<compile_context>
chip_gen: v6e
topology: v6e:2x2x1
jax: 0.10.0
libtpu: 0.0.40
codegen_flags: <defaults>
</compile_context>

<pallas_src>
import jax
import jax.numpy as jnp
from jax.experimental import pallas as pl
from jax.experimental.pallas import tpu as pltpu


# ---------------------------------------------------------------------------
# Fused kernel:
#   BN normalize -> 4x GraphConv(MeanAggregator) -> edge gather -> classifier
# ---------------------------------------------------------------------------
def fused_lgcn_kernel(x_ref, a_ref, oh_ref, mean_ref, rstd_ref,
                      w1s, w1a, b1, w2s, w2a, b2,
                      w3s, w3a, b3, w4s, w4a, b4,
                      fw1, fb1, alpha, fw2, fb2,
                      out_ref):
    BT, N, D = x_ref.shape
    k1 = oh_ref.shape[1]
    nout = out_ref.shape[-1]

    # BatchNorm1d (affine=False) normalize; stats precomputed in the wrapper.
    # Single f32 -> bf16 cast here; all later activations are carried as bf16.
    h = ((x_ref[...] - mean_ref[...]) * rstd_ref[...]).astype(jnp.bfloat16)
    h = h.reshape(BT * N, D)

    A = a_ref[...]                                            # (BT, N, N) bf16

    # Small-N path: merge the BT per-batch (N,N)@(N,d) aggregations into one
    # block-diagonal (BT*N, BT*N)@(BT*N, d) matmul for better MXU row fill.
    small_n = (N < 128) and (BT * N <= 1024)
    if small_n:
        if BT == 1:
            A_bd = A.reshape(N, N)
        else:
            A_flat = A.reshape(BT * N, N)
            A_tiled = jnp.concatenate([A_flat] * BT, axis=1)  # (BT*N, BT*N)
            ri = jax.lax.broadcasted_iota(jnp.int32, (BT * N, BT * N), 0) // N
            ci = jax.lax.broadcasted_iota(jnp.int32, (BT * N, BT * N), 1) // N
            A_bd = jnp.where(ri == ci, A_tiled, jnp.zeros_like(A_tiled))

    def layer(hflat, ws_ref, wa_ref, b_ref):
        din = hflat.shape[-1]
        if small_n:
            agg = jnp.dot(A_bd, hflat, preferred_element_type=jnp.float32)
        else:
            agg = jnp.einsum('bij,bjd->bid', A, hflat.reshape(BT, N, din),
                             preferred_element_type=jnp.float32
                             ).reshape(BT * N, din)
        # concat([h, agg]) @ W split into two MXU matmuls, f32 accumulation
        out = (jnp.dot(hflat, ws_ref[...], preferred_element_type=jnp.float32)
               + jnp.dot(agg.astype(jnp.bfloat16), wa_ref[...],
                         preferred_element_type=jnp.float32)
               + b_ref[...])
        # ReLU, then immediately drop to bf16 to halve the carried footprint.
        return jnp.maximum(out, 0.0).astype(jnp.bfloat16)

    h = layer(h, w1s, w1a, b1)
    h = layer(h, w2s, w2a, b2)
    h = layer(h, w3s, w3a, b3)
    h = layer(h, w4s, w4a, b4)                                # (BT*N, 256) bf16

    # Edge-feature gather: one-hot(one_hop_idxs) @ h on the MXU.
    edge = jnp.einsum('bkn,bnd->bkd', oh_ref[...], h.reshape(BT, N, -1),
                      preferred_element_type=jnp.float32)     # (BT, k1, 256)
    e = edge.astype(jnp.bfloat16).reshape(BT * k1, -1)

    # Fused classifier: Linear(256,256) -> PReLU(256) -> Linear(256,2).
    z = jnp.dot(e, fw1[...], preferred_element_type=jnp.float32) + fb1[...]
    z = jnp.where(z >= 0.0, z, alpha[...] * z)                # per-channel PReLU
    z2 = jnp.dot(z.astype(jnp.bfloat16), fw2[...],            # (BT*k1, 128) padded
                 preferred_element_type=jnp.float32)
    out_ref[...] = (z2[:, :nout] + fb2[...]).reshape(BT, k1, nout)


# ---------------------------------------------------------------------------
# VMEM-budget-driven tile choice
# ---------------------------------------------------------------------------
def _block_bytes(bt, N, D, k1):
    """Rough per-grid-step VMEM footprint for a candidate BT (bytes)."""
    m = bt * N
    streamed = 2 * (bt * N * D * 4          # x block (f32), double-buffered
                    + bt * N * N * 2        # A block (bf16)
                    + bt * k1 * N * 2       # one-hot block (bf16)
                    + bt * k1 * 4 * 4)      # output block (f32)
    interm = (m * 512 * 4                   # agg (f32, widest layer)
              + m * 512 * 4                 # pre-ReLU out (f32)
              + m * 512 * 2                 # carried h (bf16)
              + m * D * 4)                  # BN temp (f32)
    if N < 128 and m <= 1024:
        interm += 2 * m * m * 2             # block-diagonal A temporaries (bf16)
    return streamed + int(1.5 * interm)     # slack for fusion temps / spills


def pick_bt(B, N, D, k1, budget_bytes):
    """Largest divisor of B whose footprint fits the budget; prefer >=2 grid
    steps so v7x's two TensorCores both get work."""
    best_any, best_multi = 1, None
    for bt in range(1, B + 1):
        if B % bt:
            continue
        if _block_bytes(bt, N, D, k1) > budget_bytes:
            continue
        best_any = bt
        if B // bt >= 2:
            best_multi = bt
    return best_multi if best_multi is not None else best_any


# ---------------------------------------------------------------------------
# Wrapper around the single pallas_call
# ---------------------------------------------------------------------------
def fused_lgcn(x, A_bf16, onehot, mean, rstd, conv_args, cls_args):
    B, N, D = x.shape
    k1 = onehot.shape[1]
    nout = cls_args[-1].shape[-1]                              # fc2 bias -> 2

    resident_arrays = [mean, rstd] + list(conv_args) + list(cls_args)
    weight_bytes = sum(int(a.size) * a.dtype.itemsize for a in resident_arrays)

    # Per-generation VMEM sizing: v5e/v6e 128 MiB, v7x 64 MiB physical.
    try:
        vmem_cap = int(pltpu.get_tpu_info().vmem_capacity_bytes)
    except Exception:
        vmem_cap = 64 * 1024 * 1024
    vmem_limit = min(int(vmem_cap * 0.75), 100 * 1024 * 1024)
    vmem_limit = max(vmem_limit, 32 * 1024 * 1024)

    # Budget for the streamed blocks / intermediates: assume (worst case) the
    # resident operands end up double-buffered, plus a fixed slack.
    budget = max(vmem_limit - 2 * weight_bytes - (4 << 20), 2 << 20)
    BT = pick_bt(B, N, D, k1, budget)

    streamed_specs = [
        pl.BlockSpec((BT, N, D), lambda i: (i, 0, 0)),         # x
        pl.BlockSpec((BT, N, N), lambda i: (i, 0, 0)),         # A (bf16)
        pl.BlockSpec((BT, k1, N), lambda i: (i, 0, 0)),        # one-hot (bf16)
    ]

    def build(single_buffer_weights):
        if single_buffer_weights:
            # Constant index map -> fetched once; single buffer frees VMEM.
            def res_spec(shp):
                return pl.BlockSpec(shp, lambda i: (0, 0),
                                    pipeline_mode=pl.Buffered(1))
        else:
            def res_spec(shp):
                return pl.BlockSpec(shp, lambda i: (0, 0))
        in_specs = streamed_specs + [res_spec(a.shape) for a in resident_arrays]
        return pl.pallas_call(
            fused_lgcn_kernel,
            out_shape=jax.ShapeDtypeStruct((B, k1, nout), jnp.float32),
            grid=(B // BT,),
            in_specs=in_specs,
            out_specs=pl.BlockSpec((BT, k1, nout), lambda i: (i, 0, 0)),
            compiler_params=pltpu.CompilerParams(
                dimension_semantics=("parallel",),
                vmem_limit_bytes=vmem_limit),
        )

    args = (x, A_bf16, onehot, *resident_arrays)
    try:
        return build(True)(*args)
    except Exception:
        # Fallback: default double-buffered resident operands.
        return build(False)(*args)


# ---------------------------------------------------------------------------
# Parameter init (deterministic, mirrors the PyTorch module's shapes)
# ---------------------------------------------------------------------------
def xavier_uniform(key, shape):
    fan_in, fan_out = shape
    bound = (6.0 / (fan_in + fan_out)) ** 0.5
    return jax.random.uniform(key, shape, jnp.float32, -bound, bound)


def linear_init(key, fan_in, fan_out):
    kw, kb = jax.random.split(key)
    bound = 1.0 / (fan_in ** 0.5)
    w = jax.random.uniform(kw, (fan_in, fan_out), jnp.float32, -bound, bound)
    b = jax.random.uniform(kb, (fan_out,), jnp.float32, -bound, bound)
    return w, b


def init_params(key, feature_dim):
    keys = jax.random.split(key, 8)
    dims = [(feature_dim, 512), (512, 512), (512, 256), (256, 256)]
    params = {}
    for i, (din, dout) in enumerate(dims, start=1):
        params[f"conv{i}_w"] = xavier_uniform(keys[i - 1], (2 * din, dout))
        params[f"conv{i}_b"] = jnp.zeros((dout,), jnp.float32)
    params["fc1_w"], params["fc1_b"] = linear_init(keys[4], 256, 256)
    params["prelu_alpha"] = jnp.full((256,), 0.25, jnp.float32)
    params["fc2_w"], params["fc2_b"] = linear_init(keys[5], 256, 2)
    return params


# ---------------------------------------------------------------------------
# Full lgcn forward (extract): glue in JAX, heavy compute in ONE Pallas kernel
# ---------------------------------------------------------------------------
def lgcn_forward(params, x, A, one_hop_idxs):
    B, N, D = x.shape
    k1 = one_hop_idxs.shape[-1]

    # BatchNorm1d batch statistics (training-mode semantics): tiny XLA reduce.
    # TODO(synk): eval-mode running statistics are not modeled (no buffers).
    xf = x.reshape(-1, D)
    mean = jnp.mean(xf, axis=0, keepdims=True)
    var = jnp.mean(jnp.square(xf - mean), axis=0, keepdims=True)
    rstd = jax.lax.rsqrt(var + 1e-5)

    # One-hot gather matrix built in the wrapper (tiny), used on the MXU.
    onehot = (one_hop_idxs[:, :, None]
              == jnp.arange(N, dtype=one_hop_idxs.dtype)[None, None, :]
              ).astype(jnp.bfloat16)

    # Split each (2*Din, Dout) GraphConv weight into self/agg halves, bf16.
    conv_args = []
    for i in range(1, 5):
        w = params[f"conv{i}_w"]
        din = w.shape[0] // 2
        conv_args += [w[:din].astype(jnp.bfloat16),
                      w[din:].astype(jnp.bfloat16),
                      params[f"conv{i}_b"].reshape(1, -1)]

    # Classifier weights: fc2 padded to 128 lanes for a well-shaped MXU pass
    # (the kernel slices back to the true 2 output columns before the store).
    nout = params["fc2_w"].shape[1]
    fw2 = jnp.zeros((256, 128), jnp.float32).at[:, :nout].set(
        params["fc2_w"]).astype(jnp.bfloat16)
    cls_args = [params["fc1_w"].astype(jnp.bfloat16),
                params["fc1_b"].reshape(1, -1),
                params["prelu_alpha"].reshape(1, -1),
                fw2,
                params["fc2_b"].reshape(1, -1)]

    pred = fused_lgcn(x, A.astype(jnp.bfloat16), onehot, mean, rstd,
                      conv_args, cls_args)                     # (B, k1, 2) f32
    return pred.reshape(B * k1, nout)


# ---------------------------------------------------------------------------
# Pure-JAX f32 reference for a sanity check
# ---------------------------------------------------------------------------
def lgcn_reference(params, x, A, one_hop_idxs):
    B, N, D = x.shape
    xf = x.reshape(-1, D)
    mean = jnp.mean(xf, axis=0, keepdims=True)
    var = jnp.mean((xf - mean) ** 2, axis=0, keepdims=True)
    h = ((xf - mean) / jnp.sqrt(var + 1e-5)).reshape(B, N, D)
    for i in range(1, 5):
        agg = jnp.einsum("bij,bjd->bid", A, h)
        cat = jnp.concatenate([h, agg], axis=-1)
        h = jax.nn.relu(jnp.einsum("bnd,df->bnf", cat, params[f"conv{i}_w"])
                        + params[f"conv{i}_b"])
    ef = jax.vmap(lambda hb, idx: hb[idx])(h, one_hop_idxs).reshape(-1, h.shape[-1])
    z = ef @ params["fc1_w"] + params["fc1_b"]
    z = jnp.where(z >= 0, z, params["prelu_alpha"] * z)
    return z @ params["fc2_w"] + params["fc2_b"]


if __name__ == "__main__":
    B, N, feature_dim, k1 = 2, 16, 32, 8

    key = jax.random.PRNGKey(0)
    kx, kA, kidx, kp = jax.random.split(key, 4)

    x = jax.random.normal(kx, (B, N, feature_dim), jnp.float32)
    # row-normalized adjacency (mean aggregation semantics)
    A_raw = jax.random.uniform(kA, (B, N, N), jnp.float32)
    A = A_raw / jnp.sum(A_raw, axis=-1, keepdims=True)
    one_hop_idxs = jax.random.randint(kidx, (B, k1), 0, N)

    params = init_params(kp, feature_dim)

    pred = jax.block_until_ready(lgcn_forward(params, x, A, one_hop_idxs))
    ref = jax.block_until_ready(lgcn_reference(params, x, A, one_hop_idxs))

    assert pred.shape == (B * k1, 2)
    # bf16 MXU operands vs f32 reference -> looser tolerance
    assert jnp.allclose(pred, ref, atol=5e-2, rtol=5e-2), \
        float(jnp.max(jnp.abs(pred - ref)))
    print("KERNEL_OK")
</pallas_src>

<mosaic_0001>
module attributes {stable_mosaic.version = 11 : i64} {
  func.func @fused_lgcn_kernel(%arg0: i32, %arg1: memref<1x16x32xf32, #tpu.memory_space<vmem>>, %arg2: memref<1x16x16xbf16, #tpu.memory_space<vmem>>, %arg3: memref<1x8x16xbf16, #tpu.memory_space<vmem>>, %arg4: memref<1x32xf32, #tpu.memory_space<vmem>>, %arg5: memref<1x32xf32, #tpu.memory_space<vmem>>, %arg6: memref<32x512xbf16, #tpu.memory_space<vmem>>, %arg7: memref<32x512xbf16, #tpu.memory_space<vmem>>, %arg8: memref<1x512xf32, #tpu.memory_space<vmem>>, %arg9: memref<512x512xbf16, #tpu.memory_space<vmem>>, %arg10: memref<512x512xbf16, #tpu.memory_space<vmem>>, %arg11: memref<1x512xf32, #tpu.memory_space<vmem>>, %arg12: memref<512x256xbf16, #tpu.memory_space<vmem>>, %arg13: memref<512x256xbf16, #tpu.memory_space<vmem>>, %arg14: memref<1x256xf32, #tpu.memory_space<vmem>>, %arg15: memref<256x256xbf16, #tpu.memory_space<vmem>>, %arg16: memref<256x256xbf16, #tpu.memory_space<vmem>>, %arg17: memref<1x256xf32, #tpu.memory_space<vmem>>, %arg18: memref<256x256xbf16, #tpu.memory_space<vmem>>, %arg19: memref<1x256xf32, #tpu.memory_space<vmem>>, %arg20: memref<1x256xf32, #tpu.memory_space<vmem>>, %arg21: memref<256x128xbf16, #tpu.memory_space<vmem>>, %arg22: memref<1x2xf32, #tpu.memory_space<vmem>>, %arg23: memref<1x8x2xf32, #tpu.memory_space<vmem>>) attributes {dimension_semantics = [#tpu.dimension_semantics<parallel>], iteration_bounds = array<i64: 2>, scalar_prefetch = 0 : i64, scratch_operands = 0 : i64, tpu.core_type = #tpu.core_type<tc>, window_params = [{transform_indices = @transform_0, window_bounds = array<i64: 1, 16, 32>}, {transform_indices = @transform_1, window_bounds = array<i64: 1, 16, 16>}, {transform_indices = @transform_2, window_bounds = array<i64: 1, 8, 16>}, {pipeline_mode = #tpu.pipeline_mode<synchronous>, transform_indices = @transform_3, window_bounds = array<i64: 1, 32>}, {pipeline_mode = #tpu.pipeline_mode<synchronous>, transform_indices = @transform_4, window_bounds = array<i64: 1, 32>}, {pipeline_mode = #tpu.pipeline_mode<synchronous>, transform_indices = @transform_5, window_bounds = array<i64: 32, 512>}, {pipeline_mode = #tpu.pipeline_mode<synchronous>, transform_indices = @transform_6, window_bounds = array<i64: 32, 512>}, {pipeline_mode = #tpu.pipeline_mode<synchronous>, transform_indices = @transform_7, window_bounds = array<i64: 1, 512>}, {pipeline_mode = #tpu.pipeline_mode<synchronous>, transform_indices = @transform_8, window_bounds = array<i64: 512, 512>}, {pipeline_mode = #tpu.pipeline_mode<synchronous>, transform_indices = @transform_9, window_bounds = array<i64: 512, 512>}, {pipeline_mode = #tpu.pipeline_mode<synchronous>, transform_indices = @transform_10, window_bounds = array<i64: 1, 512>}, {pipeline_mode = #tpu.pipeline_mode<synchronous>, transform_indices = @transform_11, window_bounds = array<i64: 512, 256>}, {pipeline_mode = #tpu.pipeline_mode<synchronous>, transform_indices = @transform_12, window_bounds = array<i64: 512, 256>}, {pipeline_mode = #tpu.pipeline_mode<synchronous>, transform_indices = @transform_13, window_bounds = array<i64: 1, 256>}, {pipeline_mode = #tpu.pipeline_mode<synchronous>, transform_indices = @transform_14, window_bounds = array<i64: 256, 256>}, {pipeline_mode = #tpu.pipeline_mode<synchronous>, transform_indices = @transform_15, window_bounds = array<i64: 256, 256>}, {pipeline_mode = #tpu.pipeline_mode<synchronous>, transform_indices = @transform_16, window_bounds = array<i64: 1, 256>}, {pipeline_mode = #tpu.pipeline_mode<synchronous>, transform_indices = @transform_17, window_bounds = array<i64: 256, 256>}, {pipeline_mode = #tpu.pipeline_mode<synchronous>, transform_indices = @transform_18, window_bounds = array<i64: 1, 256>}, {pipeline_mode = #tpu.pipeline_mode<synchronous>, transform_indices = @transform_19, window_bounds = array<i64: 1, 256>}, {pipeline_mode = #tpu.pipeline_mode<synchronous>, transform_indices = @transform_20, window_bounds = array<i64: 256, 128>}, {pipeline_mode = #tpu.pipeline_mode<synchronous>, transform_indices = @transform_21, window_bounds = array<i64: 1, 2>}, {transform_indices = @transform_22, window_bounds = array<i64: 1, 8, 2>}]} {
    %c0 = arith.constant 0 : index
    %c0_0 = arith.constant 0 : index
    %c0_1 = arith.constant 0 : index
    %0 = vector.load %arg1[%c0, %c0_0, %c0_1] : memref<1x16x32xf32, #tpu.memory_space<vmem>>, vector<1x16x32xf32>
    %c0_2 = arith.constant 0 : index
    %c0_3 = arith.constant 0 : index
    %1 = vector.load %arg4[%c0_2, %c0_3] : memref<1x32xf32, #tpu.memory_space<vmem>>, vector<1x32xf32>
    %2 = vector.shape_cast %1 : vector<1x32xf32> to vector<1x1x32xf32>
    %3 = vector.broadcast %2 : vector<1x1x32xf32> to vector<1x16x32xf32>
    %4 = arith.subf %0, %3 : vector<1x16x32xf32>
    %c0_4 = arith.constant 0 : index
    %c0_5 = arith.constant 0 : index
    %5 = vector.load %arg5[%c0_4, %c0_5] : memref<1x32xf32, #tpu.memory_space<vmem>>, vector<1x32xf32>
    %6 = vector.shape_cast %5 : vector<1x32xf32> to vector<1x1x32xf32>
    %7 = vector.broadcast %6 : vector<1x1x32xf32> to vector<1x16x32xf32>
    %8 = arith.mulf %4, %7 : vector<1x16x32xf32>
    %9 = arith.truncf %8 : vector<1x16x32xf32> to vector<1x16x32xbf16>
    %10 = vector.shape_cast %9 : vector<1x16x32xbf16> to vector<16x32xbf16>
    %c0_6 = arith.constant 0 : index
    %c0_7 = arith.constant 0 : index
    %c0_8 = arith.constant 0 : index
    %11 = vector.load %arg2[%c0_6, %c0_7, %c0_8] : memref<1x16x16xbf16, #tpu.memory_space<vmem>>, vector<1x16x16xbf16>
    %12 = vector.shape_cast %11 : vector<1x16x16xbf16> to vector<16x16xbf16>
    %cst = arith.constant dense<0.000000e+00> : vector<16x32xf32>
    %13 = tpu.matmul %12, %10, %cst {dimension_numbers = #tpu.dot_dimension_numbers<[1], [0], [0], [1], [0, 0, 1, 1], [], []>} : vector<16x16xbf16>, vector<16x32xbf16>, vector<16x32xf32> -> vector<16x32xf32>
    %c0_9 = arith.constant 0 : index
    %c0_10 = arith.constant 0 : index
    %14 = vector.load %arg6[%c0_9, %c0_10] : memref<32x512xbf16, #tpu.memory_space<vmem>>, vector<32x512xbf16>
    %cst_11 = arith.constant dense<0.000000e+00> : vector<16x512xf32>
    %15 = tpu.matmul %10, %14, %cst_11 {dimension_numbers = #tpu.dot_dimension_numbers<[1], [0], [0], [1], [0, 0, 1, 1], [], []>} : vector<16x32xbf16>, vector<32x512xbf16>, vector<16x512xf32> -> vector<16x512xf32>
    %16 = arith.truncf %13 : vector<16x32xf32> to vector<16x32xbf16>
    %c0_12 = arith.constant 0 : index
    %c0_13 = arith.constant 0 : index
    %17 = vector.load %arg7[%c0_12, %c0_13] : memref<32x512xbf16, #tpu.memory_space<vmem>>, vector<32x512xbf16>
    %cst_14 = arith.constant dense<0.000000e+00> : vector<16x512xf32>
    %18 = tpu.matmul %16, %17, %cst_14 {dimension_numbers = #tpu.dot_dimension_numbers<[1], [0], [0], [1], [0, 0, 1, 1], [], []>} : vector<16x32xbf16>, vector<32x512xbf16>, vector<16x512xf32> -> vector<16x512xf32>
    %19 = arith.addf %15, %18 : vector<16x512xf32>
    %c0_15 = arith.constant 0 : index
    %c0_16 = arith.constant 0 : index
    %20 = vector.load %arg8[%c0_15, %c0_16] : memref<1x512xf32, #tpu.memory_space<vmem>>, vector<1x512xf32>
    %21 = vector.broadcast %20 : vector<1x512xf32> to vector<16x512xf32>
    %22 = arith.addf %19, %21 : vector<16x512xf32>
    %cst_17 = arith.constant 0.000000e+00 : f32
    %23 = vector.broadcast %cst_17 : f32 to vector<16x512xf32>
    %24 = arith.maximumf %22, %23 : vector<16x512xf32>
    %25 = arith.truncf %24 : vector<16x512xf32> to vector<16x512xbf16>
    %cst_18 = arith.constant dense<0.000000e+00> : vector<16x512xf32>
    %26 = tpu.matmul %12, %25, %cst_18 {dimension_numbers = #tpu.dot_dimension_numbers<[1], [0], [0], [1], [0, 0, 1, 1], [], []>} : vector<16x16xbf16>, vector<16x512xbf16>, vector<16x512xf32> -> vector<16x512xf32>
    %c0_19 = arith.constant 0 : index
    %c0_20 = arith.constant 0 : index
    %27 = vector.load %arg9[%c0_19, %c0_20] : memref<512x512xbf16, #tpu.memory_space<vmem>>, vector<512x512xbf16>
    %cst_21 = arith.constant dense<0.000000e+00> : vector<16x512xf32>
    %28 = tpu.matmul %25, %27, %cst_21 {dimension_numbers = #tpu.dot_dimension_numbers<[1], [0], [0], [1], [0, 0, 1, 1], [], []>} : vector<16x512xbf16>, vector<512x512xbf16>, vector<16x512xf32> -> vector<16x512xf32>
    %29 = arith.truncf %26 : vector<16x512xf32> to vector<16x512xbf16>
    %c0_22 = arith.constant 0 : index
    %c0_23 = arith.constant 0 : index
    %30 = vector.load %arg10[%c0_22, %c0_23] : memref<512x512xbf16, #tpu.memory_space<vmem>>, vector<512x512xbf16>
    %cst_24 = arith.constant dense<0.000000e+00> : vector<16x512xf32>
    %31 = tpu.matmul %29, %30, %cst_24 {dimension_numbers = #tpu.dot_dimension_numbers<[1], [0], [0], [1], [0, 0, 1, 1], [], []>} : vector<16x512xbf16>, vector<512x512xbf16>, vector<16x512xf32> -> vector<16x512xf32>
    %32 = arith.addf %28, %31 : vector<16x512xf32>
    %c0_25 = arith.constant 0 : index
    %c0_26 = arith.constant 0 : index
    %33 = vector.load %arg11[%c0_25, %c0_26] : memref<1x512xf32, #tpu.memory_space<vmem>>, vector<1x512xf32>
    %34 = vector.broadcast %33 : vector<1x512xf32> to vector<16x512xf32>
    %35 = arith.addf %32, %34 : vector<16x512xf32>
    %cst_27 = arith.constant 0.000000e+00 : f32
    %36 = vector.broadcast %cst_27 : f32 to vector<16x512xf32>
    %37 = arith.maximumf %35, %36 : vector<16x512xf32>
    %38 = arith.truncf %37 : vector<16x512xf32> to vector<16x512xbf16>
    %cst_28 = arith.constant dense<0.000000e+00> : vector<16x512xf32>
    %39 = tpu.matmul %12, %38, %cst_28 {dimension_numbers = #tpu.dot_dimension_numbers<[1], [0], [0], [1], [0, 0, 1, 1], [], []>} : vector<16x16xbf16>, vector<16x512xbf16>, vector<16x512xf32> -> vector<16x512xf32>
    %c0_29 = arith.constant 0 : index
    %c0_30 = arith.constant 0 : index
    %40 = vector.load %arg12[%c0_29, %c0_30] : memref<512x256xbf16, #tpu.memory_space<vmem>>, vector<512x256xbf16>
    %cst_31 = arith.constant dense<0.000000e+00> : vector<16x256xf32>
    %41 = tpu.matmul %38, %40, %cst_31 {dimension_numbers = #tpu.dot_dimension_numbers<[1], [0], [0], [1], [0, 0, 1, 1], [], []>} : vector<16x512xbf16>, vector<512x256xbf16>, vector<16x256xf32> -> vector<16x256xf32>
    %42 = arith.truncf %39 : vector<16x512xf32> to vector<16x512xbf16>
    %c0_32 = arith.constant 0 : index
    %c0_33 = arith.constant 0 : index
    %43 = vector.load %arg13[%c0_32, %c0_33] : memref<512x256xbf16, #tpu.memory_space<vmem>>, vector<512x256xbf16>
    %cst_34 = arith.constant dense<0.000000e+00> : vector<16x256xf32>
    %44 = tpu.matmul %42, %43, %cst_34 {dimension_numbers = #tpu.dot_dimension_numbers<[1], [0], [0], [1], [0, 0, 1, 1], [], []>} : vector<16x512xbf16>, vector<512x256xbf16>, vector<16x256xf32> -> vector<16x256xf32>
    %45 = arith.addf %41, %44 : vector<16x256xf32>
    %c0_35 = arith.constant 0 : index
    %c0_36 = arith.constant 0 : index
    %46 = vector.load %arg14[%c0_35, %c0_36] : memref<1x256xf32, #tpu.memory_space<vmem>>, vector<1x256xf32>
    %47 = vector.broadcast %46 : vector<1x256xf32> to vector<16x256xf32>
    %48 = arith.addf %45, %47 : vector<16x256xf32>
    %cst_37 = arith.constant 0.000000e+00 : f32
    %49 = vector.broadcast %cst_37 : f32 to vector<16x256xf32>
    %50 = arith.maximumf %48, %49 : vector<16x256xf32>
    %51 = arith.truncf %50 : vector<16x256xf32> to vector<16x256xbf16>
    %cst_38 = arith.constant dense<0.000000e+00> : vector<16x256xf32>
    %52 = tpu.matmul %12, %51, %cst_38 {dimension_numbers = #tpu.dot_dimension_numbers<[1], [0], [0], [1], [0, 0, 1, 1], [], []>} : vector<16x16xbf16>, vector<16x256xbf16>, vector<16x256xf32> -> vector<16x256xf32>
    %c0_39 = arith.constant 0 : index
    %c0_40 = arith.constant 0 : index
    %53 = vector.load %arg15[%c0_39, %c0_40] : memref<256x256xbf16, #tpu.memory_space<vmem>>, vector<256x256xbf16>
    %cst_41 = arith.constant dense<0.000000e+00> : vector<16x256xf32>
    %54 = tpu.matmul %51, %53, %cst_41 {dimension_numbers = #tpu.dot_dimension_numbers<[1], [0], [0], [1], [0, 0, 1, 1], [], []>} : vector<16x256xbf16>, vector<256x256xbf16>, vector<16x256xf32> -> vector<16x256xf32>
    %55 = arith.truncf %52 : vector<16x256xf32> to vector<16x256xbf16>
    %c0_42 = arith.constant 0 : index
    %c0_43 = arith.constant 0 : index
    %56 = vector.load %arg16[%c0_42, %c0_43] : memref<256x256xbf16, #tpu.memory_space<vmem>>, vector<256x256xbf16>
    %cst_44 = arith.constant dense<0.000000e+00> : vector<16x256xf32>
    %57 = tpu.matmul %55, %56, %cst_44 {dimension_numbers = #tpu.dot_dimension_numbers<[1], [0], [0], [1], [0, 0, 1, 1], [], []>} : vector<16x256xbf16>, vector<256x256xbf16>, vector<16x256xf32> -> vector<16x256xf32>
    %58 = arith.addf %54, %57 : vector<16x256xf32>
    %c0_45 = arith.constant 0 : index
    %c0_46 = arith.constant 0 : index
    %59 = vector.load %arg17[%c0_45, %c0_46] : memref<1x256xf32, #tpu.memory_space<vmem>>, vector<1x256xf32>
    %60 = vector.broadcast %59 : vector<1x256xf32> to vector<16x256xf32>
    %61 = arith.addf %58, %60 : vector<16x256xf32>
    %cst_47 = arith.constant 0.000000e+00 : f32
    %62 = vector.broadcast %cst_47 : f32 to vector<16x256xf32>
    %63 = arith.maximumf %61, %62 : vector<16x256xf32>
    %64 = arith.truncf %63 : vector<16x256xf32> to vector<16x256xbf16>
    %c0_48 = arith.constant 0 : index
    %c0_49 = arith.constant 0 : index
    %c0_50 = arith.constant 0 : index
    %65 = vector.load %arg3[%c0_48, %c0_49, %c0_50] : memref<1x8x16xbf16, #tpu.memory_space<vmem>>, vector<1x8x16xbf16>
    %66 = vector.shape_cast %64 : vector<16x256xbf16> to vector<1x16x256xbf16>
    "tpu.trace_start"() <{level = 10 : i32, message = "bkn,bnd->bkd"}> : () -> ()
    %cst_51 = arith.constant dense<0.000000e+00> : vector<1x8x256xf32>
    %67 = tpu.matmul %65, %66, %cst_51 {dimension_numbers = #tpu.dot_dimension_numbers<[2], [1], [1], [2], [0, 0, 0, 1, 1, 2], [0], [0]>} : vector<1x8x16xbf16>, vector<1x16x256xbf16>, vector<1x8x256xf32> -> vector<1x8x256xf32>
    "tpu.trace_stop"() : () -> ()
    %68 = arith.truncf %67 : vector<1x8x256xf32> to vector<1x8x256xbf16>
    %69 = vector.shape_cast %68 : vector<1x8x256xbf16> to vector<8x256xbf16>
    %c0_52 = arith.constant 0 : index
    %c0_53 = arith.constant 0 : index
    %70 = vector.load %arg18[%c0_52, %c0_53] : memref<256x256xbf16, #tpu.memory_space<vmem>>, vector<256x256xbf16>
    %cst_54 = arith.constant dense<0.000000e+00> : vector<8x256xf32>
    %71 = tpu.matmul %69, %70, %cst_54 {dimension_numbers = #tpu.dot_dimension_numbers<[1], [0], [0], [1], [0, 0, 1, 1], [], []>} : vector<8x256xbf16>, vector<256x256xbf16>, vector<8x256xf32> -> vector<8x256xf32>
    %c0_55 = arith.constant 0 : index
    %c0_56 = arith.constant 0 : index
    %72 = vector.load %arg19[%c0_55, %c0_56] : memref<1x256xf32, #tpu.memory_space<vmem>>, vector<1x256xf32>
    %73 = vector.broadcast %72 : vector<1x256xf32> to vector<8x256xf32>
    %74 = arith.addf %71, %73 : vector<8x256xf32>
    %cst_57 = arith.constant 0.000000e+00 : f32
    %75 = vector.broadcast %cst_57 : f32 to vector<8x256xf32>
    %76 = arith.cmpf oge, %74, %75 : vector<8x256xf32>
    %c0_58 = arith.constant 0 : index
    %c0_59 = arith.constant 0 : index
    %77 = vector.load %arg20[%c0_58, %c0_59] : memref<1x256xf32, #tpu.memory_space<vmem>>, vector<1x256xf32>
    %78 = vector.broadcast %77 : vector<1x256xf32> to vector<8x256xf32>
    %79 = arith.mulf %78, %74 : vector<8x256xf32>
    %80 = arith.select %76, %74, %79 : vector<8x256xi1>, vector<8x256xf32>
    %81 = arith.truncf %80 : vector<8x256xf32> to vector<8x256xbf16>
    %c0_60 = arith.constant 0 : index
    %c0_61 = arith.constant 0 : index
    %82 = vector.load %arg21[%c0_60, %c0_61] : memref<256x128xbf16, #tpu.memory_space<vmem>>, vector<256x128xbf16>
    %cst_62 = arith.constant dense<0.000000e+00> : vector<8x128xf32>
    %83 = tpu.matmul %81, %82, %cst_62 {dimension_numbers = #tpu.dot_dimension_numbers<[1], [0], [0], [1], [0, 0, 1, 1], [], []>} : vector<8x256xbf16>, vector<256x128xbf16>, vector<8x128xf32> -> vector<8x128xf32>
    %84 = vector.extract_strided_slice %83 {offsets = [0, 0], sizes = [8, 2], strides = [1, 1]} : vector<8x128xf32> to vector<8x2xf32>
    %c0_63 = arith.constant 0 : index
    %c0_64 = arith.constant 0 : index
    %85 = vector.load %arg22[%c0_63, %c0_64] : memref<1x2xf32, #tpu.memory_space<vmem>>, vector<1x2xf32>
    %86 = vector.broadcast %85 : vector<1x2xf32> to vector<8x2xf32>
    %87 = arith.addf %84, %86 : vector<8x2xf32>
    %88 = vector.shape_cast %87 : vector<8x2xf32> to vector<1x8x2xf32>
    %c0_65 = arith.constant 0 : index
    %c0_66 = arith.constant 0 : index
    %c0_67 = arith.constant 0 : index
    %89 = vector.load %arg23[%c0_65, %c0_66, %c0_67] : memref<1x8x2xf32, #tpu.memory_space<vmem>>, vector<1x8x2xf32>
    tpu.vector_store %arg23[%c0_65, %c0_66, %c0_67], %88 {strides = array<i32>} : memref<1x8x2xf32, #tpu.memory_space<vmem>>, vector<1x8x2xf32>,
    return
  }
  func.func @transform_0(%arg0: i32) -> (i32, i32, i32) {
    %c0_i32 = arith.constant 0 : i32
    %c0_i32_0 = arith.constant 0 : i32
    %c0_i32_1 = arith.constant 0 : i32
    return %arg0, %c0_i32, %c0_i32_0 : i32, i32, i32
  }
  func.func @transform_1(%arg0: i32) -> (i32, i32, i32) {
    %c0_i32 = arith.constant 0 : i32
    %c0_i32_0 = arith.constant 0 : i32
    %c0_i32_1 = arith.constant 0 : i32
    return %arg0, %c0_i32, %c0_i32_0 : i32, i32, i32
  }
  func.func @transform_2(%arg0: i32) -> (i32, i32, i32) {
    %c0_i32 = arith.constant 0 : i32
    %c0_i32_0 = arith.constant 0 : i32
    %c0_i32_1 = arith.constant 0 : i32
    return %arg0, %c0_i32, %c0_i32_0 : i32, i32, i32
  }
  func.func @transform_3(%arg0: i32) -> (i32, i32) {
    %c0_i32 = arith.constant 0 : i32
    %c0_i32_0 = arith.constant 0 : i32
    %c0_i32_1 = arith.constant 0 : i32
    return %c0_i32, %c0_i32_0 : i32, i32
  }
  func.func @transform_4(%arg0: i32) -> (i32, i32) {
    %c0_i32 = arith.constant 0 : i32
    %c0_i32_0 = arith.constant 0 : i32
    %c0_i32_1 = arith.constant 0 : i32
    return %c0_i32, %c0_i32_0 : i32, i32
  }
  func.func @transform_5(%arg0: i32) -> (i32, i32) {
    %c0_i32 = arith.constant 0 : i32
    %c0_i32_0 = arith.constant 0 : i32
    %c0_i32_1 = arith.constant 0 : i32
    return %c0_i32, %c0_i32_0 : i32, i32
  }
  func.func @transform_6(%arg0: i32) -> (i32, i32) {
    %c0_i32 = arith.constant 0 : i32
    %c0_i32_0 = arith.constant 0 : i32
    %c0_i32_1 = arith.constant 0 : i32
    return %c0_i32, %c0_i32_0 : i32, i32
  }
  func.func @transform_7(%arg0: i32) -> (i32, i32) {
    %c0_i32 = arith.constant 0 : i32
    %c0_i32_0 = arith.constant 0 : i32
    %c0_i32_1 = arith.constant 0 : i32
    return %c0_i32, %c0_i32_0 : i32, i32
  }
  func.func @transform_8(%arg0: i32) -> (i32, i32) {
    %c0_i32 = arith.constant 0 : i32
    %c0_i32_0 = arith.constant 0 : i32
    %c0_i32_1 = arith.constant 0 : i32
    return %c0_i32, %c0_i32_0 : i32, i32
  }
  func.func @transform_9(%arg0: i32) -> (i32, i32) {
    %c0_i32 = arith.constant 0 : i32
    %c0_i32_0 = arith.constant 0 : i32
    %c0_i32_1 = arith.constant 0 : i32
    return %c0_i32, %c0_i32_0 : i32, i32
  }
  func.func @transform_10(%arg0: i32) -> (i32, i32) {
    %c0_i32 = arith.constant 0 : i32
    %c0_i32_0 = arith.constant 0 : i32
    %c0_i32_1 = arith.constant 0 : i32
    return %c0_i32, %c0_i32_0 : i32, i32
  }
  func.func @transform_11(%arg0: i32) -> (i32, i32) {
    %c0_i32 = arith.constant 0 : i32
    %c0_i32_0 = arith.constant 0 : i32
    %c0_i32_1 = arith.constant 0 : i32
    return %c0_i32, %c0_i32_0 : i32, i32
  }
  func.func @transform_12(%arg0: i32) -> (i32, i32) {
    %c0_i32 = arith.constant 0 : i32
    %c0_i32_0 = arith.constant 0 : i32
    %c0_i32_1 = arith.constant 0 : i32
    return %c0_i32, %c0_i32_0 : i32, i32
  }
  func.func @transform_13(%arg0: i32) -> (i32, i32) {
    %c0_i32 = arith.constant 0 : i32
    %c0_i32_0 = arith.constant 0 : i32
    %c0_i32_1 = arith.constant 0 : i32
    return %c0_i32, %c0_i32_0 : i32, i32
  }
  func.func @transform_14(%arg0: i32) -> (i32, i32) {
    %c0_i32 = arith.constant 0 : i32
    %c0_i32_0 = arith.constant 0 : i32
    %c0_i32_1 = arith.constant 0 : i32
    return %c0_i32, %c0_i32_0 : i32, i32
  }
  func.func @transform_15(%arg0: i32) -> (i32, i32) {
    %c0_i32 = arith.constant 0 : i32
    %c0_i32_0 = arith.constant 0 : i32
    %c0_i32_1 = arith.constant 0 : i32
    return %c0_i32, %c0_i32_0 : i32, i32
  }
  func.func @transform_16(%arg0: i32) -> (i32, i32) {
    %c0_i32 = arith.constant 0 : i32
    %c0_i32_0 = arith.constant 0 : i32
    %c0_i32_1 = arith.constant 0 : i32
    return %c0_i32, %c0_i32_0 : i32, i32
  }
  func.func @transform_17(%arg0: i32) -> (i32, i32) {
    %c0_i32 = arith.constant 0 : i32
    %c0_i32_0 = arith.constant 0 : i32
    %c0_i32_1 = arith.constant 0 : i32
    return %c0_i32, %c0_i32_0 : i32, i32
  }
  func.func @transform_18(%arg0: i32) -> (i32, i32) {
    %c0_i32 = arith.constant 0 : i32
    %c0_i32_0 = arith.constant 0 : i32
    %c0_i32_1 = arith.constant 0 : i32
    return %c0_i32, %c0_i32_0 : i32, i32
  }
  func.func @transform_19(%arg0: i32) -> (i32, i32) {
    %c0_i32 = arith.constant 0 : i32
    %c0_i32_0 = arith.constant 0 : i32
    %c0_i32_1 = arith.constant 0 : i32
    return %c0_i32, %c0_i32_0 : i32, i32
  }
  func.func @transform_20(%arg0: i32) -> (i32, i32) {
    %c0_i32 = arith.constant 0 : i32
    %c0_i32_0 = arith.constant 0 : i32
    %c0_i32_1 = arith.constant 0 : i32
    return %c0_i32, %c0_i32_0 : i32, i32
  }
  func.func @transform_21(%arg0: i32) -> (i32, i32) {
    %c0_i32 = arith.constant 0 : i32
    %c0_i32_0 = arith.constant 0 : i32
    %c0_i32_1 = arith.constant 0 : i32
    return %c0_i32, %c0_i32_0 : i32, i32
  }
  func.func @transform_22(%arg0: i32) -> (i32, i32, i32) {
    %c0_i32 = arith.constant 0 : i32
    %c0_i32_0 = arith.constant 0 : i32
    %c0_i32_1 = arith.constant 0 : i32
    return %arg0, %c0_i32, %c0_i32_0 : i32, i32, i32
  }
}

module attributes {stable_mosaic.version = 11 : i64} {
  func.func @fused_lgcn_kernel(%arg0: i32, %arg1: memref<1x16x32xf32, #tpu.memory_space<vmem>>, %arg2: memref<1x16x16xbf16, #tpu.memory_space<vmem>>, %arg3: memref<1x8x16xbf16, #tpu.memory_space<vmem>>, %arg4: memref<1x32xf32, #tpu.memory_space<vmem>>, %arg5: memref<1x32xf32, #tpu.memory_space<vmem>>, %arg6: memref<32x512xbf16, #tpu.memory_space<vmem>>, %arg7: memref<32x512xbf16, #tpu.memory_space<vmem>>, %arg8: memref<1x512xf32, #tpu.memory_space<vmem>>, %arg9: memref<512x512xbf16, #tpu.memory_space<vmem>>, %arg10: memref<512x512xbf16, #tpu.memory_space<vmem>>, %arg11: memref<1x512xf32, #tpu.memory_space<vmem>>, %arg12: memref<512x256xbf16, #tpu.memory_space<vmem>>, %arg13: memref<512x256xbf16, #tpu.memory_space<vmem>>, %arg14: memref<1x256xf32, #tpu.memory_space<vmem>>, %arg15: memref<256x256xbf16, #tpu.memory_space<vmem>>, %arg16: memref<256x256xbf16, #tpu.memory_space<vmem>>, %arg17: memref<1x256xf32, #tpu.memory_space<vmem>>, %arg18: memref<256x256xbf16, #tpu.memory_space<vmem>>, %arg19: memref<1x256xf32, #tpu.memory_space<vmem>>, %arg20: memref<1x256xf32, #tpu.memory_space<vmem>>, %arg21: memref<256x128xbf16, #tpu.memory_space<vmem>>, %arg22: memref<1x2xf32, #tpu.memory_space<vmem>>, %arg23: memref<1x8x2xf32, #tpu.memory_space<vmem>>) attributes {dimension_semantics = [#tpu.dimension_semantics<parallel>], iteration_bounds = array<i64: 2>, scalar_prefetch = 0 : i64, scratch_operands = 0 : i64, tpu.core_type = #tpu.core_type<tc>, window_params = [{transform_indices = @transform_0, window_bounds = array<i64: 1, 16, 32>}, {transform_indices = @transform_1, window_bounds = array<i64: 1, 16, 16>}, {transform_indices = @transform_2, window_bounds = array<i64: 1, 8, 16>}, {pipeline_mode = #tpu.pipeline_mode<synchronous>, transform_indices = @transform_3, window_bounds = array<i64: 1, 32>}, {pipeline_mode = #tpu.pipeline_mode<synchronous>, transform_indices = @transform_4, window_bounds = array<i64: 1, 32>}, {pipeline_mode = #tpu.pipeline_mode<synchronous>, transform_indices = @transform_5, window_bounds = array<i64: 32, 512>}, {pipeline_mode = #tpu.pipeline_mode<synchronous>, transform_indices = @transform_6, window_bounds = array<i64: 32, 512>}, {pipeline_mode = #tpu.pipeline_mode<synchronous>, transform_indices = @transform_7, window_bounds = array<i64: 1, 512>}, {pipeline_mode = #tpu.pipeline_mode<synchronous>, transform_indices = @transform_8, window_bounds = array<i64: 512, 512>}, {pipeline_mode = #tpu.pipeline_mode<synchronous>, transform_indices = @transform_9, window_bounds = array<i64: 512, 512>}, {pipeline_mode = #tpu.pipeline_mode<synchronous>, transform_indices = @transform_10, window_bounds = array<i64: 1, 512>}, {pipeline_mode = #tpu.pipeline_mode<synchronous>, transform_indices = @transform_11, window_bounds = array<i64: 512, 256>}, {pipeline_mode = #tpu.pipeline_mode<synchronous>, transform_indices = @transform_12, window_bounds = array<i64: 512, 256>}, {pipeline_mode = #tpu.pipeline_mode<synchronous>, transform_indices = @transform_13, window_bounds = array<i64: 1, 256>}, {pipeline_mode = #tpu.pipeline_mode<synchronous>, transform_indices = @transform_14, window_bounds = array<i64: 256, 256>}, {pipeline_mode = #tpu.pipeline_mode<synchronous>, transform_indices = @transform_15, window_bounds = array<i64: 256, 256>}, {pipeline_mode = #tpu.pipeline_mode<synchronous>, transform_indices = @transform_16, window_bounds = array<i64: 1, 256>}, {pipeline_mode = #tpu.pipeline_mode<synchronous>, transform_indices = @transform_17, window_bounds = array<i64: 256, 256>}, {pipeline_mode = #tpu.pipeline_mode<synchronous>, transform_indices = @transform_18, window_bounds = array<i64: 1, 256>}, {pipeline_mode = #tpu.pipeline_mode<synchronous>, transform_indices = @transform_19, window_bounds = array<i64: 1, 256>}, {pipeline_mode = #tpu.pipeline_mode<synchronous>, transform_indices = @transform_20, window_bounds = array<i64: 256, 128>}, {pipeline_mode = #tpu.pipeline_mode<synchronous>, transform_indices = @transform_21, window_bounds = array<i64: 1, 2>}, {transform_indices = @transform_22, window_bounds = array<i64: 1, 8, 2>}]} {
    %c0 = arith.constant 0 : index
    %c0_0 = arith.constant 0 : index
    %c0_1 = arith.constant 0 : index
    %0 = vector.load %arg1[%c0, %c0_0, %c0_1] : memref<1x16x32xf32, #tpu.memory_space<vmem>>, vector<1x16x32xf32>
    %c0_2 = arith.constant 0 : index
    %c0_3 = arith.constant 0 : index
    %1 = vector.load %arg4[%c0_2, %c0_3] : memref<1x32xf32, #tpu.memory_space<vmem>>, vector<1x32xf32>
    %2 = vector.shape_cast %1 : vector<1x32xf32> to vector<1x1x32xf32>
    %3 = vector.broadcast %2 : vector<1x1x32xf32> to vector<1x16x32xf32>
    %4 = arith.subf %0, %3 : vector<1x16x32xf32>
    %c0_4 = arith.constant 0 : index
    %c0_5 = arith.constant 0 : index
    %5 = vector.load %arg5[%c0_4, %c0_5] : memref<1x32xf32, #tpu.memory_space<vmem>>, vector<1x32xf32>
    %6 = vector.shape_cast %5 : vector<1x32xf32> to vector<1x1x32xf32>
    %7 = vector.broadcast %6 : vector<1x1x32xf32> to vector<1x16x32xf32>
    %8 = arith.mulf %4, %7 : vector<1x16x32xf32>
    %9 = arith.truncf %8 : vector<1x16x32xf32> to vector<1x16x32xbf16>
    %10 = vector.shape_cast %9 : vector<1x16x32xbf16> to vector<16x32xbf16>
    %c0_6 = arith.constant 0 : index
    %c0_7 = arith.constant 0 : index
    %c0_8 = arith.constant 0 : index
    %11 = vector.load %arg2[%c0_6, %c0_7, %c0_8] : memref<1x16x16xbf16, #tpu.memory_space<vmem>>, vector<1x16x16xbf16>
    %12 = vector.shape_cast %11 : vector<1x16x16xbf16> to vector<16x16xbf16>
    %cst = arith.constant dense<0.000000e+00> : vector<16x32xf32>
    %13 = tpu.matmul %12, %10, %cst {dimension_numbers = #tpu.dot_dimension_numbers<[1], [0], [0], [1], [0, 0, 1, 1], [], []>} : vector<16x16xbf16>, vector<16x32xbf16>, vector<16x32xf32> -> vector<16x32xf32>
    %c0_9 = arith.constant 0 : index
    %c0_10 = arith.constant 0 : index
    %14 = vector.load %arg6[%c0_9, %c0_10] : memref<32x512xbf16, #tpu.memory_space<vmem>>, vector<32x512xbf16>
    %cst_11 = arith.constant dense<0.000000e+00> : vector<16x512xf32>
    %15 = tpu.matmul %10, %14, %cst_11 {dimension_numbers = #tpu.dot_dimension_numbers<[1], [0], [0], [1], [0, 0, 1, 1], [], []>} : vector<16x32xbf16>, vector<32x512xbf16>, vector<16x512xf32> -> vector<16x512xf32>
    %16 = arith.truncf %13 : vector<16x32xf32> to vector<16x32xbf16>
    %c0_12 = arith.constant 0 : index
    %c0_13 = arith.constant 0 : index
    %17 = vector.load %arg7[%c0_12, %c0_13] : memref<32x512xbf16, #tpu.memory_space<vmem>>, vector<32x512xbf16>
    %cst_14 = arith.constant dense<0.000000e+00> : vector<16x512xf32>
    %18 = tpu.matmul %16, %17, %cst_14 {dimension_numbers = #tpu.dot_dimension_numbers<[1], [0], [0], [1], [0, 0, 1, 1], [], []>} : vector<16x32xbf16>, vector<32x512xbf16>, vector<16x512xf32> -> vector<16x512xf32>
    %19 = arith.addf %15, %18 : vector<16x512xf32>
    %c0_15 = arith.constant 0 : index
    %c0_16 = arith.constant 0 : index
    %20 = vector.load %arg8[%c0_15, %c0_16] : memref<1x512xf32, #tpu.memory_space<vmem>>, vector<1x512xf32>
    %21 = vector.broadcast %20 : vector<1x512xf32> to vector<16x512xf32>
    %22 = arith.addf %19, %21 : vector<16x512xf32>
    %cst_17 = arith.constant 0.000000e+00 : f32
    %23 = vector.broadcast %cst_17 : f32 to vector<16x512xf32>
    %24 = arith.maximumf %22, %23 : vector<16x512xf32>
    %25 = arith.truncf %24 : vector<16x512xf32> to vector<16x512xbf16>
    %cst_18 = arith.constant dense<0.000000e+00> : vector<16x512xf32>
    %26 = tpu.matmul %12, %25, %cst_18 {dimension_numbers = #tpu.dot_dimension_numbers<[1], [0], [0], [1], [0, 0, 1, 1], [], []>} : vector<16x16xbf16>, vector<16x512xbf16>, vector<16x512xf32> -> vector<16x512xf32>
    %c0_19 = arith.constant 0 : index
    %c0_20 = arith.constant 0 : index
    %27 = vector.load %arg9[%c0_19, %c0_20] : memref<512x512xbf16, #tpu.memory_space<vmem>>, vector<512x512xbf16>
    %cst_21 = arith.constant dense<0.000000e+00> : vector<16x512xf32>
    %28 = tpu.matmul %25, %27, %cst_21 {dimension_numbers = #tpu.dot_dimension_numbers<[1], [0], [0], [1], [0, 0, 1, 1], [], []>} : vector<16x512xbf16>, vector<512x512xbf16>, vector<16x512xf32> -> vector<16x512xf32>
    %29 = arith.truncf %26 : vector<16x512xf32> to vector<16x512xbf16>
    %c0_22 = arith.constant 0 : index
    %c0_23 = arith.constant 0 : index
    %30 = vector.load %arg10[%c0_22, %c0_23] : memref<512x512xbf16, #tpu.memory_space<vmem>>, vector<512x512xbf16>
    %cst_24 = arith.constant dense<0.000000e+00> : vector<16x512xf32>
    %31 = tpu.matmul %29, %30, %cst_24 {dimension_numbers = #tpu.dot_dimension_numbers<[1], [0], [0], [1], [0, 0, 1, 1], [], []>} : vector<16x512xbf16>, vector<512x512xbf16>, vector<16x512xf32> -> vector<16x512xf32>
    %32 = arith.addf %28, %31 : vector<16x512xf32>
    %c0_25 = arith.constant 0 : index
    %c0_26 = arith.constant 0 : index
    %33 = vector.load %arg11[%c0_25, %c0_26] : memref<1x512xf32, #tpu.memory_space<vmem>>, vector<1x512xf32>
    %34 = vector.broadcast %33 : vector<1x512xf32> to vector<16x512xf32>
    %35 = arith.addf %32, %34 : vector<16x512xf32>
    %cst_27 = arith.constant 0.000000e+00 : f32
    %36 = vector.broadcast %cst_27 : f32 to vector<16x512xf32>
    %37 = arith.maximumf %35, %36 : vector<16x512xf32>
    %38 = arith.truncf %37 : vector<16x512xf32> to vector<16x512xbf16>
    %cst_28 = arith.constant dense<0.000000e+00> : vector<16x512xf32>
    %39 = tpu.matmul %12, %38, %cst_28 {dimension_numbers = #tpu.dot_dimension_numbers<[1], [0], [0], [1], [0, 0, 1, 1], [], []>} : vector<16x16xbf16>, vector<16x512xbf16>, vector<16x512xf32> -> vector<16x512xf32>
    %c0_29 = arith.constant 0 : index
    %c0_30 = arith.constant 0 : index
    %40 = vector.load %arg12[%c0_29, %c0_30] : memref<512x256xbf16, #tpu.memory_space<vmem>>, vector<512x256xbf16>
    %cst_31 = arith.constant dense<0.000000e+00> : vector<16x256xf32>
    %41 = tpu.matmul %38, %40, %cst_31 {dimension_numbers = #tpu.dot_dimension_numbers<[1], [0], [0], [1], [0, 0, 1, 1], [], []>} : vector<16x512xbf16>, vector<512x256xbf16>, vector<16x256xf32> -> vector<16x256xf32>
    %42 = arith.truncf %39 : vector<16x512xf32> to vector<16x512xbf16>
    %c0_32 = arith.constant 0 : index
    %c0_33 = arith.constant 0 : index
    %43 = vector.load %arg13[%c0_32, %c0_33] : memref<512x256xbf16, #tpu.memory_space<vmem>>, vector<512x256xbf16>
    %cst_34 = arith.constant dense<0.000000e+00> : vector<16x256xf32>
    %44 = tpu.matmul %42, %43, %cst_34 {dimension_numbers = #tpu.dot_dimension_numbers<[1], [0], [0], [1], [0, 0, 1, 1], [], []>} : vector<16x512xbf16>, vector<512x256xbf16>, vector<16x256xf32> -> vector<16x256xf32>
    %45 = arith.addf %41, %44 : vector<16x256xf32>
    %c0_35 = arith.constant 0 : index
    %c0_36 = arith.constant 0 : index
    %46 = vector.load %arg14[%c0_35, %c0_36] : memref<1x256xf32, #tpu.memory_space<vmem>>, vector<1x256xf32>
    %47 = vector.broadcast %46 : vector<1x256xf32> to vector<16x256xf32>
    %48 = arith.addf %45, %47 : vector<16x256xf32>
    %cst_37 = arith.constant 0.000000e+00 : f32
    %49 = vector.broadcast %cst_37 : f32 to vector<16x256xf32>
    %50 = arith.maximumf %48, %49 : vector<16x256xf32>
    %51 = arith.truncf %50 : vector<16x256xf32> to vector<16x256xbf16>
    %cst_38 = arith.constant dense<0.000000e+00> : vector<16x256xf32>
    %52 = tpu.matmul %12, %51, %cst_38 {dimension_numbers = #tpu.dot_dimension_numbers<[1], [0], [0], [1], [0, 0, 1, 1], [], []>} : vector<16x16xbf16>, vector<16x256xbf16>, vector<16x256xf32> -> vector<16x256xf32>
    %c0_39 = arith.constant 0 : index
    %c0_40 = arith.constant 0 : index
    %53 = vector.load %arg15[%c0_39, %c0_40] : memref<256x256xbf16, #tpu.memory_space<vmem>>, vector<256x256xbf16>
    %cst_41 = arith.constant dense<0.000000e+00> : vector<16x256xf32>
    %54 = tpu.matmul %51, %53, %cst_41 {dimension_numbers = #tpu.dot_dimension_numbers<[1], [0], [0], [1], [0, 0, 1, 1], [], []>} : vector<16x256xbf16>, vector<256x256xbf16>, vector<16x256xf32> -> vector<16x256xf32>
    %55 = arith.truncf %52 : vector<16x256xf32> to vector<16x256xbf16>
    %c0_42 = arith.constant 0 : index
    %c0_43 = arith.constant 0 : index
    %56 = vector.load %arg16[%c0_42, %c0_43] : memref<256x256xbf16, #tpu.memory_space<vmem>>, vector<256x256xbf16>
    %cst_44 = arith.constant dense<0.000000e+00> : vector<16x256xf32>
    %57 = tpu.matmul %55, %56, %cst_44 {dimension_numbers = #tpu.dot_dimension_numbers<[1], [0], [0], [1], [0, 0, 1, 1], [], []>} : vector<16x256xbf16>, vector<256x256xbf16>, vector<16x256xf32> -> vector<16x256xf32>
    %58 = arith.addf %54, %57 : vector<16x256xf32>
    %c0_45 = arith.constant 0 : index
    %c0_46 = arith.constant 0 : index
    %59 = vector.load %arg17[%c0_45, %c0_46] : memref<1x256xf32, #tpu.memory_space<vmem>>, vector<1x256xf32>
    %60 = vector.broadcast %59 : vector<1x256xf32> to vector<16x256xf32>
    %61 = arith.addf %58, %60 : vector<16x256xf32>
    %cst_47 = arith.constant 0.000000e+00 : f32
    %62 = vector.broadcast %cst_47 : f32 to vector<16x256xf32>
    %63 = arith.maximumf %61, %62 : vector<16x256xf32>
    %64 = arith.truncf %63 : vector<16x256xf32> to vector<16x256xbf16>
    %c0_48 = arith.constant 0 : index
    %c0_49 = arith.constant 0 : index
    %c0_50 = arith.constant 0 : index
    %65 = vector.load %arg3[%c0_48, %c0_49, %c0_50] : memref<1x8x16xbf16, #tpu.memory_space<vmem>>, vector<1x8x16xbf16>
    %66 = vector.shape_cast %64 : vector<16x256xbf16> to vector<1x16x256xbf16>
    "tpu.trace_start"() <{level = 10 : i32, message = "bkn,bnd->bkd"}> : () -> ()
    %cst_51 = arith.constant dense<0.000000e+00> : vector<1x8x256xf32>
    %67 = tpu.matmul %65, %66, %cst_51 {dimension_numbers = #tpu.dot_dimension_numbers<[2], [1], [1], [2], [0, 0, 0, 1, 1, 2], [0], [0]>} : vector<1x8x16xbf16>, vector<1x16x256xbf16>, vector<1x8x256xf32> -> vector<1x8x256xf32>
    "tpu.trace_stop"() : () -> ()
    %68 = arith.truncf %67 : vector<1x8x256xf32> to vector<1x8x256xbf16>
    %69 = vector.shape_cast %68 : vector<1x8x256xbf16> to vector<8x256xbf16>
    %c0_52 = arith.constant 0 : index
    %c0_53 = arith.constant 0 : index
    %70 = vector.load %arg18[%c0_52, %c0_53] : memref<256x256xbf16, #tpu.memory_space<vmem>>, vector<256x256xbf16>
    %cst_54 = arith.constant dense<0.000000e+00> : vector<8x256xf32>
    %71 = tpu.matmul %69, %70, %cst_54 {dimension_numbers = #tpu.dot_dimension_numbers<[1], [0], [0], [1], [0, 0, 1, 1], [], []>} : vector<8x256xbf16>, vector<256x256xbf16>, vector<8x256xf32> -> vector<8x256xf32>
    %c0_55 = arith.constant 0 : index
    %c0_56 = arith.constant 0 : index
    %72 = vector.load %arg19[%c0_55, %c0_56] : memref<1x256xf32, #tpu.memory_space<vmem>>, vector<1x256xf32>
    %73 = vector.broadcast %72 : vector<1x256xf32> to vector<8x256xf32>
    %74 = arith.addf %71, %73 : vector<8x256xf32>
    %cst_57 = arith.constant 0.000000e+00 : f32
    %75 = vector.broadcast %cst_57 : f32 to vector<8x256xf32>
    %76 = arith.cmpf oge, %74, %75 : vector<8x256xf32>
    %c0_58 = arith.constant 0 : index
    %c0_59 = arith.constant 0 : index
    %77 = vector.load %arg20[%c0_58, %c0_59] : memref<1x256xf32, #tpu.memory_space<vmem>>, vector<1x256xf32>
    %78 = vector.broadcast %77 : vector<1x256xf32> to vector<8x256xf32>
    %79 = arith.mulf %78, %74 : vector<8x256xf32>
    %80 = arith.select %76, %74, %79 : vector<8x256xi1>, vector<8x256xf32>
    %81 = arith.truncf %80 : vector<8x256xf32> to vector<8x256xbf16>
    %c0_60 = arith.constant 0 : index
    %c0_61 = arith.constant 0 : index
    %82 = vector.load %arg21[%c0_60, %c0_61] : memref<256x128xbf16, #tpu.memory_space<vmem>>, vector<256x128xbf16>
    %cst_62 = arith.constant dense<0.000000e+00> : vector<8x128xf32>
    %83 = tpu.matmul %81, %82, %cst_62 {dimension_numbers = #tpu.dot_dimension_numbers<[1], [0], [0], [1], [0, 0, 1, 1], [], []>} : vector<8x256xbf16>, vector<256x128xbf16>, vector<8x128xf32> -> vector<8x128xf32>
    %84 = vector.extract_strided_slice %83 {offsets = [0, 0], sizes = [8, 2], strides = [1, 1]} : vector<8x128xf32> to vector<8x2xf32>
    %c0_63 = arith.constant 0 : index
    %c0_64 = arith.constant 0 : index
    %85 = vector.load %arg22[%c0_63, %c0_64] : memref<1x2xf32, #tpu.memory_space<vmem>>, vector<1x2xf32>
    %86 = vector.broadcast %85 : vector<1x2xf32> to vector<8x2xf32>
    %87 = arith.addf %84, %86 : vector<8x2xf32>
    %88 = vector.shape_cast %87 : vector<8x2xf32> to vector<1x8x2xf32>
    %c0_65 = arith.constant 0 : index
    %c0_66 = arith.constant 0 : index
    %c0_67 = arith.constant 0 : index
    %89 = vector.load %arg23[%c0_65, %c0_66, %c0_67] : memref<1x8x2xf32, #tpu.memory_space<vmem>>, vector<1x8x2xf32>
    tpu.vector_store %arg23[%c0_65, %c0_66, %c0_67], %88 {strides = array<i32>} : memref<1x8x2xf32, #tpu.memory_space<vmem>>, vector<1x8x2xf32>,
    return
  }
  func.func @transform_0(%arg0: i32) -> (i32, i32, i32) {
    %c0_i32 = arith.constant 0 : i32
    %c0_i32_0 = arith.constant 0 : i32
    %c0_i32_1 = arith.constant 0 : i32
    return %arg0, %c0_i32, %c0_i32_0 : i32, i32, i32
  }
  func.func @transform_1(%arg0: i32) -> (i32, i32, i32) {
    %c0_i32 = arith.constant 0 : i32
    %c0_i32_0 = arith.constant 0 : i32
    %c0_i32_1 = arith.constant 0 : i32
    return %arg0, %c0_i32, %c0_i32_0 : i32, i32, i32
  }
  func.func @transform_2(%arg0: i32) -> (i32, i32, i32) {
    %c0_i32 = arith.constant 0 : i32
    %c0_i32_0 = arith.constant 0 : i32
    %c0_i32_1 = arith.constant 0 : i32
    return %arg0, %c0_i32, %c0_i32_0 : i32, i32, i32
  }
  func.func @transform_3(%arg0: i32) -> (i32, i32) {
    %c0_i32 = arith.constant 0 : i32
    %c0_i32_0 = arith.constant 0 : i32
    %c0_i32_1 = arith.constant 0 : i32
    return %c0_i32, %c0_i32_0 : i32, i32
  }
  func.func @transform_4(%arg0: i32) -> (i32, i32) {
    %c0_i32 = arith.constant 0 : i32
    %c0_i32_0 = arith.constant 0 : i32
    %c0_i32_1 = arith.constant 0 : i32
    return %c0_i32, %c0_i32_0 : i32, i32
  }
  func.func @transform_5(%arg0: i32) -> (i32, i32) {
    %c0_i32 = arith.constant 0 : i32
    %c0_i32_0 = arith.constant 0 : i32
    %c0_i32_1 = arith.constant 0 : i32
    return %c0_i32, %c0_i32_0 : i32, i32
  }
  func.func @transform_6(%arg0: i32) -> (i32, i32) {
    %c0_i32 = arith.constant 0 : i32
    %c0_i32_0 = arith.constant 0 : i32
    %c0_i32_1 = arith.constant 0 : i32
    return %c0_i32, %c0_i32_0 : i32, i32
  }
  func.func @transform_7(%arg0: i32) -> (i32, i32) {
    %c0_i32 = arith.constant 0 : i32
    %c0_i32_0 = arith.constant 0 : i32
    %c0_i32_1 = arith.constant 0 : i32
    return %c0_i32, %c0_i32_0 : i32, i32
  }
  func.func @transform_8(%arg0: i32) -> (i32, i32) {
    %c0_i32 = arith.constant 0 : i32
    %c0_i32_0 = arith.constant 0 : i32
    %c0_i32_1 = arith.constant 0 : i32
    return %c0_i32, %c0_i32_0 : i32, i32
  }
  func.func @transform_9(%arg0: i32) -> (i32, i32) {
    %c0_i32 = arith.constant 0 : i32
    %c0_i32_0 = arith.constant 0 : i32
    %c0_i32_1 = arith.constant 0 : i32
    return %c0_i32, %c0_i32_0 : i32, i32
  }
  func.func @transform_10(%arg0: i32) -> (i32, i32) {
    %c0_i32 = arith.constant 0 : i32
    %c0_i32_0 = arith.constant 0 : i32
    %c0_i32_1 = arith.constant 0 : i32
    return %c0_i32, %c0_i32_0 : i32, i32
  }
  func.func @transform_11(%arg0: i32) -> (i32, i32) {
    %c0_i32 = arith.constant 0 : i32
    %c0_i32_0 = arith.constant 0 : i32
    %c0_i32_1 = arith.constant 0 : i32
    return %c0_i32, %c0_i32_0 : i32, i32
  }
  func.func @transform_12(%arg0: i32) -> (i32, i32) {
    %c0_i32 = arith.constant 0 : i32
    %c0_i32_0 = arith.constant 0 : i32
    %c0_i32_1 = arith.constant 0 : i32
    return %c0_i32, %c0_i32_0 : i32, i32
  }
  func.func @transform_13(%arg0: i32) -> (i32, i32) {
    %c0_i32 = arith.constant 0 : i32
    %c0_i32_0 = arith.constant 0 : i32
    %c0_i32_1 = arith.constant 0 : i32
    return %c0_i32, %c0_i32_0 : i32, i32
  }
  func.func @transform_14(%arg0: i32) -> (i32, i32) {
    %c0_i32 = arith.constant 0 : i32
    %c0_i32_0 = arith.constant 0 : i32
    %c0_i32_1 = arith.constant 0 : i32
    return %c0_i32, %c0_i32_0 : i32, i32
  }
  func.func @transform_15(%arg0: i32) -> (i32, i32) {
    %c0_i32 = arith.constant 0 : i32
    %c0_i32_0 = arith.constant 0 : i32
    %c0_i32_1 = arith.constant 0 : i32
    return %c0_i32, %c0_i32_0 : i32, i32
  }
  func.func @transform_16(%arg0: i32) -> (i32, i32) {
    %c0_i32 = arith.constant 0 : i32
    %c0_i32_0 = arith.constant 0 : i32
    %c0_i32_1 = arith.constant 0 : i32
    return %c0_i32, %c0_i32_0 : i32, i32
  }
  func.func @transform_17(%arg0: i32) -> (i32, i32) {
    %c0_i32 = arith.constant 0 : i32
    %c0_i32_0 = arith.constant 0 : i32
    %c0_i32_1 = arith.constant 0 : i32
    return %c0_i32, %c0_i32_0 : i32, i32
  }
  func.func @transform_18(%arg0: i32) -> (i32, i32) {
    %c0_i32 = arith.constant 0 : i32
    %c0_i32_0 = arith.constant 0 : i32
    %c0_i32_1 = arith.constant 0 : i32
    return %c0_i32, %c0_i32_0 : i32, i32
  }
  func.func @transform_19(%arg0: i32) -> (i32, i32) {
    %c0_i32 = arith.constant 0 : i32
    %c0_i32_0 = arith.constant 0 : i32
    %c0_i32_1 = arith.constant 0 : i32
    return %c0_i32, %c0_i32_0 : i32, i32
  }
  func.func @transform_20(%arg0: i32) -> (i32, i32) {
    %c0_i32 = arith.constant 0 : i32
    %c0_i32_0 = arith.constant 0 : i32
    %c0_i32_1 = arith.constant 0 : i32
    return %c0_i32, %c0_i32_0 : i32, i32
  }
  func.func @transform_21(%arg0: i32) -> (i32, i32) {
    %c0_i32 = arith.constant 0 : i32
    %c0_i32_0 = arith.constant 0 : i32
    %c0_i32_1 = arith.constant 0 : i32
    return %c0_i32, %c0_i32_0 : i32, i32
  }
  func.func @transform_22(%arg0: i32) -> (i32, i32, i32) {
    %c0_i32 = arith.constant 0 : i32
    %c0_i32_0 = arith.constant 0 : i32
    %c0_i32_1 = arith.constant 0 : i32
    return %arg0, %c0_i32, %c0_i32_0 : i32, i32, i32
  }
}

</mosaic_0001>

<llo_original>
// kernel: tpu_custom_call.1
$region0: #{tpu_custom_call.1}
  #allocation0 [shape = 'u32[]', space=smem, size = 0x4, offset = 0x4, fixed_abs, tag = 'smem constant byte address 0x4 - core index']
  #allocation1 [shape = 'u32[144,128]{1,0:T(1,128)}', space=vmem, size = 0x12000, scoped, tag = 'internal scratch']
  %s0 = inlined_call_operand.hbm [shape: f32[2,16,32], index: 0, kind: input, shape index: {}]
  %s1 = inlined_call_operand.hbm [shape: bf16[2,16,16], index: 1, kind: input, shape index: {}]
  %s2 = inlined_call_operand.hbm [shape: bf16[2,8,16], index: 2, kind: input, shape index: {}]
  %s3 = inlined_call_operand.hbm [shape: f32[1,32], index: 3, kind: input, shape index: {}]
  %s4 = inlined_call_operand.hbm [shape: f32[1,32], index: 4, kind: input, shape index: {}]
  %s5 = inlined_call_operand.hbm [shape: bf16[32,512], index: 5, kind: input, shape index: {}]
  %s6 = inlined_call_operand.hbm [shape: bf16[32,512], index: 6, kind: input, shape index: {}]
  %s7 = inlined_call_operand.vmem [shape: f32[1,512], index: 7, kind: input, shape index: {}]
  %s8 = inlined_call_operand.hbm [shape: bf16[512,512], index: 8, kind: input, shape index: {}]
  %s9 = inlined_call_operand.hbm [shape: bf16[512,512], index: 9, kind: input, shape index: {}]
  %s10 = inlined_call_operand.vmem [shape: f32[1,512], index: 10, kind: input, shape index: {}]
  %s11 = inlined_call_operand.hbm [shape: bf16[512,256], index: 11, kind: input, shape index: {}]
  %s12 = inlined_call_operand.hbm [shape: bf16[512,256], index: 12, kind: input, shape index: {}]
  %s13 = inlined_call_operand.vmem [shape: f32[1,256], index: 13, kind: input, shape index: {}]
  %s14 = inlined_call_operand.hbm [shape: bf16[256,256], index: 14, kind: input, shape index: {}]
  %s15 = inlined_call_operand.hbm [shape: bf16[256,256], index: 15, kind: input, shape index: {}]
  %s16 = inlined_call_operand.vmem [shape: f32[1,256], index: 16, kind: input, shape index: {}]
  %s17 = inlined_call_operand.hbm [shape: bf16[256,256], index: 17, kind: input, shape index: {}]
  %s18 = inlined_call_operand.vmem [shape: f32[1,256], index: 18, kind: input, shape index: {}]
  %s19 = inlined_call_operand.vmem [shape: f32[1,256], index: 19, kind: input, shape index: {}]
  %s20 = inlined_call_operand.hbm [shape: bf16[256,128], index: 20, kind: input, shape index: {}]
  %s21 = inlined_call_operand.vmem [shape: f32[1,2], index: 21, kind: input, shape index: {}]
  %s22 = inlined_call_operand.vmem [shape: f32[2,8,2], index: 22, kind: output, shape index: {}]
  %s23 = sld [smem:[#allocation0]]
  $region181: #{tpu_custom_call.1} parent=0
    _
  %s25 = ssub.s32 1, %s23
  %s26 = scalar_select 0, %s25, %s23
  $region1: #{tpu_custom_call.1} parent=0
    #allocation2 [shape = 'u8[16384]{0}', space=vmem, size = 0x4000, scoped, tag = 'input window, operand 0']
    #allocation3 [shape = 's32[2]{0}', space=sflag, size = 0x8, scoped, tag = 'scoped memory for tpu_custom_call.1']
    #allocation4 [shape = 'u8[8192]{0}', space=vmem, size = 0x2000, scoped, tag = 'input window, operand 1']
    #allocation5 [shape = 's32[2]{0}', space=sflag, size = 0x8, scoped, tag = 'scoped memory for tpu_custom_call.1']
    #allocation6 [shape = 'u8[4096]{0}', space=vmem, size = 0x1000, scoped, tag = 'input window, operand 2']
    #allocation7 [shape = 'u8[512]{0}', space=vmem, size = 0x400, scoped, tag = 'input window, operand 3, single buffered']
    #allocation8 [shape = 's32[1]{0}', space=sflag, size = 0x4, scoped, tag = 'scoped memory for tpu_custom_call.1']
    #allocation9 [shape = 'u8[512]{0}', space=vmem, size = 0x400, scoped, tag = 'input window, operand 4, single buffered']
    #allocation10 [shape = 'u8[32768]{0}', space=vmem, size = 0x8000, scoped, tag = 'input window, operand 5, single buffered']
    #allocation11 [shape = 's32[1]{0}', space=sflag, size = 0x4, scoped, tag = 'scoped memory for tpu_custom_call.1']
    #allocation12 [shape = 'u8[32768]{0}', space=vmem, size = 0x8000, scoped, tag = 'input window, operand 6, single buffered']
    #allocation13 [shape = 'u8[524288]{0}', space=vmem, size = 0x80000, scoped, tag = 'input window, operand 8, single buffered']
    #allocation14 [shape = 's32[1]{0}', space=sflag, size = 0x4, scoped, tag = 'scoped memory for tpu_custom_call.1']
    #allocation15 [shape = 'u8[524288]{0}', space=vmem, size = 0x80000, scoped, tag = 'input window, operand 9, single buffered']
    #allocation16 [shape = 'u8[262144]{0}', space=vmem, size = 0x40000, scoped, tag = 'input window, operand 11, single buffered']
    #allocation17 [shape = 's32[1]{0}', space=sflag, size = 0x4, scoped, tag = 'scoped memory for tpu_custom_call.1']
    #allocation18 [shape = 'u8[262144]{0}', space=vmem, size = 0x40000, scoped, tag = 'input window, operand 12, single buffered']
    #allocation19 [shape = 'u8[131072]{0}', space=vmem, size = 0x20000, scoped, tag = 'input window, operand 14, single buffered']
    #allocation20 [shape = 's32[1]{0}', space=sflag, size = 0x4, scoped, tag = 'scoped memory for tpu_custom_call.1']
    #allocation21 [shape = 'u8[131072]{0}', space=vmem, size = 0x20000, scoped, tag = 'input window, operand 15, single buffered']
    #allocation22 [shape = 'u8[131072]{0}', space=vmem, size = 0x20000, scoped, tag = 'input window, operand 17, single buffered']
    #allocation23 [shape = 's32[1]{0}', space=sflag, size = 0x4, scoped, tag = 'scoped memory for tpu_custom_call.1']
    #allocation24 [shape = 'u8[65536]{0}', space=vmem, size = 0x10000, scoped, tag = 'input window, operand 20, single buffered']
    %27 = vsyncpa [#allocation3], 0
    %s28 = scalar_lea.sflag [#allocation3], 1
    %29 = vsyncpa %s28, 0
    %30 = vsyncpa [#allocation5], 0
    %s31 = scalar_lea.sflag [#allocation5], 1
    %32 = vsyncpa %s31, 0
    %33 = vsyncpa [#allocation8], 0
    %34 = vsyncpa [#allocation11], 0
    %35 = vsyncpa [#allocation14], 0
    %36 = vsyncpa [#allocation17], 0
    %37 = vsyncpa [#allocation20], 0
    %38 = vsyncpa [#allocation23], 0
    loop: start=0, step=1, limit=4
    $region2: #{tpu_custom_call.1} parent=1 // loop_pre_header
      _
    $region3: #{tpu_custom_call.1} parent=1 // loop_header
      %s40 = sphi 0, %s44
      %p41 = scmp.ge.s32.totalorder %s40, 4
      %s50 = sphi 0, %s52
      %s53 = sphi 0, %s50
      %s54 = sphi 0, %s53
      %s70 = sphi 0, %s54
      %s76 = sphi 0, %s78
      %s79 = sphi 0, %s76
      %s80 = sphi 0, %s79
      %s96 = sphi 0, %s80
      %s102 = sphi 0, %s104
      %s105 = sphi 0, %s102
      %s106 = sphi 0, %s105
      %s122 = sphi 0, %s106
      %s126 = sphi 0, %s126
      %s128 = sphi 0, %s126
      %s129 = sphi 0, %s128
      %s143 = sphi 0, %s129
      %s147 = sphi 0, %s147
      %s149 = sphi 0, %s147
      %s150 = sphi 0, %s149
      %s164 = sphi 0, %s150
      %s168 = sphi 0, %s168
      %s170 = sphi 0, %s168
      %s171 = sphi 0, %s170
      %s185 = sphi 0, %s171
      %s189 = sphi 0, %s189
      %s191 = sphi 0, %s189
      %s192 = sphi 0, %s191
      %s206 = sphi 0, %s192
      %s210 = sphi 0, %s210
      %s212 = sphi 0, %s210
      %s213 = sphi 0, %s212
      %s227 = sphi 0, %s213
      %s231 = sphi 0, %s231
      %s233 = sphi 0, %s231
      %s234 = sphi 0, %s233
      %s248 = sphi 0, %s234
      %s252 = sphi 0, %s252
      %s254 = sphi 0, %s252
      %s255 = sphi 0, %s254
      %s269 = sphi 0, %s255
      %s273 = sphi 0, %s273
      %s275 = sphi 0, %s273
      %s276 = sphi 0, %s275
      %s290 = sphi 0, %s276
      %s294 = sphi 0, %s294
      %s296 = sphi 0, %s294
      %s297 = sphi 0, %s296
      %s311 = sphi 0, %s297
      %s315 = sphi 0, %s315
      %s317 = sphi 0, %s315
      %s318 = sphi 0, %s317
      %s332 = sphi 0, %s318
      %s336 = sphi 0, %s336
      %s338 = sphi 0, %s336
      %s339 = sphi 0, %s338
      %s353 = sphi 0, %s339
      %s357 = sphi 0, %s357
      %s359 = sphi 0, %s357
      %s360 = sphi 0, %s359
      %s374 = sphi 0, %s360
      %s378 = sphi 0, %s378
      %s380 = sphi 0, %s378
      %s381 = sphi 0, %s380
      %s395 = sphi 0, %s381
      %s399 = sphi 0, %s399
      %s401 = sphi 0, %s399
      %s402 = sphi 0, %s401
      %s416 = sphi 0, %s402
      %s420 = sphi 0, %s420
      %s422 = sphi 0, %s420
      %s423 = sphi 0, %s422
      %s437 = sphi 0, %s423
      %s441 = sphi 0, %s441
      %s443 = sphi 0, %s441
      %s444 = sphi 0, %s443
      %s458 = sphi 0, %s444
      %s462 = sphi 0, %s462
      %s464 = sphi 0, %s462
      %s465 = sphi 0, %s464
      %s479 = sphi 0, %s465
      %s483 = sphi 0, %s483
      %s485 = sphi 0, %s483
      %s486 = sphi 0, %s485
      %s500 = sphi 0, %s486
      %s504 = sphi 0, %s504
      %s506 = sphi 0, %s504
      %s507 = sphi 0, %s506
      %s521 = sphi 0, %s507
      %s527 = sphi 0, %s529
      %s530 = sphi 0, %s527
      %s531 = sphi 0, %s530
      %s547 = sphi 0, %s531
    $region4: #{tpu_custom_call.1} parent=1 // loop_header_branch
      %43 = sbr.rel (%p41) target = $region8
    $region5: #{tpu_custom_call.1} parent=1 // loop_body
      %s45 = ssub.s32 %s40, 1
      %s46 = ssub.s32 %s40, 2
      %s47 = sadd.s32 %s40, 1
      %s48 = ssub.s32 %s40, %s47
      %p49 = scmp.eq.s32.totalorder %s48, 0
      %s51 = sadd.s32 %s50, 1
      %s52 = scalar_select %p49, %s50, %s51
      %p55 = pneg %p49
      %p56 = scmp.eq.s32.totalorder %s40, 1
      %p57 = por %p55, %p56
      %p58 = scmp.ne.s32.totalorder %s50, %s53
      %p59 = scmp.eq.s32.totalorder %s40, 0
      %p60 = por %p58, %p59
      %p61 = scmp.ne.s32.totalorder %s50, %s53
      %p62 = scmp.eq.s32.totalorder %s45, 1
      %p63 = por %p61, %p62
      %p64 = scmp.ne.s32.totalorder %s53, %s54
      %p65 = scmp.eq.s32.totalorder %s45, 0
      %p66 = por %p64, %p65
      %p67 = scmp.ne.s32.totalorder %s53, %s54
      %p68 = scmp.eq.s32.totalorder %s46, 1
      %p69 = por %p67, %p68
      %p71 = scmp.ne.s32.totalorder %s54, %s70
      %p72 = scmp.eq.s32.totalorder %s46, 0
      %p73 = por %p71, %p72
      %s74 = ssub.s32 %s40, %s47
      %p75 = scmp.eq.s32.totalorder %s74, 0
      %s77 = sadd.s32 %s76, 1
      %s78 = scalar_select %p75, %s76, %s77
      %p81 = pneg %p75
      %p82 = scmp.eq.s32.totalorder %s40, 1
      %p83 = por %p81, %p82
      %p84 = scmp.ne.s32.totalorder %s76, %s79
      %p85 = scmp.eq.s32.totalorder %s40, 0
      %p86 = por %p84, %p85
      %p87 = scmp.ne.s32.totalorder %s76, %s79
      %p88 = scmp.eq.s32.totalorder %s45, 1
      %p89 = por %p87, %p88
      %p90 = scmp.ne.s32.totalorder %s79, %s80
      %p91 = scmp.eq.s32.totalorder %s45, 0
      %p92 = por %p90, %p91
      %p93 = scmp.ne.s32.totalorder %s79, %s80
      %p94 = scmp.eq.s32.totalorder %s46, 1
      %p95 = por %p93, %p94
      %p97 = scmp.ne.s32.totalorder %s80, %s96
      %p98 = scmp.eq.s32.totalorder %s46, 0
      %p99 = por %p97, %p98
      %s100 = ssub.s32 %s40, %s47
      %p101 = scmp.eq.s32.totalorder %s100, 0
      %s103 = sadd.s32 %s102, 1
      %s104 = scalar_select %p101, %s102, %s103
      %p107 = pneg %p101
      %p108 = scmp.eq.s32.totalorder %s40, 1
      %p109 = por %p107, %p108
      %p110 = scmp.ne.s32.totalorder %s102, %s105
      %p111 = scmp.eq.s32.totalorder %s40, 0
      %p112 = por %p110, %p111
      %p113 = scmp.ne.s32.totalorder %s102, %s105
      %p114 = scmp.eq.s32.totalorder %s45, 1
      %p115 = por %p113, %p114
      %p116 = scmp.ne.s32.totalorder %s105, %s106
      %p117 = scmp.eq.s32.totalorder %s45, 0
      %p118 = por %p116, %p117
      %p119 = scmp.ne.s32.totalorder %s105, %s106
      %p120 = scmp.eq.s32.totalorder %s46, 1
      %p121 = por %p119, %p120
      %p123 = scmp.ne.s32.totalorder %s106, %s122
      %p124 = scmp.eq.s32.totalorder %s46, 0
      %p125 = por %p123, %p124
      %s127 = sadd.s32 %s126, 1
      %p130 = scmp.eq.s32.totalorder %s40, 1
      %p131 = scmp.ne.s32.totalorder %s126, %s128
      %p132 = scmp.eq.s32.totalorder %s40, 0
      %p133 = por %p131, %p132
      %p134 = scmp.ne.s32.totalorder %s126, %s128
      %p135 = scmp.eq.s32.totalorder %s45, 1
      %p136 = por %p134, %p135
      %p137 = scmp.ne.s32.totalorder %s128, %s129
      %p138 = scmp.eq.s32.totalorder %s45, 0
      %p139 = por %p137, %p138
      %p140 = scmp.ne.s32.totalorder %s128, %s129
      %p141 = scmp.eq.s32.totalorder %s46, 1
      %p142 = por %p140, %p141
      %p144 = scmp.ne.s32.totalorder %s129, %s143
      %p145 = scmp.eq.s32.totalorder %s46, 0
      %p146 = por %p144, %p145
      %s148 = sadd.s32 %s147, 1
      %p151 = scmp.eq.s32.totalorder %s40, 1
      %p152 = scmp.ne.s32.totalorder %s147, %s149
      %p153 = scmp.eq.s32.totalorder %s40, 0
      %p154 = por %p152, %p153
      %p155 = scmp.ne.s32.totalorder %s147, %s149
      %p156 = scmp.eq.s32.totalorder %s45, 1
      %p157 = por %p155, %p156
      %p158 = scmp.ne.s32.totalorder %s149, %s150
      %p159 = scmp.eq.s32.totalorder %s45, 0
      %p160 = por %p158, %p159
      %p161 = scmp.ne.s32.totalorder %s149, %s150
      %p162 = scmp.eq.s32.totalorder %s46, 1
      %p163 = por %p161, %p162
      %p165 = scmp.ne.s32.totalorder %s150, %s164
      %p166 = scmp.eq.s32.totalorder %s46, 0
      %p167 = por %p165, %p166
      %s169 = sadd.s32 %s168, 1
      %p172 = scmp.eq.s32.totalorder %s40, 1
      %p173 = scmp.ne.s32.totalorder %s168, %s170
      %p174 = scmp.eq.s32.totalorder %s40, 0
      %p175 = por %p173, %p174
      %p176 = scmp.ne.s32.totalorder %s168, %s170
      %p177 = scmp.eq.s32.totalorder %s45, 1
      %p178 = por %p176, %p177
      %p179 = scmp.ne.s32.totalorder %s170, %s171
      %p180 = scmp.eq.s32.totalorder %s45, 0
      %p181 = por %p179, %p180
      %p182 = scmp.ne.s32.totalorder %s170, %s171
      %p183 = scmp.eq.s32.totalorder %s46, 1
      %p184 = por %p182, %p183
      %p186 = scmp.ne.s32.totalorder %s171, %s185
      %p187 = scmp.eq.s32.totalorder %s46, 0
      %p188 = por %p186, %p187
      %s190 = sadd.s32 %s189, 1
      %p193 = scmp.eq.s32.totalorder %s40, 1
      %p194 = scmp.ne.s32.totalorder %s189, %s191
      %p195 = scmp.eq.s32.totalorder %s40, 0
      %p196 = por %p194, %p195
      %p197 = scmp.ne.s32.totalorder %s189, %s191
      %p198 = scmp.eq.s32.totalorder %s45, 1
      %p199 = por %p197, %p198
      %p200 = scmp.ne.s32.totalorder %s191, %s192
      %p201 = scmp.eq.s32.totalorder %s45, 0
      %p202 = por %p200, %p201
      %p203 = scmp.ne.s32.totalorder %s191, %s192
      %p204 = scmp.eq.s32.totalorder %s46, 1
      %p205 = por %p203, %p204
      %p207 = scmp.ne.s32.totalorder %s192, %s206
      %p208 = scmp.eq.s32.totalorder %s46, 0
      %p209 = por %p207, %p208
      %s211 = sadd.s32 %s210, 1
      %p214 = scmp.eq.s32.totalorder %s40, 1
      %p215 = scmp.ne.s32.totalorder %s210, %s212
      %p216 = scmp.eq.s32.totalorder %s40, 0
      %p217 = por %p215, %p216
      %p218 = scmp.ne.s32.totalorder %s210, %s212
      %p219 = scmp.eq.s32.totalorder %s45, 1
      %p220 = por %p218, %p219
      %p221 = scmp.ne.s32.totalorder %s212, %s213
      %p222 = scmp.eq.s32.totalorder %s45, 0
      %p223 = por %p221, %p222
      %p224 = scmp.ne.s32.totalorder %s212, %s213
      %p225 = scmp.eq.s32.totalorder %s46, 1
      %p226 = por %p224, %p225
      %p228 = scmp.ne.s32.totalorder %s213, %s227
      %p229 = scmp.eq.s32.totalorder %s46, 0
      %p230 = por %p228, %p229
      %s232 = sadd.s32 %s231, 1
      %p235 = scmp.eq.s32.totalorder %s40, 1
      %p236 = scmp.ne.s32.totalorder %s231, %s233
      %p237 = scmp.eq.s32.totalorder %s40, 0
      %p238 = por %p236, %p237
      %p239 = scmp.ne.s32.totalorder %s231, %s233
      %p240 = scmp.eq.s32.totalorder %s45, 1
      %p241 = por %p239, %p240
      %p242 = scmp.ne.s32.totalorder %s233, %s234
      %p243 = scmp.eq.s32.totalorder %s45, 0
      %p244 = por %p242, %p243
      %p245 = scmp.ne.s32.totalorder %s233, %s234
      %p246 = scmp.eq.s32.totalorder %s46, 1
      %p247 = por %p245, %p246
      %p249 = scmp.ne.s32.totalorder %s234, %s248
      %p250 = scmp.eq.s32.totalorder %s46, 0
      %p251 = por %p249, %p250
      %s253 = sadd.s32 %s252, 1
      %p256 = scmp.eq.s32.totalorder %s40, 1
      %p257 = scmp.ne.s32.totalorder %s252, %s254
      %p258 = scmp.eq.s32.totalorder %s40, 0
      %p259 = por %p257, %p258
      %p260 = scmp.ne.s32.totalorder %s252, %s254
      %p261 = scmp.eq.s32.totalorder %s45, 1
      %p262 = por %p260, %p261
      %p263 = scmp.ne.s32.totalorder %s254, %s255
      %p264 = scmp.eq.s32.totalorder %s45, 0
      %p265 = por %p263, %p264
      %p266 = scmp.ne.s32.totalorder %s254, %s255
      %p267 = scmp.eq.s32.totalorder %s46, 1
      %p268 = por %p266, %p267
      %p270 = scmp.ne.s32.totalorder %s255, %s269
      %p271 = scmp.eq.s32.totalorder %s46, 0
      %p272 = por %p270, %p271
      %s274 = sadd.s32 %s273, 1
      %p277 = scmp.eq.s32.totalorder %s40, 1
      %p278 = scmp.ne.s32.totalorder %s273, %s275
      %p279 = scmp.eq.s32.totalorder %s40, 0
      %p280 = por %p278, %p279
      %p281 = scmp.ne.s32.totalorder %s273, %s275
      %p282 = scmp.eq.s32.totalorder %s45, 1
      %p283 = por %p281, %p282
      %p284 = scmp.ne.s32.totalorder %s275, %s276
      %p285 = scmp.eq.s32.totalorder %s45, 0
      %p286 = por %p284, %p285
      %p287 = scmp.ne.s32.totalorder %s275, %s276
      %p288 = scmp.eq.s32.totalorder %s46, 1
      %p289 = por %p287, %p288
      %p291 = scmp.ne.s32.totalorder %s276, %s290
      %p292 = scmp.eq.s32.totalorder %s46, 0
      %p293 = por %p291, %p292
      %s295 = sadd.s32 %s294, 1
      %p298 = scmp.eq.s32.totalorder %s40, 1
      %p299 = scmp.ne.s32.totalorder %s294, %s296
      %p300 = scmp.eq.s32.totalorder %s40, 0
      %p301 = por %p299, %p300
      %p302 = scmp.ne.s32.totalorder %s294, %s296
      %p303 = scmp.eq.s32.totalorder %s45, 1
      %p304 = por %p302, %p303
      %p305 = scmp.ne.s32.totalorder %s296, %s297
      %p306 = scmp.eq.s32.totalorder %s45, 0
      %p307 = por %p305, %p306
      %p308 = scmp.ne.s32.totalorder %s296, %s297
      %p309 = scmp.eq.s32.totalorder %s46, 1
      %p310 = por %p308, %p309
      %p312 = scmp.ne.s32.totalorder %s297, %s311
      %p313 = scmp.eq.s32.totalorder %s46, 0
      %p314 = por %p312, %p313
      %s316 = sadd.s32 %s315, 1
      %p319 = scmp.eq.s32.totalorder %s40, 1
      %p320 = scmp.ne.s32.totalorder %s315, %s317
      %p321 = scmp.eq.s32.totalorder %s40, 0
      %p322 = por %p320, %p321
      %p323 = scmp.ne.s32.totalorder %s315, %s317
      %p324 = scmp.eq.s32.totalorder %s45, 1
      %p325 = por %p323, %p324
      %p326 = scmp.ne.s32.totalorder %s317, %s318
      %p327 = scmp.eq.s32.totalorder %s45, 0
      %p328 = por %p326, %p327
      %p329 = scmp.ne.s32.totalorder %s317, %s318
      %p330 = scmp.eq.s32.totalorder %s46, 1
      %p331 = por %p329, %p330
      %p333 = scmp.ne.s32.totalorder %s318, %s332
      %p334 = scmp.eq.s32.totalorder %s46, 0
      %p335 = por %p333, %p334
      %s337 = sadd.s32 %s336, 1
      %p340 = scmp.eq.s32.totalorder %s40, 1
      %p341 = scmp.ne.s32.totalorder %s336, %s338
      %p342 = scmp.eq.s32.totalorder %s40, 0
      %p343 = por %p341, %p342
      %p344 = scmp.ne.s32.totalorder %s336, %s338
      %p345 = scmp.eq.s32.totalorder %s45, 1
      %p346 = por %p344, %p345
      %p347 = scmp.ne.s32.totalorder %s338, %s339
      %p348 = scmp.eq.s32.totalorder %s45, 0
      %p349 = por %p347, %p348
      %p350 = scmp.ne.s32.totalorder %s338, %s339
      %p351 = scmp.eq.s32.totalorder %s46, 1
      %p352 = por %p350, %p351
      %p354 = scmp.ne.s32.totalorder %s339, %s353
      %p355 = scmp.eq.s32.totalorder %s46, 0
      %p356 = por %p354, %p355
      %s358 = sadd.s32 %s357, 1
      %p361 = scmp.eq.s32.totalorder %s40, 1
      %p362 = scmp.ne.s32.totalorder %s357, %s359
      %p363 = scmp.eq.s32.totalorder %s40, 0
      %p364 = por %p362, %p363
      %p365 = scmp.ne.s32.totalorder %s357, %s359
      %p366 = scmp.eq.s32.totalorder %s45, 1
      %p367 = por %p365, %p366
      %p368 = scmp.ne.s32.totalorder %s359, %s360
      %p369 = scmp.eq.s32.totalorder %s45, 0
      %p370 = por %p368, %p369
      %p371 = scmp.ne.s32.totalorder %s359, %s360
      %p372 = scmp.eq.s32.totalorder %s46, 1
      %p373 = por %p371, %p372
      %p375 = scmp.ne.s32.totalorder %s360, %s374
      %p376 = scmp.eq.s32.totalorder %s46, 0
      %p377 = por %p375, %p376
      %s379 = sadd.s32 %s378, 1
      %p382 = scmp.eq.s32.totalorder %s40, 1
      %p383 = scmp.ne.s32.totalorder %s378, %s380
      %p384 = scmp.eq.s32.totalorder %s40, 0
      %p385 = por %p383, %p384
      %p386 = scmp.ne.s32.totalorder %s378, %s380
      %p387 = scmp.eq.s32.totalorder %s45, 1
      %p388 = por %p386, %p387
      %p389 = scmp.ne.s32.totalorder %s380, %s381
      %p390 = scmp.eq.s32.totalorder %s45, 0
      %p391 = por %p389, %p390
      %p392 = scmp.ne.s32.totalorder %s380, %s381
      %p393 = scmp.eq.s32.totalorder %s46, 1
      %p394 = por %p392, %p393
      %p396 = scmp.ne.s32.totalorder %s381, %s395
      %p397 = scmp.eq.s32.totalorder %s46, 0
      %p398 = por %p396, %p397
      %s400 = sadd.s32 %s399, 1
      %p403 = scmp.eq.s32.totalorder %s40, 1
      %p404 = scmp.ne.s32.totalorder %s399, %s401
      %p405 = scmp.eq.s32.totalorder %s40, 0
      %p406 = por %p404, %p405
      %p407 = scmp.ne.s32.totalorder %s399, %s401
      %p408 = scmp.eq.s32.totalorder %s45, 1
      %p409 = por %p407, %p408
      %p410 = scmp.ne.s32.totalorder %s401, %s402
      %p411 = scmp.eq.s32.totalorder %s45, 0
      %p412 = por %p410, %p411
      %p413 = scmp.ne.s32.totalorder %s401, %s402
      %p414 = scmp.eq.s32.totalorder %s46, 1
      %p415 = por %p413, %p414
      %p417 = scmp.ne.s32.totalorder %s402, %s416
      %p418 = scmp.eq.s32.totalorder %s46, 0
      %p419 = por %p417, %p418
      %s421 = sadd.s32 %s420, 1
      %p424 = scmp.eq.s32.totalorder %s40, 1
      %p425 = scmp.ne.s32.totalorder %s420, %s422
      %p426 = scmp.eq.s32.totalorder %s40, 0
      %p427 = por %p425, %p426
      %p428 = scmp.ne.s32.totalorder %s420, %s422
      %p429 = scmp.eq.s32.totalorder %s45, 1
      %p430 = por %p428, %p429
      %p431 = scmp.ne.s32.totalorder %s422, %s423
      %p432 = scmp.eq.s32.totalorder %s45, 0
      %p433 = por %p431, %p432
      %p434 = scmp.ne.s32.totalorder %s422, %s423
      %p435 = scmp.eq.s32.totalorder %s46, 1
      %p436 = por %p434, %p435
      %p438 = scmp.ne.s32.totalorder %s423, %s437
      %p439 = scmp.eq.s32.totalorder %s46, 0
      %p440 = por %p438, %p439
      %s442 = sadd.s32 %s441, 1
      %p445 = scmp.eq.s32.totalorder %s40, 1
      %p446 = scmp.ne.s32.totalorder %s441, %s443
      %p447 = scmp.eq.s32.totalorder %s40, 0
      %p448 = por %p446, %p447
      %p449 = scmp.ne.s32.totalorder %s441, %s443
      %p450 = scmp.eq.s32.totalorder %s45, 1
      %p451 = por %p449, %p450
      %p452 = scmp.ne.s32.totalorder %s443, %s444
      %p453 = scmp.eq.s32.totalorder %s45, 0
      %p454 = por %p452, %p453
      %p455 = scmp.ne.s32.totalorder %s443, %s444
      %p456 = scmp.eq.s32.totalorder %s46, 1
      %p457 = por %p455, %p456
      %p459 = scmp.ne.s32.totalorder %s444, %s458
      %p460 = scmp.eq.s32.totalorder %s46, 0
      %p461 = por %p459, %p460
      %s463 = sadd.s32 %s462, 1
      %p466 = scmp.eq.s32.totalorder %s40, 1
      %p467 = scmp.ne.s32.totalorder %s462, %s464
      %p468 = scmp.eq.s32.totalorder %s40, 0
      %p469 = por %p467, %p468
      %p470 = scmp.ne.s32.totalorder %s462, %s464
      %p471 = scmp.eq.s32.totalorder %s45, 1
      %p472 = por %p470, %p471
      %p473 = scmp.ne.s32.totalorder %s464, %s465
      %p474 = scmp.eq.s32.totalorder %s45, 0
      %p475 = por %p473, %p474
      %p476 = scmp.ne.s32.totalorder %s464, %s465
      %p477 = scmp.eq.s32.totalorder %s46, 1
      %p478 = por %p476, %p477
      %p480 = scmp.ne.s32.totalorder %s465, %s479
      %p481 = scmp.eq.s32.totalorder %s46, 0
      %p482 = por %p480, %p481
      %s484 = sadd.s32 %s483, 1
      %p487 = scmp.eq.s32.totalorder %s40, 1
      %p488 = scmp.ne.s32.totalorder %s483, %s485
      %p489 = scmp.eq.s32.totalorder %s40, 0
      %p490 = por %p488, %p489
      %p491 = scmp.ne.s32.totalorder %s483, %s485
      %p492 = scmp.eq.s32.totalorder %s45, 1
      %p493 = por %p491, %p492
      %p494 = scmp.ne.s32.totalorder %s485, %s486
      %p495 = scmp.eq.s32.totalorder %s45, 0
      %p496 = por %p494, %p495
      %p497 = scmp.ne.s32.totalorder %s485, %s486
      %p498 = scmp.eq.s32.totalorder %s46, 1
      %p499 = por %p497, %p498
      %p501 = scmp.ne.s32.totalorder %s486, %s500
      %p502 = scmp.eq.s32.totalorder %s46, 0
      %p503 = por %p501, %p502
      %s505 = sadd.s32 %s504, 1
      %p508 = scmp.eq.s32.totalorder %s40, 1
      %p509 = scmp.ne.s32.totalorder %s504, %s506
      %p510 = scmp.eq.s32.totalorder %s40, 0
      %p511 = por %p509, %p510
      %p512 = scmp.ne.s32.totalorder %s504, %s506
      %p513 = scmp.eq.s32.totalorder %s45, 1
      %p514 = por %p512, %p513
      %p515 = scmp.ne.s32.totalorder %s506, %s507
      %p516 = scmp.eq.s32.totalorder %s45, 0
      %p517 = por %p515, %p516
      %p518 = scmp.ne.s32.totalorder %s506, %s507
      %p519 = scmp.eq.s32.totalorder %s46, 1
      %p520 = por %p518, %p519
      %p522 = scmp.ne.s32.totalorder %s507, %s521
      %p523 = scmp.eq.s32.totalorder %s46, 0
      %p524 = por %p522, %p523
      %s525 = ssub.s32 %s40, %s47
      %p526 = scmp.eq.s32.totalorder %s525, 0
      %s528 = sadd.s32 %s527, 1
      %s529 = scalar_select %p526, %s527, %s528
      %p532 = pneg %p526
      %p533 = scmp.eq.s32.totalorder %s40, 1
      %p534 = por %p532, %p533
      %p535 = scmp.ne.s32.totalorder %s527, %s530
      %p536 = scmp.eq.s32.totalorder %s40, 0
      %p537 = por %p535, %p536
      %p538 = scmp.ne.s32.totalorder %s527, %s530
      %p539 = scmp.eq.s32.totalorder %s45, 1
      %p540 = por %p538, %p539
      %p541 = scmp.ne.s32.totalorder %s530, %s531
      %p542 = scmp.eq.s32.totalorder %s45, 0
      %p543 = por %p541, %p542
      %p544 = scmp.ne.s32.totalorder %s530, %s531
      %p545 = scmp.eq.s32.totalorder %s46, 1
      %p546 = por %p544, %p545
      %p548 = scmp.ne.s32.totalorder %s531, %s547
      %p549 = scmp.eq.s32.totalorder %s46, 0
      %p550 = por %p548, %p549
      %p551 = scmp.le.s32.totalorder 1, %s40
      %p552 = scmp.lt.s32.totalorder %s40, 3
      %p553 = pnand %p551, %p552
      %p554 = pneg %p553
      // Predicated region
      $region9: #{tpu_custom_call.1} parent=5 // pred_check
        _
      $region10: #{tpu_custom_call.1} parent=5 // pred_check_branch
        %556 = sbr.rel (%p553) target = $region12
      $region11: #{tpu_custom_call.1} parent=5 // pred_region
        %s557 = ssub.s32 %s40, 1
        // Predicated region
        $region13: #{tpu_custom_call.1} parent=11 // pred_check
          %p558 = pneg %p139
        $region14: #{tpu_custom_call.1} parent=11 // pred_check_branch
          %560 = sbr.rel (%p558) target = $region16
        $region15: #{tpu_custom_call.1} parent=11 // pred_region
          %s562 = ssub.s32 16, 16
          %563 = vsyncadd [#allocation8], %s562
          %s565 = sshll.u32 [#allocation7], 4
          %s566 = int_to_ptr.vmem [resolvable:$true] %s565
          %568 = dma.hbm_to_vmem [thread:$0]  %s3, 16, %s566, [#allocation8]
        $region16: #{tpu_custom_call.1} parent=11 // pred_fallthru
          _
        // Predicated region
        $region17: #{tpu_custom_call.1} parent=11 // pred_check
          %p569 = pneg %p160
        $region18: #{tpu_custom_call.1} parent=11 // pred_check_branch
          %571 = sbr.rel (%p569) target = $region20
        $region19: #{tpu_custom_call.1} parent=11 // pred_region
          %s573 = ssub.s32 16, 16
          %574 = vsyncadd [#allocation8], %s573
          %s576 = sshll.u32 [#allocation9], 4
          %s577 = int_to_ptr.vmem [resolvable:$true] %s576
          %579 = dma.hbm_to_vmem [thread:$0]  %s4, 16, %s577, [#allocation8]
        $region20: #{tpu_custom_call.1} parent=11 // pred_fallthru
          _
        // Predicated region
        $region21: #{tpu_custom_call.1} parent=11 // pred_check
          %p580 = pneg %p181
        $region22: #{tpu_custom_call.1} parent=11 // pred_check_branch
          %582 = sbr.rel (%p580) target = $region24
        $region23: #{tpu_custom_call.1} parent=11 // pred_region
          %s584 = ssub.s32 1024, 1024
          %585 = vsyncadd [#allocation11], %s584
          %s586 = sshll.u32 [#allocation10], 4
          %s587 = int_to_ptr.vmem [resolvable:$true] %s586
          %592 = dma.hbm_to_vmem [thread:$0]  %s5, 1024, %s587, [#allocation11], 256, 256, 16
        $region24: #{tpu_custom_call.1} parent=11 // pred_fallthru
          _
        // Predicated region
        $region25: #{tpu_custom_call.1} parent=11 // pred_check
          %p593 = pneg %p202
        $region26: #{tpu_custom_call.1} parent=11 // pred_check_branch
          %595 = sbr.rel (%p593) target = $region28
        $region27: #{tpu_custom_call.1} parent=11 // pred_region
          %s597 = ssub.s32 1024, 1024
          %598 = vsyncadd [#allocation11], %s597
          %s599 = sshll.u32 [#allocation12], 4
          %s600 = int_to_ptr.vmem [resolvable:$true] %s599
          %605 = dma.hbm_to_vmem [thread:$0]  %s6, 1024, %s600, [#allocation11], 256, 256, 16
        $region28: #{tpu_custom_call.1} parent=11 // pred_fallthru
          _
        // Predicated region
        $region29: #{tpu_custom_call.1} parent=11 // pred_check
          %p606 = pneg %p223
        $region30: #{tpu_custom_call.1} parent=11 // pred_check_branch
          %608 = sbr.rel (%p606) target = $region32
        $region31: #{tpu_custom_call.1} parent=11 // pred_region
          _
        $region32: #{tpu_custom_call.1} parent=11 // pred_fallthru
          _
        // Predicated region
        $region33: #{tpu_custom_call.1} parent=11 // pred_check
          %p609 = pneg %p244
        $region34: #{tpu_custom_call.1} parent=11 // pred_check_branch
          %611 = sbr.rel (%p609) target = $region36
        $region35: #{tpu_custom_call.1} parent=11 // pred_region
          %s613 = ssub.s32 16384, 16384
          %614 = vsyncadd [#allocation14], %s613
          %s615 = sshll.u32 [#allocation13], 4
          %s616 = int_to_ptr.vmem [resolvable:$true] %s615
          %621 = dma.hbm_to_vmem [thread:$0]  %s8, 16384, %s616, [#allocation14], 256, 256, 16
        $region36: #{tpu_custom_call.1} parent=11 // pred_fallthru
          _
        // Predicated region
        $region37: #{tpu_custom_call.1} parent=11 // pred_check
          %p622 = pneg %p265
        $region38: #{tpu_custom_call.1} parent=11 // pred_check_branch
          %624 = sbr.rel (%p622) target = $region40
        $region39: #{tpu_custom_call.1} parent=11 // pred_region
          %s626 = ssub.s32 16384, 16384
          %627 = vsyncadd [#allocation14], %s626
          %s628 = sshll.u32 [#allocation15], 4
          %s629 = int_to_ptr.vmem [resolvable:$true] %s628
          %634 = dma.hbm_to_vmem [thread:$0]  %s9, 16384, %s629, [#allocation14], 256, 256, 16
        $region40: #{tpu_custom_call.1} parent=11 // pred_fallthru
          _
        // Predicated region
        $region41: #{tpu_custom_call.1} parent=11 // pred_check
          %p635 = pneg %p286
        $region42: #{tpu_custom_call.1} parent=11 // pred_check_branch
          %637 = sbr.rel (%p635) target = $region44
        $region43: #{tpu_custom_call.1} parent=11 // pred_region
          _
        $region44: #{tpu_custom_call.1} parent=11 // pred_fallthru
          _
        // Predicated region
        $region45: #{tpu_custom_call.1} parent=11 // pred_check
          %p638 = pneg %p307
        $region46: #{tpu_custom_call.1} parent=11 // pred_check_branch
          %640 = sbr.rel (%p638) target = $region48
        $region47: #{tpu_custom_call.1} parent=11 // pred_region
          %s642 = ssub.s32 8192, 8192
          %643 = vsyncadd [#allocation17], %s642
          %s644 = sshll.u32 [#allocation16], 4
          %s645 = int_to_ptr.vmem [resolvable:$true] %s644
          %650 = dma.hbm_to_vmem [thread:$0]  %s11, 8192, %s645, [#allocation17], 128, 128, 8
        $region48: #{tpu_custom_call.1} parent=11 // pred_fallthru
          _
        // Predicated region
        $region49: #{tpu_custom_call.1} parent=11 // pred_check
          %p651 = pneg %p328
        $region50: #{tpu_custom_call.1} parent=11 // pred_check_branch
          %653 = sbr.rel (%p651) target = $region52
        $region51: #{tpu_custom_call.1} parent=11 // pred_region
          %s655 = ssub.s32 8192, 8192
          %656 = vsyncadd [#allocation17], %s655
          %s657 = sshll.u32 [#allocation18], 4
          %s658 = int_to_ptr.vmem [resolvable:$true] %s657
          %663 = dma.hbm_to_vmem [thread:$0]  %s12, 8192, %s658, [#allocation17], 128, 128, 8
        $region52: #{tpu_custom_call.1} parent=11 // pred_fallthru
          _
        // Predicated region
        $region53: #{tpu_custom_call.1} parent=11 // pred_check
          %p664 = pneg %p349
        $region54: #{tpu_custom_call.1} parent=11 // pred_check_branch
          %666 = sbr.rel (%p664) target = $region56
        $region55: #{tpu_custom_call.1} parent=11 // pred_region
          _
        $region56: #{tpu_custom_call.1} parent=11 // pred_fallthru
          _
        // Predicated region
        $region57: #{tpu_custom_call.1} parent=11 // pred_check
          %p667 = pneg %p370
        $region58: #{tpu_custom_call.1} parent=11 // pred_check_branch
          %669 = sbr.rel (%p667) target = $region60
        $region59: #{tpu_custom_call.1} parent=11 // pred_region
          %s671 = ssub.s32 4096, 4096
          %672 = vsyncadd [#allocation20], %s671
          %s673 = sshll.u32 [#allocation19], 4
          %s674 = int_to_ptr.vmem [resolvable:$true] %s673
          %679 = dma.hbm_to_vmem [thread:$0]  %s14, 4096, %s674, [#allocation20], 128, 128, 8
        $region60: #{tpu_custom_call.1} parent=11 // pred_fallthru
          _
        // Predicated region
        $region61: #{tpu_custom_call.1} parent=11 // pred_check
          %p680 = pneg %p391
        $region62: #{tpu_custom_call.1} parent=11 // pred_check_branch
          %682 = sbr.rel (%p680) target = $region64
        $region63: #{tpu_custom_call.1} parent=11 // pred_region
          %s684 = ssub.s32 4096, 4096
          %685 = vsyncadd [#allocation20], %s684
          %s686 = sshll.u32 [#allocation21], 4
          %s687 = int_to_ptr.vmem [resolvable:$true] %s686
          %692 = dma.hbm_to_vmem [thread:$0]  %s15, 4096, %s687, [#allocation20], 128, 128, 8
        $region64: #{tpu_custom_call.1} parent=11 // pred_fallthru
          _
        // Predicated region
        $region65: #{tpu_custom_call.1} parent=11 // pred_check
          %p693 = pneg %p412
        $region66: #{tpu_custom_call.1} parent=11 // pred_check_branch
          %695 = sbr.rel (%p693) target = $region68
        $region67: #{tpu_custom_call.1} parent=11 // pred_region
          _
        $region68: #{tpu_custom_call.1} parent=11 // pred_fallthru
          _
        // Predicated region
        $region69: #{tpu_custom_call.1} parent=11 // pred_check
          %p696 = pneg %p433
        $region70: #{tpu_custom_call.1} parent=11 // pred_check_branch
          %698 = sbr.rel (%p696) target = $region72
        $region71: #{tpu_custom_call.1} parent=11 // pred_region
          %s700 = ssub.s32 4096, 4096
          %701 = vsyncadd [#allocation23], %s700
          %s702 = sshll.u32 [#allocation22], 4
          %s703 = int_to_ptr.vmem [resolvable:$true] %s702
          %708 = dma.hbm_to_vmem [thread:$0]  %s17, 4096, %s703, [#allocation23], 128, 128, 8
        $region72: #{tpu_custom_call.1} parent=11 // pred_fallthru
          _
        // Predicated region
        $region73: #{tpu_custom_call.1} parent=11 // pred_check
          %p709 = pneg %p454
        $region74: #{tpu_custom_call.1} parent=11 // pred_check_branch
          %711 = sbr.rel (%p709) target = $region76
        $region75: #{tpu_custom_call.1} parent=11 // pred_region
          _
        $region76: #{tpu_custom_call.1} parent=11 // pred_fallthru
          _
        // Predicated region
        $region77: #{tpu_custom_call.1} parent=11 // pred_check
          %p712 = pneg %p475
        $region78: #{tpu_custom_call.1} parent=11 // pred_check_branch
          %714 = sbr.rel (%p712) target = $region80
        $region79: #{tpu_custom_call.1} parent=11 // pred_region
          _
        $region80: #{tpu_custom_call.1} parent=11 // pred_fallthru
          _
        // Predicated region
        $region81: #{tpu_custom_call.1} parent=11 // pred_check
          %p715 = pneg %p496
        $region82: #{tpu_custom_call.1} parent=11 // pred_check_branch
          %717 = sbr.rel (%p715) target = $region84
        $region83: #{tpu_custom_call.1} parent=11 // pred_region
          %s719 = ssub.s32 2048, 2048
          %720 = vsyncadd [#allocation23], %s719
          %s721 = sshll.u32 [#allocation24], 4
          %s722 = int_to_ptr.vmem [resolvable:$true] %s721
          %727 = dma.hbm_to_vmem [thread:$0]  %s20, 2048, %s722, [#allocation23], 64, 64, 4
        $region84: #{tpu_custom_call.1} parent=11 // pred_fallthru
          _
        // Predicated region
        $region85: #{tpu_custom_call.1} parent=11 // pred_check
          %p728 = pneg %p517
        $region86: #{tpu_custom_call.1} parent=11 // pred_check_branch
          %730 = sbr.rel (%p728) target = $region88
        $region87: #{tpu_custom_call.1} parent=11 // pred_region
          _
        $region88: #{tpu_custom_call.1} parent=11 // pred_fallthru
          _
      $region12: #{tpu_custom_call.1} parent=5 // pred_fallthru
        _
      %p731 = scmp.lt.s32.totalorder %s40, 2
      // Predicated region
      $region89: #{tpu_custom_call.1} parent=5 // pred_check
        %p732 = pneg %p731
      $region90: #{tpu_custom_call.1} parent=5 // pred_check_branch
        %734 = sbr.rel (%p732) target = $region92
      $region91: #{tpu_custom_call.1} parent=5 // pred_region
        // Predicated region
        $region93: #{tpu_custom_call.1} parent=91 // pred_check
          %p735 = pneg %p60
        $region94: #{tpu_custom_call.1} parent=91 // pred_check_branch
          %737 = sbr.rel (%p735) target = $region96
        $region95: #{tpu_custom_call.1} parent=91 // pred_region
          %s738 = sand.u32 %s50, 1
          %s739 = scalar_lea.sflag [#allocation3], %s738
          %s740 = sand.u32 %s50, 1
          %s741 = smul.addr %s740, 16
          %s742 = scalar_lea.vmem [#allocation2], %s741
          %s744 = ssub.s32 256, 256
          %745 = vsyncadd %s739, %s744
          %s746 = smul.addr %s40, 2
          %s747 = smul.addr %s746, 128
          %s748 = scalar_lea.hbm %s0, %s747
          %s749 = sshll.u32 %s742, 4
          %s750 = int_to_ptr.vmem [resolvable:$true] %s749
          %755 = dma.hbm_to_vmem [thread:$0]  %s748, 256, %s750, %s739, 128, 128, 8
        $region96: #{tpu_custom_call.1} parent=91 // pred_fallthru
          _
        // Predicated region
        $region97: #{tpu_custom_call.1} parent=91 // pred_check
          %p756 = pneg %p86
        $region98: #{tpu_custom_call.1} parent=91 // pred_check_branch
          %758 = sbr.rel (%p756) target = $region100
        $region99: #{tpu_custom_call.1} parent=91 // pred_region
          %s759 = sand.u32 %s40, 1
          %s760 = scalar_lea.sflag [#allocation5], %s759
          %s761 = sand.u32 %s76, 1
          %s762 = smul.addr %s761, 8
          %s763 = scalar_lea.vmem [#allocation4], %s762
          %s765 = ssub.s32 128, 128
          %766 = vsyncadd %s760, %s765
          %s767 = smul.addr %s40, 2
          %s768 = smul.addr %s767, 64
          %s769 = scalar_lea.hbm %s1, %s768
          %s770 = sshll.u32 %s763, 4
          %s771 = int_to_ptr.vmem [resolvable:$true] %s770
          %776 = dma.hbm_to_vmem [thread:$0]  %s769, 128, %s771, %s760, 64, 64, 4
        $region100: #{tpu_custom_call.1} parent=91 // pred_fallthru
          _
        // Predicated region
        $region101: #{tpu_custom_call.1} parent=91 // pred_check
          %p777 = pneg %p112
        $region102: #{tpu_custom_call.1} parent=91 // pred_check_branch
          %779 = sbr.rel (%p777) target = $region104
        $region103: #{tpu_custom_call.1} parent=91 // pred_region
          %s780 = sand.u32 %s40, 1
          %s781 = scalar_lea.sflag [#allocation5], %s780
          %s782 = sand.u32 %s102, 1
          %s783 = smul.addr %s782, 4
          %s784 = scalar_lea.vmem [#allocation6], %s783
          %s786 = ssub.s32 64, 64
          %787 = vsyncadd %s781, %s786
          %s788 = smul.addr %s40, 64
          %s789 = scalar_lea.hbm %s2, %s788
          %s791 = sshll.u32 %s784, 4
          %s792 = int_to_ptr.vmem [resolvable:$true] %s791
          %794 = dma.hbm_to_vmem [thread:$0]  %s789, 64, %s792, %s781
        $region104: #{tpu_custom_call.1} parent=91 // pred_fallthru
          _
      $region92: #{tpu_custom_call.1} parent=5 // pred_fallthru
        _
      %p795 = scmp.le.s32.totalorder 1, %s40
      %p796 = scmp.lt.s32.totalorder %s40, 3
      %p797 = pnand %p795, %p796
      %p798 = pneg %p797
      // Predicated region
      $region105: #{tpu_custom_call.1} parent=5 // pred_check
        _
      $region106: #{tpu_custom_call.1} parent=5 // pred_check_branch
        %800 = sbr.rel (%p797) target = $region108
      $region107: #{tpu_custom_call.1} parent=5 // pred_region
        %s801 = ssub.s32 %s40, 1
        %s802 = sand.u32 %s53, 1
        %s803 = scalar_lea.sflag [#allocation3], %s802
        %s804 = sand.u32 %s53, 1
        %s805 = smul.addr %s804, 16
        %s806 = scalar_lea.vmem [#allocation2], %s805
        // Predicated region
        $region109: #{tpu_custom_call.1} parent=107 // pred_check
          %p807 = pneg %p66
        $region110: #{tpu_custom_call.1} parent=107 // pred_check_branch
          %809 = sbr.rel (%p807) target = $region112
        $region111: #{tpu_custom_call.1} parent=107 // pred_region
          %810 = dma.done %s803, 256
        $region112: #{tpu_custom_call.1} parent=107 // pred_fallthru
          _
        %s811 = sand.u32 %s45, 1
        %s812 = scalar_lea.sflag [#allocation5], %s811
        %s813 = sand.u32 %s79, 1
        %s814 = smul.addr %s813, 8
        %s815 = scalar_lea.vmem [#allocation4], %s814
        // Predicated region
        $region113: #{tpu_custom_call.1} parent=107 // pred_check
          %p816 = pneg %p92
        $region114: #{tpu_custom_call.1} parent=107 // pred_check_branch
          %818 = sbr.rel (%p816) target = $region116
        $region115: #{tpu_custom_call.1} parent=107 // pred_region
          %819 = dma.done %s812, 128
        $region116: #{tpu_custom_call.1} parent=107 // pred_fallthru
          _
        %s820 = sand.u32 %s45, 1
        %s821 = scalar_lea.sflag [#allocation5], %s820
        %s822 = sand.u32 %s105, 1
        %s823 = smul.addr %s822, 4
        %s824 = scalar_lea.vmem [#allocation6], %s823
        // Predicated region
        $region117: #{tpu_custom_call.1} parent=107 // pred_check
          %p825 = pneg %p118
        $region118: #{tpu_custom_call.1} parent=107 // pred_check_branch
          %827 = sbr.rel (%p825) target = $region120
        $region119: #{tpu_custom_call.1} parent=107 // pred_region
          %828 = dma.done %s821, 64
        $region120: #{tpu_custom_call.1} parent=107 // pred_fallthru
          _
        // Predicated region
        $region121: #{tpu_custom_call.1} parent=107 // pred_check
          %p829 = pneg %p139
        $region122: #{tpu_custom_call.1} parent=107 // pred_check_branch
          %831 = sbr.rel (%p829) target = $region124
        $region123: #{tpu_custom_call.1} parent=107 // pred_region
          %832 = dma.done [#allocation8], 16
        $region124: #{tpu_custom_call.1} parent=107 // pred_fallthru
          _
        // Predicated region
        $region125: #{tpu_custom_call.1} parent=107 // pred_check
          %p833 = pneg %p160
        $region126: #{tpu_custom_call.1} parent=107 // pred_check_branch
          %835 = sbr.rel (%p833) target = $region128
        $region127: #{tpu_custom_call.1} parent=107 // pred_region
          %836 = dma.done [#allocation8], 16
        $region128: #{tpu_custom_call.1} parent=107 // pred_fallthru
          _
        // Predicated region
        $region129: #{tpu_custom_call.1} parent=107 // pred_check
          %p837 = pneg %p181
        $region130: #{tpu_custom_call.1} parent=107 // pred_check_branch
          %839 = sbr.rel (%p837) target = $region132
        $region131: #{tpu_custom_call.1} parent=107 // pred_region
          %840 = dma.done [#allocation11], 1024
        $region132: #{tpu_custom_call.1} parent=107 // pred_fallthru
          _
        // Predicated region
        $region133: #{tpu_custom_call.1} parent=107 // pred_check
          %p841 = pneg %p202
        $region134: #{tpu_custom_call.1} parent=107 // pred_check_branch
          %843 = sbr.rel (%p841) target = $region136
        $region135: #{tpu_custom_call.1} parent=107 // pred_region
          %844 = dma.done [#allocation11], 1024
        $region136: #{tpu_custom_call.1} parent=107 // pred_fallthru
          _
        // Predicated region
        $region137: #{tpu_custom_call.1} parent=107 // pred_check
          %p845 = pneg %p244
        $region138: #{tpu_custom_call.1} parent=107 // pred_check_branch
          %847 = sbr.rel (%p845) target = $region140
        $region139: #{tpu_custom_call.1} parent=107 // pred_region
          %848 = dma.done [#allocation14], 16384
        $region140: #{tpu_custom_call.1} parent=107 // pred_fallthru
          _
        // Predicated region
        $region141: #{tpu_custom_call.1} parent=107 // pred_check
          %p849 = pneg %p265
        $region142: #{tpu_custom_call.1} parent=107 // pred_check_branch
          %851 = sbr.rel (%p849) target = $region144
        $region143: #{tpu_custom_call.1} parent=107 // pred_region
          %852 = dma.done [#allocation14], 16384
        $region144: #{tpu_custom_call.1} parent=107 // pred_fallthru
          _
        // Predicated region
        $region145: #{tpu_custom_call.1} parent=107 // pred_check
          %p853 = pneg %p307
        $region146: #{tpu_custom_call.1} parent=107 // pred_check_branch
          %855 = sbr.rel (%p853) target = $region148
        $region147: #{tpu_custom_call.1} parent=107 // pred_region
          %856 = dma.done [#allocation17], 8192
        $region148: #{tpu_custom_call.1} parent=107 // pred_fallthru
          _
        // Predicated region
        $region149: #{tpu_custom_call.1} parent=107 // pred_check
          %p857 = pneg %p328
        $region150: #{tpu_custom_call.1} parent=107 // pred_check_branch
          %859 = sbr.rel (%p857) target = $region152
        $region151: #{tpu_custom_call.1} parent=107 // pred_region
          %860 = dma.done [#allocation17], 8192
        $region152: #{tpu_custom_call.1} parent=107 // pred_fallthru
          _
        // Predicated region
        $region153: #{tpu_custom_call.1} parent=107 // pred_check
          %p861 = pneg %p370
        $region154: #{tpu_custom_call.1} parent=107 // pred_check_branch
          %863 = sbr.rel (%p861) target = $region156
        $region155: #{tpu_custom_call.1} parent=107 // pred_region
          %864 = dma.done [#allocation20], 4096
        $region156: #{tpu_custom_call.1} parent=107 // pred_fallthru
          _
        // Predicated region
        $region157: #{tpu_custom_call.1} parent=107 // pred_check
          %p865 = pneg %p391
        $region158: #{tpu_custom_call.1} parent=107 // pred_check_branch
          %867 = sbr.rel (%p865) target = $region160
        $region159: #{tpu_custom_call.1} parent=107 // pred_region
          %868 = dma.done [#allocation20], 4096
        $region160: #{tpu_custom_call.1} parent=107 // pred_fallthru
          _
        // Predicated region
        $region161: #{tpu_custom_call.1} parent=107 // pred_check
          %p869 = pneg %p433
        $region162: #{tpu_custom_call.1} parent=107 // pred_check_branch
          %871 = sbr.rel (%p869) target = $region164
        $region163: #{tpu_custom_call.1} parent=107 // pred_region
          %872 = dma.done [#allocation23], 4096
        $region164: #{tpu_custom_call.1} parent=107 // pred_fallthru
          _
        // Predicated region
        $region165: #{tpu_custom_call.1} parent=107 // pred_check
          %p873 = pneg %p496
        $region166: #{tpu_custom_call.1} parent=107 // pred_check_branch
          %875 = sbr.rel (%p873) target = $region168
        $region167: #{tpu_custom_call.1} parent=107 // pred_region
          %876 = dma.done [#allocation23], 2048
        $region168: #{tpu_custom_call.1} parent=107 // pred_fallthru
          _
        %s877 = sand.u32 %s53, 1
        %s878 = scalar_lea.sflag [#allocation3], %s877
        %s879 = sand.u32 %s53, 1
        %s880 = smul.addr %s879, 16
        %s881 = scalar_lea.vmem [#allocation2], %s880
        %p882 = pneg %p66
        %p883 = pneg %p63
        %s884 = sand.u32 %s45, 1
        %s885 = scalar_lea.sflag [#allocation5], %s884
        %s886 = sand.u32 %s79, 1
        %s887 = smul.addr %s886, 8
        %s888 = scalar_lea.vmem [#allocation4], %s887
        %p889 = pneg %p92
        %p890 = pneg %p89
        %s891 = sand.u32 %s45, 1
        %s892 = scalar_lea.sflag [#allocation5], %s891
        %s893 = sand.u32 %s105, 1
        %s894 = smul.addr %s893, 4
        %s895 = scalar_lea.vmem [#allocation6], %s894
        %p896 = pneg %p118
        %p897 = pneg %p115
        %p898 = pneg %p139
        %p899 = pneg %p136
        %p900 = pneg %p160
        %p901 = pneg %p157
        %p902 = pneg %p181
        %p903 = pneg %p178
        %p904 = pneg %p202
        %p905 = pneg %p199
        %p906 = pneg %p223
        %p907 = pneg %p220
        %p908 = pneg %p244
        %p909 = pneg %p241
        %p910 = pneg %p265
        %p911 = pneg %p262
        %p912 = pneg %p286
        %p913 = pneg %p283
        %p914 = pneg %p307
        %p915 = pneg %p304
        %p916 = pneg %p328
        %p917 = pneg %p325
        %p918 = pneg %p349
        %p919 = pneg %p346
        %p920 = pneg %p370
        %p921 = pneg %p367
        %p922 = pneg %p391
        %p923 = pneg %p388
        %p924 = pneg %p412
        %p925 = pneg %p409
        %p926 = pneg %p433
        %p927 = pneg %p430
        %p928 = pneg %p454
        %p929 = pneg %p451
        %p930 = pneg %p475
        %p931 = pneg %p472
        %p932 = pneg %p496
        %p933 = pneg %p493
        %p934 = pneg %p517
        %p935 = pneg %p514
        %p936 = pneg %p543
        %p937 = pneg %p540
        %p938 = scmp.lt.s32.totalorder %s45, 1
        %s939 = scalar_select %p938, %s45, 1
        %s940 = smul.addr %s939, 8
        %s941 = scalar_lea.vmem %s22, %s940
        %p942 = scmp.lt.s32.totalorder %s45, 1
        %s943 = scalar_select %p942, %s45, 1
        %s944 = smul.addr %s943, 8
        %s945 = scalar_lea.vmem %s22, %s944
        %v947 = vld [vmem:[%s806] sm:$0xff]
        %v948 = vld [vmem:[%s806 + $0x8] sm:$0xff]
        %v949 = vld [vmem:[#allocation7] sm:$0x1]
        %v951 = vlaneseq
        %v952 = vshrl.u32 %v951, 7
        %v953 = vsub.s32 0, %v952
        %v954 = vrot.slane %v949, %v953
        %v956 = vsub.f32 %v947, %v954
        %v957 = vsub.f32 %v948, %v954
        %v958 = vld [vmem:[#allocation9] sm:$0x1]
        %v960 = vlaneseq
        %v961 = vshrl.u32 %v960, 7
        %v962 = vsub.s32 0, %v961
        %v963 = vrot.slane %v958, %v962
        %v965 = vmul.f32 %v956, %v963
        %v966 = vmul.f32 %v957, %v963
        %v967 = vpack.c.bf16 %v966, %v965
        %v968 = vld [vmem:[%s815] sm:$0xf]
        %v969 = vld [vmem:[%s815 + $0x4] sm:$0xf]
        %v972 = vunpack.c.l.b16 %v968
        %v973 = vunpack.c.l.b16 %v969
        %v974 = vpack.c.b16 %v973, %v972
        %vm975 = vcmask 130048
        %v977 = vsel %vm975, %v974, 0
        %979 = vmatprep.subr.bf16.mxu0 0
        %980 = vmatpush1.bf16.msra.mxu0 0
        %981 = vmatprep.subr.bf16.mxu0 0
        %982 = vmatpush1.bf16.msra.mxu0 0
        %983 = vmatprep.subr.bf16.mxu0 0
        %984 = vmatpush1.bf16.msra.mxu0 0
        %985 = vmatprep.subr.bf16.mxu0 0
        %986 = vmatpush1.bf16.msra.mxu0 0
        %987 = vmatprep.subr.bf16.mxu0 0
        %988 = vmatpush1.bf16.msra.mxu0 0
        %989 = vmatprep.subr.bf16.mxu0 0
        %990 = vmatpush1.bf16.msra.mxu0 0
        %991 = vmatprep.subr.bf16.mxu0 0
        %992 = vmatpush1.bf16.msra.mxu0 0
        %993 = vmatprep.subr.bf16.mxu0 0
        %994 = vmatpush1.bf16.msra.mxu0 %v967
        %995 = vmatprep.subr.bf16.mxu0 0
        %996 = vmatpush2.bf16.msra.mxu0 0
        %997 = vmatprep.subr.bf16.mxu0 0
        %998 = vmatpush2.bf16.msra.mxu0 0
        %999 = vmatprep.subr.bf16.mxu0 0
        %1000 = vmatpush2.bf16.msra.mxu0 0
        %1001 = vmatprep.subr.bf16.mxu0 0
        %1002 = vmatpush2.bf16.msra.mxu0 0
        %1003 = vmatprep.subr.bf16.mxu0 0
        %1004 = vmatpush2.bf16.msra.mxu0 0
        %1005 = vmatprep.subr.bf16.mxu0 0
        %1006 = vmatpush2.bf16.msra.mxu0 0
        %1007 = vmatprep.subr.bf16.mxu0 0
        %1008 = vmatpush2.bf16.msra.mxu0 0
        %1009 = vmatprep.subr.bf16.mxu0 0
        %1010 = vmatpush2.bf16.msra.mxu0 0
        %1011 = vmatprep.mubr.bf16.mxu0 0
        %1012 = vmatmul.mubr.bf16.gmra.mxu0 %v977
        %v1013 = vpop.f32.mrf.mxu0
        %v1014 = vadd.f32 0.0, %v1013
        %v1015 = vpop.f32.mrf.mxu0
        %v1016 = vpop.f32.mrf.mxu0
        %v1017 = vadd.f32 0.0, %v1016
        %v1018 = vpop.f32.mrf.mxu0
        %1019 = vdwg.mxu0
        %v1020 = vld [vmem:[#allocation10] sm:$0xff]
        %v1021 = vld [vmem:[#allocation10 + $0x8] sm:$0xff]
        %v1022 = vld [vmem:[#allocation10 + $0x10] sm:$0xff]
        %v1023 = vld [vmem:[#allocation10 + $0x18] sm:$0xff]
        %v1024 = vld [vmem:[#allocation10 + $0x20] sm:$0xff]
        %v1025 = vld [vmem:[#allocation10 + $0x28] sm:$0xff]
        %v1026 = vld [vmem:[#allocation10 + $0x30] sm:$0xff]
        %v1027 = vld [vmem:[#allocation10 + $0x38] sm:$0xff]
        %v1028 = vpack.c.bf16 %v1017, %v1014
        %v1029 = vld [vmem:[#allocation12] sm:$0xff]
        %v1030 = vld [vmem:[#allocation12 + $0x8] sm:$0xff]
        %v1031 = vld [vmem:[#allocation12 + $0x10] sm:$0xff]
        %v1032 = vld [vmem:[#allocation12 + $0x18] sm:$0xff]
        %v1033 = vld [vmem:[#allocation12 + $0x20] sm:$0xff]
        %v1034 = vld [vmem:[#allocation12 + $0x28] sm:$0xff]
        %v1035 = vld [vmem:[#allocation12 + $0x30] sm:$0xff]
        %v1036 = vld [vmem:[#allocation12 + $0x38] sm:$0xff]
        %v1045 = vunpack.c.l.b16 %v1029
        %v1046 = vunpack.c.h.b16 %v1029
        %v1047 = vunpack.c.l.b16 %v1030
        %v1048 = vunpack.c.h.b16 %v1030
        %v1049 = vunpack.c.l.b16 %v1031
        %v1050 = vunpack.c.h.b16 %v1031
        %v1051 = vunpack.c.l.b16 %v1032
        %v1052 = vunpack.c.h.b16 %v1032
        %v1053 = vunpack.c.l.b16 %v1033
        %v1054 = vunpack.c.h.b16 %v1033
        %v1055 = vunpack.c.l.b16 %v1034
        %v1056 = vunpack.c.h.b16 %v1034
        %v1057 = vunpack.c.l.b16 %v1035
        %v1058 = vunpack.c.h.b16 %v1035
        %v1059 = vunpack.c.l.b16 %v1036
        %v1060 = vunpack.c.h.b16 %v1036
        %v1061 = vpack.c.b16 %v1049, %v1045
        %v1062 = vpack.c.b16 %v1050, %v1046
        %v1063 = vpack.c.b16 %v1051, %v1047
        %v1064 = vpack.c.b16 %v1052, %v1048
        %v1065 = vpack.c.b16 %v1057, %v1053
        %v1066 = vpack.c.b16 %v1058, %v1054
        %v1067 = vpack.c.b16 %v1059, %v1055
        %v1068 = vpack.c.b16 %v1060, %v1056
        %vm1077 = vcmask 261120
        %v1079 = vsel %vm1077, %v1028, 0
        %1081 = vmatprep.subr.bf16.mxu0 0
        %1082 = vmatpush1.bf16.msra.mxu0 0
        %1083 = vmatprep.subr.bf16.mxu0 0
        %1084 = vmatpush1.bf16.msra.mxu0 0
        %1085 = vmatprep.subr.bf16.mxu0 0
        %1086 = vmatpush1.bf16.msra.mxu0 0
        %1087 = vmatprep.subr.bf16.mxu0 0
        %1088 = vmatpush1.bf16.msra.mxu0 0
        %1089 = vmatprep.subr.bf16.mxu0 0
        %1090 = vmatpush1.bf16.msra.mxu0 0
        %1091 = vmatprep.subr.bf16.mxu0 0
        %1092 = vmatpush1.bf16.msra.mxu0 0
        %1093 = vmatprep.subr.bf16.mxu0 %v1066
        %1094 = vmatpush1.bf16.msra.mxu0 %v1065
        %1095 = vmatprep.subr.bf16.mxu0 %v1062
        %1096 = vmatpush1.bf16.msra.mxu0 %v1061
        %1097 = vmatprep.subr.bf16.mxu0 0
        %1098 = vmatpush2.bf16.msra.mxu0 0
        %1099 = vmatprep.subr.bf16.mxu0 0
        %1100 = vmatpush2.bf16.msra.mxu0 0
        %1101 = vmatprep.subr.bf16.mxu0 0
        %1102 = vmatpush2.bf16.msra.mxu0 0
        %1103 = vmatprep.subr.bf16.mxu0 0
        %1104 = vmatpush2.bf16.msra.mxu0 0
        %1105 = vmatprep.subr.bf16.mxu0 0
        %1106 = vmatpush2.bf16.msra.mxu0 0
        %1107 = vmatprep.subr.bf16.mxu0 0
        %1108 = vmatpush2.bf16.msra.mxu0 0
        %1109 = vmatprep.subr.bf16.mxu0 0
        %1110 = vmatpush2.bf16.msra.mxu0 0
        %1111 = vmatprep.subr.bf16.mxu0 0
        %1112 = vmatpush2.bf16.msra.mxu0 0
        %1113 = vmatprep.mubr.bf16.mxu0 0
        %1114 = vmatmul.mubr.bf16.gmra.mxu0 %v1079
        %v1115 = vpop.f32.mrf.mxu0
        %v1116 = vadd.f32 0.0, %v1115
        %v1117 = vpop.f32.mrf.mxu0
        %v1118 = vadd.f32 0.0, %v1117
        %v1119 = vpop.f32.mrf.mxu0
        %v1120 = vadd.f32 0.0, %v1119
        %v1121 = vpop.f32.mrf.mxu0
        %v1122 = vadd.f32 0.0, %v1121
        %1123 = vdwg.mxu0
        %1124 = vmatprep.subr.bf16.mxu0 0
        %1125 = vmatpush1.bf16.msra.mxu0 0
        %1126 = vmatprep.subr.bf16.mxu0 0
        %1127 = vmatpush1.bf16.msra.mxu0 0
        %1128 = vmatprep.subr.bf16.mxu0 0
        %1129 = vmatpush1.bf16.msra.mxu0 0
        %1130 = vmatprep.subr.bf16.mxu0 0
        %1131 = vmatpush1.bf16.msra.mxu0 0
        %1132 = vmatprep.subr.bf16.mxu0 0
        %1133 = vmatpush1.bf16.msra.mxu0 0
        %1134 = vmatprep.subr.bf16.mxu0 0
        %1135 = vmatpush1.bf16.msra.mxu0 0
        %1136 = vmatprep.subr.bf16.mxu0 %v1068
        %1137 = vmatpush1.bf16.msra.mxu0 %v1067
        %1138 = vmatprep.subr.bf16.mxu0 %v1064
        %1139 = vmatpush1.bf16.msra.mxu0 %v1063
        %1140 = vmatprep.subr.bf16.mxu0 0
        %1141 = vmatpush2.bf16.msra.mxu0 0
        %1142 = vmatprep.subr.bf16.mxu0 0
        %1143 = vmatpush2.bf16.msra.mxu0 0
        %1144 = vmatprep.subr.bf16.mxu0 0
        %1145 = vmatpush2.bf16.msra.mxu0 0
        %1146 = vmatprep.subr.bf16.mxu0 0
        %1147 = vmatpush2.bf16.msra.mxu0 0
        %1148 = vmatprep.subr.bf16.mxu0 0
        %1149 = vmatpush2.bf16.msra.mxu0 0
        %1150 = vmatprep.subr.bf16.mxu0 0
        %1151 = vmatpush2.bf16.msra.mxu0 0
        %1152 = vmatprep.subr.bf16.mxu0 0
        %1153 = vmatpush2.bf16.msra.mxu0 0
        %1154 = vmatprep.subr.bf16.mxu0 0
        %1155 = vmatpush2.bf16.msra.mxu0 0
        %1156 = vmatprep.mubr.bf16.mxu0 0
        %1157 = vmatmul.mubr.bf16.gmra.mxu0 %v1079
        %v1158 = vpop.f32.mrf.mxu0
        %v1159 = vadd.f32 0.0, %v1158
        %v1160 = vpop.f32.mrf.mxu0
        %v1161 = vadd.f32 0.0, %v1160
        %v1162 = vpop.f32.mrf.mxu0
        %v1163 = vadd.f32 0.0, %v1162
        %v1164 = vpop.f32.mrf.mxu0
        %v1165 = vadd.f32 0.0, %v1164
        %1166 = vdwg.mxu0
        %v1175 = vunpack.c.l.b16 %v1020
        %v1176 = vunpack.c.h.b16 %v1020
        %v1177 = vunpack.c.l.b16 %v1021
        %v1178 = vunpack.c.h.b16 %v1021
        %v1179 = vunpack.c.l.b16 %v1022
        %v1180 = vunpack.c.h.b16 %v1022
        %v1181 = vunpack.c.l.b16 %v1023
        %v1182 = vunpack.c.h.b16 %v1023
        %v1183 = vunpack.c.l.b16 %v1024
        %v1184 = vunpack.c.h.b16 %v1024
        %v1185 = vunpack.c.l.b16 %v1025
        %v1186 = vunpack.c.h.b16 %v1025
        %v1187 = vunpack.c.l.b16 %v1026
        %v1188 = vunpack.c.h.b16 %v1026
        %v1189 = vunpack.c.l.b16 %v1027
        %v1190 = vunpack.c.h.b16 %v1027
        %v1191 = vpack.c.b16 %v1179, %v1175
        %v1192 = vpack.c.b16 %v1180, %v1176
        %v1193 = vpack.c.b16 %v1181, %v1177
        %v1194 = vpack.c.b16 %v1182, %v1178
        %v1195 = vpack.c.b16 %v1187, %v1183
        %v1196 = vpack.c.b16 %v1188, %v1184
        %v1197 = vpack.c.b16 %v1189, %v1185
        %v1198 = vpack.c.b16 %v1190, %v1186
        %v1208 = vsel %vm1077, %v967, 0
        %1210 = vmatprep.subr.bf16.mxu0 0
        %1211 = vmatpush1.bf16.msra.mxu0 0
        %1212 = vmatprep.subr.bf16.mxu0 0
        %1213 = vmatpush1.bf16.msra.mxu0 0
        %1214 = vmatprep.subr.bf16.mxu0 0
        %1215 = vmatpush1.bf16.msra.mxu0 0
        %1216 = vmatprep.subr.bf16.mxu0 0
        %1217 = vmatpush1.bf16.msra.mxu0 0
        %1218 = vmatprep.subr.bf16.mxu0 0
        %1219 = vmatpush1.bf16.msra.mxu0 0
        %1220 = vmatprep.subr.bf16.mxu0 0
        %1221 = vmatpush1.bf16.msra.mxu0 0
        %1222 = vmatprep.subr.bf16.mxu0 %v1196
        %1223 = vmatpush1.bf16.msra.mxu0 %v1195
        %1224 = vmatprep.subr.bf16.mxu0 %v1192
        %1225 = vmatpush1.bf16.msra.mxu0 %v1191
        %1226 = vmatprep.subr.bf16.mxu0 0
        %1227 = vmatpush2.bf16.msra.mxu0 0
        %1228 = vmatprep.subr.bf16.mxu0 0
        %1229 = vmatpush2.bf16.msra.mxu0 0
        %1230 = vmatprep.subr.bf16.mxu0 0
        %1231 = vmatpush2.bf16.msra.mxu0 0
        %1232 = vmatprep.subr.bf16.mxu0 0
        %1233 = vmatpush2.bf16.msra.mxu0 0
        %1234 = vmatprep.subr.bf16.mxu0 0
        %1235 = vmatpush2.bf16.msra.mxu0 0
        %1236 = vmatprep.subr.bf16.mxu0 0
        %1237 = vmatpush2.bf16.msra.mxu0 0
        %1238 = vmatprep.subr.bf16.mxu0 0
        %1239 = vmatpush2.bf16.msra.mxu0 0
        %1240 = vmatprep.subr.bf16.mxu0 0
        %1241 = vmatpush2.bf16.msra.mxu0 0
        %1242 = vmatprep.mubr.bf16.mxu0 0
        %1243 = vmatmul.mubr.bf16.gmra.mxu0 %v1208
        %v1244 = vpop.f32.mrf.mxu0
        %v1245 = vadd.f32 %v1116, %v1244
        %v1246 = vpop.f32.mrf.mxu0
        %v1247 = vadd.f32 %v1118, %v1246
        %v1248 = vpop.f32.mrf.mxu0
        %v1249 = vadd.f32 %v1120, %v1248
        %v1250 = vpop.f32.mrf.mxu0
        %v1251 = vadd.f32 %v1122, %v1250
        %1252 = vdwg.mxu0
        %1253 = vmatprep.subr.bf16.mxu0 0
        %1254 = vmatpush1.bf16.msra.mxu0 0
        %1255 = vmatprep.subr.bf16.mxu0 0
        %1256 = vmatpush1.bf16.msra.mxu0 0
        %1257 = vmatprep.subr.bf16.mxu0 0
        %1258 = vmatpush1.bf16.msra.mxu0 0
        %1259 = vmatprep.subr.bf16.mxu0 0
        %1260 = vmatpush1.bf16.msra.mxu0 0
        %1261 = vmatprep.subr.bf16.mxu0 0
        %1262 = vmatpush1.bf16.msra.mxu0 0
        %1263 = vmatprep.subr.bf16.mxu0 0
        %1264 = vmatpush1.bf16.msra.mxu0 0
        %1265 = vmatprep.subr.bf16.mxu0 %v1198
        %1266 = vmatpush1.bf16.msra.mxu0 %v1197
        %1267 = vmatprep.subr.bf16.mxu0 %v1194
        %1268 = vmatpush1.bf16.msra.mxu0 %v1193
        %1269 = vmatprep.subr.bf16.mxu0 0
        %1270 = vmatpush2.bf16.msra.mxu0 0
        %1271 = vmatprep.subr.bf16.mxu0 0
        %1272 = vmatpush2.bf16.msra.mxu0 0
        %1273 = vmatprep.subr.bf16.mxu0 0
        %1274 = vmatpush2.bf16.msra.mxu0 0
        %1275 = vmatprep.subr.bf16.mxu0 0
        %1276 = vmatpush2.bf16.msra.mxu0 0
        %1277 = vmatprep.subr.bf16.mxu0 0
        %1278 = vmatpush2.bf16.msra.mxu0 0
        %1279 = vmatprep.subr.bf16.mxu0 0
        %1280 = vmatpush2.bf16.msra.mxu0 0
        %1281 = vmatprep.subr.bf16.mxu0 0
        %1282 = vmatpush2.bf16.msra.mxu0 0
        %1283 = vmatprep.subr.bf16.mxu0 0
        %1284 = vmatpush2.bf16.msra.mxu0 0
        %1285 = vmatprep.mubr.bf16.mxu0 0
        %1286 = vmatmul.mubr.bf16.gmra.mxu0 %v1208
        %v1287 = vpop.f32.mrf.mxu0
        %v1288 = vadd.f32 %v1159, %v1287
        %v1289 = vpop.f32.mrf.mxu0
        %v1290 = vadd.f32 %v1161, %v1289
        %v1291 = vpop.f32.mrf.mxu0
        %v1292 = vadd.f32 %v1163, %v1291
        %v1293 = vpop.f32.mrf.mxu0
        %v1294 = vadd.f32 %v1165, %v1293
        %1295 = vdwg.mxu0
        %v1296 = vld [vmem:[%s7] sm:$0xf]
        %v1298 = vlaneseq
        %v1299 = vshrl.u32 %v1298, 7
        %v1300 = vsub.s32 0, %v1299
        %v1301 = vrot.slane %v1296, %v1300
        %v1302 = vlaneseq
        %v1303 = vshrl.u32 %v1302, 7
        %v1304 = vsub.s32 1, %v1303
        %v1305 = vrot.slane %v1296, %v1304
        %v1306 = vlaneseq
        %v1307 = vshrl.u32 %v1306, 7
        %v1308 = vsub.s32 2, %v1307
        %v1309 = vrot.slane %v1296, %v1308
        %v1310 = vlaneseq
        %v1311 = vshrl.u32 %v1310, 7
        %v1312 = vsub.s32 3, %v1311
        %v1313 = vrot.slane %v1296, %v1312
        %v1318 = vadd.f32 %v1245, %v1301
        %v1319 = vadd.f32 %v1247, %v1305
        %v1320 = vadd.f32 %v1288, %v1309
        %v1321 = vadd.f32 %v1290, %v1313
        %v1322 = vadd.f32 %v1249, %v1301
        %v1323 = vadd.f32 %v1251, %v1305
        %v1324 = vadd.f32 %v1292, %v1309
        %v1325 = vadd.f32 %v1294, %v1313
        %v1326 = vmax.f32 %v1318, 0.0
        %v1327 = vmax.f32 %v1319, 0.0
        %v1328 = vmax.f32 %v1320, 0.0
        %v1329 = vmax.f32 %v1321, 0.0
        %v1330 = vmax.f32 %v1322, 0.0
        %v1331 = vmax.f32 %v1323, 0.0
        %v1332 = vmax.f32 %v1324, 0.0
        %v1333 = vmax.f32 %v1325, 0.0
        %v1334 = vpack.c.bf16 %v1330, %v1326
        %v1335 = vpack.c.bf16 %v1331, %v1327
        %v1336 = vpack.c.bf16 %v1332, %v1328
        %v1337 = vpack.c.bf16 %v1333, %v1329
        %1338 = vmatprep.subr.bf16.mxu0 0
        %1339 = vmatpush1.bf16.msra.mxu0 0
        %1340 = vmatprep.subr.bf16.mxu0 0
        %1341 = vmatpush1.bf16.msra.mxu0 0
        %1342 = vmatprep.subr.bf16.mxu0 0
        %1343 = vmatpush1.bf16.msra.mxu0 0
        %1344 = vmatprep.subr.bf16.mxu0 0
        %1345 = vmatpush1.bf16.msra.mxu0 0
        %1346 = vmatprep.subr.bf16.mxu0 0
        %1347 = vmatpush1.bf16.msra.mxu0 0
        %1348 = vmatprep.subr.bf16.mxu0 0
        %1349 = vmatpush1.bf16.msra.mxu0 0
        %1350 = vmatprep.subr.bf16.mxu0 0
        %1351 = vmatpush1.bf16.msra.mxu0 0
        %1352 = vmatprep.subr.bf16.mxu0 %v1335
        %1353 = vmatpush1.bf16.msra.mxu0 %v1334
        %1354 = vmatprep.subr.bf16.mxu0 0
        %1355 = vmatpush2.bf16.msra.mxu0 0
        %1356 = vmatprep.subr.bf16.mxu0 0
        %1357 = vmatpush2.bf16.msra.mxu0 0
        %1358 = vmatprep.subr.bf16.mxu0 0
        %1359 = vmatpush2.bf16.msra.mxu0 0
        %1360 = vmatprep.subr.bf16.mxu0 0
        %1361 = vmatpush2.bf16.msra.mxu0 0
        %1362 = vmatprep.subr.bf16.mxu0 0
        %1363 = vmatpush2.bf16.msra.mxu0 0
        %1364 = vmatprep.subr.bf16.mxu0 0
        %1365 = vmatpush2.bf16.msra.mxu0 0
        %1366 = vmatprep.subr.bf16.mxu0 0
        %1367 = vmatpush2.bf16.msra.mxu0 0
        %1368 = vmatprep.subr.bf16.mxu0 0
        %1369 = vmatpush2.bf16.msra.mxu0 0
        %1370 = vmatprep.mubr.bf16.mxu0 0
        %1371 = vmatmul.mubr.bf16.gmra.mxu0 %v977
        %v1372 = vpop.f32.mrf.mxu0
        %v1373 = vadd.f32 0.0, %v1372
        %v1374 = vpop.f32.mrf.mxu0
        %v1375 = vadd.f32 0.0, %v1374
        %v1376 = vpop.f32.mrf.mxu0
        %v1377 = vadd.f32 0.0, %v1376
        %v1378 = vpop.f32.mrf.mxu0
        %v1379 = vadd.f32 0.0, %v1378
        %1380 = vdwg.mxu0
        %1381 = vmatprep.subr.bf16.mxu0 0
        %1382 = vmatpush1.bf16.msra.mxu0 0
        %1383 = vmatprep.subr.bf16.mxu0 0
        %1384 = vmatpush1.bf16.msra.mxu0 0
        %1385 = vmatprep.subr.bf16.mxu0 0
        %1386 = vmatpush1.bf16.msra.mxu0 0
        %1387 = vmatprep.subr.bf16.mxu0 0
        %1388 = vmatpush1.bf16.msra.mxu0 0
        %1389 = vmatprep.subr.bf16.mxu0 0
        %1390 = vmatpush1.bf16.msra.mxu0 0
        %1391 = vmatprep.subr.bf16.mxu0 0
        %1392 = vmatpush1.bf16.msra.mxu0 0
        %1393 = vmatprep.subr.bf16.mxu0 0
        %1394 = vmatpush1.bf16.msra.mxu0 0
        %1395 = vmatprep.subr.bf16.mxu0 %v1337
        %1396 = vmatpush1.bf16.msra.mxu0 %v1336
        %1397 = vmatprep.subr.bf16.mxu0 0
        %1398 = vmatpush2.bf16.msra.mxu0 0
        %1399 = vmatprep.subr.bf16.mxu0 0
        %1400 = vmatpush2.bf16.msra.mxu0 0
        %1401 = vmatprep.subr.bf16.mxu0 0
        %1402 = vmatpush2.bf16.msra.mxu0 0
        %1403 = vmatprep.subr.bf16.mxu0 0
        %1404 = vmatpush2.bf16.msra.mxu0 0
        %1405 = vmatprep.subr.bf16.mxu0 0
        %1406 = vmatpush2.bf16.msra.mxu0 0
        %1407 = vmatprep.subr.bf16.mxu0 0
        %1408 = vmatpush2.bf16.msra.mxu0 0
        %1409 = vmatprep.subr.bf16.mxu0 0
        %1410 = vmatpush2.bf16.msra.mxu0 0
        %1411 = vmatprep.subr.bf16.mxu0 0
        %1412 = vmatpush2.bf16.msra.mxu0 0
        %1413 = vmatprep.mubr.bf16.mxu0 0
        %1414 = vmatmul.mubr.bf16.gmra.mxu0 %v977
        %v1415 = vpop.f32.mrf.mxu0
        %v1416 = vadd.f32 0.0, %v1415
        %v1417 = vpop.f32.mrf.mxu0
        %v1418 = vadd.f32 0.0, %v1417
        %v1419 = vpop.f32.mrf.mxu0
        %v1420 = vadd.f32 0.0, %v1419
        %v1421 = vpop.f32.mrf.mxu0
        %v1422 = vadd.f32 0.0, %v1421
        %1423 = vdwg.mxu0
        %v1424 = vld [vmem:[#allocation13] sm:$0xff]
        %v1425 = vld [vmem:[#allocation13 + $0x8] sm:$0xff]
        %v1426 = vld [vmem:[#allocation13 + $0x10] sm:$0xff]
        %v1427 = vld [vmem:[#allocation13 + $0x18] sm:$0xff]
        %v1428 = vld [vmem:[#allocation13 + $0x20] sm:$0xff]
        %v1429 = vld [vmem:[#allocation13 + $0x28] sm:$0xff]
        %v1430 = vld [vmem:[#allocation13 + $0x30] sm:$0xff]
        %v1431 = vld [vmem:[#allocation13 + $0x38] sm:$0xff]
        %v1432 = vld [vmem:[#allocation13 + $0x40] sm:$0xff]
        %v1433 = vld [vmem:[#allocation13 + $0x48] sm:$0xff]
        %v1434 = vld [vmem:[#allocation13 + $0x50] sm:$0xff]
        %v1435 = vld [vmem:[#allocation13 + $0x58] sm:$0xff]
        %v1436 = vld [vmem:[#allocation13 + $0x60] sm:$0xff]
        %v1437 = vld [vmem:[#allocation13 + $0x68] sm:$0xff]
        %v1438 = vld [vmem:[#allocation13 + $0x70] sm:$0xff]
        %v1439 = vld [vmem:[#allocation13 + $0x78] sm:$0xff]
        %v1440 = vld [vmem:[#allocation13 + $0x80] sm:$0xff]
        %v1441 = vld [vmem:[#allocation13 + $0x88] sm:$0xff]
        %v1442 = vld [vmem:[#allocation13 + $0x90] sm:$0xff]
        %v1443 = vld [vmem:[#allocation13 + $0x98] sm:$0xff]
        %v1444 = vld [vmem:[#allocation13 + $0xa0] sm:$0xff]
        %v1445 = vld [vmem:[#allocation13 + $0xa8] sm:$0xff]
        %v1446 = vld [vmem:[#allocation13 + $0xb0] sm:$0xff]
        %v1447 = vld [vmem:[#allocation13 + $0xb8] sm:$0xff]
        %v1448 = vld [vmem:[#allocation13 + $0xc0] sm:$0xff]
        %v1449 = vld [vmem:[#allocation13 + $0xc8] sm:$0xff]
        %v1450 = vld [vmem:[#allocation13 + $0xd0] sm:$0xff]
        %v1451 = vld [vmem:[#allocation13 + $0xd8] sm:$0xff]
        %v1452 = vld [vmem:[#allocation13 + $0xe0] sm:$0xff]
        %v1453 = vld [vmem:[#allocation13 + $0xe8] sm:$0xff]
        %v1454 = vld [vmem:[#allocation13 + $0xf0] sm:$0xff]
        %v1455 = vld [vmem:[#allocation13 + $0xf8] sm:$0xff]
        %v1456 = vld [vmem:[#allocation13 + $0x100] sm:$0xff]
        %v1457 = vld [vmem:[#allocation13 + $0x108] sm:$0xff]
        %v1458 = vld [vmem:[#allocation13 + $0x110] sm:$0xff]
        %v1459 = vld [vmem:[#allocation13 + $0x118] sm:$0xff]
        %v1460 = vld [vmem:[#allocation13 + $0x120] sm:$0xff]
        %v1461 = vld [vmem:[#allocation13 + $0x128] sm:$0xff]
        %v1462 = vld [vmem:[#allocation13 + $0x130] sm:$0xff]
        %v1463 = vld [vmem:[#allocation13 + $0x138] sm:$0xff]
        %v1464 = vld [vmem:[#allocation13 + $0x140] sm:$0xff]
        %v1465 = vld [vmem:[#allocation13 + $0x148] sm:$0xff]
        %v1466 = vld [vmem:[#allocation13 + $0x150] sm:$0xff]
        %v1467 = vld [vmem:[#allocation13 + $0x158] sm:$0xff]
        %v1468 = vld [vmem:[#allocation13 + $0x160] sm:$0xff]
        %v1469 = vld [vmem:[#allocation13 + $0x168] sm:$0xff]
        %v1470 = vld [vmem:[#allocation13 + $0x170] sm:$0xff]
        %v1471 = vld [vmem:[#allocation13 + $0x178] sm:$0xff]
        %v1472 = vld [vmem:[#allocation13 + $0x180] sm:$0xff]
        %v1473 = vld [vmem:[#allocation13 + $0x188] sm:$0xff]
        %v1474 = vld [vmem:[#allocation13 + $0x190] sm:$0xff]
        %v1475 = vld [vmem:[#allocation13 + $0x198] sm:$0xff]
        %v1476 = vld [vmem:[#allocation13 + $0x1a0] sm:$0xff]
        %v1477 = vld [vmem:[#allocation13 + $0x1a8] sm:$0xff]
        %v1478 = vld [vmem:[#allocation13 + $0x1b0] sm:$0xff]
        %v1479 = vld [vmem:[#allocation13 + $0x1b8] sm:$0xff]
        %v1480 = vld [vmem:[#allocation13 + $0x1c0] sm:$0xff]
        %v1481 = vld [vmem:[#allocation13 + $0x1c8] sm:$0xff]
        %v1482 = vld [vmem:[#allocation13 + $0x1d0] sm:$0xff]
        %v1483 = vld [vmem:[#allocation13 + $0x1d8] sm:$0xff]
        %v1484 = vld [vmem:[#allocation13 + $0x1e0] sm:$0xff]
        %v1485 = vld [vmem:[#allocation13 + $0x1e8] sm:$0xff]
        %v1486 = vld [vmem:[#allocation13 + $0x1f0] sm:$0xff]
        %v1487 = vld [vmem:[#allocation13 + $0x1f8] sm:$0xff]
        %v1488 = vld [vmem:[#allocation13 + $0x200] sm:$0xff]
        %v1489 = vld [vmem:[#allocation13 + $0x208] sm:$0xff]
        %v1490 = vld [vmem:[#allocation13 + $0x210] sm:$0xff]
        %v1491 = vld [vmem:[#allocation13 + $0x218] sm:$0xff]
        %v1492 = vld [vmem:[#allocation13 + $0x220] sm:$0xff]
        %v1493 = vld [vmem:[#allocation13 + $0x228] sm:$0xff]
        %v1494 = vld [vmem:[#allocation13 + $0x230] sm:$0xff]
        %v1495 = vld [vmem:[#allocation13 + $0x238] sm:$0xff]
        %v1496 = vld [vmem:[#allocation13 + $0x240] sm:$0xff]
        %v1497 = vld [vmem:[#allocation13 + $0x248] sm:$0xff]
        %v1498 = vld [vmem:[#allocation13 + $0x250] sm:$0xff]
        %v1499 = vld [vmem:[#allocation13 + $0x258] sm:$0xff]
        %v1500 = vld [vmem:[#allocation13 + $0x260] sm:$0xff]
        %v1501 = vld [vmem:[#allocation13 + $0x268] sm:$0xff]
        %v1502 = vld [vmem:[#allocation13 + $0x270] sm:$0xff]
        %v1503 = vld [vmem:[#allocation13 + $0x278] sm:$0xff]
        %v1504 = vld [vmem:[#allocation13 + $0x280] sm:$0xff]
        %v1505 = vld [vmem:[#allocation13 + $0x288] sm:$0xff]
        %v1506 = vld [vmem:[#allocation13 + $0x290] sm:$0xff]
        %v1507 = vld [vmem:[#allocation13 + $0x298] sm:$0xff]
        %v1508 = vld [vmem:[#allocation13 + $0x2a0] sm:$0xff]
        %v1509 = vld [vmem:[#allocation13 + $0x2a8] sm:$0xff]
        %v1510 = vld [vmem:[#allocation13 + $0x2b0] sm:$0xff]
        %v1511 = vld [vmem:[#allocation13 + $0x2b8] sm:$0xff]
        %v1512 = vld [vmem:[#allocation13 + $0x2c0] sm:$0xff]
        %v1513 = vld [vmem:[#allocation13 + $0x2c8] sm:$0xff]
        %v1514 = vld [vmem:[#allocation13 + $0x2d0] sm:$0xff]
        %v1515 = vld [vmem:[#allocation13 + $0x2d8] sm:$0xff]
        %v1516 = vld [vmem:[#allocation13 + $0x2e0] sm:$0xff]
        %v1517 = vld [vmem:[#allocation13 + $0x2e8] sm:$0xff]
        %v1518 = vld [vmem:[#allocation13 + $0x2f0] sm:$0xff]
        %v1519 = vld [vmem:[#allocation13 + $0x2f8] sm:$0xff]
        %v1520 = vld [vmem:[#allocation13 + $0x300] sm:$0xff]
        %v1521 = vld [vmem:[#allocation13 + $0x308] sm:$0xff]
        %v1522 = vld [vmem:[#allocation13 + $0x310] sm:$0xff]
        %v1523 = vld [vmem:[#allocation13 + $0x318] sm:$0xff]
        %v1524 = vld [vmem:[#allocation13 + $0x320] sm:$0xff]
        %v1525 = vld [vmem:[#allocation13 + $0x328] sm:$0xff]
        %v1526 = vld [vmem:[#allocation13 + $0x330] sm:$0xff]
        %v1527 = vld [vmem:[#allocation13 + $0x338] sm:$0xff]
        %v1528 = vld [vmem:[#allocation13 + $0x340] sm:$0xff]
        %v1529 = vld [vmem:[#allocation13 + $0x348] sm:$0xff]
        %v1530 = vld [vmem:[#allocation13 + $0x350] sm:$0xff]
        %v1531 = vld [vmem:[#allocation13 + $0x358] sm:$0xff]
        %v1532 = vld [vmem:[#allocation13 + $0x360] sm:$0xff]
        %v1533 = vld [vmem:[#allocation13 + $0x368] sm:$0xff]
        %v1534 = vld [vmem:[#allocation13 + $0x370] sm:$0xff]
        %v1535 = vld [vmem:[#allocation13 + $0x378] sm:$0xff]
        %v1536 = vld [vmem:[#allocation13 + $0x380] sm:$0xff]
        %v1537 = vld [vmem:[#allocation13 + $0x388] sm:$0xff]
        %v1538 = vld [vmem:[#allocation13 + $0x390] sm:$0xff]
        %v1539 = vld [vmem:[#allocation13 + $0x398] sm:$0xff]
        %v1540 = vld [vmem:[#allocation13 + $0x3a0] sm:$0xff]
        %v1541 = vld [vmem:[#allocation13 + $0x3a8] sm:$0xff]
        %v1542 = vld [vmem:[#allocation13 + $0x3b0] sm:$0xff]
        %v1543 = vld [vmem:[#allocation13 + $0x3b8] sm:$0xff]
        %v1544 = vld [vmem:[#allocation13 + $0x3c0] sm:$0xff]
        %v1545 = vld [vmem:[#allocation13 + $0x3c8] sm:$0xff]
        %v1546 = vld [vmem:[#allocation13 + $0x3d0] sm:$0xff]
        %v1547 = vld [vmem:[#allocation13 + $0x3d8] sm:$0xff]
        %v1548 = vld [vmem:[#allocation13 + $0x3e0] sm:$0xff]
        %v1549 = vld [vmem:[#allocation13 + $0x3e8] sm:$0xff]
        %v1550 = vld [vmem:[#allocation13 + $0x3f0] sm:$0xff]
        %v1551 = vld [vmem:[#allocation13 + $0x3f8] sm:$0xff]
        %v1552 = vpack.c.bf16 %v1377, %v1373
        %v1553 = vpack.c.bf16 %v1379, %v1375
        %v1554 = vpack.c.bf16 %v1420, %v1416
        %v1555 = vpack.c.bf16 %v1422, %v1418
        %v1556 = vld [vmem:[#allocation15] sm:$0xff]
        %v1557 = vld [vmem:[#allocation15 + $0x8] sm:$0xff]
        %v1558 = vld [vmem:[#allocation15 + $0x10] sm:$0xff]
        %v1559 = vld [vmem:[#allocation15 + $0x18] sm:$0xff]
        %v1560 = vld [vmem:[#allocation15 + $0x20] sm:$0xff]
        %v1561 = vld [vmem:[#allocation15 + $0x28] sm:$0xff]
        %v1562 = vld [vmem:[#allocation15 + $0x30] sm:$0xff]
        %v1563 = vld [vmem:[#allocation15 + $0x38] sm:$0xff]
        %v1564 = vld [vmem:[#allocation15 + $0x40] sm:$0xff]
        %v1565 = vld [vmem:[#allocation15 + $0x48] sm:$0xff]
        %v1566 = vld [vmem:[#allocation15 + $0x50] sm:$0xff]
        %v1567 = vld [vmem:[#allocation15 + $0x58] sm:$0xff]
        %v1568 = vld [vmem:[#allocation15 + $0x60] sm:$0xff]
        %v1569 = vld [vmem:[#allocation15 + $0x68] sm:$0xff]
        %v1570 = vld [vmem:[#allocation15 + $0x70] sm:$0xff]
        %v1571 = vld [vmem:[#allocation15 + $0x78] sm:$0xff]
        %v1572 = vld [vmem:[#allocation15 + $0x80] sm:$0xff]
        %v1573 = vld [vmem:[#allocation15 + $0x88] sm:$0xff]
        %v1574 = vld [vmem:[#allocation15 + $0x90] sm:$0xff]
        %v1575 = vld [vmem:[#allocation15 + $0x98] sm:$0xff]
        %v1576 = vld [vmem:[#allocation15 + $0xa0] sm:$0xff]
        %v1577 = vld [vmem:[#allocation15 + $0xa8] sm:$0xff]
        %v1578 = vld [vmem:[#allocation15 + $0xb0] sm:$0xff]
        %v1579 = vld [vmem:[#allocation15 + $0xb8] sm:$0xff]
        %v1580 = vld [vmem:[#allocation15 + $0xc0] sm:$0xff]
        %v1581 = vld [vmem:[#allocation15 + $0xc8] sm:$0xff]
        %v1582 = vld [vmem:[#allocation15 + $0xd0] sm:$0xff]
        %v1583 = vld [vmem:[#allocation15 + $0xd8] sm:$0xff]
        %v1584 = vld [vmem:[#allocation15 + $0xe0] sm:$0xff]
        %v1585 = vld [vmem:[#allocation15 + $0xe8] sm:$0xff]
        %v1586 = vld [vmem:[#allocation15 + $0xf0] sm:$0xff]
        %v1587 = vld [vmem:[#allocation15 + $0xf8] sm:$0xff]
        %v1588 = vld [vmem:[#allocation15 + $0x100] sm:$0xff]
        %v1589 = vld [vmem:[#allocation15 + $0x108] sm:$0xff]
        %v1590 = vld [vmem:[#allocation15 + $0x110] sm:$0xff]
        %v1591 = vld [vmem:[#allocation15 + $0x118] sm:$0xff]
        %v1592 = vld [vmem:[#allocation15 + $0x120] sm:$0xff]
        %v1593 = vld [vmem:[#allocation15 + $0x128] sm:$0xff]
        %v1594 = vld [vmem:[#allocation15 + $0x130] sm:$0xff]
        %v1595 = vld [vmem:[#allocation15 + $0x138] sm:$0xff]
        %v1596 = vld [vmem:[#allocation15 + $0x140] sm:$0xff]
        %v1597 = vld [vmem:[#allocation15 + $0x148] sm:$0xff]
        %v1598 = vld [vmem:[#allocation15 + $0x150] sm:$0xff]
        %v1599 = vld [vmem:[#allocation15 + $0x158] sm:$0xff]
        %v1600 = vld [vmem:[#allocation15 + $0x160] sm:$0xff]
        %v1601 = vld [vmem:[#allocation15 + $0x168] sm:$0xff]
        %v1602 = vld [vmem:[#allocation15 + $0x170] sm:$0xff]
        %v1603 = vld [vmem:[#allocation15 + $0x178] sm:$0xff]
        %v1604 = vld [vmem:[#allocation15 + $0x180] sm:$0xff]
        %v1605 = vld [vmem:[#allocation15 + $0x188] sm:$0xff]
        %v1606 = vld [vmem:[#allocation15 + $0x190] sm:$0xff]
        %v1607 = vld [vmem:[#allocation15 + $0x198] sm:$0xff]
        %v1608 = vld [vmem:[#allocation15 + $0x1a0] sm:$0xff]
        %v1609 = vld [vmem:[#allocation15 + $0x1a8] sm:$0xff]
        %v1610 = vld [vmem:[#allocation15 + $0x1b0] sm:$0xff]
        %v1611 = vld [vmem:[#allocation15 + $0x1b8] sm:$0xff]
        %v1612 = vld [vmem:[#allocation15 + $0x1c0] sm:$0xff]
        %v1613 = vld [vmem:[#allocation15 + $0x1c8] sm:$0xff]
        %v1614 = vld [vmem:[#allocation15 + $0x1d0] sm:$0xff]
        %v1615 = vld [vmem:[#allocation15 + $0x1d8] sm:$0xff]
        %v1616 = vld [vmem:[#allocation15 + $0x1e0] sm:$0xff]
        %v1617 = vld [vmem:[#allocation15 + $0x1e8] sm:$0xff]
        %v1618 = vld [vmem:[#allocation15 + $0x1f0] sm:$0xff]
        %v1619 = vld [vmem:[#allocation15 + $0x1f8] sm:$0xff]
        %v1620 = vld [vmem:[#allocation15 + $0x200] sm:$0xff]
        %v1621 = vld [vmem:[#allocation15 + $0x208] sm:$0xff]
        %v1622 = vld [vmem:[#allocation15 + $0x210] sm:$0xff]
        %v1623 = vld [vmem:[#allocation15 + $0x218] sm:$0xff]
        %v1624 = vld [vmem:[#allocation15 + $0x220] sm:$0xff]
        %v1625 = vld [vmem:[#allocation15 + $0x228] sm:$0xff]
        %v1626 = vld [vmem:[#allocation15 + $0x230] sm:$0xff]
        %v1627 = vld [vmem:[#allocation15 + $0x238] sm:$0xff]
        %v1628 = vld [vmem:[#allocation15 + $0x240] sm:$0xff]
        %v1629 = vld [vmem:[#allocation15 + $0x248] sm:$0xff]
        %v1630 = vld [vmem:[#allocation15 + $0x250] sm:$0xff]
        %v1631 = vld [vmem:[#allocation15 + $0x258] sm:$0xff]
        %v1632 = vld [vmem:[#allocation15 + $0x260] sm:$0xff]
        %v1633 = vld [vmem:[#allocation15 + $0x268] sm:$0xff]
        %v1634 = vld [vmem:[#allocation15 + $0x270] sm:$0xff]
        %v1635 = vld [vmem:[#allocation15 + $0x278] sm:$0xff]
        %v1636 = vld [vmem:[#allocation15 + $0x280] sm:$0xff]
        %v1637 = vld [vmem:[#allocation15 + $0x288] sm:$0xff]
        %v1638 = vld [vmem:[#allocation15 + $0x290] sm:$0xff]
        %v1639 = vld [vmem:[#allocation15 + $0x298] sm:$0xff]
        %v1640 = vld [vmem:[#allocation15 + $0x2a0] sm:$0xff]
        %v1641 = vld [vmem:[#allocation15 + $0x2a8] sm:$0xff]
        %v1642 = vld [vmem:[#allocation15 + $0x2b0] sm:$0xff]
        %v1643 = vld [vmem:[#allocation15 + $0x2b8] sm:$0xff]
        %v1644 = vld [vmem:[#allocation15 + $0x2c0] sm:$0xff]
        %v1645 = vld [vmem:[#allocation15 + $0x2c8] sm:$0xff]
        %v1646 = vld [vmem:[#allocation15 + $0x2d0] sm:$0xff]
        %v1647 = vld [vmem:[#allocation15 + $0x2d8] sm:$0xff]
        %v1648 = vld [vmem:[#allocation15 + $0x2e0] sm:$0xff]
        %v1649 = vld [vmem:[#allocation15 + $0x2e8] sm:$0xff]
        %v1650 = vld [vmem:[#allocation15 + $0x2f0] sm:$0xff]
        %v1651 = vld [vmem:[#allocation15 + $0x2f8] sm:$0xff]
        %v1652 = vld [vmem:[#allocation15 + $0x300] sm:$0xff]
        %v1653 = vld [vmem:[#allocation15 + $0x308] sm:$0xff]
        %v1654 = vld [vmem:[#allocation15 + $0x310] sm:$0xff]
        %v1655 = vld [vmem:[#allocation15 + $0x318] sm:$0xff]
        %v1656 = vld [vmem:[#allocation15 + $0x320] sm:$0xff]
        %v1657 = vld [vmem:[#allocation15 + $0x328] sm:$0xff]
        %v1658 = vld [vmem:[#allocation15 + $0x330] sm:$0xff]
        %v1659 = vld [vmem:[#allocation15 + $0x338] sm:$0xff]
        %v1660 = vld [vmem:[#allocation15 + $0x340] sm:$0xff]
        %v1661 = vld [vmem:[#allocation15 + $0x348] sm:$0xff]
        %v1662 = vld [vmem:[#allocation15 + $0x350] sm:$0xff]
        %v1663 = vld [vmem:[#allocation15 + $0x358] sm:$0xff]
        %v1664 = vld [vmem:[#allocation15 + $0x360] sm:$0xff]
        %v1665 = vld [vmem:[#allocation15 + $0x368] sm:$0xff]
        %v1666 = vld [vmem:[#allocation15 + $0x370] sm:$0xff]
        %v1667 = vld [vmem:[#allocation15 + $0x378] sm:$0xff]
        %v1668 = vld [vmem:[#allocation15 + $0x380] sm:$0xff]
        %v1669 = vld [vmem:[#allocation15 + $0x388] sm:$0xff]
        %v1670 = vld [vmem:[#allocation15 + $0x390] sm:$0xff]
        %v1671 = vld [vmem:[#allocation15 + $0x398] sm:$0xff]
        %v1672 = vld [vmem:[#allocation15 + $0x3a0] sm:$0xff]
        %v1673 = vld [vmem:[#allocation15 + $0x3a8] sm:$0xff]
        %v1674 = vld [vmem:[#allocation15 + $0x3b0] sm:$0xff]
        %v1675 = vld [vmem:[#allocation15 + $0x3b8] sm:$0xff]
        %v1676 = vld [vmem:[#allocation15 + $0x3c0] sm:$0xff]
        %v1677 = vld [vmem:[#allocation15 + $0x3c8] sm:$0xff]
        %v1678 = vld [vmem:[#allocation15 + $0x3d0] sm:$0xff]
        %v1679 = vld [vmem:[#allocation15 + $0x3d8] sm:$0xff]
        %v1680 = vld [vmem:[#allocation15 + $0x3e0] sm:$0xff]
        %v1681 = vld [vmem:[#allocation15 + $0x3e8] sm:$0xff]
        %v1682 = vld [vmem:[#allocation15 + $0x3f0] sm:$0xff]
        %v1683 = vld [vmem:[#allocation15 + $0x3f8] sm:$0xff]
        %v1812 = vunpack.c.l.b16 %v1556
        %v1813 = vunpack.c.h.b16 %v1556
        %v1814 = vunpack.c.l.b16 %v1557
        %v1815 = vunpack.c.h.b16 %v1557
        %v1816 = vunpack.c.l.b16 %v1558
        %v1817 = vunpack.c.h.b16 %v1558
        %v1818 = vunpack.c.l.b16 %v1559
        %v1819 = vunpack.c.h.b16 %v1559
        %v1820 = vunpack.c.l.b16 %v1560
        %v1821 = vunpack.c.h.b16 %v1560
        %v1822 = vunpack.c.l.b16 %v1561
        %v1823 = vunpack.c.h.b16 %v1561
        %v1824 = vunpack.c.l.b16 %v1562
        %v1825 = vunpack.c.h.b16 %v1562
        %v1826 = vunpack.c.l.b16 %v1563
        %v1827 = vunpack.c.h.b16 %v1563
        %v1828 = vunpack.c.l.b16 %v1564
        %v1829 = vunpack.c.h.b16 %v1564
        %v1830 = vunpack.c.l.b16 %v1565
        %v1831 = vunpack.c.h.b16 %v1565
        %v1832 = vunpack.c.l.b16 %v1566
        %v1833 = vunpack.c.h.b16 %v1566
        %v1834 = vunpack.c.l.b16 %v1567
        %v1835 = vunpack.c.h.b16 %v1567
        %v1836 = vunpack.c.l.b16 %v1568
        %v1837 = vunpack.c.h.b16 %v1568
        %v1838 = vunpack.c.l.b16 %v1569
        %v1839 = vunpack.c.h.b16 %v1569
        %v1840 = vunpack.c.l.b16 %v1570
        %v1841 = vunpack.c.h.b16 %v1570
        %v1842 = vunpack.c.l.b16 %v1571
        %v1843 = vunpack.c.h.b16 %v1571
        %v1844 = vunpack.c.l.b16 %v1572
        %v1845 = vunpack.c.h.b16 %v1572
        %v1846 = vunpack.c.l.b16 %v1573
        %v1847 = vunpack.c.h.b16 %v1573
        %v1848 = vunpack.c.l.b16 %v1574
        %v1849 = vunpack.c.h.b16 %v1574
        %v1850 = vunpack.c.l.b16 %v1575
        %v1851 = vunpack.c.h.b16 %v1575
        %v1852 = vunpack.c.l.b16 %v1576
        %v1853 = vunpack.c.h.b16 %v1576
        %v1854 = vunpack.c.l.b16 %v1577
        %v1855 = vunpack.c.h.b16 %v1577
        %v1856 = vunpack.c.l.b16 %v1578
        %v1857 = vunpack.c.h.b16 %v1578
        %v1858 = vunpack.c.l.b16 %v1579
        %v1859 = vunpack.c.h.b16 %v1579
        %v1860 = vunpack.c.l.b16 %v1580
        %v1861 = vunpack.c.h.b16 %v1580
        %v1862 = vunpack.c.l.b16 %v1581
        %v1863 = vunpack.c.h.b16 %v1581
        %v1864 = vunpack.c.l.b16 %v1582
        %v1865 = vunpack.c.h.b16 %v1582
        %v1866 = vunpack.c.l.b16 %v1583
        %v1867 = vunpack.c.h.b16 %v1583
        %v1868 = vunpack.c.l.b16 %v1584
        %v1869 = vunpack.c.h.b16 %v1584
        %v1870 = vunpack.c.l.b16 %v1585
        %v1871 = vunpack.c.h.b16 %v1585
        %v1872 = vunpack.c.l.b16 %v1586
        %v1873 = vunpack.c.h.b16 %v1586
        %v1874 = vunpack.c.l.b16 %v1587
        %v1875 = vunpack.c.h.b16 %v1587
        %v1876 = vunpack.c.l.b16 %v1588
        %v1877 = vunpack.c.h.b16 %v1588
        %v1878 = vunpack.c.l.b16 %v1589
        %v1879 = vunpack.c.h.b16 %v1589
        %v1880 = vunpack.c.l.b16 %v1590
        %v1881 = vunpack.c.h.b16 %v1590
        %v1882 = vunpack.c.l.b16 %v1591
        %v1883 = vunpack.c.h.b16 %v1591
        %v1884 = vunpack.c.l.b16 %v1592
        %v1885 = vunpack.c.h.b16 %v1592
        %v1886 = vunpack.c.l.b16 %v1593
        %v1887 = vunpack.c.h.b16 %v1593
        %v1888 = vunpack.c.l.b16 %v1594
        %v1889 = vunpack.c.h.b16 %v1594
        %v1890 = vunpack.c.l.b16 %v1595
        %v1891 = vunpack.c.h.b16 %v1595
        %v1892 = vunpack.c.l.b16 %v1596
        %v1893 = vunpack.c.h.b16 %v1596
        %v1894 = vunpack.c.l.b16 %v1597
        %v1895 = vunpack.c.h.b16 %v1597
        %v1896 = vunpack.c.l.b16 %v1598
        %v1897 = vunpack.c.h.b16 %v1598
        %v1898 = vunpack.c.l.b16 %v1599
        %v1899 = vunpack.c.h.b16 %v1599
        %v1900 = vunpack.c.l.b16 %v1600
        %v1901 = vunpack.c.h.b16 %v1600
        %v1902 = vunpack.c.l.b16 %v1601
        %v1903 = vunpack.c.h.b16 %v1601
        %v1904 = vunpack.c.l.b16 %v1602
        %v1905 = vunpack.c.h.b16 %v1602
        %v1906 = vunpack.c.l.b16 %v1603
        %v1907 = vunpack.c.h.b16 %v1603
        %v1908 = vunpack.c.l.b16 %v1604
        %v1909 = vunpack.c.h.b16 %v1604
        %v1910 = vunpack.c.l.b16 %v1605
        %v1911 = vunpack.c.h.b16 %v1605
        %v1912 = vunpack.c.l.b16 %v1606
        %v1913 = vunpack.c.h.b16 %v1606
        %v1914 = vunpack.c.l.b16 %v1607
        %v1915 = vunpack.c.h.b16 %v1607
        %v1916 = vunpack.c.l.b16 %v1608
        %v1917 = vunpack.c.h.b16 %v1608
        %v1918 = vunpack.c.l.b16 %v1609
        %v1919 = vunpack.c.h.b16 %v1609
        %v1920 = vunpack.c.l.b16 %v1610
        %v1921 = vunpack.c.h.b16 %v1610
        %v1922 = vunpack.c.l.b16 %v1611
        %v1923 = vunpack.c.h.b16 %v1611
        %v1924 = vunpack.c.l.b16 %v1612
        %v1925 = vunpack.c.h.b16 %v1612
        %v1926 = vunpack.c.l.b16 %v1613
        %v1927 = vunpack.c.h.b16 %v1613
        %v1928 = vunpack.c.l.b16 %v1614
        %v1929 = vunpack.c.h.b16 %v1614
        %v1930 = vunpack.c.l.b16 %v1615
        %v1931 = vunpack.c.h.b16 %v1615
        %v1932 = vunpack.c.l.b16 %v1616
        %v1933 = vunpack.c.h.b16 %v1616
        %v1934 = vunpack.c.l.b16 %v1617
        %v1935 = vunpack.c.h.b16 %v1617
        %v1936 = vunpack.c.l.b16 %v1618
        %v1937 = vunpack.c.h.b16 %v1618
        %v1938 = vunpack.c.l.b16 %v1619
        %v1939 = vunpack.c.h.b16 %v1619
        %v1940 = vunpack.c.l.b16 %v1620
        %v1941 = vunpack.c.h.b16 %v1620
        %v1942 = vunpack.c.l.b16 %v1621
        %v1943 = vunpack.c.h.b16 %v1621
        %v1944 = vunpack.c.l.b16 %v1622
        %v1945 = vunpack.c.h.b16 %v1622
        %v1946 = vunpack.c.l.b16 %v1623
        %v1947 = vunpack.c.h.b16 %v1623
        %v1948 = vunpack.c.l.b16 %v1624
        %v1949 = vunpack.c.h.b16 %v1624
        %v1950 = vunpack.c.l.b16 %v1625
        %v1951 = vunpack.c.h.b16 %v1625
        %v1952 = vunpack.c.l.b16 %v1626
        %v1953 = vunpack.c.h.b16 %v1626
        %v1954 = vunpack.c.l.b16 %v1627
        %v1955 = vunpack.c.h.b16 %v1627
        %v1956 = vunpack.c.l.b16 %v1628
        %v1957 = vunpack.c.h.b16 %v1628
        %v1958 = vunpack.c.l.b16 %v1629
        %v1959 = vunpack.c.h.b16 %v1629
        %v1960 = vunpack.c.l.b16 %v1630
        %v1961 = vunpack.c.h.b16 %v1630
        %v1962 = vunpack.c.l.b16 %v1631
        %v1963 = vunpack.c.h.b16 %v1631
        %v1964 = vunpack.c.l.b16 %v1632
        %v1965 = vunpack.c.h.b16 %v1632
        %v1966 = vunpack.c.l.b16 %v1633
        %v1967 = vunpack.c.h.b16 %v1633
        %v1968 = vunpack.c.l.b16 %v1634
        %v1969 = vunpack.c.h.b16 %v1634
        %v1970 = vunpack.c.l.b16 %v1635
        %v1971 = vunpack.c.h.b16 %v1635
        %v1972 = vunpack.c.l.b16 %v1636
        %v1973 = vunpack.c.h.b16 %v1636
        %v1974 = vunpack.c.l.b16 %v1637
        %v1975 = vunpack.c.h.b16 %v1637
        %v1976 = vunpack.c.l.b16 %v1638
        %v1977 = vunpack.c.h.b16 %v1638
        %v1978 = vunpack.c.l.b16 %v1639
        %v1979 = vunpack.c.h.b16 %v1639
        %v1980 = vunpack.c.l.b16 %v1640
        %v1981 = vunpack.c.h.b16 %v1640
        %v1982 = vunpack.c.l.b16 %v1641
        %v1983 = vunpack.c.h.b16 %v1641
        %v1984 = vunpack.c.l.b16 %v1642
        %v1985 = vunpack.c.h.b16 %v1642
        %v1986 = vunpack.c.l.b16 %v1643
        %v1987 = vunpack.c.h.b16 %v1643
        %v1988 = vunpack.c.l.b16 %v1644
        %v1989 = vunpack.c.h.b16 %v1644
        %v1990 = vunpack.c.l.b16 %v1645
        %v1991 = vunpack.c.h.b16 %v1645
        %v1992 = vunpack.c.l.b16 %v1646
        %v1993 = vunpack.c.h.b16 %v1646
        %v1994 = vunpack.c.l.b16 %v1647
        %v1995 = vunpack.c.h.b16 %v1647
        %v1996 = vunpack.c.l.b16 %v1648
        %v1997 = vunpack.c.h.b16 %v1648
        %v1998 = vunpack.c.l.b16 %v1649
        %v1999 = vunpack.c.h.b16 %v1649
        %v2000 = vunpack.c.l.b16 %v1650
        %v2001 = vunpack.c.h.b16 %v1650
        %v2002 = vunpack.c.l.b16 %v1651
        %v2003 = vunpack.c.h.b16 %v1651
        %v2004 = vunpack.c.l.b16 %v1652
        %v2005 = vunpack.c.h.b16 %v1652
        %v2006 = vunpack.c.l.b16 %v1653
        %v2007 = vunpack.c.h.b16 %v1653
        %v2008 = vunpack.c.l.b16 %v1654
        %v2009 = vunpack.c.h.b16 %v1654
        %v2010 = vunpack.c.l.b16 %v1655
        %v2011 = vunpack.c.h.b16 %v1655
        %v2012 = vunpack.c.l.b16 %v1656
        %v2013 = vunpack.c.h.b16 %v1656
        %v2014 = vunpack.c.l.b16 %v1657
        %v2015 = vunpack.c.h.b16 %v1657
        %v2016 = vunpack.c.l.b16 %v1658
        %v2017 = vunpack.c.h.b16 %v1658
        %v2018 = vunpack.c.l.b16 %v1659
        %v2019 = vunpack.c.h.b16 %v1659
        %v2020 = vunpack.c.l.b16 %v1660
        %v2021 = vunpack.c.h.b16 %v1660
        %v2022 = vunpack.c.l.b16 %v1661
        %v2023 = vunpack.c.h.b16 %v1661
        %v2024 = vunpack.c.l.b16 %v1662
        %v2025 = vunpack.c.h.b16 %v1662
        %v2026 = vunpack.c.l.b16 %v1663
        %v2027 = vunpack.c.h.b16 %v1663
        %v2028 = vunpack.c.l.b16 %v1664
        %v2029 = vunpack.c.h.b16 %v1664
        %v2030 = vunpack.c.l.b16 %v1665
        %v2031 = vunpack.c.h.b16 %v1665
        %v2032 = vunpack.c.l.b16 %v1666
        %v2033 = vunpack.c.h.b16 %v1666
        %v2034 = vunpack.c.l.b16 %v1667
        %v2035 = vunpack.c.h.b16 %v1667
        %v2036 = vunpack.c.l.b16 %v1668
        %v2037 = vunpack.c.h.b16 %v1668
        %v2038 = vunpack.c.l.b16 %v1669
        %v2039 = vunpack.c.h.b16 %v1669
        %v2040 = vunpack.c.l.b16 %v1670
        %v2041 = vunpack.c.h.b16 %v1670
        %v2042 = vunpack.c.l.b16 %v1671
        %v2043 = vunpack.c.h.b16 %v1671
        %v2044 = vunpack.c.l.b16 %v1672
        %v2045 = vunpack.c.h.b16 %v1672
        %v2046 = vunpack.c.l.b16 %v1673
        %v2047 = vunpack.c.h.b16 %v1673
        %v2048 = vunpack.c.l.b16 %v1674
        %v2049 = vunpack.c.h.b16 %v1674
        %v2050 = vunpack.c.l.b16 %v1675
        %v2051 = vunpack.c.h.b16 %v1675
        %v2052 = vunpack.c.l.b16 %v1676
        %v2053 = vunpack.c.h.b16 %v1676
        %v2054 = vunpack.c.l.b16 %v1677
        %v2055 = vunpack.c.h.b16 %v1677
        %v2056 = vunpack.c.l.b16 %v1678
        %v2057 = vunpack.c.h.b16 %v1678
        %v2058 = vunpack.c.l.b16 %v1679
        %v2059 = vunpack.c.h.b16 %v1679
        %v2060 = vunpack.c.l.b16 %v1680
        %v2061 = vunpack.c.h.b16 %v1680
        %v2062 = vunpack.c.l.b16 %v1681
        %v2063 = vunpack.c.h.b16 %v1681
        %v2064 = vunpack.c.l.b16 %v1682
        %v2065 = vunpack.c.h.b16 %v1682
        %v2066 = vunpack.c.l.b16 %v1683
        %v2067 = vunpack.c.h.b16 %v1683
        %v2068 = vpack.c.b16 %v1816, %v1812
        %v2069 = vpack.c.b16 %v1817, %v1813
        %v2070 = vpack.c.b16 %v1818, %v1814
        %v2071 = vpack.c.b16 %v1819, %v1815
        %v2072 = vpack.c.b16 %v1824, %v1820
        %v2073 = vpack.c.b16 %v1825, %v1821
        %v2074 = vpack.c.b16 %v1826, %v1822
        %v2075 = vpack.c.b16 %v1827, %v1823
        %v2076 = vpack.c.b16 %v1832, %v1828
        %v2077 = vpack.c.b16 %v1833, %v1829
        %v2078 = vpack.c.b16 %v1834, %v1830
        %v2079 = vpack.c.b16 %v1835, %v1831
        %v2080 = vpack.c.b16 %v1840, %v1836
        %v2081 = vpack.c.b16 %v1841, %v1837
        %v2082 = vpack.c.b16 %v1842, %v1838
        %v2083 = vpack.c.b16 %v1843, %v1839
        %v2084 = vpack.c.b16 %v1848, %v1844
        %v2085 = vpack.c.b16 %v1849, %v1845
        %v2086 = vpack.c.b16 %v1850, %v1846
        %v2087 = vpack.c.b16 %v1851, %v1847
        %v2088 = vpack.c.b16 %v1856, %v1852
        %v2089 = vpack.c.b16 %v1857, %v1853
        %v2090 = vpack.c.b16 %v1858, %v1854
        %v2091 = vpack.c.b16 %v1859, %v1855
        %v2092 = vpack.c.b16 %v1864, %v1860
        %v2093 = vpack.c.b16 %v1865, %v1861
        %v2094 = vpack.c.b16 %v1866, %v1862
        %v2095 = vpack.c.b16 %v1867, %v1863
        %v2096 = vpack.c.b16 %v1872, %v1868
        %v2097 = vpack.c.b16 %v1873, %v1869
        %v2098 = vpack.c.b16 %v1874, %v1870
        %v2099 = vpack.c.b16 %v1875, %v1871
        %v2100 = vpack.c.b16 %v1880, %v1876
        %v2101 = vpack.c.b16 %v1881, %v1877
        %v2102 = vpack.c.b16 %v1882, %v1878
        %v2103 = vpack.c.b16 %v1883, %v1879
        %v2104 = vpack.c.b16 %v1888, %v1884
        %v2105 = vpack.c.b16 %v1889, %v1885
        %v2106 = vpack.c.b16 %v1890, %v1886
        %v2107 = vpack.c.b16 %v1891, %v1887
        %v2108 = vpack.c.b16 %v1896, %v1892
        %v2109 = vpack.c.b16 %v1897, %v1893
        %v2110 = vpack.c.b16 %v1898, %v1894
        %v2111 = vpack.c.b16 %v1899, %v1895
        %v2112 = vpack.c.b16 %v1904, %v1900
        %v2113 = vpack.c.b16 %v1905, %v1901
        %v2114 = vpack.c.b16 %v1906, %v1902
        %v2115 = vpack.c.b16 %v1907, %v1903
        %v2116 = vpack.c.b16 %v1912, %v1908
        %v2117 = vpack.c.b16 %v1913, %v1909
        %v2118 = vpack.c.b16 %v1914, %v1910
        %v2119 = vpack.c.b16 %v1915, %v1911
        %v2120 = vpack.c.b16 %v1920, %v1916
        %v2121 = vpack.c.b16 %v1921, %v1917
        %v2122 = vpack.c.b16 %v1922, %v1918
        %v2123 = vpack.c.b16 %v1923, %v1919
        %v2124 = vpack.c.b16 %v1928, %v1924
        %v2125 = vpack.c.b16 %v1929, %v1925
        %v2126 = vpack.c.b16 %v1930, %v1926
        %v2127 = vpack.c.b16 %v1931, %v1927
        %v2128 = vpack.c.b16 %v1936, %v1932
        %v2129 = vpack.c.b16 %v1937, %v1933
        %v2130 = vpack.c.b16 %v1938, %v1934
        %v2131 = vpack.c.b16 %v1939, %v1935
        %v2132 = vpack.c.b16 %v1944, %v1940
        %v2133 = vpack.c.b16 %v1945, %v1941
        %v2134 = vpack.c.b16 %v1946, %v1942
        %v2135 = vpack.c.b16 %v1947, %v1943
        %v2136 = vpack.c.b16 %v1952, %v1948
        %v2137 = vpack.c.b16 %v1953, %v1949
        %v2138 = vpack.c.b16 %v1954, %v1950
        %v2139 = vpack.c.b16 %v1955, %v1951
        %v2140 = vpack.c.b16 %v1960, %v1956
        %v2141 = vpack.c.b16 %v1961, %v1957
        %v2142 = vpack.c.b16 %v1962, %v1958
        %v2143 = vpack.c.b16 %v1963, %v1959
        %v2144 = vpack.c.b16 %v1968, %v1964
        %v2145 = vpack.c.b16 %v1969, %v1965
        %v2146 = vpack.c.b16 %v1970, %v1966
        %v2147 = vpack.c.b16 %v1971, %v1967
        %v2148 = vpack.c.b16 %v1976, %v1972
        %v2149 = vpack.c.b16 %v1977, %v1973
        %v2150 = vpack.c.b16 %v1978, %v1974
        %v2151 = vpack.c.b16 %v1979, %v1975
        %v2152 = vpack.c.b16 %v1984, %v1980
        %v2153 = vpack.c.b16 %v1985, %v1981
        %v2154 = vpack.c.b16 %v1986, %v1982
        %v2155 = vpack.c.b16 %v1987, %v1983
        %v2156 = vpack.c.b16 %v1992, %v1988
        %v2157 = vpack.c.b16 %v1993, %v1989
        %v2158 = vpack.c.b16 %v1994, %v1990
        %v2159 = vpack.c.b16 %v1995, %v1991
        %v2160 = vpack.c.b16 %v2000, %v1996
        %v2161 = vpack.c.b16 %v2001, %v1997
        %v2162 = vpack.c.b16 %v2002, %v1998
        %v2163 = vpack.c.b16 %v2003, %v1999
        %v2164 = vpack.c.b16 %v2008, %v2004
        %v2165 = vpack.c.b16 %v2009, %v2005
        %v2166 = vpack.c.b16 %v2010, %v2006
        %v2167 = vpack.c.b16 %v2011, %v2007
        %v2168 = vpack.c.b16 %v2016, %v2012
        %v2169 = vpack.c.b16 %v2017, %v2013
        %v2170 = vpack.c.b16 %v2018, %v2014
        %v2171 = vpack.c.b16 %v2019, %v2015
        %v2172 = vpack.c.b16 %v2024, %v2020
        %v2173 = vpack.c.b16 %v2025, %v2021
        %v2174 = vpack.c.b16 %v2026, %v2022
        %v2175 = vpack.c.b16 %v2027, %v2023
        %v2176 = vpack.c.b16 %v2032, %v2028
        %v2177 = vpack.c.b16 %v2033, %v2029
        %v2178 = vpack.c.b16 %v2034, %v2030
        %v2179 = vpack.c.b16 %v2035, %v2031
        %v2180 = vpack.c.b16 %v2040, %v2036
        %v2181 = vpack.c.b16 %v2041, %v2037
        %v2182 = vpack.c.b16 %v2042, %v2038
        %v2183 = vpack.c.b16 %v2043, %v2039
        %v2184 = vpack.c.b16 %v2048, %v2044
        %v2185 = vpack.c.b16 %v2049, %v2045
        %v2186 = vpack.c.b16 %v2050, %v2046
        %v2187 = vpack.c.b16 %v2051, %v2047
        %v2188 = vpack.c.b16 %v2056, %v2052
        %v2189 = vpack.c.b16 %v2057, %v2053
        %v2190 = vpack.c.b16 %v2058, %v2054
        %v2191 = vpack.c.b16 %v2059, %v2055
        %v2192 = vpack.c.b16 %v2064, %v2060
        %v2193 = vpack.c.b16 %v2065, %v2061
        %v2194 = vpack.c.b16 %v2066, %v2062
        %v2195 = vpack.c.b16 %v2067, %v2063
        %2324 = vmatprep.subr.bf16.mxu0 %v2097
        %2325 = vmatpush1.bf16.msra.mxu0 %v2096
        %2326 = vmatprep.subr.bf16.mxu0 %v2093
        %2327 = vmatpush1.bf16.msra.mxu0 %v2092
        %2328 = vmatprep.subr.bf16.mxu0 %v2089
        %2329 = vmatpush1.bf16.msra.mxu0 %v2088
        %2330 = vmatprep.subr.bf16.mxu0 %v2085
        %2331 = vmatpush1.bf16.msra.mxu0 %v2084
        %2332 = vmatprep.subr.bf16.mxu0 %v2081
        %2333 = vmatpush1.bf16.msra.mxu0 %v2080
        %2334 = vmatprep.subr.bf16.mxu0 %v2077
        %2335 = vmatpush1.bf16.msra.mxu0 %v2076
        %2336 = vmatprep.subr.bf16.mxu0 %v2073
        %2337 = vmatpush1.bf16.msra.mxu0 %v2072
        %2338 = vmatprep.subr.bf16.mxu0 %v2069
        %2339 = vmatpush1.bf16.msra.mxu0 %v2068
        %2340 = vmatprep.subr.bf16.mxu0 %v2129
        %2341 = vmatpush2.bf16.msra.mxu0 %v2128
        %2342 = vmatprep.subr.bf16.mxu0 %v2125
        %2343 = vmatpush2.bf16.msra.mxu0 %v2124
        %2344 = vmatprep.subr.bf16.mxu0 %v2121
        %2345 = vmatpush2.bf16.msra.mxu0 %v2120
        %2346 = vmatprep.subr.bf16.mxu0 %v2117
        %2347 = vmatpush2.bf16.msra.mxu0 %v2116
        %2348 = vmatprep.subr.bf16.mxu0 %v2113
        %2349 = vmatpush2.bf16.msra.mxu0 %v2112
        %2350 = vmatprep.subr.bf16.mxu0 %v2109
        %2351 = vmatpush2.bf16.msra.mxu0 %v2108
        %2352 = vmatprep.subr.bf16.mxu0 %v2105
        %2353 = vmatpush2.bf16.msra.mxu0 %v2104
        %2354 = vmatprep.subr.bf16.mxu0 %v2101
        %2355 = vmatpush2.bf16.msra.mxu0 %v2100
        %2356 = vmatprep.mubr.bf16.mxu0 %v1553
        %2357 = vmatmul.mubr.bf16.gmra.mxu0 %v1552
        %v2358 = vpop.f32.mrf.mxu0
        %v2359 = vadd.f32 0.0, %v2358
        %v2360 = vpop.f32.mrf.mxu0
        %v2361 = vadd.f32 0.0, %v2360
        %v2362 = vpop.f32.mrf.mxu0
        %v2363 = vadd.f32 0.0, %v2362
        %v2364 = vpop.f32.mrf.mxu0
        %v2365 = vadd.f32 0.0, %v2364
        %2366 = vdwg.mxu0
        %2367 = vmatprep.subr.bf16.mxu0 %v2161
        %2368 = vmatpush1.bf16.msra.mxu0 %v2160
        %2369 = vmatprep.subr.bf16.mxu0 %v2157
        %2370 = vmatpush1.bf16.msra.mxu0 %v2156
        %2371 = vmatprep.subr.bf16.mxu0 %v2153
        %2372 = vmatpush1.bf16.msra.mxu0 %v2152
        %2373 = vmatprep.subr.bf16.mxu0 %v2149
        %2374 = vmatpush1.bf16.msra.mxu0 %v2148
        %2375 = vmatprep.subr.bf16.mxu0 %v2145
        %2376 = vmatpush1.bf16.msra.mxu0 %v2144
        %2377 = vmatprep.subr.bf16.mxu0 %v2141
        %2378 = vmatpush1.bf16.msra.mxu0 %v2140
        %2379 = vmatprep.subr.bf16.mxu0 %v2137
        %2380 = vmatpush1.bf16.msra.mxu0 %v2136
        %2381 = vmatprep.subr.bf16.mxu0 %v2133
        %2382 = vmatpush1.bf16.msra.mxu0 %v2132
        %2383 = vmatprep.subr.bf16.mxu0 %v2193
        %2384 = vmatpush2.bf16.msra.mxu0 %v2192
        %2385 = vmatprep.subr.bf16.mxu0 %v2189
        %2386 = vmatpush2.bf16.msra.mxu0 %v2188
        %2387 = vmatprep.subr.bf16.mxu0 %v2185
        %2388 = vmatpush2.bf16.msra.mxu0 %v2184
        %2389 = vmatprep.subr.bf16.mxu0 %v2181
        %2390 = vmatpush2.bf16.msra.mxu0 %v2180
        %2391 = vmatprep.subr.bf16.mxu0 %v2177
        %2392 = vmatpush2.bf16.msra.mxu0 %v2176
        %2393 = vmatprep.subr.bf16.mxu0 %v2173
        %2394 = vmatpush2.bf16.msra.mxu0 %v2172
        %2395 = vmatprep.subr.bf16.mxu0 %v2169
        %2396 = vmatpush2.bf16.msra.mxu0 %v2168
        %2397 = vmatprep.subr.bf16.mxu0 %v2165
        %2398 = vmatpush2.bf16.msra.mxu0 %v2164
        %2399 = vmatprep.mubr.bf16.mxu0 %v1555
        %2400 = vmatmul.mubr.bf16.gmra.mxu0 %v1554
        %v2401 = vpop.f32.mrf.mxu0
        %v2402 = vadd.f32 %v2359, %v2401
        %v2403 = vpop.f32.mrf.mxu0
        %v2404 = vadd.f32 %v2361, %v2403
        %v2405 = vpop.f32.mrf.mxu0
        %v2406 = vadd.f32 %v2363, %v2405
        %v2407 = vpop.f32.mrf.mxu0
        %v2408 = vadd.f32 %v2365, %v2407
        %2409 = vdwg.mxu0
        %2410 = vmatprep.subr.bf16.mxu0 %v2099
        %2411 = vmatpush1.bf16.msra.mxu0 %v2098
        %2412 = vmatprep.subr.bf16.mxu0 %v2095
        %2413 = vmatpush1.bf16.msra.mxu0 %v2094
        %2414 = vmatprep.subr.bf16.mxu0 %v2091
        %2415 = vmatpush1.bf16.msra.mxu0 %v2090
        %2416 = vmatprep.subr.bf16.mxu0 %v2087
        %2417 = vmatpush1.bf16.msra.mxu0 %v2086
        %2418 = vmatprep.subr.bf16.mxu0 %v2083
        %2419 = vmatpush1.bf16.msra.mxu0 %v2082
        %2420 = vmatprep.subr.bf16.mxu0 %v2079
        %2421 = vmatpush1.bf16.msra.mxu0 %v2078
        %2422 = vmatprep.subr.bf16.mxu0 %v2075
        %2423 = vmatpush1.bf16.msra.mxu0 %v2074
        %2424 = vmatprep.subr.bf16.mxu0 %v2071
        %2425 = vmatpush1.bf16.msra.mxu0 %v2070
        %2426 = vmatprep.subr.bf16.mxu0 %v2131
        %2427 = vmatpush2.bf16.msra.mxu0 %v2130
        %2428 = vmatprep.subr.bf16.mxu0 %v2127
        %2429 = vmatpush2.bf16.msra.mxu0 %v2126
        %2430 = vmatprep.subr.bf16.mxu0 %v2123
        %2431 = vmatpush2.bf16.msra.mxu0 %v2122
        %2432 = vmatprep.subr.bf16.mxu0 %v2119
        %2433 = vmatpush2.bf16.msra.mxu0 %v2118
        %2434 = vmatprep.subr.bf16.mxu0 %v2115
        %2435 = vmatpush2.bf16.msra.mxu0 %v2114
        %2436 = vmatprep.subr.bf16.mxu0 %v2111
        %2437 = vmatpush2.bf16.msra.mxu0 %v2110
        %2438 = vmatprep.subr.bf16.mxu0 %v2107
        %2439 = vmatpush2.bf16.msra.mxu0 %v2106
        %2440 = vmatprep.subr.bf16.mxu0 %v2103
        %2441 = vmatpush2.bf16.msra.mxu0 %v2102
        %2442 = vmatprep.mubr.bf16.mxu0 %v1553
        %2443 = vmatmul.mubr.bf16.gmra.mxu0 %v1552
        %v2444 = vpop.f32.mrf.mxu0
        %v2445 = vadd.f32 0.0, %v2444
        %v2446 = vpop.f32.mrf.mxu0
        %v2447 = vadd.f32 0.0, %v2446
        %v2448 = vpop.f32.mrf.mxu0
        %v2449 = vadd.f32 0.0, %v2448
        %v2450 = vpop.f32.mrf.mxu0
        %v2451 = vadd.f32 0.0, %v2450
        %2452 = vdwg.mxu0
        %2453 = vmatprep.subr.bf16.mxu0 %v2163
        %2454 = vmatpush1.bf16.msra.mxu0 %v2162
        %2455 = vmatprep.subr.bf16.mxu0 %v2159
        %2456 = vmatpush1.bf16.msra.mxu0 %v2158
        %2457 = vmatprep.subr.bf16.mxu0 %v2155
        %2458 = vmatpush1.bf16.msra.mxu0 %v2154
        %2459 = vmatprep.subr.bf16.mxu0 %v2151
        %2460 = vmatpush1.bf16.msra.mxu0 %v2150
        %2461 = vmatprep.subr.bf16.mxu0 %v2147
        %2462 = vmatpush1.bf16.msra.mxu0 %v2146
        %2463 = vmatprep.subr.bf16.mxu0 %v2143
        %2464 = vmatpush1.bf16.msra.mxu0 %v2142
        %2465 = vmatprep.subr.bf16.mxu0 %v2139
        %2466 = vmatpush1.bf16.msra.mxu0 %v2138
        %2467 = vmatprep.subr.bf16.mxu0 %v2135
        %2468 = vmatpush1.bf16.msra.mxu0 %v2134
        %2469 = vmatprep.subr.bf16.mxu0 %v2195
        %2470 = vmatpush2.bf16.msra.mxu0 %v2194
        %2471 = vmatprep.subr.bf16.mxu0 %v2191
        %2472 = vmatpush2.bf16.msra.mxu0 %v2190
        %2473 = vmatprep.subr.bf16.mxu0 %v2187
        %2474 = vmatpush2.bf16.msra.mxu0 %v2186
        %2475 = vmatprep.subr.bf16.mxu0 %v2183
        %2476 = vmatpush2.bf16.msra.mxu0 %v2182
        %2477 = vmatprep.subr.bf16.mxu0 %v2179
        %2478 = vmatpush2.bf16.msra.mxu0 %v2178
        %2479 = vmatprep.subr.bf16.mxu0 %v2175
        %2480 = vmatpush2.bf16.msra.mxu0 %v2174
        %2481 = vmatprep.subr.bf16.mxu0 %v2171
        %2482 = vmatpush2.bf16.msra.mxu0 %v2170
        %2483 = vmatprep.subr.bf16.mxu0 %v2167
        %2484 = vmatpush2.bf16.msra.mxu0 %v2166
        %2485 = vmatprep.mubr.bf16.mxu0 %v1555
        %2486 = vmatmul.mubr.bf16.gmra.mxu0 %v1554
        %v2487 = vpop.f32.mrf.mxu0
        %v2488 = vadd.f32 %v2445, %v2487
        %v2489 = vpop.f32.mrf.mxu0
        %v2490 = vadd.f32 %v2447, %v2489
        %v2491 = vpop.f32.mrf.mxu0
        %v2492 = vadd.f32 %v2449, %v2491
        %v2493 = vpop.f32.mrf.mxu0
        %v2494 = vadd.f32 %v2451, %v2493
        %2495 = vdwg.mxu0
        %v2624 = vunpack.c.l.b16 %v1424
        %v2625 = vunpack.c.h.b16 %v1424
        %v2626 = vunpack.c.l.b16 %v1425
        %v2627 = vunpack.c.h.b16 %v1425
        %v2628 = vunpack.c.l.b16 %v1426
        %v2629 = vunpack.c.h.b16 %v1426
        %v2630 = vunpack.c.l.b16 %v1427
        %v2631 = vunpack.c.h.b16 %v1427
        %v2632 = vunpack.c.l.b16 %v1428
        %v2633 = vunpack.c.h.b16 %v1428
        %v2634 = vunpack.c.l.b16 %v1429
        %v2635 = vunpack.c.h.b16 %v1429
        %v2636 = vunpack.c.l.b16 %v1430
        %v2637 = vunpack.c.h.b16 %v1430
        %v2638 = vunpack.c.l.b16 %v1431
        %v2639 = vunpack.c.h.b16 %v1431
        %v2640 = vunpack.c.l.b16 %v1432
        %v2641 = vunpack.c.h.b16 %v1432
        %v2642 = vunpack.c.l.b16 %v1433
        %v2643 = vunpack.c.h.b16 %v1433
        %v2644 = vunpack.c.l.b16 %v1434
        %v2645 = vunpack.c.h.b16 %v1434
        %v2646 = vunpack.c.l.b16 %v1435
        %v2647 = vunpack.c.h.b16 %v1435
        %v2648 = vunpack.c.l.b16 %v1436
        %v2649 = vunpack.c.h.b16 %v1436
        %v2650 = vunpack.c.l.b16 %v1437
        %v2651 = vunpack.c.h.b16 %v1437
        %v2652 = vunpack.c.l.b16 %v1438
        %v2653 = vunpack.c.h.b16 %v1438
        %v2654 = vunpack.c.l.b16 %v1439
        %v2655 = vunpack.c.h.b16 %v1439
        %v2656 = vunpack.c.l.b16 %v1440
        %v2657 = vunpack.c.h.b16 %v1440
        %v2658 = vunpack.c.l.b16 %v1441
        %v2659 = vunpack.c.h.b16 %v1441
        %v2660 = vunpack.c.l.b16 %v1442
        %v2661 = vunpack.c.h.b16 %v1442
        %v2662 = vunpack.c.l.b16 %v1443
        %v2663 = vunpack.c.h.b16 %v1443
        %v2664 = vunpack.c.l.b16 %v1444
        %v2665 = vunpack.c.h.b16 %v1444
        %v2666 = vunpack.c.l.b16 %v1445
        %v2667 = vunpack.c.h.b16 %v1445
        %v2668 = vunpack.c.l.b16 %v1446
        %v2669 = vunpack.c.h.b16 %v1446
        %v2670 = vunpack.c.l.b16 %v1447
        %v2671 = vunpack.c.h.b16 %v1447
        %v2672 = vunpack.c.l.b16 %v1448
        %v2673 = vunpack.c.h.b16 %v1448
        %v2674 = vunpack.c.l.b16 %v1449
        %v2675 = vunpack.c.h.b16 %v1449
        %v2676 = vunpack.c.l.b16 %v1450
        %v2677 = vunpack.c.h.b16 %v1450
        %v2678 = vunpack.c.l.b16 %v1451
        %v2679 = vunpack.c.h.b16 %v1451
        %v2680 = vunpack.c.l.b16 %v1452
        %v2681 = vunpack.c.h.b16 %v1452
        %v2682 = vunpack.c.l.b16 %v1453
        %v2683 = vunpack.c.h.b16 %v1453
        %v2684 = vunpack.c.l.b16 %v1454
        %v2685 = vunpack.c.h.b16 %v1454
        %v2686 = vunpack.c.l.b16 %v1455
        %v2687 = vunpack.c.h.b16 %v1455
        %v2688 = vunpack.c.l.b16 %v1456
        %v2689 = vunpack.c.h.b16 %v1456
        %v2690 = vunpack.c.l.b16 %v1457
        %v2691 = vunpack.c.h.b16 %v1457
        %v2692 = vunpack.c.l.b16 %v1458
        %v2693 = vunpack.c.h.b16 %v1458
        %v2694 = vunpack.c.l.b16 %v1459
        %v2695 = vunpack.c.h.b16 %v1459
        %v2696 = vunpack.c.l.b16 %v1460
        %v2697 = vunpack.c.h.b16 %v1460
        %v2698 = vunpack.c.l.b16 %v1461
        %v2699 = vunpack.c.h.b16 %v1461
        %v2700 = vunpack.c.l.b16 %v1462
        %v2701 = vunpack.c.h.b16 %v1462
        %v2702 = vunpack.c.l.b16 %v1463
        %v2703 = vunpack.c.h.b16 %v1463
        %v2704 = vunpack.c.l.b16 %v1464
        %v2705 = vunpack.c.h.b16 %v1464
        %v2706 = vunpack.c.l.b16 %v1465
        %v2707 = vunpack.c.h.b16 %v1465
        %v2708 = vunpack.c.l.b16 %v1466
        %v2709 = vunpack.c.h.b16 %v1466
        %v2710 = vunpack.c.l.b16 %v1467
        %v2711 = vunpack.c.h.b16 %v1467
        %v2712 = vunpack.c.l.b16 %v1468
        %v2713 = vunpack.c.h.b16 %v1468
        %v2714 = vunpack.c.l.b16 %v1469
        %v2715 = vunpack.c.h.b16 %v1469
        %v2716 = vunpack.c.l.b16 %v1470
        %v2717 = vunpack.c.h.b16 %v1470
        %v2718 = vunpack.c.l.b16 %v1471
        %v2719 = vunpack.c.h.b16 %v1471
        %v2720 = vunpack.c.l.b16 %v1472
        %v2721 = vunpack.c.h.b16 %v1472
        %v2722 = vunpack.c.l.b16 %v1473
        %v2723 = vunpack.c.h.b16 %v1473
        %v2724 = vunpack.c.l.b16 %v1474
        %v2725 = vunpack.c.h.b16 %v1474
        %v2726 = vunpack.c.l.b16 %v1475
        %v2727 = vunpack.c.h.b16 %v1475
        %v2728 = vunpack.c.l.b16 %v1476
        %v2729 = vunpack.c.h.b16 %v1476
        %v2730 = vunpack.c.l.b16 %v1477
        %v2731 = vunpack.c.h.b16 %v1477
        %v2732 = vunpack.c.l.b16 %v1478
        %v2733 = vunpack.c.h.b16 %v1478
        %v2734 = vunpack.c.l.b16 %v1479
        %v2735 = vunpack.c.h.b16 %v1479
        %v2736 = vunpack.c.l.b16 %v1480
        %v2737 = vunpack.c.h.b16 %v1480
        %v2738 = vunpack.c.l.b16 %v1481
        %v2739 = vunpack.c.h.b16 %v1481
        %v2740 = vunpack.c.l.b16 %v1482
        %v2741 = vunpack.c.h.b16 %v1482
        %v2742 = vunpack.c.l.b16 %v1483
        %v2743 = vunpack.c.h.b16 %v1483
        %v2744 = vunpack.c.l.b16 %v1484
        %v2745 = vunpack.c.h.b16 %v1484
        %v2746 = vunpack.c.l.b16 %v1485
        %v2747 = vunpack.c.h.b16 %v1485
        %v2748 = vunpack.c.l.b16 %v1486
        %v2749 = vunpack.c.h.b16 %v1486
        %v2750 = vunpack.c.l.b16 %v1487
        %v2751 = vunpack.c.h.b16 %v1487
        %v2752 = vunpack.c.l.b16 %v1488
        %v2753 = vunpack.c.h.b16 %v1488
        %v2754 = vunpack.c.l.b16 %v1489
        %v2755 = vunpack.c.h.b16 %v1489
        %v2756 = vunpack.c.l.b16 %v1490
        %v2757 = vunpack.c.h.b16 %v1490
        %v2758 = vunpack.c.l.b16 %v1491
        %v2759 = vunpack.c.h.b16 %v1491
        %v2760 = vunpack.c.l.b16 %v1492
        %v2761 = vunpack.c.h.b16 %v1492
        %v2762 = vunpack.c.l.b16 %v1493
        %v2763 = vunpack.c.h.b16 %v1493
        %v2764 = vunpack.c.l.b16 %v1494
        %v2765 = vunpack.c.h.b16 %v1494
        %v2766 = vunpack.c.l.b16 %v1495
        %v2767 = vunpack.c.h.b16 %v1495
        %v2768 = vunpack.c.l.b16 %v1496
        %v2769 = vunpack.c.h.b16 %v1496
        %v2770 = vunpack.c.l.b16 %v1497
        %v2771 = vunpack.c.h.b16 %v1497
        %v2772 = vunpack.c.l.b16 %v1498
        %v2773 = vunpack.c.h.b16 %v1498
        %v2774 = vunpack.c.l.b16 %v1499
        %v2775 = vunpack.c.h.b16 %v1499
        %v2776 = vunpack.c.l.b16 %v1500
        %v2777 = vunpack.c.h.b16 %v1500
        %v2778 = vunpack.c.l.b16 %v1501
        %v2779 = vunpack.c.h.b16 %v1501
        %v2780 = vunpack.c.l.b16 %v1502
        %v2781 = vunpack.c.h.b16 %v1502
        %v2782 = vunpack.c.l.b16 %v1503
        %v2783 = vunpack.c.h.b16 %v1503
        %v2784 = vunpack.c.l.b16 %v1504
        %v2785 = vunpack.c.h.b16 %v1504
        %v2786 = vunpack.c.l.b16 %v1505
        %v2787 = vunpack.c.h.b16 %v1505
        %v2788 = vunpack.c.l.b16 %v1506
        %v2789 = vunpack.c.h.b16 %v1506
        %v2790 = vunpack.c.l.b16 %v1507
        %v2791 = vunpack.c.h.b16 %v1507
        %v2792 = vunpack.c.l.b16 %v1508
        %v2793 = vunpack.c.h.b16 %v1508
        %v2794 = vunpack.c.l.b16 %v1509
        %v2795 = vunpack.c.h.b16 %v1509
        %v2796 = vunpack.c.l.b16 %v1510
        %v2797 = vunpack.c.h.b16 %v1510
        %v2798 = vunpack.c.l.b16 %v1511
        %v2799 = vunpack.c.h.b16 %v1511
        %v2800 = vunpack.c.l.b16 %v1512
        %v2801 = vunpack.c.h.b16 %v1512
        %v2802 = vunpack.c.l.b16 %v1513
        %v2803 = vunpack.c.h.b16 %v1513
        %v2804 = vunpack.c.l.b16 %v1514
        %v2805 = vunpack.c.h.b16 %v1514
        %v2806 = vunpack.c.l.b16 %v1515
        %v2807 = vunpack.c.h.b16 %v1515
        %v2808 = vunpack.c.l.b16 %v1516
        %v2809 = vunpack.c.h.b16 %v1516
        %v2810 = vunpack.c.l.b16 %v1517
        %v2811 = vunpack.c.h.b16 %v1517
        %v2812 = vunpack.c.l.b16 %v1518
        %v2813 = vunpack.c.h.b16 %v1518
        %v2814 = vunpack.c.l.b16 %v1519
        %v2815 = vunpack.c.h.b16 %v1519
        %v2816 = vunpack.c.l.b16 %v1520
        %v2817 = vunpack.c.h.b16 %v1520
        %v2818 = vunpack.c.l.b16 %v1521
        %v2819 = vunpack.c.h.b16 %v1521
        %v2820 = vunpack.c.l.b16 %v1522
        %v2821 = vunpack.c.h.b16 %v1522
        %v2822 = vunpack.c.l.b16 %v1523
        %v2823 = vunpack.c.h.b16 %v1523
        %v2824 = vunpack.c.l.b16 %v1524
        %v2825 = vunpack.c.h.b16 %v1524
        %v2826 = vunpack.c.l.b16 %v1525
        %v2827 = vunpack.c.h.b16 %v1525
        %v2828 = vunpack.c.l.b16 %v1526
        %v2829 = vunpack.c.h.b16 %v1526
        %v2830 = vunpack.c.l.b16 %v1527
        %v2831 = vunpack.c.h.b16 %v1527
        %v2832 = vunpack.c.l.b16 %v1528
        %v2833 = vunpack.c.h.b16 %v1528
        %v2834 = vunpack.c.l.b16 %v1529
        %v2835 = vunpack.c.h.b16 %v1529
        %v2836 = vunpack.c.l.b16 %v1530
        %v2837 = vunpack.c.h.b16 %v1530
        %v2838 = vunpack.c.l.b16 %v1531
        %v2839 = vunpack.c.h.b16 %v1531
        %v2840 = vunpack.c.l.b16 %v1532
        %v2841 = vunpack.c.h.b16 %v1532
        %v2842 = vunpack.c.l.b16 %v1533
        %v2843 = vunpack.c.h.b16 %v1533
        %v2844 = vunpack.c.l.b16 %v1534
        %v2845 = vunpack.c.h.b16 %v1534
        %v2846 = vunpack.c.l.b16 %v1535
        %v2847 = vunpack.c.h.b16 %v1535
        %v2848 = vunpack.c.l.b16 %v1536
        %v2849 = vunpack.c.h.b16 %v1536
        %v2850 = vunpack.c.l.b16 %v1537
        %v2851 = vunpack.c.h.b16 %v1537
        %v2852 = vunpack.c.l.b16 %v1538
        %v2853 = vunpack.c.h.b16 %v1538
        %v2854 = vunpack.c.l.b16 %v1539
        %v2855 = vunpack.c.h.b16 %v1539
        %v2856 = vunpack.c.l.b16 %v1540
        %v2857 = vunpack.c.h.b16 %v1540
        %v2858 = vunpack.c.l.b16 %v1541
        %v2859 = vunpack.c.h.b16 %v1541
        %v2860 = vunpack.c.l.b16 %v1542
        %v2861 = vunpack.c.h.b16 %v1542
        %v2862 = vunpack.c.l.b16 %v1543
        %v2863 = vunpack.c.h.b16 %v1543
        %v2864 = vunpack.c.l.b16 %v1544
        %v2865 = vunpack.c.h.b16 %v1544
        %v2866 = vunpack.c.l.b16 %v1545
        %v2867 = vunpack.c.h.b16 %v1545
        %v2868 = vunpack.c.l.b16 %v1546
        %v2869 = vunpack.c.h.b16 %v1546
        %v2870 = vunpack.c.l.b16 %v1547
        %v2871 = vunpack.c.h.b16 %v1547
        %v2872 = vunpack.c.l.b16 %v1548
        %v2873 = vunpack.c.h.b16 %v1548
        %v2874 = vunpack.c.l.b16 %v1549
        %v2875 = vunpack.c.h.b16 %v1549
        %v2876 = vunpack.c.l.b16 %v1550
        %v2877 = vunpack.c.h.b16 %v1550
        %v2878 = vunpack.c.l.b16 %v1551
        %v2879 = vunpack.c.h.b16 %v1551
        %v2880 = vpack.c.b16 %v2628, %v2624
        %v2881 = vpack.c.b16 %v2629, %v2625
        %v2882 = vpack.c.b16 %v2630, %v2626
        %v2883 = vpack.c.b16 %v2631, %v2627
        %v2884 = vpack.c.b16 %v2636, %v2632
        %v2885 = vpack.c.b16 %v2637, %v2633
        %v2886 = vpack.c.b16 %v2638, %v2634
        %v2887 = vpack.c.b16 %v2639, %v2635
        %v2888 = vpack.c.b16 %v2644, %v2640
        %v2889 = vpack.c.b16 %v2645, %v2641
        %v2890 = vpack.c.b16 %v2646, %v2642
        %v2891 = vpack.c.b16 %v2647, %v2643
        %v2892 = vpack.c.b16 %v2652, %v2648
        %v2893 = vpack.c.b16 %v2653, %v2649
        %v2894 = vpack.c.b16 %v2654, %v2650
        %v2895 = vpack.c.b16 %v2655, %v2651
        %v2896 = vpack.c.b16 %v2660, %v2656
        %v2897 = vpack.c.b16 %v2661, %v2657
        %v2898 = vpack.c.b16 %v2662, %v2658
        %v2899 = vpack.c.b16 %v2663, %v2659
        %v2900 = vpack.c.b16 %v2668, %v2664
        %v2901 = vpack.c.b16 %v2669, %v2665
        %v2902 = vpack.c.b16 %v2670, %v2666
        %v2903 = vpack.c.b16 %v2671, %v2667
        %v2904 = vpack.c.b16 %v2676, %v2672
        %v2905 = vpack.c.b16 %v2677, %v2673
        %v2906 = vpack.c.b16 %v2678, %v2674
        %v2907 = vpack.c.b16 %v2679, %v2675
        %v2908 = vpack.c.b16 %v2684, %v2680
        %v2909 = vpack.c.b16 %v2685, %v2681
        %v2910 = vpack.c.b16 %v2686, %v2682
        %v2911 = vpack.c.b16 %v2687, %v2683
        %v2912 = vpack.c.b16 %v2692, %v2688
        %v2913 = vpack.c.b16 %v2693, %v2689
        %v2914 = vpack.c.b16 %v2694, %v2690
        %v2915 = vpack.c.b16 %v2695, %v2691
        %v2916 = vpack.c.b16 %v2700, %v2696
        %v2917 = vpack.c.b16 %v2701, %v2697
        %v2918 = vpack.c.b16 %v2702, %v2698
        %v2919 = vpack.c.b16 %v2703, %v2699
        %v2920 = vpack.c.b16 %v2708, %v2704
        %v2921 = vpack.c.b16 %v2709, %v2705
        %v2922 = vpack.c.b16 %v2710, %v2706
        %v2923 = vpack.c.b16 %v2711, %v2707
        %v2924 = vpack.c.b16 %v2716, %v2712
        %v2925 = vpack.c.b16 %v2717, %v2713
        %v2926 = vpack.c.b16 %v2718, %v2714
        %v2927 = vpack.c.b16 %v2719, %v2715
        %v2928 = vpack.c.b16 %v2724, %v2720
        %v2929 = vpack.c.b16 %v2725, %v2721
        %v2930 = vpack.c.b16 %v2726, %v2722
        %v2931 = vpack.c.b16 %v2727, %v2723
        %v2932 = vpack.c.b16 %v2732, %v2728
        %v2933 = vpack.c.b16 %v2733, %v2729
        %v2934 = vpack.c.b16 %v2734, %v2730
        %v2935 = vpack.c.b16 %v2735, %v2731
        %v2936 = vpack.c.b16 %v2740, %v2736
        %v2937 = vpack.c.b16 %v2741, %v2737
        %v2938 = vpack.c.b16 %v2742, %v2738
        %v2939 = vpack.c.b16 %v2743, %v2739
        %v2940 = vpack.c.b16 %v2748, %v2744
        %v2941 = vpack.c.b16 %v2749, %v2745
        %v2942 = vpack.c.b16 %v2750, %v2746
        %v2943 = vpack.c.b16 %v2751, %v2747
        %v2944 = vpack.c.b16 %v2756, %v2752
        %v2945 = vpack.c.b16 %v2757, %v2753
        %v2946 = vpack.c.b16 %v2758, %v2754
        %v2947 = vpack.c.b16 %v2759, %v2755
        %v2948 = vpack.c.b16 %v2764, %v2760
        %v2949 = vpack.c.b16 %v2765, %v2761
        %v2950 = vpack.c.b16 %v2766, %v2762
        %v2951 = vpack.c.b16 %v2767, %v2763
        %v2952 = vpack.c.b16 %v2772, %v2768
        %v2953 = vpack.c.b16 %v2773, %v2769
        %v2954 = vpack.c.b16 %v2774, %v2770
        %v2955 = vpack.c.b16 %v2775, %v2771
        %v2956 = vpack.c.b16 %v2780, %v2776
        %v2957 = vpack.c.b16 %v2781, %v2777
        %v2958 = vpack.c.b16 %v2782, %v2778
        %v2959 = vpack.c.b16 %v2783, %v2779
        %v2960 = vpack.c.b16 %v2788, %v2784
        %v2961 = vpack.c.b16 %v2789, %v2785
        %v2962 = vpack.c.b16 %v2790, %v2786
        %v2963 = vpack.c.b16 %v2791, %v2787
        %v2964 = vpack.c.b16 %v2796, %v2792
        %v2965 = vpack.c.b16 %v2797, %v2793
        %v2966 = vpack.c.b16 %v2798, %v2794
        %v2967 = vpack.c.b16 %v2799, %v2795
        %v2968 = vpack.c.b16 %v2804, %v2800
        %v2969 = vpack.c.b16 %v2805, %v2801
        %v2970 = vpack.c.b16 %v2806, %v2802
        %v2971 = vpack.c.b16 %v2807, %v2803
        %v2972 = vpack.c.b16 %v2812, %v2808
        %v2973 = vpack.c.b16 %v2813, %v2809
        %v2974 = vpack.c.b16 %v2814, %v2810
        %v2975 = vpack.c.b16 %v2815, %v2811
        %v2976 = vpack.c.b16 %v2820, %v2816
        %v2977 = vpack.c.b16 %v2821, %v2817
        %v2978 = vpack.c.b16 %v2822, %v2818
        %v2979 = vpack.c.b16 %v2823, %v2819
        %v2980 = vpack.c.b16 %v2828, %v2824
        %v2981 = vpack.c.b16 %v2829, %v2825
        %v2982 = vpack.c.b16 %v2830, %v2826
        %v2983 = vpack.c.b16 %v2831, %v2827
        %v2984 = vpack.c.b16 %v2836, %v2832
        %v2985 = vpack.c.b16 %v2837, %v2833
        %v2986 = vpack.c.b16 %v2838, %v2834
        %v2987 = vpack.c.b16 %v2839, %v2835
        %v2988 = vpack.c.b16 %v2844, %v2840
        %v2989 = vpack.c.b16 %v2845, %v2841
        %v2990 = vpack.c.b16 %v2846, %v2842
        %v2991 = vpack.c.b16 %v2847, %v2843
        %v2992 = vpack.c.b16 %v2852, %v2848
        %v2993 = vpack.c.b16 %v2853, %v2849
        %v2994 = vpack.c.b16 %v2854, %v2850
        %v2995 = vpack.c.b16 %v2855, %v2851
        %v2996 = vpack.c.b16 %v2860, %v2856
        %v2997 = vpack.c.b16 %v2861, %v2857
        %v2998 = vpack.c.b16 %v2862, %v2858
        %v2999 = vpack.c.b16 %v2863, %v2859
        %v3000 = vpack.c.b16 %v2868, %v2864
        %v3001 = vpack.c.b16 %v2869, %v2865
        %v3002 = vpack.c.b16 %v2870, %v2866
        %v3003 = vpack.c.b16 %v2871, %v2867
        %v3004 = vpack.c.b16 %v2876, %v2872
        %v3005 = vpack.c.b16 %v2877, %v2873
        %v3006 = vpack.c.b16 %v2878, %v2874
        %v3007 = vpack.c.b16 %v2879, %v2875
        %3136 = vmatprep.subr.bf16.mxu0 %v2909
        %3137 = vmatpush1.bf16.msra.mxu0 %v2908
        %3138 = vmatprep.subr.bf16.mxu0 %v2905
        %3139 = vmatpush1.bf16.msra.mxu0 %v2904
        %3140 = vmatprep.subr.bf16.mxu0 %v2901
        %3141 = vmatpush1.bf16.msra.mxu0 %v2900
        %3142 = vmatprep.subr.bf16.mxu0 %v2897
        %3143 = vmatpush1.bf16.msra.mxu0 %v2896
        %3144 = vmatprep.subr.bf16.mxu0 %v2893
        %3145 = vmatpush1.bf16.msra.mxu0 %v2892
        %3146 = vmatprep.subr.bf16.mxu0 %v2889
        %3147 = vmatpush1.bf16.msra.mxu0 %v2888
        %3148 = vmatprep.subr.bf16.mxu0 %v2885
        %3149 = vmatpush1.bf16.msra.mxu0 %v2884
        %3150 = vmatprep.subr.bf16.mxu0 %v2881
        %3151 = vmatpush1.bf16.msra.mxu0 %v2880
        %3152 = vmatprep.subr.bf16.mxu0 %v2941
        %3153 = vmatpush2.bf16.msra.mxu0 %v2940
        %3154 = vmatprep.subr.bf16.mxu0 %v2937
        %3155 = vmatpush2.bf16.msra.mxu0 %v2936
        %3156 = vmatprep.subr.bf16.mxu0 %v2933
        %3157 = vmatpush2.bf16.msra.mxu0 %v2932
        %3158 = vmatprep.subr.bf16.mxu0 %v2929
        %3159 = vmatpush2.bf16.msra.mxu0 %v2928
        %3160 = vmatprep.subr.bf16.mxu0 %v2925
        %3161 = vmatpush2.bf16.msra.mxu0 %v2924
        %3162 = vmatprep.subr.bf16.mxu0 %v2921
        %3163 = vmatpush2.bf16.msra.mxu0 %v2920
        %3164 = vmatprep.subr.bf16.mxu0 %v2917
        %3165 = vmatpush2.bf16.msra.mxu0 %v2916
        %3166 = vmatprep.subr.bf16.mxu0 %v2913
        %3167 = vmatpush2.bf16.msra.mxu0 %v2912
        %3168 = vmatprep.mubr.bf16.mxu0 %v1335
        %3169 = vmatmul.mubr.bf16.gmra.mxu0 %v1334
        %v3170 = vpop.f32.mrf.mxu0
        %v3171 = vadd.f32 %v2402, %v3170
        %v3172 = vpop.f32.mrf.mxu0
        %v3173 = vadd.f32 %v2404, %v3172
        %v3174 = vpop.f32.mrf.mxu0
        %v3175 = vadd.f32 %v2406, %v3174
        %v3176 = vpop.f32.mrf.mxu0
        %v3177 = vadd.f32 %v2408, %v3176
        %3178 = vdwg.mxu0
        %3179 = vmatprep.subr.bf16.mxu0 %v2973
        %3180 = vmatpush1.bf16.msra.mxu0 %v2972
        %3181 = vmatprep.subr.bf16.mxu0 %v2969
        %3182 = vmatpush1.bf16.msra.mxu0 %v2968
        %3183 = vmatprep.subr.bf16.mxu0 %v2965
        %3184 = vmatpush1.bf16.msra.mxu0 %v2964
        %3185 = vmatprep.subr.bf16.mxu0 %v2961
        %3186 = vmatpush1.bf16.msra.mxu0 %v2960
        %3187 = vmatprep.subr.bf16.mxu0 %v2957
        %3188 = vmatpush1.bf16.msra.mxu0 %v2956
        %3189 = vmatprep.subr.bf16.mxu0 %v2953
        %3190 = vmatpush1.bf16.msra.mxu0 %v2952
        %3191 = vmatprep.subr.bf16.mxu0 %v2949
        %3192 = vmatpush1.bf16.msra.mxu0 %v2948
        %3193 = vmatprep.subr.bf16.mxu0 %v2945
        %3194 = vmatpush1.bf16.msra.mxu0 %v2944
        %3195 = vmatprep.subr.bf16.mxu0 %v3005
        %3196 = vmatpush2.bf16.msra.mxu0 %v3004
        %3197 = vmatprep.subr.bf16.mxu0 %v3001
        %3198 = vmatpush2.bf16.msra.mxu0 %v3000
        %3199 = vmatprep.subr.bf16.mxu0 %v2997
        %3200 = vmatpush2.bf16.msra.mxu0 %v2996
        %3201 = vmatprep.subr.bf16.mxu0 %v2993
        %3202 = vmatpush2.bf16.msra.mxu0 %v2992
        %3203 = vmatprep.subr.bf16.mxu0 %v2989
        %3204 = vmatpush2.bf16.msra.mxu0 %v2988
        %3205 = vmatprep.subr.bf16.mxu0 %v2985
        %3206 = vmatpush2.bf16.msra.mxu0 %v2984
        %3207 = vmatprep.subr.bf16.mxu0 %v2981
        %3208 = vmatpush2.bf16.msra.mxu0 %v2980
        %3209 = vmatprep.subr.bf16.mxu0 %v2977
        %3210 = vmatpush2.bf16.msra.mxu0 %v2976
        %3211 = vmatprep.mubr.bf16.mxu0 %v1337
        %3212 = vmatmul.mubr.bf16.gmra.mxu0 %v1336
        %v3213 = vpop.f32.mrf.mxu0
        %v3214 = vadd.f32 %v3171, %v3213
        %v3215 = vpop.f32.mrf.mxu0
        %v3216 = vadd.f32 %v3173, %v3215
        %v3217 = vpop.f32.mrf.mxu0
        %v3218 = vadd.f32 %v3175, %v3217
        %v3219 = vpop.f32.mrf.mxu0
        %v3220 = vadd.f32 %v3177, %v3219
        %3221 = vdwg.mxu0
        %3222 = vmatprep.subr.bf16.mxu0 %v2911
        %3223 = vmatpush1.bf16.msra.mxu0 %v2910
        %3224 = vmatprep.subr.bf16.mxu0 %v2907
        %3225 = vmatpush1.bf16.msra.mxu0 %v2906
        %3226 = vmatprep.subr.bf16.mxu0 %v2903
        %3227 = vmatpush1.bf16.msra.mxu0 %v2902
        %3228 = vmatprep.subr.bf16.mxu0 %v2899
        %3229 = vmatpush1.bf16.msra.mxu0 %v2898
        %3230 = vmatprep.subr.bf16.mxu0 %v2895
        %3231 = vmatpush1.bf16.msra.mxu0 %v2894
        %3232 = vmatprep.subr.bf16.mxu0 %v2891
        %3233 = vmatpush1.bf16.msra.mxu0 %v2890
        %3234 = vmatprep.subr.bf16.mxu0 %v2887
        %3235 = vmatpush1.bf16.msra.mxu0 %v2886
        %3236 = vmatprep.subr.bf16.mxu0 %v2883
        %3237 = vmatpush1.bf16.msra.mxu0 %v2882
        %3238 = vmatprep.subr.bf16.mxu0 %v2943
        %3239 = vmatpush2.bf16.msra.mxu0 %v2942
        %3240 = vmatprep.subr.bf16.mxu0 %v2939
        %3241 = vmatpush2.bf16.msra.mxu0 %v2938
        %3242 = vmatprep.subr.bf16.mxu0 %v2935
        %3243 = vmatpush2.bf16.msra.mxu0 %v2934
        %3244 = vmatprep.subr.bf16.mxu0 %v2931
        %3245 = vmatpush2.bf16.msra.mxu0 %v2930
        %3246 = vmatprep.subr.bf16.mxu0 %v2927
        %3247 = vmatpush2.bf16.msra.mxu0 %v2926
        %3248 = vmatprep.subr.bf16.mxu0 %v2923
        %3249 = vmatpush2.bf16.msra.mxu0 %v2922
        %3250 = vmatprep.subr.bf16.mxu0 %v2919
        %3251 = vmatpush2.bf16.msra.mxu0 %v2918
        %3252 = vmatprep.subr.bf16.mxu0 %v2915
        %3253 = vmatpush2.bf16.msra.mxu0 %v2914
        %3254 = vmatprep.mubr.bf16.mxu0 %v1335
        %3255 = vmatmul.mubr.bf16.gmra.mxu0 %v1334
        %v3256 = vpop.f32.mrf.mxu0
        %v3257 = vadd.f32 %v2488, %v3256
        %v3258 = vpop.f32.mrf.mxu0
        %v3259 = vadd.f32 %v2490, %v3258
        %v3260 = vpop.f32.mrf.mxu0
        %v3261 = vadd.f32 %v2492, %v3260
        %v3262 = vpop.f32.mrf.mxu0
        %v3263 = vadd.f32 %v2494, %v3262
        %3264 = vdwg.mxu0
        %3265 = vmatprep.subr.bf16.mxu0 %v2975
        %3266 = vmatpush1.bf16.msra.mxu0 %v2974
        %3267 = vmatprep.subr.bf16.mxu0 %v2971
        %3268 = vmatpush1.bf16.msra.mxu0 %v2970
        %3269 = vmatprep.subr.bf16.mxu0 %v2967
        %3270 = vmatpush1.bf16.msra.mxu0 %v2966
        %3271 = vmatprep.subr.bf16.mxu0 %v2963
        %3272 = vmatpush1.bf16.msra.mxu0 %v2962
        %3273 = vmatprep.subr.bf16.mxu0 %v2959
        %3274 = vmatpush1.bf16.msra.mxu0 %v2958
        %3275 = vmatprep.subr.bf16.mxu0 %v2955
        %3276 = vmatpush1.bf16.msra.mxu0 %v2954
        %3277 = vmatprep.subr.bf16.mxu0 %v2951
        %3278 = vmatpush1.bf16.msra.mxu0 %v2950
        %3279 = vmatprep.subr.bf16.mxu0 %v2947
        %3280 = vmatpush1.bf16.msra.mxu0 %v2946
        %3281 = vmatprep.subr.bf16.mxu0 %v3007
        %3282 = vmatpush2.bf16.msra.mxu0 %v3006
        %3283 = vmatprep.subr.bf16.mxu0 %v3003
        %3284 = vmatpush2.bf16.msra.mxu0 %v3002
        %3285 = vmatprep.subr.bf16.mxu0 %v2999
        %3286 = vmatpush2.bf16.msra.mxu0 %v2998
        %3287 = vmatprep.subr.bf16.mxu0 %v2995
        %3288 = vmatpush2.bf16.msra.mxu0 %v2994
        %3289 = vmatprep.subr.bf16.mxu0 %v2991
        %3290 = vmatpush2.bf16.msra.mxu0 %v2990
        %3291 = vmatprep.subr.bf16.mxu0 %v2987
        %3292 = vmatpush2.bf16.msra.mxu0 %v2986
        %3293 = vmatprep.subr.bf16.mxu0 %v2983
        %3294 = vmatpush2.bf16.msra.mxu0 %v2982
        %3295 = vmatprep.subr.bf16.mxu0 %v2979
        %3296 = vmatpush2.bf16.msra.mxu0 %v2978
        %3297 = vmatprep.mubr.bf16.mxu0 %v1337
        %3298 = vmatmul.mubr.bf16.gmra.mxu0 %v1336
        %v3299 = vpop.f32.mrf.mxu0
        %v3300 = vadd.f32 %v3257, %v3299
        %v3301 = vpop.f32.mrf.mxu0
        %v3302 = vadd.f32 %v3259, %v3301
        %v3303 = vpop.f32.mrf.mxu0
        %v3304 = vadd.f32 %v3261, %v3303
        %v3305 = vpop.f32.mrf.mxu0
        %v3306 = vadd.f32 %v3263, %v3305
        %3307 = vdwg.mxu0
        %v3308 = vld [vmem:[%s10] sm:$0xf]
        %v3310 = vlaneseq
        %v3311 = vshrl.u32 %v3310, 7
        %v3312 = vsub.s32 0, %v3311
        %v3313 = vrot.slane %v3308, %v3312
        %v3314 = vlaneseq
        %v3315 = vshrl.u32 %v3314, 7
        %v3316 = vsub.s32 1, %v3315
        %v3317 = vrot.slane %v3308, %v3316
        %v3318 = vlaneseq
        %v3319 = vshrl.u32 %v3318, 7
        %v3320 = vsub.s32 2, %v3319
        %v3321 = vrot.slane %v3308, %v3320
        %v3322 = vlaneseq
        %v3323 = vshrl.u32 %v3322, 7
        %v3324 = vsub.s32 3, %v3323
        %v3325 = vrot.slane %v3308, %v3324
        %v3330 = vadd.f32 %v3214, %v3313
        %v3331 = vadd.f32 %v3216, %v3317
        %v3332 = vadd.f32 %v3300, %v3321
        %v3333 = vadd.f32 %v3302, %v3325
        %v3334 = vadd.f32 %v3218, %v3313
        %v3335 = vadd.f32 %v3220, %v3317
        %v3336 = vadd.f32 %v3304, %v3321
        %v3337 = vadd.f32 %v3306, %v3325
        %v3338 = vmax.f32 %v3330, 0.0
        %v3339 = vmax.f32 %v3331, 0.0
        %v3340 = vmax.f32 %v3332, 0.0
        %v3341 = vmax.f32 %v3333, 0.0
        %v3342 = vmax.f32 %v3334, 0.0
        %v3343 = vmax.f32 %v3335, 0.0
        %v3344 = vmax.f32 %v3336, 0.0
        %v3345 = vmax.f32 %v3337, 0.0
        %v3346 = vpack.c.bf16 %v3342, %v3338
        %v3347 = vpack.c.bf16 %v3343, %v3339
        %v3348 = vpack.c.bf16 %v3344, %v3340
        %v3349 = vpack.c.bf16 %v3345, %v3341
        %3350 = vmatprep.subr.bf16.mxu0 0
        %3351 = vmatpush1.bf16.msra.mxu0 0
        %3352 = vmatprep.subr.bf16.mxu0 0
        %3353 = vmatpush1.bf16.msra.mxu0 0
        %3354 = vmatprep.subr.bf16.mxu0 0
        %3355 = vmatpush1.bf16.msra.mxu0 0
        %3356 = vmatprep.subr.bf16.mxu0 0
        %3357 = vmatpush1.bf16.msra.mxu0 0
        %3358 = vmatprep.subr.bf16.mxu0 0
        %3359 = vmatpush1.bf16.msra.mxu0 0
        %3360 = vmatprep.subr.bf16.mxu0 0
        %3361 = vmatpush1.bf16.msra.mxu0 0
        %3362 = vmatprep.subr.bf16.mxu0 0
        %3363 = vmatpush1.bf16.msra.mxu0 0
        %3364 = vmatprep.subr.bf16.mxu0 %v3347
        %3365 = vmatpush1.bf16.msra.mxu0 %v3346
        %3366 = vmatprep.subr.bf16.mxu0 0
        %3367 = vmatpush2.bf16.msra.mxu0 0
        %3368 = vmatprep.subr.bf16.mxu0 0
        %3369 = vmatpush2.bf16.msra.mxu0 0
        %3370 = vmatprep.subr.bf16.mxu0 0
        %3371 = vmatpush2.bf16.msra.mxu0 0
        %3372 = vmatprep.subr.bf16.mxu0 0
        %3373 = vmatpush2.bf16.msra.mxu0 0
        %3374 = vmatprep.subr.bf16.mxu0 0
        %3375 = vmatpush2.bf16.msra.mxu0 0
        %3376 = vmatprep.subr.bf16.mxu0 0
        %3377 = vmatpush2.bf16.msra.mxu0 0
        %3378 = vmatprep.subr.bf16.mxu0 0
        %3379 = vmatpush2.bf16.msra.mxu0 0
        %3380 = vmatprep.subr.bf16.mxu0 0
        %3381 = vmatpush2.bf16.msra.mxu0 0
        %3382 = vmatprep.mubr.bf16.mxu0 0
        %3383 = vmatmul.mubr.bf16.gmra.mxu0 %v977
        %v3384 = vpop.f32.mrf.mxu0
        %v3385 = vadd.f32 0.0, %v3384
        %v3386 = vpop.f32.mrf.mxu0
        %v3387 = vadd.f32 0.0, %v3386
        %v3388 = vpop.f32.mrf.mxu0
        %v3389 = vadd.f32 0.0, %v3388
        %v3390 = vpop.f32.mrf.mxu0
        %v3391 = vadd.f32 0.0, %v3390
        %3392 = vdwg.mxu0
        %3393 = vmatprep.subr.bf16.mxu0 0
        %3394 = vmatpush1.bf16.msra.mxu0 0
        %3395 = vmatprep.subr.bf16.mxu0 0
        %3396 = vmatpush1.bf16.msra.mxu0 0
        %3397 = vmatprep.subr.bf16.mxu0 0
        %3398 = vmatpush1.bf16.msra.mxu0 0
        %3399 = vmatprep.subr.bf16.mxu0 0
        %3400 = vmatpush1.bf16.msra.mxu0 0
        %3401 = vmatprep.subr.bf16.mxu0 0
        %3402 = vmatpush1.bf16.msra.mxu0 0
        %3403 = vmatprep.subr.bf16.mxu0 0
        %3404 = vmatpush1.bf16.msra.mxu0 0
        %3405 = vmatprep.subr.bf16.mxu0 0
        %3406 = vmatpush1.bf16.msra.mxu0 0
        %3407 = vmatprep.subr.bf16.mxu0 %v3349
        %3408 = vmatpush1.bf16.msra.mxu0 %v3348
        %3409 = vmatprep.subr.bf16.mxu0 0
        %3410 = vmatpush2.bf16.msra.mxu0 0
        %3411 = vmatprep.subr.bf16.mxu0 0
        %3412 = vmatpush2.bf16.msra.mxu0 0
        %3413 = vmatprep.subr.bf16.mxu0 0
        %3414 = vmatpush2.bf16.msra.mxu0 0
        %3415 = vmatprep.subr.bf16.mxu0 0
        %3416 = vmatpush2.bf16.msra.mxu0 0
        %3417 = vmatprep.subr.bf16.mxu0 0
        %3418 = vmatpush2.bf16.msra.mxu0 0
        %3419 = vmatprep.subr.bf16.mxu0 0
        %3420 = vmatpush2.bf16.msra.mxu0 0
        %3421 = vmatprep.subr.bf16.mxu0 0
        %3422 = vmatpush2.bf16.msra.mxu0 0
        %3423 = vmatprep.subr.bf16.mxu0 0
        %3424 = vmatpush2.bf16.msra.mxu0 0
        %3425 = vmatprep.mubr.bf16.mxu0 0
        %3426 = vmatmul.mubr.bf16.gmra.mxu0 %v977
        %v3427 = vpop.f32.mrf.mxu0
        %v3428 = vadd.f32 0.0, %v3427
        %v3429 = vpop.f32.mrf.mxu0
        %v3430 = vadd.f32 0.0, %v3429
        %v3431 = vpop.f32.mrf.mxu0
        %v3432 = vadd.f32 0.0, %v3431
        %v3433 = vpop.f32.mrf.mxu0
        %v3434 = vadd.f32 0.0, %v3433
        %3435 = vdwg.mxu0
        %v3436 = vld [vmem:[#allocation16] sm:$0xff]
        %v3437 = vld [vmem:[#allocation16 + $0x8] sm:$0xff]
        %v3438 = vld [vmem:[#allocation16 + $0x10] sm:$0xff]
        %v3439 = vld [vmem:[#allocation16 + $0x18] sm:$0xff]
        %v3440 = vld [vmem:[#allocation16 + $0x20] sm:$0xff]
        %v3441 = vld [vmem:[#allocation16 + $0x28] sm:$0xff]
        %v3442 = vld [vmem:[#allocation16 + $0x30] sm:$0xff]
        %v3443 = vld [vmem:[#allocation16 + $0x38] sm:$0xff]
        %v3444 = vld [vmem:[#allocation16 + $0x40] sm:$0xff]
        %v3445 = vld [vmem:[#allocation16 + $0x48] sm:$0xff]
        %v3446 = vld [vmem:[#allocation16 + $0x50] sm:$0xff]
        %v3447 = vld [vmem:[#allocation16 + $0x58] sm:$0xff]
        %v3448 = vld [vmem:[#allocation16 + $0x60] sm:$0xff]
        %v3449 = vld [vmem:[#allocation16 + $0x68] sm:$0xff]
        %v3450 = vld [vmem:[#allocation16 + $0x70] sm:$0xff]
        %v3451 = vld [vmem:[#allocation16 + $0x78] sm:$0xff]
        %v3452 = vld [vmem:[#allocation16 + $0x80] sm:$0xff]
        %v3453 = vld [vmem:[#allocation16 + $0x88] sm:$0xff]
        %v3454 = vld [vmem:[#allocation16 + $0x90] sm:$0xff]
        %v3455 = vld [vmem:[#allocation16 + $0x98] sm:$0xff]
        %v3456 = vld [vmem:[#allocation16 + $0xa0] sm:$0xff]
        %v3457 = vld [vmem:[#allocation16 + $0xa8] sm:$0xff]
        %v3458 = vld [vmem:[#allocation16 + $0xb0] sm:$0xff]
        %v3459 = vld [vmem:[#allocation16 + $0xb8] sm:$0xff]
        %v3460 = vld [vmem:[#allocation16 + $0xc0] sm:$0xff]
        %v3461 = vld [vmem:[#allocation16 + $0xc8] sm:$0xff]
        %v3462 = vld [vmem:[#allocation16 + $0xd0] sm:$0xff]
        %v3463 = vld [vmem:[#allocation16 + $0xd8] sm:$0xff]
        %v3464 = vld [vmem:[#allocation16 + $0xe0] sm:$0xff]
        %v3465 = vld [vmem:[#allocation16 + $0xe8] sm:$0xff]
        %v3466 = vld [vmem:[#allocation16 + $0xf0] sm:$0xff]
        %v3467 = vld [vmem:[#allocation16 + $0xf8] sm:$0xff]
        %v3468 = vld [vmem:[#allocation16 + $0x100] sm:$0xff]
        %v3469 = vld [vmem:[#allocation16 + $0x108] sm:$0xff]
        %v3470 = vld [vmem:[#allocation16 + $0x110] sm:$0xff]
        %v3471 = vld [vmem:[#allocation16 + $0x118] sm:$0xff]
        %v3472 = vld [vmem:[#allocation16 + $0x120] sm:$0xff]
        %v3473 = vld [vmem:[#allocation16 + $0x128] sm:$0xff]
        %v3474 = vld [vmem:[#allocation16 + $0x130] sm:$0xff]
        %v3475 = vld [vmem:[#allocation16 + $0x138] sm:$0xff]
        %v3476 = vld [vmem:[#allocation16 + $0x140] sm:$0xff]
        %v3477 = vld [vmem:[#allocation16 + $0x148] sm:$0xff]
        %v3478 = vld [vmem:[#allocation16 + $0x150] sm:$0xff]
        %v3479 = vld [vmem:[#allocation16 + $0x158] sm:$0xff]
        %v3480 = vld [vmem:[#allocation16 + $0x160] sm:$0xff]
        %v3481 = vld [vmem:[#allocation16 + $0x168] sm:$0xff]
        %v3482 = vld [vmem:[#allocation16 + $0x170] sm:$0xff]
        %v3483 = vld [vmem:[#allocation16 + $0x178] sm:$0xff]
        %v3484 = vld [vmem:[#allocation16 + $0x180] sm:$0xff]
        %v3485 = vld [vmem:[#allocation16 + $0x188] sm:$0xff]
        %v3486 = vld [vmem:[#allocation16 + $0x190] sm:$0xff]
        %v3487 = vld [vmem:[#allocation16 + $0x198] sm:$0xff]
        %v3488 = vld [vmem:[#allocation16 + $0x1a0] sm:$0xff]
        %v3489 = vld [vmem:[#allocation16 + $0x1a8] sm:$0xff]
        %v3490 = vld [vmem:[#allocation16 + $0x1b0] sm:$0xff]
        %v3491 = vld [vmem:[#allocation16 + $0x1b8] sm:$0xff]
        %v3492 = vld [vmem:[#allocation16 + $0x1c0] sm:$0xff]
        %v3493 = vld [vmem:[#allocation16 + $0x1c8] sm:$0xff]
        %v3494 = vld [vmem:[#allocation16 + $0x1d0] sm:$0xff]
        %v3495 = vld [vmem:[#allocation16 + $0x1d8] sm:$0xff]
        %v3496 = vld [vmem:[#allocation16 + $0x1e0] sm:$0xff]
        %v3497 = vld [vmem:[#allocation16 + $0x1e8] sm:$0xff]
        %v3498 = vld [vmem:[#allocation16 + $0x1f0] sm:$0xff]
        %v3499 = vld [vmem:[#allocation16 + $0x1f8] sm:$0xff]
        %v3500 = vpack.c.bf16 %v3389, %v3385
        %v3501 = vpack.c.bf16 %v3391, %v3387
        %v3502 = vpack.c.bf16 %v3432, %v3428
        %v3503 = vpack.c.bf16 %v3434, %v3430
        %v3504 = vld [vmem:[#allocation18] sm:$0xff]
        %v3505 = vld [vmem:[#allocation18 + $0x8] sm:$0xff]
        %v3506 = vld [vmem:[#allocation18 + $0x10] sm:$0xff]
        %v3507 = vld [vmem:[#allocation18 + $0x18] sm:$0xff]
        %v3508 = vld [vmem:[#allocation18 + $0x20] sm:$0xff]
        %v3509 = vld [vmem:[#allocation18 + $0x28] sm:$0xff]
        %v3510 = vld [vmem:[#allocation18 + $0x30] sm:$0xff]
        %v3511 = vld [vmem:[#allocation18 + $0x38] sm:$0xff]
        %v3512 = vld [vmem:[#allocation18 + $0x40] sm:$0xff]
        %v3513 = vld [vmem:[#allocation18 + $0x48] sm:$0xff]
        %v3514 = vld [vmem:[#allocation18 + $0x50] sm:$0xff]
        %v3515 = vld [vmem:[#allocation18 + $0x58] sm:$0xff]
        %v3516 = vld [vmem:[#allocation18 + $0x60] sm:$0xff]
        %v3517 = vld [vmem:[#allocation18 + $0x68] sm:$0xff]
        %v3518 = vld [vmem:[#allocation18 + $0x70] sm:$0xff]
        %v3519 = vld [vmem:[#allocation18 + $0x78] sm:$0xff]
        %v3520 = vld [vmem:[#allocation18 + $0x80] sm:$0xff]
        %v3521 = vld [vmem:[#allocation18 + $0x88] sm:$0xff]
        %v3522 = vld [vmem:[#allocation18 + $0x90] sm:$0xff]
        %v3523 = vld [vmem:[#allocation18 + $0x98] sm:$0xff]
        %v3524 = vld [vmem:[#allocation18 + $0xa0] sm:$0xff]
        %v3525 = vld [vmem:[#allocation18 + $0xa8] sm:$0xff]
        %v3526 = vld [vmem:[#allocation18 + $0xb0] sm:$0xff]
        %v3527 = vld [vmem:[#allocation18 + $0xb8] sm:$0xff]
        %v3528 = vld [vmem:[#allocation18 + $0xc0] sm:$0xff]
        %v3529 = vld [vmem:[#allocation18 + $0xc8] sm:$0xff]
        %v3530 = vld [vmem:[#allocation18 + $0xd0] sm:$0xff]
        %v3531 = vld [vmem:[#allocation18 + $0xd8] sm:$0xff]
        %v3532 = vld [vmem:[#allocation18 + $0xe0] sm:$0xff]
        %v3533 = vld [vmem:[#allocation18 + $0xe8] sm:$0xff]
        %v3534 = vld [vmem:[#allocation18 + $0xf0] sm:$0xff]
        %v3535 = vld [vmem:[#allocation18 + $0xf8] sm:$0xff]
        %v3536 = vld [vmem:[#allocation18 + $0x100] sm:$0xff]
        %v3537 = vld [vmem:[#allocation18 + $0x108] sm:$0xff]
        %v3538 = vld [vmem:[#allocation18 + $0x110] sm:$0xff]
        %v3539 = vld [vmem:[#allocation18 + $0x118] sm:$0xff]
        %v3540 = vld [vmem:[#allocation18 + $0x120] sm:$0xff]
        %v3541 = vld [vmem:[#allocation18 + $0x128] sm:$0xff]
        %v3542 = vld [vmem:[#allocation18 + $0x130] sm:$0xff]
        %v3543 = vld [vmem:[#allocation18 + $0x138] sm:$0xff]
        %v3544 = vld [vmem:[#allocation18 + $0x140] sm:$0xff]
        %v3545 = vld [vmem:[#allocation18 + $0x148] sm:$0xff]
        %v3546 = vld [vmem:[#allocation18 + $0x150] sm:$0xff]
        %v3547 = vld [vmem:[#allocation18 + $0x158] sm:$0xff]
        %v3548 = vld [vmem:[#allocation18 + $0x160] sm:$0xff]
        %v3549 = vld [vmem:[#allocation18 + $0x168] sm:$0xff]
        %v3550 = vld [vmem:[#allocation18 + $0x170] sm:$0xff]
        %v3551 = vld [vmem:[#allocation18 + $0x178] sm:$0xff]
        %v3552 = vld [vmem:[#allocation18 + $0x180] sm:$0xff]
        %v3553 = vld [vmem:[#allocation18 + $0x188] sm:$0xff]
        %v3554 = vld [vmem:[#allocation18 + $0x190] sm:$0xff]
        %v3555 = vld [vmem:[#allocation18 + $0x198] sm:$0xff]
        %v3556 = vld [vmem:[#allocation18 + $0x1a0] sm:$0xff]
        %v3557 = vld [vmem:[#allocation18 + $0x1a8] sm:$0xff]
        %v3558 = vld [vmem:[#allocation18 + $0x1b0] sm:$0xff]
        %v3559 = vld [vmem:[#allocation18 + $0x1b8] sm:$0xff]
        %v3560 = vld [vmem:[#allocation18 + $0x1c0] sm:$0xff]
        %v3561 = vld [vmem:[#allocation18 + $0x1c8] sm:$0xff]
        %v3562 = vld [vmem:[#allocation18 + $0x1d0] sm:$0xff]
        %v3563 = vld [vmem:[#allocation18 + $0x1d8] sm:$0xff]
        %v3564 = vld [vmem:[#allocation18 + $0x1e0] sm:$0xff]
        %v3565 = vld [vmem:[#allocation18 + $0x1e8] sm:$0xff]
        %v3566 = vld [vmem:[#allocation18 + $0x1f0] sm:$0xff]
        %v3567 = vld [vmem:[#allocation18 + $0x1f8] sm:$0xff]
        %v3632 = vunpack.c.l.b16 %v3504
        %v3633 = vunpack.c.h.b16 %v3504
        %v3634 = vunpack.c.l.b16 %v3505
        %v3635 = vunpack.c.h.b16 %v3505
        %v3636 = vunpack.c.l.b16 %v3506
        %v3637 = vunpack.c.h.b16 %v3506
        %v3638 = vunpack.c.l.b16 %v3507
        %v3639 = vunpack.c.h.b16 %v3507
        %v3640 = vunpack.c.l.b16 %v3508
        %v3641 = vunpack.c.h.b16 %v3508
        %v3642 = vunpack.c.l.b16 %v3509
        %v3643 = vunpack.c.h.b16 %v3509
        %v3644 = vunpack.c.l.b16 %v3510
        %v3645 = vunpack.c.h.b16 %v3510
        %v3646 = vunpack.c.l.b16 %v3511
        %v3647 = vunpack.c.h.b16 %v3511
        %v3648 = vunpack.c.l.b16 %v3512
        %v3649 = vunpack.c.h.b16 %v3512
        %v3650 = vunpack.c.l.b16 %v3513
        %v3651 = vunpack.c.h.b16 %v3513
        %v3652 = vunpack.c.l.b16 %v3514
        %v3653 = vunpack.c.h.b16 %v3514
        %v3654 = vunpack.c.l.b16 %v3515
        %v3655 = vunpack.c.h.b16 %v3515
        %v3656 = vunpack.c.l.b16 %v3516
        %v3657 = vunpack.c.h.b16 %v3516
        %v3658 = vunpack.c.l.b16 %v3517
        %v3659 = vunpack.c.h.b16 %v3517
        %v3660 = vunpack.c.l.b16 %v3518
        %v3661 = vunpack.c.h.b16 %v3518
        %v3662 = vunpack.c.l.b16 %v3519
        %v3663 = vunpack.c.h.b16 %v3519
        %v3664 = vunpack.c.l.b16 %v3520
        %v3665 = vunpack.c.h.b16 %v3520
        %v3666 = vunpack.c.l.b16 %v3521
        %v3667 = vunpack.c.h.b16 %v3521
        %v3668 = vunpack.c.l.b16 %v3522
        %v3669 = vunpack.c.h.b16 %v3522
        %v3670 = vunpack.c.l.b16 %v3523
        %v3671 = vunpack.c.h.b16 %v3523
        %v3672 = vunpack.c.l.b16 %v3524
        %v3673 = vunpack.c.h.b16 %v3524
        %v3674 = vunpack.c.l.b16 %v3525
        %v3675 = vunpack.c.h.b16 %v3525
        %v3676 = vunpack.c.l.b16 %v3526
        %v3677 = vunpack.c.h.b16 %v3526
        %v3678 = vunpack.c.l.b16 %v3527
        %v3679 = vunpack.c.h.b16 %v3527
        %v3680 = vunpack.c.l.b16 %v3528
        %v3681 = vunpack.c.h.b16 %v3528
        %v3682 = vunpack.c.l.b16 %v3529
        %v3683 = vunpack.c.h.b16 %v3529
        %v3684 = vunpack.c.l.b16 %v3530
        %v3685 = vunpack.c.h.b16 %v3530
        %v3686 = vunpack.c.l.b16 %v3531
        %v3687 = vunpack.c.h.b16 %v3531
        %v3688 = vunpack.c.l.b16 %v3532
        %v3689 = vunpack.c.h.b16 %v3532
        %v3690 = vunpack.c.l.b16 %v3533
        %v3691 = vunpack.c.h.b16 %v3533
        %v3692 = vunpack.c.l.b16 %v3534
        %v3693 = vunpack.c.h.b16 %v3534
        %v3694 = vunpack.c.l.b16 %v3535
        %v3695 = vunpack.c.h.b16 %v3535
        %v3696 = vunpack.c.l.b16 %v3536
        %v3697 = vunpack.c.h.b16 %v3536
        %v3698 = vunpack.c.l.b16 %v3537
        %v3699 = vunpack.c.h.b16 %v3537
        %v3700 = vunpack.c.l.b16 %v3538
        %v3701 = vunpack.c.h.b16 %v3538
        %v3702 = vunpack.c.l.b16 %v3539
        %v3703 = vunpack.c.h.b16 %v3539
        %v3704 = vunpack.c.l.b16 %v3540
        %v3705 = vunpack.c.h.b16 %v3540
        %v3706 = vunpack.c.l.b16 %v3541
        %v3707 = vunpack.c.h.b16 %v3541
        %v3708 = vunpack.c.l.b16 %v3542
        %v3709 = vunpack.c.h.b16 %v3542
        %v3710 = vunpack.c.l.b16 %v3543
        %v3711 = vunpack.c.h.b16 %v3543
        %v3712 = vunpack.c.l.b16 %v3544
        %v3713 = vunpack.c.h.b16 %v3544
        %v3714 = vunpack.c.l.b16 %v3545
        %v3715 = vunpack.c.h.b16 %v3545
        %v3716 = vunpack.c.l.b16 %v3546
        %v3717 = vunpack.c.h.b16 %v3546
        %v3718 = vunpack.c.l.b16 %v3547
        %v3719 = vunpack.c.h.b16 %v3547
        %v3720 = vunpack.c.l.b16 %v3548
        %v3721 = vunpack.c.h.b16 %v3548
        %v3722 = vunpack.c.l.b16 %v3549
        %v3723 = vunpack.c.h.b16 %v3549
        %v3724 = vunpack.c.l.b16 %v3550
        %v3725 = vunpack.c.h.b16 %v3550
        %v3726 = vunpack.c.l.b16 %v3551
        %v3727 = vunpack.c.h.b16 %v3551
        %v3728 = vunpack.c.l.b16 %v3552
        %v3729 = vunpack.c.h.b16 %v3552
        %v3730 = vunpack.c.l.b16 %v3553
        %v3731 = vunpack.c.h.b16 %v3553
        %v3732 = vunpack.c.l.b16 %v3554
        %v3733 = vunpack.c.h.b16 %v3554
        %v3734 = vunpack.c.l.b16 %v3555
        %v3735 = vunpack.c.h.b16 %v3555
        %v3736 = vunpack.c.l.b16 %v3556
        %v3737 = vunpack.c.h.b16 %v3556
        %v3738 = vunpack.c.l.b16 %v3557
        %v3739 = vunpack.c.h.b16 %v3557
        %v3740 = vunpack.c.l.b16 %v3558
        %v3741 = vunpack.c.h.b16 %v3558
        %v3742 = vunpack.c.l.b16 %v3559
        %v3743 = vunpack.c.h.b16 %v3559
        %v3744 = vunpack.c.l.b16 %v3560
        %v3745 = vunpack.c.h.b16 %v3560
        %v3746 = vunpack.c.l.b16 %v3561
        %v3747 = vunpack.c.h.b16 %v3561
        %v3748 = vunpack.c.l.b16 %v3562
        %v3749 = vunpack.c.h.b16 %v3562
        %v3750 = vunpack.c.l.b16 %v3563
        %v3751 = vunpack.c.h.b16 %v3563
        %v3752 = vunpack.c.l.b16 %v3564
        %v3753 = vunpack.c.h.b16 %v3564
        %v3754 = vunpack.c.l.b16 %v3565
        %v3755 = vunpack.c.h.b16 %v3565
        %v3756 = vunpack.c.l.b16 %v3566
        %v3757 = vunpack.c.h.b16 %v3566
        %v3758 = vunpack.c.l.b16 %v3567
        %v3759 = vunpack.c.h.b16 %v3567
        %v3760 = vpack.c.b16 %v3634, %v3632
        %v3761 = vpack.c.b16 %v3635, %v3633
        %v3762 = vpack.c.b16 %v3638, %v3636
        %v3763 = vpack.c.b16 %v3639, %v3637
        %v3764 = vpack.c.b16 %v3642, %v3640
        %v3765 = vpack.c.b16 %v3643, %v3641
        %v3766 = vpack.c.b16 %v3646, %v3644
        %v3767 = vpack.c.b16 %v3647, %v3645
        %v3768 = vpack.c.b16 %v3650, %v3648
        %v3769 = vpack.c.b16 %v3651, %v3649
        %v3770 = vpack.c.b16 %v3654, %v3652
        %v3771 = vpack.c.b16 %v3655, %v3653
        %v3772 = vpack.c.b16 %v3658, %v3656
        %v3773 = vpack.c.b16 %v3659, %v3657
        %v3774 = vpack.c.b16 %v3662, %v3660
        %v3775 = vpack.c.b16 %v3663, %v3661
        %v3776 = vpack.c.b16 %v3666, %v3664
        %v3777 = vpack.c.b16 %v3667, %v3665
        %v3778 = vpack.c.b16 %v3670, %v3668
        %v3779 = vpack.c.b16 %v3671, %v3669
        %v3780 = vpack.c.b16 %v3674, %v3672
        %v3781 = vpack.c.b16 %v3675, %v3673
        %v3782 = vpack.c.b16 %v3678, %v3676
        %v3783 = vpack.c.b16 %v3679, %v3677
        %v3784 = vpack.c.b16 %v3682, %v3680
        %v3785 = vpack.c.b16 %v3683, %v3681
        %v3786 = vpack.c.b16 %v3686, %v3684
        %v3787 = vpack.c.b16 %v3687, %v3685
        %v3788 = vpack.c.b16 %v3690, %v3688
        %v3789 = vpack.c.b16 %v3691, %v3689
        %v3790 = vpack.c.b16 %v3694, %v3692
        %v3791 = vpack.c.b16 %v3695, %v3693
        %v3792 = vpack.c.b16 %v3698, %v3696
        %v3793 = vpack.c.b16 %v3699, %v3697
        %v3794 = vpack.c.b16 %v3702, %v3700
        %v3795 = vpack.c.b16 %v3703, %v3701
        %v3796 = vpack.c.b16 %v3706, %v3704
        %v3797 = vpack.c.b16 %v3707, %v3705
        %v3798 = vpack.c.b16 %v3710, %v3708
        %v3799 = vpack.c.b16 %v3711, %v3709
        %v3800 = vpack.c.b16 %v3714, %v3712
        %v3801 = vpack.c.b16 %v3715, %v3713
        %v3802 = vpack.c.b16 %v3718, %v3716
        %v3803 = vpack.c.b16 %v3719, %v3717
        %v3804 = vpack.c.b16 %v3722, %v3720
        %v3805 = vpack.c.b16 %v3723, %v3721
        %v3806 = vpack.c.b16 %v3726, %v3724
        %v3807 = vpack.c.b16 %v3727, %v3725
        %v3808 = vpack.c.b16 %v3730, %v3728
        %v3809 = vpack.c.b16 %v3731, %v3729
        %v3810 = vpack.c.b16 %v3734, %v3732
        %v3811 = vpack.c.b16 %v3735, %v3733
        %v3812 = vpack.c.b16 %v3738, %v3736
        %v3813 = vpack.c.b16 %v3739, %v3737
        %v3814 = vpack.c.b16 %v3742, %v3740
        %v3815 = vpack.c.b16 %v3743, %v3741
        %v3816 = vpack.c.b16 %v3746, %v3744
        %v3817 = vpack.c.b16 %v3747, %v3745
        %v3818 = vpack.c.b16 %v3750, %v3748
        %v3819 = vpack.c.b16 %v3751, %v3749
        %v3820 = vpack.c.b16 %v3754, %v3752
        %v3821 = vpack.c.b16 %v3755, %v3753
        %v3822 = vpack.c.b16 %v3758, %v3756
        %v3823 = vpack.c.b16 %v3759, %v3757
        %3888 = vmatprep.subr.bf16.mxu0 %v3775
        %3889 = vmatpush1.bf16.msra.mxu0 %v3774
        %3890 = vmatprep.subr.bf16.mxu0 %v3773
        %3891 = vmatpush1.bf16.msra.mxu0 %v3772
        %3892 = vmatprep.subr.bf16.mxu0 %v3771
        %3893 = vmatpush1.bf16.msra.mxu0 %v3770
        %3894 = vmatprep.subr.bf16.mxu0 %v3769
        %3895 = vmatpush1.bf16.msra.mxu0 %v3768
        %3896 = vmatprep.subr.bf16.mxu0 %v3767
        %3897 = vmatpush1.bf16.msra.mxu0 %v3766
        %3898 = vmatprep.subr.bf16.mxu0 %v3765
        %3899 = vmatpush1.bf16.msra.mxu0 %v3764
        %3900 = vmatprep.subr.bf16.mxu0 %v3763
        %3901 = vmatpush1.bf16.msra.mxu0 %v3762
        %3902 = vmatprep.subr.bf16.mxu0 %v3761
        %3903 = vmatpush1.bf16.msra.mxu0 %v3760
        %3904 = vmatprep.subr.bf16.mxu0 %v3791
        %3905 = vmatpush2.bf16.msra.mxu0 %v3790
        %3906 = vmatprep.subr.bf16.mxu0 %v3789
        %3907 = vmatpush2.bf16.msra.mxu0 %v3788
        %3908 = vmatprep.subr.bf16.mxu0 %v3787
        %3909 = vmatpush2.bf16.msra.mxu0 %v3786
        %3910 = vmatprep.subr.bf16.mxu0 %v3785
        %3911 = vmatpush2.bf16.msra.mxu0 %v3784
        %3912 = vmatprep.subr.bf16.mxu0 %v3783
        %3913 = vmatpush2.bf16.msra.mxu0 %v3782
        %3914 = vmatprep.subr.bf16.mxu0 %v3781
        %3915 = vmatpush2.bf16.msra.mxu0 %v3780
        %3916 = vmatprep.subr.bf16.mxu0 %v3779
        %3917 = vmatpush2.bf16.msra.mxu0 %v3778
        %3918 = vmatprep.subr.bf16.mxu0 %v3777
        %3919 = vmatpush2.bf16.msra.mxu0 %v3776
        %3920 = vmatprep.mubr.bf16.mxu0 %v3501
        %3921 = vmatmul.mubr.bf16.gmra.mxu0 %v3500
        %v3922 = vpop.f32.mrf.mxu0
        %v3923 = vadd.f32 0.0, %v3922
        %v3924 = vpop.f32.mrf.mxu0
        %v3925 = vadd.f32 0.0, %v3924
        %v3926 = vpop.f32.mrf.mxu0
        %v3927 = vadd.f32 0.0, %v3926
        %v3928 = vpop.f32.mrf.mxu0
        %v3929 = vadd.f32 0.0, %v3928
        %3930 = vdwg.mxu0
        %3931 = vmatprep.subr.bf16.mxu0 %v3807
        %3932 = vmatpush1.bf16.msra.mxu0 %v3806
        %3933 = vmatprep.subr.bf16.mxu0 %v3805
        %3934 = vmatpush1.bf16.msra.mxu0 %v3804
        %3935 = vmatprep.subr.bf16.mxu0 %v3803
        %3936 = vmatpush1.bf16.msra.mxu0 %v3802
        %3937 = vmatprep.subr.bf16.mxu0 %v3801
        %3938 = vmatpush1.bf16.msra.mxu0 %v3800
        %3939 = vmatprep.subr.bf16.mxu0 %v3799
        %3940 = vmatpush1.bf16.msra.mxu0 %v3798
        %3941 = vmatprep.subr.bf16.mxu0 %v3797
        %3942 = vmatpush1.bf16.msra.mxu0 %v3796
        %3943 = vmatprep.subr.bf16.mxu0 %v3795
        %3944 = vmatpush1.bf16.msra.mxu0 %v3794
        %3945 = vmatprep.subr.bf16.mxu0 %v3793
        %3946 = vmatpush1.bf16.msra.mxu0 %v3792
        %3947 = vmatprep.subr.bf16.mxu0 %v3823
        %3948 = vmatpush2.bf16.msra.mxu0 %v3822
        %3949 = vmatprep.subr.bf16.mxu0 %v3821
        %3950 = vmatpush2.bf16.msra.mxu0 %v3820
        %3951 = vmatprep.subr.bf16.mxu0 %v3819
        %3952 = vmatpush2.bf16.msra.mxu0 %v3818
        %3953 = vmatprep.subr.bf16.mxu0 %v3817
        %3954 = vmatpush2.bf16.msra.mxu0 %v3816
        %3955 = vmatprep.subr.bf16.mxu0 %v3815
        %3956 = vmatpush2.bf16.msra.mxu0 %v3814
        %3957 = vmatprep.subr.bf16.mxu0 %v3813
        %3958 = vmatpush2.bf16.msra.mxu0 %v3812
        %3959 = vmatprep.subr.bf16.mxu0 %v3811
        %3960 = vmatpush2.bf16.msra.mxu0 %v3810
        %3961 = vmatprep.subr.bf16.mxu0 %v3809
        %3962 = vmatpush2.bf16.msra.mxu0 %v3808
        %3963 = vmatprep.mubr.bf16.mxu0 %v3503
        %3964 = vmatmul.mubr.bf16.gmra.mxu0 %v3502
        %v3965 = vpop.f32.mrf.mxu0
        %v3966 = vadd.f32 %v3923, %v3965
        %v3967 = vpop.f32.mrf.mxu0
        %v3968 = vadd.f32 %v3925, %v3967
        %v3969 = vpop.f32.mrf.mxu0
        %v3970 = vadd.f32 %v3927, %v3969
        %v3971 = vpop.f32.mrf.mxu0
        %v3972 = vadd.f32 %v3929, %v3971
        %3973 = vdwg.mxu0
        %v4038 = vunpack.c.l.b16 %v3436
        %v4039 = vunpack.c.h.b16 %v3436
        %v4040 = vunpack.c.l.b16 %v3437
        %v4041 = vunpack.c.h.b16 %v3437
        %v4042 = vunpack.c.l.b16 %v3438
        %v4043 = vunpack.c.h.b16 %v3438
        %v4044 = vunpack.c.l.b16 %v3439
        %v4045 = vunpack.c.h.b16 %v3439
        %v4046 = vunpack.c.l.b16 %v3440
        %v4047 = vunpack.c.h.b16 %v3440
        %v4048 = vunpack.c.l.b16 %v3441
        %v4049 = vunpack.c.h.b16 %v3441
        %v4050 = vunpack.c.l.b16 %v3442
        %v4051 = vunpack.c.h.b16 %v3442
        %v4052 = vunpack.c.l.b16 %v3443
        %v4053 = vunpack.c.h.b16 %v3443
        %v4054 = vunpack.c.l.b16 %v3444
        %v4055 = vunpack.c.h.b16 %v3444
        %v4056 = vunpack.c.l.b16 %v3445
        %v4057 = vunpack.c.h.b16 %v3445
        %v4058 = vunpack.c.l.b16 %v3446
        %v4059 = vunpack.c.h.b16 %v3446
        %v4060 = vunpack.c.l.b16 %v3447
        %v4061 = vunpack.c.h.b16 %v3447
        %v4062 = vunpack.c.l.b16 %v3448
        %v4063 = vunpack.c.h.b16 %v3448
        %v4064 = vunpack.c.l.b16 %v3449
        %v4065 = vunpack.c.h.b16 %v3449
        %v4066 = vunpack.c.l.b16 %v3450
        %v4067 = vunpack.c.h.b16 %v3450
        %v4068 = vunpack.c.l.b16 %v3451
        %v4069 = vunpack.c.h.b16 %v3451
        %v4070 = vunpack.c.l.b16 %v3452
        %v4071 = vunpack.c.h.b16 %v3452
        %v4072 = vunpack.c.l.b16 %v3453
        %v4073 = vunpack.c.h.b16 %v3453
        %v4074 = vunpack.c.l.b16 %v3454
        %v4075 = vunpack.c.h.b16 %v3454
        %v4076 = vunpack.c.l.b16 %v3455
        %v4077 = vunpack.c.h.b16 %v3455
        %v4078 = vunpack.c.l.b16 %v3456
        %v4079 = vunpack.c.h.b16 %v3456
        %v4080 = vunpack.c.l.b16 %v3457
        %v4081 = vunpack.c.h.b16 %v3457
        %v4082 = vunpack.c.l.b16 %v3458
        %v4083 = vunpack.c.h.b16 %v3458
        %v4084 = vunpack.c.l.b16 %v3459
        %v4085 = vunpack.c.h.b16 %v3459
        %v4086 = vunpack.c.l.b16 %v3460
        %v4087 = vunpack.c.h.b16 %v3460
        %v4088 = vunpack.c.l.b16 %v3461
        %v4089 = vunpack.c.h.b16 %v3461
        %v4090 = vunpack.c.l.b16 %v3462
        %v4091 = vunpack.c.h.b16 %v3462
        %v4092 = vunpack.c.l.b16 %v3463
        %v4093 = vunpack.c.h.b16 %v3463
        %v4094 = vunpack.c.l.b16 %v3464
        %v4095 = vunpack.c.h.b16 %v3464
        %v4096 = vunpack.c.l.b16 %v3465
        %v4097 = vunpack.c.h.b16 %v3465
        %v4098 = vunpack.c.l.b16 %v3466
        %v4099 = vunpack.c.h.b16 %v3466
        %v4100 = vunpack.c.l.b16 %v3467
        %v4101 = vunpack.c.h.b16 %v3467
        %v4102 = vunpack.c.l.b16 %v3468
        %v4103 = vunpack.c.h.b16 %v3468
        %v4104 = vunpack.c.l.b16 %v3469
        %v4105 = vunpack.c.h.b16 %v3469
        %v4106 = vunpack.c.l.b16 %v3470
        %v4107 = vunpack.c.h.b16 %v3470
        %v4108 = vunpack.c.l.b16 %v3471
        %v4109 = vunpack.c.h.b16 %v3471
        %v4110 = vunpack.c.l.b16 %v3472
        %v4111 = vunpack.c.h.b16 %v3472
        %v4112 = vunpack.c.l.b16 %v3473
        %v4113 = vunpack.c.h.b16 %v3473
        %v4114 = vunpack.c.l.b16 %v3474
        %v4115 = vunpack.c.h.b16 %v3474
        %v4116 = vunpack.c.l.b16 %v3475
        %v4117 = vunpack.c.h.b16 %v3475
        %v4118 = vunpack.c.l.b16 %v3476
        %v4119 = vunpack.c.h.b16 %v3476
        %v4120 = vunpack.c.l.b16 %v3477
        %v4121 = vunpack.c.h.b16 %v3477
        %v4122 = vunpack.c.l.b16 %v3478
        %v4123 = vunpack.c.h.b16 %v3478
        %v4124 = vunpack.c.l.b16 %v3479
        %v4125 = vunpack.c.h.b16 %v3479
        %v4126 = vunpack.c.l.b16 %v3480
        %v4127 = vunpack.c.h.b16 %v3480
        %v4128 = vunpack.c.l.b16 %v3481
        %v4129 = vunpack.c.h.b16 %v3481
        %v4130 = vunpack.c.l.b16 %v3482
        %v4131 = vunpack.c.h.b16 %v3482
        %v4132 = vunpack.c.l.b16 %v3483
        %v4133 = vunpack.c.h.b16 %v3483
        %v4134 = vunpack.c.l.b16 %v3484
        %v4135 = vunpack.c.h.b16 %v3484
        %v4136 = vunpack.c.l.b16 %v3485
        %v4137 = vunpack.c.h.b16 %v3485
        %v4138 = vunpack.c.l.b16 %v3486
        %v4139 = vunpack.c.h.b16 %v3486
        %v4140 = vunpack.c.l.b16 %v3487
        %v4141 = vunpack.c.h.b16 %v3487
        %v4142 = vunpack.c.l.b16 %v3488
        %v4143 = vunpack.c.h.b16 %v3488
        %v4144 = vunpack.c.l.b16 %v3489
        %v4145 = vunpack.c.h.b16 %v3489
        %v4146 = vunpack.c.l.b16 %v3490
        %v4147 = vunpack.c.h.b16 %v3490
        %v4148 = vunpack.c.l.b16 %v3491
        %v4149 = vunpack.c.h.b16 %v3491
        %v4150 = vunpack.c.l.b16 %v3492
        %v4151 = vunpack.c.h.b16 %v3492
        %v4152 = vunpack.c.l.b16 %v3493
        %v4153 = vunpack.c.h.b16 %v3493
        %v4154 = vunpack.c.l.b16 %v3494
        %v4155 = vunpack.c.h.b16 %v3494
        %v4156 = vunpack.c.l.b16 %v3495
        %v4157 = vunpack.c.h.b16 %v3495
        %v4158 = vunpack.c.l.b16 %v3496
        %v4159 = vunpack.c.h.b16 %v3496
        %v4160 = vunpack.c.l.b16 %v3497
        %v4161 = vunpack.c.h.b16 %v3497
        %v4162 = vunpack.c.l.b16 %v3498
        %v4163 = vunpack.c.h.b16 %v3498
        %v4164 = vunpack.c.l.b16 %v3499
        %v4165 = vunpack.c.h.b16 %v3499
        %v4166 = vpack.c.b16 %v4040, %v4038
        %v4167 = vpack.c.b16 %v4041, %v4039
        %v4168 = vpack.c.b16 %v4044, %v4042
        %v4169 = vpack.c.b16 %v4045, %v4043
        %v4170 = vpack.c.b16 %v4048, %v4046
        %v4171 = vpack.c.b16 %v4049, %v4047
        %v4172 = vpack.c.b16 %v4052, %v4050
        %v4173 = vpack.c.b16 %v4053, %v4051
        %v4174 = vpack.c.b16 %v4056, %v4054
        %v4175 = vpack.c.b16 %v4057, %v4055
        %v4176 = vpack.c.b16 %v4060, %v4058
        %v4177 = vpack.c.b16 %v4061, %v4059
        %v4178 = vpack.c.b16 %v4064, %v4062
        %v4179 = vpack.c.b16 %v4065, %v4063
        %v4180 = vpack.c.b16 %v4068, %v4066
        %v4181 = vpack.c.b16 %v4069, %v4067
        %v4182 = vpack.c.b16 %v4072, %v4070
        %v4183 = vpack.c.b16 %v4073, %v4071
        %v4184 = vpack.c.b16 %v4076, %v4074
        %v4185 = vpack.c.b16 %v4077, %v4075
        %v4186 = vpack.c.b16 %v4080, %v4078
        %v4187 = vpack.c.b16 %v4081, %v4079
        %v4188 = vpack.c.b16 %v4084, %v4082
        %v4189 = vpack.c.b16 %v4085, %v4083
        %v4190 = vpack.c.b16 %v4088, %v4086
        %v4191 = vpack.c.b16 %v4089, %v4087
        %v4192 = vpack.c.b16 %v4092, %v4090
        %v4193 = vpack.c.b16 %v4093, %v4091
        %v4194 = vpack.c.b16 %v4096, %v4094
        %v4195 = vpack.c.b16 %v4097, %v4095
        %v4196 = vpack.c.b16 %v4100, %v4098
        %v4197 = vpack.c.b16 %v4101, %v4099
        %v4198 = vpack.c.b16 %v4104, %v4102
        %v4199 = vpack.c.b16 %v4105, %v4103
        %v4200 = vpack.c.b16 %v4108, %v4106
        %v4201 = vpack.c.b16 %v4109, %v4107
        %v4202 = vpack.c.b16 %v4112, %v4110
        %v4203 = vpack.c.b16 %v4113, %v4111
        %v4204 = vpack.c.b16 %v4116, %v4114
        %v4205 = vpack.c.b16 %v4117, %v4115
        %v4206 = vpack.c.b16 %v4120, %v4118
        %v4207 = vpack.c.b16 %v4121, %v4119
        %v4208 = vpack.c.b16 %v4124, %v4122
        %v4209 = vpack.c.b16 %v4125, %v4123
        %v4210 = vpack.c.b16 %v4128, %v4126
        %v4211 = vpack.c.b16 %v4129, %v4127
        %v4212 = vpack.c.b16 %v4132, %v4130
        %v4213 = vpack.c.b16 %v4133, %v4131
        %v4214 = vpack.c.b16 %v4136, %v4134
        %v4215 = vpack.c.b16 %v4137, %v4135
        %v4216 = vpack.c.b16 %v4140, %v4138
        %v4217 = vpack.c.b16 %v4141, %v4139
        %v4218 = vpack.c.b16 %v4144, %v4142
        %v4219 = vpack.c.b16 %v4145, %v4143
        %v4220 = vpack.c.b16 %v4148, %v4146
        %v4221 = vpack.c.b16 %v4149, %v4147
        %v4222 = vpack.c.b16 %v4152, %v4150
        %v4223 = vpack.c.b16 %v4153, %v4151
        %v4224 = vpack.c.b16 %v4156, %v4154
        %v4225 = vpack.c.b16 %v4157, %v4155
        %v4226 = vpack.c.b16 %v4160, %v4158
        %v4227 = vpack.c.b16 %v4161, %v4159
        %v4228 = vpack.c.b16 %v4164, %v4162
        %v4229 = vpack.c.b16 %v4165, %v4163
        %4294 = vmatprep.subr.bf16.mxu0 %v4181
        %4295 = vmatpush1.bf16.msra.mxu0 %v4180
        %4296 = vmatprep.subr.bf16.mxu0 %v4179
        %4297 = vmatpush1.bf16.msra.mxu0 %v4178
        %4298 = vmatprep.subr.bf16.mxu0 %v4177
        %4299 = vmatpush1.bf16.msra.mxu0 %v4176
        %4300 = vmatprep.subr.bf16.mxu0 %v4175
        %4301 = vmatpush1.bf16.msra.mxu0 %v4174
        %4302 = vmatprep.subr.bf16.mxu0 %v4173
        %4303 = vmatpush1.bf16.msra.mxu0 %v4172
        %4304 = vmatprep.subr.bf16.mxu0 %v4171
        %4305 = vmatpush1.bf16.msra.mxu0 %v4170
        %4306 = vmatprep.subr.bf16.mxu0 %v4169
        %4307 = vmatpush1.bf16.msra.mxu0 %v4168
        %4308 = vmatprep.subr.bf16.mxu0 %v4167
        %4309 = vmatpush1.bf16.msra.mxu0 %v4166
        %4310 = vmatprep.subr.bf16.mxu0 %v4197
        %4311 = vmatpush2.bf16.msra.mxu0 %v4196
        %4312 = vmatprep.subr.bf16.mxu0 %v4195
        %4313 = vmatpush2.bf16.msra.mxu0 %v4194
        %4314 = vmatprep.subr.bf16.mxu0 %v4193
        %4315 = vmatpush2.bf16.msra.mxu0 %v4192
        %4316 = vmatprep.subr.bf16.mxu0 %v4191
        %4317 = vmatpush2.bf16.msra.mxu0 %v4190
        %4318 = vmatprep.subr.bf16.mxu0 %v4189
        %4319 = vmatpush2.bf16.msra.mxu0 %v4188
        %4320 = vmatprep.subr.bf16.mxu0 %v4187
        %4321 = vmatpush2.bf16.msra.mxu0 %v4186
        %4322 = vmatprep.subr.bf16.mxu0 %v4185
        %4323 = vmatpush2.bf16.msra.mxu0 %v4184
        %4324 = vmatprep.subr.bf16.mxu0 %v4183
        %4325 = vmatpush2.bf16.msra.mxu0 %v4182
        %4326 = vmatprep.mubr.bf16.mxu0 %v3347
        %4327 = vmatmul.mubr.bf16.gmra.mxu0 %v3346
        %v4328 = vpop.f32.mrf.mxu0
        %v4329 = vadd.f32 %v3966, %v4328
        %v4330 = vpop.f32.mrf.mxu0
        %v4331 = vadd.f32 %v3968, %v4330
        %v4332 = vpop.f32.mrf.mxu0
        %v4333 = vadd.f32 %v3970, %v4332
        %v4334 = vpop.f32.mrf.mxu0
        %v4335 = vadd.f32 %v3972, %v4334
        %4336 = vdwg.mxu0
        %4337 = vmatprep.subr.bf16.mxu0 %v4213
        %4338 = vmatpush1.bf16.msra.mxu0 %v4212
        %4339 = vmatprep.subr.bf16.mxu0 %v4211
        %4340 = vmatpush1.bf16.msra.mxu0 %v4210
        %4341 = vmatprep.subr.bf16.mxu0 %v4209
        %4342 = vmatpush1.bf16.msra.mxu0 %v4208
        %4343 = vmatprep.subr.bf16.mxu0 %v4207
        %4344 = vmatpush1.bf16.msra.mxu0 %v4206
        %4345 = vmatprep.subr.bf16.mxu0 %v4205
        %4346 = vmatpush1.bf16.msra.mxu0 %v4204
        %4347 = vmatprep.subr.bf16.mxu0 %v4203
        %4348 = vmatpush1.bf16.msra.mxu0 %v4202
        %4349 = vmatprep.subr.bf16.mxu0 %v4201
        %4350 = vmatpush1.bf16.msra.mxu0 %v4200
        %4351 = vmatprep.subr.bf16.mxu0 %v4199
        %4352 = vmatpush1.bf16.msra.mxu0 %v4198
        %4353 = vmatprep.subr.bf16.mxu0 %v4229
        %4354 = vmatpush2.bf16.msra.mxu0 %v4228
        %4355 = vmatprep.subr.bf16.mxu0 %v4227
        %4356 = vmatpush2.bf16.msra.mxu0 %v4226
        %4357 = vmatprep.subr.bf16.mxu0 %v4225
        %4358 = vmatpush2.bf16.msra.mxu0 %v4224
        %4359 = vmatprep.subr.bf16.mxu0 %v4223
        %4360 = vmatpush2.bf16.msra.mxu0 %v4222
        %4361 = vmatprep.subr.bf16.mxu0 %v4221
        %4362 = vmatpush2.bf16.msra.mxu0 %v4220
        %4363 = vmatprep.subr.bf16.mxu0 %v4219
        %4364 = vmatpush2.bf16.msra.mxu0 %v4218
        %4365 = vmatprep.subr.bf16.mxu0 %v4217
        %4366 = vmatpush2.bf16.msra.mxu0 %v4216
        %4367 = vmatprep.subr.bf16.mxu0 %v4215
        %4368 = vmatpush2.bf16.msra.mxu0 %v4214
        %4369 = vmatprep.mubr.bf16.mxu0 %v3349
        %4370 = vmatmul.mubr.bf16.gmra.mxu0 %v3348
        %v4371 = vpop.f32.mrf.mxu0
        %v4372 = vadd.f32 %v4329, %v4371
        %v4373 = vpop.f32.mrf.mxu0
        %v4374 = vadd.f32 %v4331, %v4373
        %v4375 = vpop.f32.mrf.mxu0
        %v4376 = vadd.f32 %v4333, %v4375
        %v4377 = vpop.f32.mrf.mxu0
        %v4378 = vadd.f32 %v4335, %v4377
        %4379 = vdwg.mxu0
        %v4380 = vld [vmem:[%s13] sm:$0x3]
        %v4382 = vlaneseq
        %v4383 = vshrl.u32 %v4382, 7
        %v4384 = vsub.s32 0, %v4383
        %v4385 = vrot.slane %v4380, %v4384
        %v4386 = vlaneseq
        %v4387 = vshrl.u32 %v4386, 7
        %v4388 = vsub.s32 1, %v4387
        %v4389 = vrot.slane %v4380, %v4388
        %v4392 = vadd.f32 %v4372, %v4385
        %v4393 = vadd.f32 %v4374, %v4389
        %v4394 = vadd.f32 %v4376, %v4385
        %v4395 = vadd.f32 %v4378, %v4389
        %v4396 = vmax.f32 %v4392, 0.0
        %v4397 = vmax.f32 %v4393, 0.0
        %v4398 = vmax.f32 %v4394, 0.0
        %v4399 = vmax.f32 %v4395, 0.0
        %v4400 = vpack.c.bf16 %v4398, %v4396
        %v4401 = vpack.c.bf16 %v4399, %v4397
        %4402 = vmatprep.subr.bf16.mxu0 0
        %4403 = vmatpush1.bf16.msra.mxu0 0
        %4404 = vmatprep.subr.bf16.mxu0 0
        %4405 = vmatpush1.bf16.msra.mxu0 0
        %4406 = vmatprep.subr.bf16.mxu0 0
        %4407 = vmatpush1.bf16.msra.mxu0 0
        %4408 = vmatprep.subr.bf16.mxu0 0
        %4409 = vmatpush1.bf16.msra.mxu0 0
        %4410 = vmatprep.subr.bf16.mxu0 0
        %4411 = vmatpush1.bf16.msra.mxu0 0
        %4412 = vmatprep.subr.bf16.mxu0 0
        %4413 = vmatpush1.bf16.msra.mxu0 0
        %4414 = vmatprep.subr.bf16.mxu0 0
        %4415 = vmatpush1.bf16.msra.mxu0 0
        %4416 = vmatprep.subr.bf16.mxu0 %v4401
        %4417 = vmatpush1.bf16.msra.mxu0 %v4400
        %4418 = vmatprep.subr.bf16.mxu0 0
        %4419 = vmatpush2.bf16.msra.mxu0 0
        %4420 = vmatprep.subr.bf16.mxu0 0
        %4421 = vmatpush2.bf16.msra.mxu0 0
        %4422 = vmatprep.subr.bf16.mxu0 0
        %4423 = vmatpush2.bf16.msra.mxu0 0
        %4424 = vmatprep.subr.bf16.mxu0 0
        %4425 = vmatpush2.bf16.msra.mxu0 0
        %4426 = vmatprep.subr.bf16.mxu0 0
        %4427 = vmatpush2.bf16.msra.mxu0 0
        %4428 = vmatprep.subr.bf16.mxu0 0
        %4429 = vmatpush2.bf16.msra.mxu0 0
        %4430 = vmatprep.subr.bf16.mxu0 0
        %4431 = vmatpush2.bf16.msra.mxu0 0
        %4432 = vmatprep.subr.bf16.mxu0 0
        %4433 = vmatpush2.bf16.msra.mxu0 0
        %4434 = vmatprep.mubr.bf16.mxu0 0
        %4435 = vmatmul.mubr.bf16.gmra.mxu0 %v977
        %v4436 = vpop.f32.mrf.mxu0
        %v4437 = vadd.f32 0.0, %v4436
        %v4438 = vpop.f32.mrf.mxu0
        %v4439 = vadd.f32 0.0, %v4438
        %v4440 = vpop.f32.mrf.mxu0
        %v4441 = vadd.f32 0.0, %v4440
        %v4442 = vpop.f32.mrf.mxu0
        %v4443 = vadd.f32 0.0, %v4442
        %4444 = vdwg.mxu0
        %v4445 = vld [vmem:[#allocation19] sm:$0xff]
        %v4446 = vld [vmem:[#allocation19 + $0x8] sm:$0xff]
        %v4447 = vld [vmem:[#allocation19 + $0x10] sm:$0xff]
        %v4448 = vld [vmem:[#allocation19 + $0x18] sm:$0xff]
        %v4449 = vld [vmem:[#allocation19 + $0x20] sm:$0xff]
        %v4450 = vld [vmem:[#allocation19 + $0x28] sm:$0xff]
        %v4451 = vld [vmem:[#allocation19 + $0x30] sm:$0xff]
        %v4452 = vld [vmem:[#allocation19 + $0x38] sm:$0xff]
        %v4453 = vld [vmem:[#allocation19 + $0x40] sm:$0xff]
        %v4454 = vld [vmem:[#allocation19 + $0x48] sm:$0xff]
        %v4455 = vld [vmem:[#allocation19 + $0x50] sm:$0xff]
        %v4456 = vld [vmem:[#allocation19 + $0x58] sm:$0xff]
        %v4457 = vld [vmem:[#allocation19 + $0x60] sm:$0xff]
        %v4458 = vld [vmem:[#allocation19 + $0x68] sm:$0xff]
        %v4459 = vld [vmem:[#allocation19 + $0x70] sm:$0xff]
        %v4460 = vld [vmem:[#allocation19 + $0x78] sm:$0xff]
        %v4461 = vld [vmem:[#allocation19 + $0x80] sm:$0xff]
        %v4462 = vld [vmem:[#allocation19 + $0x88] sm:$0xff]
        %v4463 = vld [vmem:[#allocation19 + $0x90] sm:$0xff]
        %v4464 = vld [vmem:[#allocation19 + $0x98] sm:$0xff]
        %v4465 = vld [vmem:[#allocation19 + $0xa0] sm:$0xff]
        %v4466 = vld [vmem:[#allocation19 + $0xa8] sm:$0xff]
        %v4467 = vld [vmem:[#allocation19 + $0xb0] sm:$0xff]
        %v4468 = vld [vmem:[#allocation19 + $0xb8] sm:$0xff]
        %v4469 = vld [vmem:[#allocation19 + $0xc0] sm:$0xff]
        %v4470 = vld [vmem:[#allocation19 + $0xc8] sm:$0xff]
        %v4471 = vld [vmem:[#allocation19 + $0xd0] sm:$0xff]
        %v4472 = vld [vmem:[#allocation19 + $0xd8] sm:$0xff]
        %v4473 = vld [vmem:[#allocation19 + $0xe0] sm:$0xff]
        %v4474 = vld [vmem:[#allocation19 + $0xe8] sm:$0xff]
        %v4475 = vld [vmem:[#allocation19 + $0xf0] sm:$0xff]
        %v4476 = vld [vmem:[#allocation19 + $0xf8] sm:$0xff]
        %v4477 = vpack.c.bf16 %v4441, %v4437
        %v4478 = vpack.c.bf16 %v4443, %v4439
        %v4479 = vld [vmem:[#allocation21] sm:$0xff]
        %v4480 = vld [vmem:[#allocation21 + $0x8] sm:$0xff]
        %v4481 = vld [vmem:[#allocation21 + $0x10] sm:$0xff]
        %v4482 = vld [vmem:[#allocation21 + $0x18] sm:$0xff]
        %v4483 = vld [vmem:[#allocation21 + $0x20] sm:$0xff]
        %v4484 = vld [vmem:[#allocation21 + $0x28] sm:$0xff]
        %v4485 = vld [vmem:[#allocation21 + $0x30] sm:$0xff]
        %v4486 = vld [vmem:[#allocation21 + $0x38] sm:$0xff]
        %v4487 = vld [vmem:[#allocation21 + $0x40] sm:$0xff]
        %v4488 = vld [vmem:[#allocation21 + $0x48] sm:$0xff]
        %v4489 = vld [vmem:[#allocation21 + $0x50] sm:$0xff]
        %v4490 = vld [vmem:[#allocation21 + $0x58] sm:$0xff]
        %v4491 = vld [vmem:[#allocation21 + $0x60] sm:$0xff]
        %v4492 = vld [vmem:[#allocation21 + $0x68] sm:$0xff]
        %v4493 = vld [vmem:[#allocation21 + $0x70] sm:$0xff]
        %v4494 = vld [vmem:[#allocation21 + $0x78] sm:$0xff]
        %v4495 = vld [vmem:[#allocation21 + $0x80] sm:$0xff]
        %v4496 = vld [vmem:[#allocation21 + $0x88] sm:$0xff]
        %v4497 = vld [vmem:[#allocation21 + $0x90] sm:$0xff]
        %v4498 = vld [vmem:[#allocation21 + $0x98] sm:$0xff]
        %v4499 = vld [vmem:[#allocation21 + $0xa0] sm:$0xff]
        %v4500 = vld [vmem:[#allocation21 + $0xa8] sm:$0xff]
        %v4501 = vld [vmem:[#allocation21 + $0xb0] sm:$0xff]
        %v4502 = vld [vmem:[#allocation21 + $0xb8] sm:$0xff]
        %v4503 = vld [vmem:[#allocation21 + $0xc0] sm:$0xff]
        %v4504 = vld [vmem:[#allocation21 + $0xc8] sm:$0xff]
        %v4505 = vld [vmem:[#allocation21 + $0xd0] sm:$0xff]
        %v4506 = vld [vmem:[#allocation21 + $0xd8] sm:$0xff]
        %v4507 = vld [vmem:[#allocation21 + $0xe0] sm:$0xff]
        %v4508 = vld [vmem:[#allocation21 + $0xe8] sm:$0xff]
        %v4509 = vld [vmem:[#allocation21 + $0xf0] sm:$0xff]
        %v4510 = vld [vmem:[#allocation21 + $0xf8] sm:$0xff]
        %v4543 = vunpack.c.l.b16 %v4479
        %v4544 = vunpack.c.h.b16 %v4479
        %v4545 = vunpack.c.l.b16 %v4480
        %v4546 = vunpack.c.h.b16 %v4480
        %v4547 = vunpack.c.l.b16 %v4481
        %v4548 = vunpack.c.h.b16 %v4481
        %v4549 = vunpack.c.l.b16 %v4482
        %v4550 = vunpack.c.h.b16 %v4482
        %v4551 = vunpack.c.l.b16 %v4483
        %v4552 = vunpack.c.h.b16 %v4483
        %v4553 = vunpack.c.l.b16 %v4484
        %v4554 = vunpack.c.h.b16 %v4484
        %v4555 = vunpack.c.l.b16 %v4485
        %v4556 = vunpack.c.h.b16 %v4485
        %v4557 = vunpack.c.l.b16 %v4486
        %v4558 = vunpack.c.h.b16 %v4486
        %v4559 = vunpack.c.l.b16 %v4487
        %v4560 = vunpack.c.h.b16 %v4487
        %v4561 = vunpack.c.l.b16 %v4488
        %v4562 = vunpack.c.h.b16 %v4488
        %v4563 = vunpack.c.l.b16 %v4489
        %v4564 = vunpack.c.h.b16 %v4489
        %v4565 = vunpack.c.l.b16 %v4490
        %v4566 = vunpack.c.h.b16 %v4490
        %v4567 = vunpack.c.l.b16 %v4491
        %v4568 = vunpack.c.h.b16 %v4491
        %v4569 = vunpack.c.l.b16 %v4492
        %v4570 = vunpack.c.h.b16 %v4492
        %v4571 = vunpack.c.l.b16 %v4493
        %v4572 = vunpack.c.h.b16 %v4493
        %v4573 = vunpack.c.l.b16 %v4494
        %v4574 = vunpack.c.h.b16 %v4494
        %v4575 = vunpack.c.l.b16 %v4495
        %v4576 = vunpack.c.h.b16 %v4495
        %v4577 = vunpack.c.l.b16 %v4496
        %v4578 = vunpack.c.h.b16 %v4496
        %v4579 = vunpack.c.l.b16 %v4497
        %v4580 = vunpack.c.h.b16 %v4497
        %v4581 = vunpack.c.l.b16 %v4498
        %v4582 = vunpack.c.h.b16 %v4498
        %v4583 = vunpack.c.l.b16 %v4499
        %v4584 = vunpack.c.h.b16 %v4499
        %v4585 = vunpack.c.l.b16 %v4500
        %v4586 = vunpack.c.h.b16 %v4500
        %v4587 = vunpack.c.l.b16 %v4501
        %v4588 = vunpack.c.h.b16 %v4501
        %v4589 = vunpack.c.l.b16 %v4502
        %v4590 = vunpack.c.h.b16 %v4502
        %v4591 = vunpack.c.l.b16 %v4503
        %v4592 = vunpack.c.h.b16 %v4503
        %v4593 = vunpack.c.l.b16 %v4504
        %v4594 = vunpack.c.h.b16 %v4504
        %v4595 = vunpack.c.l.b16 %v4505
        %v4596 = vunpack.c.h.b16 %v4505
        %v4597 = vunpack.c.l.b16 %v4506
        %v4598 = vunpack.c.h.b16 %v4506
        %v4599 = vunpack.c.l.b16 %v4507
        %v4600 = vunpack.c.h.b16 %v4507
        %v4601 = vunpack.c.l.b16 %v4508
        %v4602 = vunpack.c.h.b16 %v4508
        %v4603 = vunpack.c.l.b16 %v4509
        %v4604 = vunpack.c.h.b16 %v4509
        %v4605 = vunpack.c.l.b16 %v4510
        %v4606 = vunpack.c.h.b16 %v4510
        %v4607 = vpack.c.b16 %v4545, %v4543
        %v4608 = vpack.c.b16 %v4546, %v4544
        %v4609 = vpack.c.b16 %v4549, %v4547
        %v4610 = vpack.c.b16 %v4550, %v4548
        %v4611 = vpack.c.b16 %v4553, %v4551
        %v4612 = vpack.c.b16 %v4554, %v4552
        %v4613 = vpack.c.b16 %v4557, %v4555
        %v4614 = vpack.c.b16 %v4558, %v4556
        %v4615 = vpack.c.b16 %v4561, %v4559
        %v4616 = vpack.c.b16 %v4562, %v4560
        %v4617 = vpack.c.b16 %v4565, %v4563
        %v4618 = vpack.c.b16 %v4566, %v4564
        %v4619 = vpack.c.b16 %v4569, %v4567
        %v4620 = vpack.c.b16 %v4570, %v4568
        %v4621 = vpack.c.b16 %v4573, %v4571
        %v4622 = vpack.c.b16 %v4574, %v4572
        %v4623 = vpack.c.b16 %v4577, %v4575
        %v4624 = vpack.c.b16 %v4578, %v4576
        %v4625 = vpack.c.b16 %v4581, %v4579
        %v4626 = vpack.c.b16 %v4582, %v4580
        %v4627 = vpack.c.b16 %v4585, %v4583
        %v4628 = vpack.c.b16 %v4586, %v4584
        %v4629 = vpack.c.b16 %v4589, %v4587
        %v4630 = vpack.c.b16 %v4590, %v4588
        %v4631 = vpack.c.b16 %v4593, %v4591
        %v4632 = vpack.c.b16 %v4594, %v4592
        %v4633 = vpack.c.b16 %v4597, %v4595
        %v4634 = vpack.c.b16 %v4598, %v4596
        %v4635 = vpack.c.b16 %v4601, %v4599
        %v4636 = vpack.c.b16 %v4602, %v4600
        %v4637 = vpack.c.b16 %v4605, %v4603
        %v4638 = vpack.c.b16 %v4606, %v4604
        %4671 = vmatprep.subr.bf16.mxu0 %v4622
        %4672 = vmatpush1.bf16.msra.mxu0 %v4621
        %4673 = vmatprep.subr.bf16.mxu0 %v4620
        %4674 = vmatpush1.bf16.msra.mxu0 %v4619
        %4675 = vmatprep.subr.bf16.mxu0 %v4618
        %4676 = vmatpush1.bf16.msra.mxu0 %v4617
        %4677 = vmatprep.subr.bf16.mxu0 %v4616
        %4678 = vmatpush1.bf16.msra.mxu0 %v4615
        %4679 = vmatprep.subr.bf16.mxu0 %v4614
        %4680 = vmatpush1.bf16.msra.mxu0 %v4613
        %4681 = vmatprep.subr.bf16.mxu0 %v4612
        %4682 = vmatpush1.bf16.msra.mxu0 %v4611
        %4683 = vmatprep.subr.bf16.mxu0 %v4610
        %4684 = vmatpush1.bf16.msra.mxu0 %v4609
        %4685 = vmatprep.subr.bf16.mxu0 %v4608
        %4686 = vmatpush1.bf16.msra.mxu0 %v4607
        %4687 = vmatprep.subr.bf16.mxu0 %v4638
        %4688 = vmatpush2.bf16.msra.mxu0 %v4637
        %4689 = vmatprep.subr.bf16.mxu0 %v4636
        %4690 = vmatpush2.bf16.msra.mxu0 %v4635
        %4691 = vmatprep.subr.bf16.mxu0 %v4634
        %4692 = vmatpush2.bf16.msra.mxu0 %v4633
        %4693 = vmatprep.subr.bf16.mxu0 %v4632
        %4694 = vmatpush2.bf16.msra.mxu0 %v4631
        %4695 = vmatprep.subr.bf16.mxu0 %v4630
        %4696 = vmatpush2.bf16.msra.mxu0 %v4629
        %4697 = vmatprep.subr.bf16.mxu0 %v4628
        %4698 = vmatpush2.bf16.msra.mxu0 %v4627
        %4699 = vmatprep.subr.bf16.mxu0 %v4626
        %4700 = vmatpush2.bf16.msra.mxu0 %v4625
        %4701 = vmatprep.subr.bf16.mxu0 %v4624
        %4702 = vmatpush2.bf16.msra.mxu0 %v4623
        %4703 = vmatprep.mubr.bf16.mxu0 %v4478
        %4704 = vmatmul.mubr.bf16.gmra.mxu0 %v4477
        %v4705 = vpop.f32.mrf.mxu0
        %v4706 = vadd.f32 0.0, %v4705
        %v4707 = vpop.f32.mrf.mxu0
        %v4708 = vadd.f32 0.0, %v4707
        %v4709 = vpop.f32.mrf.mxu0
        %v4710 = vadd.f32 0.0, %v4709
        %v4711 = vpop.f32.mrf.mxu0
        %v4712 = vadd.f32 0.0, %v4711
        %4713 = vdwg.mxu0
        %v4746 = vunpack.c.l.b16 %v4445
        %v4747 = vunpack.c.h.b16 %v4445
        %v4748 = vunpack.c.l.b16 %v4446
        %v4749 = vunpack.c.h.b16 %v4446
        %v4750 = vunpack.c.l.b16 %v4447
        %v4751 = vunpack.c.h.b16 %v4447
        %v4752 = vunpack.c.l.b16 %v4448
        %v4753 = vunpack.c.h.b16 %v4448
        %v4754 = vunpack.c.l.b16 %v4449
        %v4755 = vunpack.c.h.b16 %v4449
        %v4756 = vunpack.c.l.b16 %v4450
        %v4757 = vunpack.c.h.b16 %v4450
        %v4758 = vunpack.c.l.b16 %v4451
        %v4759 = vunpack.c.h.b16 %v4451
        %v4760 = vunpack.c.l.b16 %v4452
        %v4761 = vunpack.c.h.b16 %v4452
        %v4762 = vunpack.c.l.b16 %v4453
        %v4763 = vunpack.c.h.b16 %v4453
        %v4764 = vunpack.c.l.b16 %v4454
        %v4765 = vunpack.c.h.b16 %v4454
        %v4766 = vunpack.c.l.b16 %v4455
        %v4767 = vunpack.c.h.b16 %v4455
        %v4768 = vunpack.c.l.b16 %v4456
        %v4769 = vunpack.c.h.b16 %v4456
        %v4770 = vunpack.c.l.b16 %v4457
        %v4771 = vunpack.c.h.b16 %v4457
        %v4772 = vunpack.c.l.b16 %v4458
        %v4773 = vunpack.c.h.b16 %v4458
        %v4774 = vunpack.c.l.b16 %v4459
        %v4775 = vunpack.c.h.b16 %v4459
        %v4776 = vunpack.c.l.b16 %v4460
        %v4777 = vunpack.c.h.b16 %v4460
        %v4778 = vunpack.c.l.b16 %v4461
        %v4779 = vunpack.c.h.b16 %v4461
        %v4780 = vunpack.c.l.b16 %v4462
        %v4781 = vunpack.c.h.b16 %v4462
        %v4782 = vunpack.c.l.b16 %v4463
        %v4783 = vunpack.c.h.b16 %v4463
        %v4784 = vunpack.c.l.b16 %v4464
        %v4785 = vunpack.c.h.b16 %v4464
        %v4786 = vunpack.c.l.b16 %v4465
        %v4787 = vunpack.c.h.b16 %v4465
        %v4788 = vunpack.c.l.b16 %v4466
        %v4789 = vunpack.c.h.b16 %v4466
        %v4790 = vunpack.c.l.b16 %v4467
        %v4791 = vunpack.c.h.b16 %v4467
        %v4792 = vunpack.c.l.b16 %v4468
        %v4793 = vunpack.c.h.b16 %v4468
        %v4794 = vunpack.c.l.b16 %v4469
        %v4795 = vunpack.c.h.b16 %v4469
        %v4796 = vunpack.c.l.b16 %v4470
        %v4797 = vunpack.c.h.b16 %v4470
        %v4798 = vunpack.c.l.b16 %v4471
        %v4799 = vunpack.c.h.b16 %v4471
        %v4800 = vunpack.c.l.b16 %v4472
        %v4801 = vunpack.c.h.b16 %v4472
        %v4802 = vunpack.c.l.b16 %v4473
        %v4803 = vunpack.c.h.b16 %v4473
        %v4804 = vunpack.c.l.b16 %v4474
        %v4805 = vunpack.c.h.b16 %v4474
        %v4806 = vunpack.c.l.b16 %v4475
        %v4807 = vunpack.c.h.b16 %v4475
        %v4808 = vunpack.c.l.b16 %v4476
        %v4809 = vunpack.c.h.b16 %v4476
        %v4810 = vpack.c.b16 %v4748, %v4746
        %v4811 = vpack.c.b16 %v4749, %v4747
        %v4812 = vpack.c.b16 %v4752, %v4750
        %v4813 = vpack.c.b16 %v4753, %v4751
        %v4814 = vpack.c.b16 %v4756, %v4754
        %v4815 = vpack.c.b16 %v4757, %v4755
        %v4816 = vpack.c.b16 %v4760, %v4758
        %v4817 = vpack.c.b16 %v4761, %v4759
        %v4818 = vpack.c.b16 %v4764, %v4762
        %v4819 = vpack.c.b16 %v4765, %v4763
        %v4820 = vpack.c.b16 %v4768, %v4766
        %v4821 = vpack.c.b16 %v4769, %v4767
        %v4822 = vpack.c.b16 %v4772, %v4770
        %v4823 = vpack.c.b16 %v4773, %v4771
        %v4824 = vpack.c.b16 %v4776, %v4774
        %v4825 = vpack.c.b16 %v4777, %v4775
        %v4826 = vpack.c.b16 %v4780, %v4778
        %v4827 = vpack.c.b16 %v4781, %v4779
        %v4828 = vpack.c.b16 %v4784, %v4782
        %v4829 = vpack.c.b16 %v4785, %v4783
        %v4830 = vpack.c.b16 %v4788, %v4786
        %v4831 = vpack.c.b16 %v4789, %v4787
        %v4832 = vpack.c.b16 %v4792, %v4790
        %v4833 = vpack.c.b16 %v4793, %v4791
        %v4834 = vpack.c.b16 %v4796, %v4794
        %v4835 = vpack.c.b16 %v4797, %v4795
        %v4836 = vpack.c.b16 %v4800, %v4798
        %v4837 = vpack.c.b16 %v4801, %v4799
        %v4838 = vpack.c.b16 %v4804, %v4802
        %v4839 = vpack.c.b16 %v4805, %v4803
        %v4840 = vpack.c.b16 %v4808, %v4806
        %v4841 = vpack.c.b16 %v4809, %v4807
        %4874 = vmatprep.subr.bf16.mxu0 %v4825
        %4875 = vmatpush1.bf16.msra.mxu0 %v4824
        %4876 = vmatprep.subr.bf16.mxu0 %v4823
        %4877 = vmatpush1.bf16.msra.mxu0 %v4822
        %4878 = vmatprep.subr.bf16.mxu0 %v4821
        %4879 = vmatpush1.bf16.msra.mxu0 %v4820
        %4880 = vmatprep.subr.bf16.mxu0 %v4819
        %4881 = vmatpush1.bf16.msra.mxu0 %v4818
        %4882 = vmatprep.subr.bf16.mxu0 %v4817
        %4883 = vmatpush1.bf16.msra.mxu0 %v4816
        %4884 = vmatprep.subr.bf16.mxu0 %v4815
        %4885 = vmatpush1.bf16.msra.mxu0 %v4814
        %4886 = vmatprep.subr.bf16.mxu0 %v4813
        %4887 = vmatpush1.bf16.msra.mxu0 %v4812
        %4888 = vmatprep.subr.bf16.mxu0 %v4811
        %4889 = vmatpush1.bf16.msra.mxu0 %v4810
        %4890 = vmatprep.subr.bf16.mxu0 %v4841
        %4891 = vmatpush2.bf16.msra.mxu0 %v4840
        %4892 = vmatprep.subr.bf16.mxu0 %v4839
        %4893 = vmatpush2.bf16.msra.mxu0 %v4838
        %4894 = vmatprep.subr.bf16.mxu0 %v4837
        %4895 = vmatpush2.bf16.msra.mxu0 %v4836
        %4896 = vmatprep.subr.bf16.mxu0 %v4835
        %4897 = vmatpush2.bf16.msra.mxu0 %v4834
        %4898 = vmatprep.subr.bf16.mxu0 %v4833
        %4899 = vmatpush2.bf16.msra.mxu0 %v4832
        %4900 = vmatprep.subr.bf16.mxu0 %v4831
        %4901 = vmatpush2.bf16.msra.mxu0 %v4830
        %4902 = vmatprep.subr.bf16.mxu0 %v4829
        %4903 = vmatpush2.bf16.msra.mxu0 %v4828
        %4904 = vmatprep.subr.bf16.mxu0 %v4827
        %4905 = vmatpush2.bf16.msra.mxu0 %v4826
        %4906 = vmatprep.mubr.bf16.mxu0 %v4401
        %4907 = vmatmul.mubr.bf16.gmra.mxu0 %v4400
        %v4908 = vpop.f32.mrf.mxu0
        %v4909 = vadd.f32 %v4706, %v4908
        %v4910 = vpop.f32.mrf.mxu0
        %v4911 = vadd.f32 %v4708, %v4910
        %v4912 = vpop.f32.mrf.mxu0
        %v4913 = vadd.f32 %v4710, %v4912
        %v4914 = vpop.f32.mrf.mxu0
        %v4915 = vadd.f32 %v4712, %v4914
        %4916 = vdwg.mxu0
        %v4917 = vld [vmem:[%s16] sm:$0x3]
        %v4919 = vlaneseq
        %v4920 = vshrl.u32 %v4919, 7
        %v4921 = vsub.s32 0, %v4920
        %v4922 = vrot.slane %v4917, %v4921
        %v4923 = vlaneseq
        %v4924 = vshrl.u32 %v4923, 7
        %v4925 = vsub.s32 1, %v4924
        %v4926 = vrot.slane %v4917, %v4925
        %v4929 = vadd.f32 %v4909, %v4922
        %v4930 = vadd.f32 %v4911, %v4926
        %v4931 = vadd.f32 %v4913, %v4922
        %v4932 = vadd.f32 %v4915, %v4926
        %v4933 = vmax.f32 %v4929, 0.0
        %v4934 = vmax.f32 %v4930, 0.0
        %v4935 = vmax.f32 %v4931, 0.0
        %v4936 = vmax.f32 %v4932, 0.0
        %v4937 = vpack.c.bf16 %v4935, %v4933
        %v4938 = vpack.c.bf16 %v4936, %v4934
        %v4939 = vld [vmem:[%s824] sm:$0xf]
        %v4941 = vsel %vm975, %v4939, 0
        %4943 = vmatprep.subr.bf16.mxu0 0
        %4944 = vmatpush1.bf16.msra.mxu0 0
        %4945 = vmatprep.subr.bf16.mxu0 0
        %4946 = vmatpush1.bf16.msra.mxu0 0
        %4947 = vmatprep.subr.bf16.mxu0 0
        %4948 = vmatpush1.bf16.msra.mxu0 0
        %4949 = vmatprep.subr.bf16.mxu0 0
        %4950 = vmatpush1.bf16.msra.mxu0 0
        %4951 = vmatprep.subr.bf16.mxu0 0
        %4952 = vmatpush1.bf16.msra.mxu0 0
        %4953 = vmatprep.subr.bf16.mxu0 0
        %4954 = vmatpush1.bf16.msra.mxu0 0
        %4955 = vmatprep.subr.bf16.mxu0 0
        %4956 = vmatpush1.bf16.msra.mxu0 0
        %4957 = vmatprep.subr.bf16.mxu0 %v4938
        %4958 = vmatpush1.bf16.msra.mxu0 %v4937
        %4959 = vmatprep.subr.bf16.mxu0 0
        %4960 = vmatpush2.bf16.msra.mxu0 0
        %4961 = vmatprep.subr.bf16.mxu0 0
        %4962 = vmatpush2.bf16.msra.mxu0 0
        %4963 = vmatprep.subr.bf16.mxu0 0
        %4964 = vmatpush2.bf16.msra.mxu0 0
        %4965 = vmatprep.subr.bf16.mxu0 0
        %4966 = vmatpush2.bf16.msra.mxu0 0
        %4967 = vmatprep.subr.bf16.mxu0 0
        %4968 = vmatpush2.bf16.msra.mxu0 0
        %4969 = vmatprep.subr.bf16.mxu0 0
        %4970 = vmatpush2.bf16.msra.mxu0 0
        %4971 = vmatprep.subr.bf16.mxu0 0
        %4972 = vmatpush2.bf16.msra.mxu0 0
        %4973 = vmatprep.subr.bf16.mxu0 0
        %4974 = vmatpush2.bf16.msra.mxu0 0
        %4975 = vmatprep.mubr.bf16.mxu0 0
        %4976 = vmatmul.mubr.bf16.gmra.mxu0 %v4941
        %v4977 = vpop.f32.mrf.mxu0
        %v4978 = vadd.f32 0.0, %v4977
        %v4979 = vpop.f32.mrf.mxu0
        %v4980 = vadd.f32 0.0, %v4979
        %v4981 = vpop.f32.mrf.mxu0
        %v4982 = vpop.f32.mrf.mxu0
        %4983 = vdwg.mxu0
        %v4984 = vpack.c.bf16 %v4978, %v4978
        %v4985 = vpack.c.bf16 %v4980, %v4980
        %v4986 = vld [vmem:[#allocation22] sm:$0xff]
        %v4987 = vld [vmem:[#allocation22 + $0x8] sm:$0xff]
        %v4988 = vld [vmem:[#allocation22 + $0x10] sm:$0xff]
        %v4989 = vld [vmem:[#allocation22 + $0x18] sm:$0xff]
        %v4990 = vld [vmem:[#allocation22 + $0x20] sm:$0xff]
        %v4991 = vld [vmem:[#allocation22 + $0x28] sm:$0xff]
        %v4992 = vld [vmem:[#allocation22 + $0x30] sm:$0xff]
        %v4993 = vld [vmem:[#allocation22 + $0x38] sm:$0xff]
        %v4994 = vld [vmem:[#allocation22 + $0x40] sm:$0xff]
        %v4995 = vld [vmem:[#allocation22 + $0x48] sm:$0xff]
        %v4996 = vld [vmem:[#allocation22 + $0x50] sm:$0xff]
        %v4997 = vld [vmem:[#allocation22 + $0x58] sm:$0xff]
        %v4998 = vld [vmem:[#allocation22 + $0x60] sm:$0xff]
        %v4999 = vld [vmem:[#allocation22 + $0x68] sm:$0xff]
        %v5000 = vld [vmem:[#allocation22 + $0x70] sm:$0xff]
        %v5001 = vld [vmem:[#allocation22 + $0x78] sm:$0xff]
        %v5002 = vld [vmem:[#allocation22 + $0x80] sm:$0xff]
        %v5003 = vld [vmem:[#allocation22 + $0x88] sm:$0xff]
        %v5004 = vld [vmem:[#allocation22 + $0x90] sm:$0xff]
        %v5005 = vld [vmem:[#allocation22 + $0x98] sm:$0xff]
        %v5006 = vld [vmem:[#allocation22 + $0xa0] sm:$0xff]
        %v5007 = vld [vmem:[#allocation22 + $0xa8] sm:$0xff]
        %v5008 = vld [vmem:[#allocation22 + $0xb0] sm:$0xff]
        %v5009 = vld [vmem:[#allocation22 + $0xb8] sm:$0xff]
        %v5010 = vld [vmem:[#allocation22 + $0xc0] sm:$0xff]
        %v5011 = vld [vmem:[#allocation22 + $0xc8] sm:$0xff]
        %v5012 = vld [vmem:[#allocation22 + $0xd0] sm:$0xff]
        %v5013 = vld [vmem:[#allocation22 + $0xd8] sm:$0xff]
        %v5014 = vld [vmem:[#allocation22 + $0xe0] sm:$0xff]
        %v5015 = vld [vmem:[#allocation22 + $0xe8] sm:$0xff]
        %v5016 = vld [vmem:[#allocation22 + $0xf0] sm:$0xff]
        %v5017 = vld [vmem:[#allocation22 + $0xf8] sm:$0xff]
        %v5018 = vld [vmem:[%s18] sm:$0x3]
        %v5020 = vlaneseq
        %v5021 = vshrl.u32 %v5020, 7
        %v5022 = vsub.s32 0, %v5021
        %v5023 = vrot.slane %v5018, %v5022
        %v5024 = vlaneseq
        %v5025 = vshrl.u32 %v5024, 7
        %v5026 = vsub.s32 1, %v5025
        %v5027 = vrot.slane %v5018, %v5026
        %v5062 = vunpack.c.l.b16 %v4986
        %v5063 = vunpack.c.h.b16 %v4986
        %v5064 = vunpack.c.l.b16 %v4987
        %v5065 = vunpack.c.h.b16 %v4987
        %v5066 = vunpack.c.l.b16 %v4988
        %v5067 = vunpack.c.h.b16 %v4988
        %v5068 = vunpack.c.l.b16 %v4989
        %v5069 = vunpack.c.h.b16 %v4989
        %v5070 = vunpack.c.l.b16 %v4990
        %v5071 = vunpack.c.h.b16 %v4990
        %v5072 = vunpack.c.l.b16 %v4991
        %v5073 = vunpack.c.h.b16 %v4991
        %v5074 = vunpack.c.l.b16 %v4992
        %v5075 = vunpack.c.h.b16 %v4992
        %v5076 = vunpack.c.l.b16 %v4993
        %v5077 = vunpack.c.h.b16 %v4993
        %v5078 = vunpack.c.l.b16 %v4994
        %v5079 = vunpack.c.h.b16 %v4994
        %v5080 = vunpack.c.l.b16 %v4995
        %v5081 = vunpack.c.h.b16 %v4995
        %v5082 = vunpack.c.l.b16 %v4996
        %v5083 = vunpack.c.h.b16 %v4996
        %v5084 = vunpack.c.l.b16 %v4997
        %v5085 = vunpack.c.h.b16 %v4997
        %v5086 = vunpack.c.l.b16 %v4998
        %v5087 = vunpack.c.h.b16 %v4998
        %v5088 = vunpack.c.l.b16 %v4999
        %v5089 = vunpack.c.h.b16 %v4999
        %v5090 = vunpack.c.l.b16 %v5000
        %v5091 = vunpack.c.h.b16 %v5000
        %v5092 = vunpack.c.l.b16 %v5001
        %v5093 = vunpack.c.h.b16 %v5001
        %v5094 = vunpack.c.l.b16 %v5002
        %v5095 = vunpack.c.h.b16 %v5002
        %v5096 = vunpack.c.l.b16 %v5003
        %v5097 = vunpack.c.h.b16 %v5003
        %v5098 = vunpack.c.l.b16 %v5004
        %v5099 = vunpack.c.h.b16 %v5004
        %v5100 = vunpack.c.l.b16 %v5005
        %v5101 = vunpack.c.h.b16 %v5005
        %v5102 = vunpack.c.l.b16 %v5006
        %v5103 = vunpack.c.h.b16 %v5006
        %v5104 = vunpack.c.l.b16 %v5007
        %v5105 = vunpack.c.h.b16 %v5007
        %v5106 = vunpack.c.l.b16 %v5008
        %v5107 = vunpack.c.h.b16 %v5008
        %v5108 = vunpack.c.l.b16 %v5009
        %v5109 = vunpack.c.h.b16 %v5009
        %v5110 = vunpack.c.l.b16 %v5010
        %v5111 = vunpack.c.h.b16 %v5010
        %v5112 = vunpack.c.l.b16 %v5011
        %v5113 = vunpack.c.h.b16 %v5011
        %v5114 = vunpack.c.l.b16 %v5012
        %v5115 = vunpack.c.h.b16 %v5012
        %v5116 = vunpack.c.l.b16 %v5013
        %v5117 = vunpack.c.h.b16 %v5013
        %v5118 = vunpack.c.l.b16 %v5014
        %v5119 = vunpack.c.h.b16 %v5014
        %v5120 = vunpack.c.l.b16 %v5015
        %v5121 = vunpack.c.h.b16 %v5015
        %v5122 = vunpack.c.l.b16 %v5016
        %v5123 = vunpack.c.h.b16 %v5016
        %v5124 = vunpack.c.l.b16 %v5017
        %v5125 = vunpack.c.h.b16 %v5017
        %v5126 = vpack.c.b16 %v5064, %v5062
        %v5127 = vpack.c.b16 %v5065, %v5063
        %v5128 = vpack.c.b16 %v5068, %v5066
        %v5129 = vpack.c.b16 %v5069, %v5067
        %v5130 = vpack.c.b16 %v5072, %v5070
        %v5131 = vpack.c.b16 %v5073, %v5071
        %v5132 = vpack.c.b16 %v5076, %v5074
        %v5133 = vpack.c.b16 %v5077, %v5075
        %v5134 = vpack.c.b16 %v5080, %v5078
        %v5135 = vpack.c.b16 %v5081, %v5079
        %v5136 = vpack.c.b16 %v5084, %v5082
        %v5137 = vpack.c.b16 %v5085, %v5083
        %v5138 = vpack.c.b16 %v5088, %v5086
        %v5139 = vpack.c.b16 %v5089, %v5087
        %v5140 = vpack.c.b16 %v5092, %v5090
        %v5141 = vpack.c.b16 %v5093, %v5091
        %v5142 = vpack.c.b16 %v5096, %v5094
        %v5143 = vpack.c.b16 %v5097, %v5095
        %v5144 = vpack.c.b16 %v5100, %v5098
        %v5145 = vpack.c.b16 %v5101, %v5099
        %v5146 = vpack.c.b16 %v5104, %v5102
        %v5147 = vpack.c.b16 %v5105, %v5103
        %v5148 = vpack.c.b16 %v5108, %v5106
        %v5149 = vpack.c.b16 %v5109, %v5107
        %v5150 = vpack.c.b16 %v5112, %v5110
        %v5151 = vpack.c.b16 %v5113, %v5111
        %v5152 = vpack.c.b16 %v5116, %v5114
        %v5153 = vpack.c.b16 %v5117, %v5115
        %v5154 = vpack.c.b16 %v5120, %v5118
        %v5155 = vpack.c.b16 %v5121, %v5119
        %v5156 = vpack.c.b16 %v5124, %v5122
        %v5157 = vpack.c.b16 %v5125, %v5123
        %5190 = vmatprep.subr.bf16.mxu0 %v5141
        %5191 = vmatpush1.bf16.msra.mxu0 %v5140
        %5192 = vmatprep.subr.bf16.mxu0 %v5139
        %5193 = vmatpush1.bf16.msra.mxu0 %v5138
        %5194 = vmatprep.subr.bf16.mxu0 %v5137
        %5195 = vmatpush1.bf16.msra.mxu0 %v5136
        %5196 = vmatprep.subr.bf16.mxu0 %v5135
        %5197 = vmatpush1.bf16.msra.mxu0 %v5134
        %5198 = vmatprep.subr.bf16.mxu0 %v5133
        %5199 = vmatpush1.bf16.msra.mxu0 %v5132
        %5200 = vmatprep.subr.bf16.mxu0 %v5131
        %5201 = vmatpush1.bf16.msra.mxu0 %v5130
        %5202 = vmatprep.subr.bf16.mxu0 %v5129
        %5203 = vmatpush1.bf16.msra.mxu0 %v5128
        %5204 = vmatprep.subr.bf16.mxu0 %v5127
        %5205 = vmatpush1.bf16.msra.mxu0 %v5126
        %5206 = vmatprep.subr.bf16.mxu0 %v5157
        %5207 = vmatpush2.bf16.msra.mxu0 %v5156
        %5208 = vmatprep.subr.bf16.mxu0 %v5155
        %5209 = vmatpush2.bf16.msra.mxu0 %v5154
        %5210 = vmatprep.subr.bf16.mxu0 %v5153
        %5211 = vmatpush2.bf16.msra.mxu0 %v5152
        %5212 = vmatprep.subr.bf16.mxu0 %v5151
        %5213 = vmatpush2.bf16.msra.mxu0 %v5150
        %5214 = vmatprep.subr.bf16.mxu0 %v5149
        %5215 = vmatpush2.bf16.msra.mxu0 %v5148
        %5216 = vmatprep.subr.bf16.mxu0 %v5147
        %5217 = vmatpush2.bf16.msra.mxu0 %v5146
        %5218 = vmatprep.subr.bf16.mxu0 %v5145
        %5219 = vmatpush2.bf16.msra.mxu0 %v5144
        %5220 = vmatprep.subr.bf16.mxu0 %v5143
        %5221 = vmatpush2.bf16.msra.mxu0 %v5142
        %5222 = vmatprep.mubr.bf16.mxu0 %v4985
        %5223 = vmatmul.mubr.bf16.gmra.mxu0 %v4984
        %v5224 = vpop.f32.mrf.mxu0
        %v5225 = vadd.f32 %v5023, %v5224
        %v5226 = vpop.f32.mrf.mxu0
        %v5227 = vadd.f32 %v5027, %v5226
        %v5228 = vpop.f32.mrf.mxu0
        %v5229 = vpop.f32.mrf.mxu0
        %5230 = vdwg.mxu0
        %vm5231 = vcmp.ge.f32.partialorder %v5225, 0.0
        %vm5232 = vcmp.ge.f32.partialorder %v5227, 0.0
        %v5233 = vld [vmem:[%s19] sm:$0x3]
        %v5235 = vlaneseq
        %v5236 = vshrl.u32 %v5235, 7
        %v5237 = vsub.s32 0, %v5236
        %v5238 = vrot.slane %v5233, %v5237
        %v5239 = vlaneseq
        %v5240 = vshrl.u32 %v5239, 7
        %v5241 = vsub.s32 1, %v5240
        %v5242 = vrot.slane %v5233, %v5241
        %v5245 = vmul.f32 %v5238, %v5225
        %v5246 = vmul.f32 %v5242, %v5227
        %v5247 = vsel %vm5231, %v5225, %v5245
        %v5248 = vsel %vm5232, %v5227, %v5246
        %v5249 = vpack.c.bf16 %v5247, %v5247
        %v5250 = vpack.c.bf16 %v5248, %v5248
        %v5251 = vld [vmem:[#allocation24] sm:$0xf]
        %v5252 = vld [vmem:[#allocation24 + $0x4] sm:$0xf]
        %v5253 = vld [vmem:[#allocation24 + $0x8] sm:$0xf]
        %v5254 = vld [vmem:[#allocation24 + $0xc] sm:$0xf]
        %v5255 = vld [vmem:[#allocation24 + $0x10] sm:$0xf]
        %v5256 = vld [vmem:[#allocation24 + $0x14] sm:$0xf]
        %v5257 = vld [vmem:[#allocation24 + $0x18] sm:$0xf]
        %v5258 = vld [vmem:[#allocation24 + $0x1c] sm:$0xf]
        %v5259 = vld [vmem:[#allocation24 + $0x20] sm:$0xf]
        %v5260 = vld [vmem:[#allocation24 + $0x24] sm:$0xf]
        %v5261 = vld [vmem:[#allocation24 + $0x28] sm:$0xf]
        %v5262 = vld [vmem:[#allocation24 + $0x2c] sm:$0xf]
        %v5263 = vld [vmem:[#allocation24 + $0x30] sm:$0xf]
        %v5264 = vld [vmem:[#allocation24 + $0x34] sm:$0xf]
        %v5265 = vld [vmem:[#allocation24 + $0x38] sm:$0xf]
        %v5266 = vld [vmem:[#allocation24 + $0x3c] sm:$0xf]
        %v5267 = vld [vmem:[#allocation24 + $0x40] sm:$0xf]
        %v5268 = vld [vmem:[#allocation24 + $0x44] sm:$0xf]
        %v5269 = vld [vmem:[#allocation24 + $0x48] sm:$0xf]
        %v5270 = vld [vmem:[#allocation24 + $0x4c] sm:$0xf]
        %v5271 = vld [vmem:[#allocation24 + $0x50] sm:$0xf]
        %v5272 = vld [vmem:[#allocation24 + $0x54] sm:$0xf]
        %v5273 = vld [vmem:[#allocation24 + $0x58] sm:$0xf]
        %v5274 = vld [vmem:[#allocation24 + $0x5c] sm:$0xf]
        %v5275 = vld [vmem:[#allocation24 + $0x60] sm:$0xf]
        %v5276 = vld [vmem:[#allocation24 + $0x64] sm:$0xf]
        %v5277 = vld [vmem:[#allocation24 + $0x68] sm:$0xf]
        %v5278 = vld [vmem:[#allocation24 + $0x6c] sm:$0xf]
        %v5279 = vld [vmem:[#allocation24 + $0x70] sm:$0xf]
        %v5280 = vld [vmem:[#allocation24 + $0x74] sm:$0xf]
        %v5281 = vld [vmem:[#allocation24 + $0x78] sm:$0xf]
        %v5282 = vld [vmem:[#allocation24 + $0x7c] sm:$0xf]
        %v5315 = vunpack.c.l.b16 %v5251
        %v5316 = vunpack.c.l.b16 %v5252
        %v5317 = vunpack.c.l.b16 %v5253
        %v5318 = vunpack.c.l.b16 %v5254
        %v5319 = vunpack.c.l.b16 %v5255
        %v5320 = vunpack.c.l.b16 %v5256
        %v5321 = vunpack.c.l.b16 %v5257
        %v5322 = vunpack.c.l.b16 %v5258
        %v5323 = vunpack.c.l.b16 %v5259
        %v5324 = vunpack.c.l.b16 %v5260
        %v5325 = vunpack.c.l.b16 %v5261
        %v5326 = vunpack.c.l.b16 %v5262
        %v5327 = vunpack.c.l.b16 %v5263
        %v5328 = vunpack.c.l.b16 %v5264
        %v5329 = vunpack.c.l.b16 %v5265
        %v5330 = vunpack.c.l.b16 %v5266
        %v5331 = vunpack.c.l.b16 %v5267
        %v5332 = vunpack.c.l.b16 %v5268
        %v5333 = vunpack.c.l.b16 %v5269
        %v5334 = vunpack.c.l.b16 %v5270
        %v5335 = vunpack.c.l.b16 %v5271
        %v5336 = vunpack.c.l.b16 %v5272
        %v5337 = vunpack.c.l.b16 %v5273
        %v5338 = vunpack.c.l.b16 %v5274
        %v5339 = vunpack.c.l.b16 %v5275
        %v5340 = vunpack.c.l.b16 %v5276
        %v5341 = vunpack.c.l.b16 %v5277
        %v5342 = vunpack.c.l.b16 %v5278
        %v5343 = vunpack.c.l.b16 %v5279
        %v5344 = vunpack.c.l.b16 %v5280
        %v5345 = vunpack.c.l.b16 %v5281
        %v5346 = vunpack.c.l.b16 %v5282
        %v5347 = vpack.c.b16 %v5316, %v5315
        %v5348 = vpack.c.b16 %v5318, %v5317
        %v5349 = vpack.c.b16 %v5320, %v5319
        %v5350 = vpack.c.b16 %v5322, %v5321
        %v5351 = vpack.c.b16 %v5324, %v5323
        %v5352 = vpack.c.b16 %v5326, %v5325
        %v5353 = vpack.c.b16 %v5328, %v5327
        %v5354 = vpack.c.b16 %v5330, %v5329
        %v5355 = vpack.c.b16 %v5332, %v5331
        %v5356 = vpack.c.b16 %v5334, %v5333
        %v5357 = vpack.c.b16 %v5336, %v5335
        %v5358 = vpack.c.b16 %v5338, %v5337
        %v5359 = vpack.c.b16 %v5340, %v5339
        %v5360 = vpack.c.b16 %v5342, %v5341
        %v5361 = vpack.c.b16 %v5344, %v5343
        %v5362 = vpack.c.b16 %v5346, %v5345
        %5379 = vmatprep.subr.bf16.mxu0 0
        %5380 = vmatpush1.bf16.msra.mxu0 %v5354
        %5381 = vmatprep.subr.bf16.mxu0 0
        %5382 = vmatpush1.bf16.msra.mxu0 %v5353
        %5383 = vmatprep.subr.bf16.mxu0 0
        %5384 = vmatpush1.bf16.msra.mxu0 %v5352
        %5385 = vmatprep.subr.bf16.mxu0 0
        %5386 = vmatpush1.bf16.msra.mxu0 %v5351
        %5387 = vmatprep.subr.bf16.mxu0 0
        %5388 = vmatpush1.bf16.msra.mxu0 %v5350
        %5389 = vmatprep.subr.bf16.mxu0 0
        %5390 = vmatpush1.bf16.msra.mxu0 %v5349
        %5391 = vmatprep.subr.bf16.mxu0 0
        %5392 = vmatpush1.bf16.msra.mxu0 %v5348
        %5393 = vmatprep.subr.bf16.mxu0 0
        %5394 = vmatpush1.bf16.msra.mxu0 %v5347
        %5395 = vmatprep.subr.bf16.mxu0 0
        %5396 = vmatpush2.bf16.msra.mxu0 %v5362
        %5397 = vmatprep.subr.bf16.mxu0 0
        %5398 = vmatpush2.bf16.msra.mxu0 %v5361
        %5399 = vmatprep.subr.bf16.mxu0 0
        %5400 = vmatpush2.bf16.msra.mxu0 %v5360
        %5401 = vmatprep.subr.bf16.mxu0 0
        %5402 = vmatpush2.bf16.msra.mxu0 %v5359
        %5403 = vmatprep.subr.bf16.mxu0 0
        %5404 = vmatpush2.bf16.msra.mxu0 %v5358
        %5405 = vmatprep.subr.bf16.mxu0 0
        %5406 = vmatpush2.bf16.msra.mxu0 %v5357
        %5407 = vmatprep.subr.bf16.mxu0 0
        %5408 = vmatpush2.bf16.msra.mxu0 %v5356
        %5409 = vmatprep.subr.bf16.mxu0 0
        %5410 = vmatpush2.bf16.msra.mxu0 %v5355
        %5411 = vmatprep.mubr.bf16.mxu0 %v5250
        %5412 = vmatmul.mubr.bf16.gmra.mxu0 %v5249
        %v5413 = vpop.f32.mrf.mxu0
        %v5414 = vadd.f32 0.0, %v5413
        %v5415 = vpop.f32.mrf.mxu0
        %v5416 = vpop.f32.mrf.mxu0
        %v5417 = vpop.f32.mrf.mxu0
        %5418 = vdwg.mxu0
        %v5419 = vld [vmem:[%s21] sm:$0x1]
        %v5421 = vlaneseq
        %v5422 = vshrl.u32 %v5421, 7
        %v5423 = vsub.s32 0, %v5422
        %v5424 = vrot.slane %v5419, %v5423
        %v5426 = vadd.f32 %v5414, %v5424
        %vm5427 = vcmask 15360
        %5428 = vst.msk [vmem:[%s945] sm:$0xff] %vm5427, %v5426
        %p5429 = scmp.lt.s32.totalorder %s45, 1
        %s5430 = scalar_select %p5429, %s45, 1
        %s5431 = smul.addr %s5430, 8
        %s5432 = scalar_lea.vmem %s22, %s5431
        // Predicated region
        $region169: #{tpu_custom_call.1} parent=107 // pred_check
          %p5433 = pneg %p540
        $region170: #{tpu_custom_call.1} parent=107 // pred_check_branch
          %5435 = sbr.rel (%p5433) target = $region172
        $region171: #{tpu_custom_call.1} parent=107 // pred_region
          _
        $region172: #{tpu_custom_call.1} parent=107 // pred_fallthru
          _
      $region108: #{tpu_custom_call.1} parent=5 // pred_fallthru
        _
      %p5436 = scmp.le.s32.totalorder 2, %s40
      // Predicated region
      $region173: #{tpu_custom_call.1} parent=5 // pred_check
        %p5437 = pneg %p5436
      $region174: #{tpu_custom_call.1} parent=5 // pred_check_branch
        %5439 = sbr.rel (%p5437) target = $region176
      $region175: #{tpu_custom_call.1} parent=5 // pred_region
        %s5440 = ssub.s32 %s40, 2
        // Predicated region
        $region177: #{tpu_custom_call.1} parent=175 // pred_check
          %p5441 = pneg %p546
        $region178: #{tpu_custom_call.1} parent=175 // pred_check_branch
          %5443 = sbr.rel (%p5441) target = $region180
        $region179: #{tpu_custom_call.1} parent=175 // pred_region
          %p5444 = scmp.lt.s32.totalorder %s46, 1
          %s5445 = scalar_select %p5444, %s46, 1
          %s5446 = smul.addr %s5445, 8
          %s5447 = scalar_lea.vmem %s22, %s5446
        $region180: #{tpu_custom_call.1} parent=175 // pred_fallthru
          _
      $region176: #{tpu_custom_call.1} parent=5 // pred_fallthru
        _
    $region6: #{tpu_custom_call.1} parent=1 // loop_footer
      %s44 = sadd.s32 1, %s40
    $region7: #{tpu_custom_call.1} parent=1 // loop_footer_branch
      %39 = sbr.rel target = $region3
    $region8: #{tpu_custom_call.1} parent=1 // loop_exit
      _
    %5448 = vsyncpa [#allocation3], 1
    %s5449 = scalar_lea.sflag [#allocation3], 1
    %5450 = vsyncpa %s5449, 1
    %5451 = vsyncpa [#allocation5], 1
    %s5452 = scalar_lea.sflag [#allocation5], 1
    %5453 = vsyncpa %s5452, 1
    %5454 = vsyncpa [#allocation8], 1
    %5455 = vsyncpa [#allocation11], 1
    %5456 = vsyncpa [#allocation14], 1
    %5457 = vsyncpa [#allocation17], 1
    %5458 = vsyncpa [#allocation20], 1
    %5459 = vsyncpa [#allocation23], 1

// kernel: tpu_custom_call.1
$region0: #{tpu_custom_call.1}
  #allocation0 [shape = 'u32[]', space=smem, size = 0x4, offset = 0x4, fixed_abs, tag = 'smem constant byte address 0x4 - core index']
  #allocation1 [shape = 'u32[144,128]{1,0:T(1,128)}', space=vmem, size = 0x12000, scoped, tag = 'internal scratch']
  %s0 = inlined_call_operand.hbm [shape: f32[2,16,32], index: 0, kind: input, shape index: {}]
  %s1 = inlined_call_operand.hbm [shape: bf16[2,16,16], index: 1, kind: input, shape index: {}]
  %s2 = inlined_call_operand.hbm [shape: bf16[2,8,16], index: 2, kind: input, shape index: {}]
  %s3 = inlined_call_operand.hbm [shape: f32[1,32], index: 3, kind: input, shape index: {}]
  %s4 = inlined_call_operand.hbm [shape: f32[1,32], index: 4, kind: input, shape index: {}]
  %s5 = inlined_call_operand.hbm [shape: bf16[32,512], index: 5, kind: input, shape index: {}]
  %s6 = inlined_call_operand.hbm [shape: bf16[32,512], index: 6, kind: input, shape index: {}]
  %s7 = inlined_call_operand.vmem [shape: f32[1,512], index: 7, kind: input, shape index: {}]
  %s8 = inlined_call_operand.hbm [shape: bf16[512,512], index: 8, kind: input, shape index: {}]
  %s9 = inlined_call_operand.hbm [shape: bf16[512,512], index: 9, kind: input, shape index: {}]
  %s10 = inlined_call_operand.vmem [shape: f32[1,512], index: 10, kind: input, shape index: {}]
  %s11 = inlined_call_operand.hbm [shape: bf16[512,256], index: 11, kind: input, shape index: {}]
  %s12 = inlined_call_operand.hbm [shape: bf16[512,256], index: 12, kind: input, shape index: {}]
  %s13 = inlined_call_operand.vmem [shape: f32[1,256], index: 13, kind: input, shape index: {}]
  %s14 = inlined_call_operand.hbm [shape: bf16[256,256], index: 14, kind: input, shape index: {}]
  %s15 = inlined_call_operand.hbm [shape: bf16[256,256], index: 15, kind: input, shape index: {}]
  %s16 = inlined_call_operand.vmem [shape: f32[1,256], index: 16, kind: input, shape index: {}]
  %s17 = inlined_call_operand.hbm [shape: bf16[256,256], index: 17, kind: input, shape index: {}]
  %s18 = inlined_call_operand.vmem [shape: f32[1,256], index: 18, kind: input, shape index: {}]
  %s19 = inlined_call_operand.vmem [shape: f32[1,256], index: 19, kind: input, shape index: {}]
  %s20 = inlined_call_operand.hbm [shape: bf16[256,128], index: 20, kind: input, shape index: {}]
  %s21 = inlined_call_operand.vmem [shape: f32[1,2], index: 21, kind: input, shape index: {}]
  %s22 = inlined_call_operand.vmem [shape: f32[2,8,2], index: 22, kind: output, shape index: {}]
  %s23 = sld [smem:[#allocation0]]
  $region181: #{tpu_custom_call.1} parent=0
    _
  %s25 = ssub.s32 1, %s23
  %s26 = scalar_select 0, %s25, %s23
  $region1: #{tpu_custom_call.1} parent=0
    #allocation2 [shape = 'u8[16384]{0}', space=vmem, size = 0x4000, scoped, tag = 'input window, operand 0']
    #allocation3 [shape = 's32[2]{0}', space=sflag, size = 0x8, scoped, tag = 'scoped memory for tpu_custom_call.1']
    #allocation4 [shape = 'u8[8192]{0}', space=vmem, size = 0x2000, scoped, tag = 'input window, operand 1']
    #allocation5 [shape = 's32[2]{0}', space=sflag, size = 0x8, scoped, tag = 'scoped memory for tpu_custom_call.1']
    #allocation6 [shape = 'u8[4096]{0}', space=vmem, size = 0x1000, scoped, tag = 'input window, operand 2']
    #allocation7 [shape = 'u8[512]{0}', space=vmem, size = 0x400, scoped, tag = 'input window, operand 3, single buffered']
    #allocation8 [shape = 's32[1]{0}', space=sflag, size = 0x4, scoped, tag = 'scoped memory for tpu_custom_call.1']
    #allocation9 [shape = 'u8[512]{0}', space=vmem, size = 0x400, scoped, tag = 'input window, operand 4, single buffered']
    #allocation10 [shape = 'u8[32768]{0}', space=vmem, size = 0x8000, scoped, tag = 'input window, operand 5, single buffered']
    #allocation11 [shape = 's32[1]{0}', space=sflag, size = 0x4, scoped, tag = 'scoped memory for tpu_custom_call.1']
    #allocation12 [shape = 'u8[32768]{0}', space=vmem, size = 0x8000, scoped, tag = 'input window, operand 6, single buffered']
    #allocation13 [shape = 'u8[524288]{0}', space=vmem, size = 0x80000, scoped, tag = 'input window, operand 8, single buffered']
    #allocation14 [shape = 's32[1]{0}', space=sflag, size = 0x4, scoped, tag = 'scoped memory for tpu_custom_call.1']
    #allocation15 [shape = 'u8[524288]{0}', space=vmem, size = 0x80000, scoped, tag = 'input window, operand 9, single buffered']
    #allocation16 [shape = 'u8[262144]{0}', space=vmem, size = 0x40000, scoped, tag = 'input window, operand 11, single buffered']
    #allocation17 [shape = 's32[1]{0}', space=sflag, size = 0x4, scoped, tag = 'scoped memory for tpu_custom_call.1']
    #allocation18 [shape = 'u8[262144]{0}', space=vmem, size = 0x40000, scoped, tag = 'input window, operand 12, single buffered']
    #allocation19 [shape = 'u8[131072]{0}', space=vmem, size = 0x20000, scoped, tag = 'input window, operand 14, single buffered']
    #allocation20 [shape = 's32[1]{0}', space=sflag, size = 0x4, scoped, tag = 'scoped memory for tpu_custom_call.1']
    #allocation21 [shape = 'u8[131072]{0}', space=vmem, size = 0x20000, scoped, tag = 'input window, operand 15, single buffered']
    #allocation22 [shape = 'u8[131072]{0}', space=vmem, size = 0x20000, scoped, tag = 'input window, operand 17, single buffered']
    #allocation23 [shape = 's32[1]{0}', space=sflag, size = 0x4, scoped, tag = 'scoped memory for tpu_custom_call.1']
    #allocation24 [shape = 'u8[65536]{0}', space=vmem, size = 0x10000, scoped, tag = 'input window, operand 20, single buffered']
    %27 = vsyncpa [#allocation3], 0
    %s28 = scalar_lea.sflag [#allocation3], 1
    %29 = vsyncpa %s28, 0
    %30 = vsyncpa [#allocation5], 0
    %s31 = scalar_lea.sflag [#allocation5], 1
    %32 = vsyncpa %s31, 0
    %33 = vsyncpa [#allocation8], 0
    %34 = vsyncpa [#allocation11], 0
    %35 = vsyncpa [#allocation14], 0
    %36 = vsyncpa [#allocation17], 0
    %37 = vsyncpa [#allocation20], 0
    %38 = vsyncpa [#allocation23], 0
    loop: start=0, step=1, limit=4
    $region2: #{tpu_custom_call.1} parent=1 // loop_pre_header
      _
    $region3: #{tpu_custom_call.1} parent=1 // loop_header
      %s40 = sphi 0, %s44
      %p41 = scmp.ge.s32.totalorder %s40, 4
      %s50 = sphi 0, %s52
      %s53 = sphi 0, %s50
      %s54 = sphi 0, %s53
      %s70 = sphi 0, %s54
      %s76 = sphi 0, %s78
      %s79 = sphi 0, %s76
      %s80 = sphi 0, %s79
      %s96 = sphi 0, %s80
      %s102 = sphi 0, %s104
      %s105 = sphi 0, %s102
      %s106 = sphi 0, %s105
      %s122 = sphi 0, %s106
      %s126 = sphi 0, %s126
      %s128 = sphi 0, %s126
      %s129 = sphi 0, %s128
      %s143 = sphi 0, %s129
      %s147 = sphi 0, %s147
      %s149 = sphi 0, %s147
      %s150 = sphi 0, %s149
      %s164 = sphi 0, %s150
      %s168 = sphi 0, %s168
      %s170 = sphi 0, %s168
      %s171 = sphi 0, %s170
      %s185 = sphi 0, %s171
      %s189 = sphi 0, %s189
      %s191 = sphi 0, %s189
      %s192 = sphi 0, %s191
      %s206 = sphi 0, %s192
      %s210 = sphi 0, %s210
      %s212 = sphi 0, %s210
      %s213 = sphi 0, %s212
      %s227 = sphi 0, %s213
      %s231 = sphi 0, %s231
      %s233 = sphi 0, %s231
      %s234 = sphi 0, %s233
      %s248 = sphi 0, %s234
      %s252 = sphi 0, %s252
      %s254 = sphi 0, %s252
      %s255 = sphi 0, %s254
      %s269 = sphi 0, %s255
      %s273 = sphi 0, %s273
      %s275 = sphi 0, %s273
      %s276 = sphi 0, %s275
      %s290 = sphi 0, %s276
      %s294 = sphi 0, %s294
      %s296 = sphi 0, %s294
      %s297 = sphi 0, %s296
      %s311 = sphi 0, %s297
      %s315 = sphi 0, %s315
      %s317 = sphi 0, %s315
      %s318 = sphi 0, %s317
      %s332 = sphi 0, %s318
      %s336 = sphi 0, %s336
      %s338 = sphi 0, %s336
      %s339 = sphi 0, %s338
      %s353 = sphi 0, %s339
      %s357 = sphi 0, %s357
      %s359 = sphi 0, %s357
      %s360 = sphi 0, %s359
      %s374 = sphi 0, %s360
      %s378 = sphi 0, %s378
      %s380 = sphi 0, %s378
      %s381 = sphi 0, %s380
      %s395 = sphi 0, %s381
      %s399 = sphi 0, %s399
      %s401 = sphi 0, %s399
      %s402 = sphi 0, %s401
      %s416 = sphi 0, %s402
      %s420 = sphi 0, %s420
      %s422 = sphi 0, %s420
      %s423 = sphi 0, %s422
      %s437 = sphi 0, %s423
      %s441 = sphi 0, %s441
      %s443 = sphi 0, %s441
      %s444 = sphi 0, %s443
      %s458 = sphi 0, %s444
      %s462 = sphi 0, %s462
      %s464 = sphi 0, %s462
      %s465 = sphi 0, %s464
      %s479 = sphi 0, %s465
      %s483 = sphi 0, %s483
      %s485 = sphi 0, %s483
      %s486 = sphi 0, %s485
      %s500 = sphi 0, %s486
      %s504 = sphi 0, %s504
      %s506 = sphi 0, %s504
      %s507 = sphi 0, %s506
      %s521 = sphi 0, %s507
      %s527 = sphi 0, %s529
      %s530 = sphi 0, %s527
      %s531 = sphi 0, %s530
      %s547 = sphi 0, %s531
    $region4: #{tpu_custom_call.1} parent=1 // loop_header_branch
      %43 = sbr.rel (%p41) target = $region8
    $region5: #{tpu_custom_call.1} parent=1 // loop_body
      %s45 = ssub.s32 %s40, 1
      %s46 = ssub.s32 %s40, 2
      %s47 = sadd.s32 %s40, 1
      %s48 = ssub.s32 %s40, %s47
      %p49 = scmp.eq.s32.totalorder %s48, 0
      %s51 = sadd.s32 %s50, 1
      %s52 = scalar_select %p49, %s50, %s51
      %p55 = pneg %p49
      %p56 = scmp.eq.s32.totalorder %s40, 1
      %p57 = por %p55, %p56
      %p58 = scmp.ne.s32.totalorder %s50, %s53
      %p59 = scmp.eq.s32.totalorder %s40, 0
      %p60 = por %p58, %p59
      %p61 = scmp.ne.s32.totalorder %s50, %s53
      %p62 = scmp.eq.s32.totalorder %s45, 1
      %p63 = por %p61, %p62
      %p64 = scmp.ne.s32.totalorder %s53, %s54
      %p65 = scmp.eq.s32.totalorder %s45, 0
      %p66 = por %p64, %p65
      %p67 = scmp.ne.s32.totalorder %s53, %s54
      %p68 = scmp.eq.s32.totalorder %s46, 1
      %p69 = por %p67, %p68
      %p71 = scmp.ne.s32.totalorder %s54, %s70
      %p72 = scmp.eq.s32.totalorder %s46, 0
      %p73 = por %p71, %p72
      %s74 = ssub.s32 %s40, %s47
      %p75 = scmp.eq.s32.totalorder %s74, 0
      %s77 = sadd.s32 %s76, 1
      %s78 = scalar_select %p75, %s76, %s77
      %p81 = pneg %p75
      %p82 = scmp.eq.s32.totalorder %s40, 1
      %p83 = por %p81, %p82
      %p84 = scmp.ne.s32.totalorder %s76, %s79
      %p85 = scmp.eq.s32.totalorder %s40, 0
      %p86 = por %p84, %p85
      %p87 = scmp.ne.s32.totalorder %s76, %s79
      %p88 = scmp.eq.s32.totalorder %s45, 1
      %p89 = por %p87, %p88
      %p90 = scmp.ne.s32.totalorder %s79, %s80
      %p91 = scmp.eq.s32.totalorder %s45, 0
      %p92 = por %p90, %p91
      %p93 = scmp.ne.s32.totalorder %s79, %s80
      %p94 = scmp.eq.s32.totalorder %s46, 1
      %p95 = por %p93, %p94
      %p97 = scmp.ne.s32.totalorder %s80, %s96
      %p98 = scmp.eq.s32.totalorder %s46, 0
      %p99 = por %p97, %p98
      %s100 = ssub.s32 %s40, %s47
      %p101 = scmp.eq.s32.totalorder %s100, 0
      %s103 = sadd.s32 %s102, 1
      %s104 = scalar_select %p101, %s102, %s103
      %p107 = pneg %p101
      %p108 = scmp.eq.s32.totalorder %s40, 1
      %p109 = por %p107, %p108
      %p110 = scmp.ne.s32.totalorder %s102, %s105
      %p111 = scmp.eq.s32.totalorder %s40, 0
      %p112 = por %p110, %p111
      %p113 = scmp.ne.s32.totalorder %s102, %s105
      %p114 = scmp.eq.s32.totalorder %s45, 1
      %p115 = por %p113, %p114
      %p116 = scmp.ne.s32.totalorder %s105, %s106
      %p117 = scmp.eq.s32.totalorder %s45, 0
      %p118 = por %p116, %p117
      %p119 = scmp.ne.s32.totalorder %s105, %s106
      %p120 = scmp.eq.s32.totalorder %s46, 1
      %p121 = por %p119, %p120
      %p123 = scmp.ne.s32.totalorder %s106, %s122
      %p124 = scmp.eq.s32.totalorder %s46, 0
      %p125 = por %p123, %p124
      %s127 = sadd.s32 %s126, 1
      %p130 = scmp.eq.s32.totalorder %s40, 1
      %p131 = scmp.ne.s32.totalorder %s126, %s128
      %p132 = scmp.eq.s32.totalorder %s40, 0
      %p133 = por %p131, %p132
      %p134 = scmp.ne.s32.totalorder %s126, %s128
      %p135 = scmp.eq.s32.totalorder %s45, 1
      %p136 = por %p134, %p135
      %p137 = scmp.ne.s32.totalorder %s128, %s129
      %p138 = scmp.eq.s32.totalorder %s45, 0
      %p139 = por %p137, %p138
      %p140 = scmp.ne.s32.totalorder %s128, %s129
      %p141 = scmp.eq.s32.totalorder %s46, 1
      %p142 = por %p140, %p141
      %p144 = scmp.ne.s32.totalorder %s129, %s143
      %p145 = scmp.eq.s32.totalorder %s46, 0
      %p146 = por %p144, %p145
      %s148 = sadd.s32 %s147, 1
      %p151 = scmp.eq.s32.totalorder %s40, 1
      %p152 = scmp.ne.s32.totalorder %s147, %s149
      %p153 = scmp.eq.s32.totalorder %s40, 0
      %p154 = por %p152, %p153
      %p155 = scmp.ne.s32.totalorder %s147, %s149
      %p156 = scmp.eq.s32.totalorder %s45, 1
      %p157 = por %p155, %p156
      %p158 = scmp.ne.s32.totalorder %s149, %s150
      %p159 = scmp.eq.s32.totalorder %s45, 0
      %p160 = por %p158, %p159
      %p161 = scmp.ne.s32.totalorder %s149, %s150
      %p162 = scmp.eq.s32.totalorder %s46, 1
      %p163 = por %p161, %p162
      %p165 = scmp.ne.s32.totalorder %s150, %s164
      %p166 = scmp.eq.s32.totalorder %s46, 0
      %p167 = por %p165, %p166
      %s169 = sadd.s32 %s168, 1
      %p172 = scmp.eq.s32.totalorder %s40, 1
      %p173 = scmp.ne.s32.totalorder %s168, %s170
      %p174 = scmp.eq.s32.totalorder %s40, 0
      %p175 = por %p173, %p174
      %p176 = scmp.ne.s32.totalorder %s168, %s170
      %p177 = scmp.eq.s32.totalorder %s45, 1
      %p178 = por %p176, %p177
      %p179 = scmp.ne.s32.totalorder %s170, %s171
      %p180 = scmp.eq.s32.totalorder %s45, 0
      %p181 = por %p179, %p180
      %p182 = scmp.ne.s32.totalorder %s170, %s171
      %p183 = scmp.eq.s32.totalorder %s46, 1
      %p184 = por %p182, %p183
      %p186 = scmp.ne.s32.totalorder %s171, %s185
      %p187 = scmp.eq.s32.totalorder %s46, 0
      %p188 = por %p186, %p187
      %s190 = sadd.s32 %s189, 1
      %p193 = scmp.eq.s32.totalorder %s40, 1
      %p194 = scmp.ne.s32.totalorder %s189, %s191
      %p195 = scmp.eq.s32.totalorder %s40, 0
      %p196 = por %p194, %p195
      %p197 = scmp.ne.s32.totalorder %s189, %s191
      %p198 = scmp.eq.s32.totalorder %s45, 1
      %p199 = por %p197, %p198
      %p200 = scmp.ne.s32.totalorder %s191, %s192
      %p201 = scmp.eq.s32.totalorder %s45, 0
      %p202 = por %p200, %p201
      %p203 = scmp.ne.s32.totalorder %s191, %s192
      %p204 = scmp.eq.s32.totalorder %s46, 1
      %p205 = por %p203, %p204
      %p207 = scmp.ne.s32.totalorder %s192, %s206
      %p208 = scmp.eq.s32.totalorder %s46, 0
      %p209 = por %p207, %p208
      %s211 = sadd.s32 %s210, 1
      %p214 = scmp.eq.s32.totalorder %s40, 1
      %p215 = scmp.ne.s32.totalorder %s210, %s212
      %p216 = scmp.eq.s32.totalorder %s40, 0
      %p217 = por %p215, %p216
      %p218 = scmp.ne.s32.totalorder %s210, %s212
      %p219 = scmp.eq.s32.totalorder %s45, 1
      %p220 = por %p218, %p219
      %p221 = scmp.ne.s32.totalorder %s212, %s213
      %p222 = scmp.eq.s32.totalorder %s45, 0
      %p223 = por %p221, %p222
      %p224 = scmp.ne.s32.totalorder %s212, %s213
      %p225 = scmp.eq.s32.totalorder %s46, 1
      %p226 = por %p224, %p225
      %p228 = scmp.ne.s32.totalorder %s213, %s227
      %p229 = scmp.eq.s32.totalorder %s46, 0
      %p230 = por %p228, %p229
      %s232 = sadd.s32 %s231, 1
      %p235 = scmp.eq.s32.totalorder %s40, 1
      %p236 = scmp.ne.s32.totalorder %s231, %s233
      %p237 = scmp.eq.s32.totalorder %s40, 0
      %p238 = por %p236, %p237
      %p239 = scmp.ne.s32.totalorder %s231, %s233
      %p240 = scmp.eq.s32.totalorder %s45, 1
      %p241 = por %p239, %p240
      %p242 = scmp.ne.s32.totalorder %s233, %s234
      %p243 = scmp.eq.s32.totalorder %s45, 0
      %p244 = por %p242, %p243
      %p245 = scmp.ne.s32.totalorder %s233, %s234
      %p246 = scmp.eq.s32.totalorder %s46, 1
      %p247 = por %p245, %p246
      %p249 = scmp.ne.s32.totalorder %s234, %s248
      %p250 = scmp.eq.s32.totalorder %s46, 0
      %p251 = por %p249, %p250
      %s253 = sadd.s32 %s252, 1
      %p256 = scmp.eq.s32.totalorder %s40, 1
      %p257 = scmp.ne.s32.totalorder %s252, %s254
      %p258 = scmp.eq.s32.totalorder %s40, 0
      %p259 = por %p257, %p258
      %p260 = scmp.ne.s32.totalorder %s252, %s254
      %p261 = scmp.eq.s32.totalorder %s45, 1
      %p262 = por %p260, %p261
      %p263 = scmp.ne.s32.totalorder %s254, %s255
      %p264 = scmp.eq.s32.totalorder %s45, 0
      %p265 = por %p263, %p264
      %p266 = scmp.ne.s32.totalorder %s254, %s255
      %p267 = scmp.eq.s32.totalorder %s46, 1
      %p268 = por %p266, %p267
      %p270 = scmp.ne.s32.totalorder %s255, %s269
      %p271 = scmp.eq.s32.totalorder %s46, 0
      %p272 = por %p270, %p271
      %s274 = sadd.s32 %s273, 1
      %p277 = scmp.eq.s32.totalorder %s40, 1
      %p278 = scmp.ne.s32.totalorder %s273, %s275
      %p279 = scmp.eq.s32.totalorder %s40, 0
      %p280 = por %p278, %p279
      %p281 = scmp.ne.s32.totalorder %s273, %s275
      %p282 = scmp.eq.s32.totalorder %s45, 1
      %p283 = por %p281, %p282
      %p284 = scmp.ne.s32.totalorder %s275, %s276
      %p285 = scmp.eq.s32.totalorder %s45, 0
      %p286 = por %p284, %p285
      %p287 = scmp.ne.s32.totalorder %s275, %s276
      %p288 = scmp.eq.s32.totalorder %s46, 1
      %p289 = por %p287, %p288
      %p291 = scmp.ne.s32.totalorder %s276, %s290
      %p292 = scmp.eq.s32.totalorder %s46, 0
      %p293 = por %p291, %p292
      %s295 = sadd.s32 %s294, 1
      %p298 = scmp.eq.s32.totalorder %s40, 1
      %p299 = scmp.ne.s32.totalorder %s294, %s296
      %p300 = scmp.eq.s32.totalorder %s40, 0
      %p301 = por %p299, %p300
      %p302 = scmp.ne.s32.totalorder %s294, %s296
      %p303 = scmp.eq.s32.totalorder %s45, 1
      %p304 = por %p302, %p303
      %p305 = scmp.ne.s32.totalorder %s296, %s297
      %p306 = scmp.eq.s32.totalorder %s45, 0
      %p307 = por %p305, %p306
      %p308 = scmp.ne.s32.totalorder %s296, %s297
      %p309 = scmp.eq.s32.totalorder %s46, 1
      %p310 = por %p308, %p309
      %p312 = scmp.ne.s32.totalorder %s297, %s311
      %p313 = scmp.eq.s32.totalorder %s46, 0
      %p314 = por %p312, %p313
      %s316 = sadd.s32 %s315, 1
      %p319 = scmp.eq.s32.totalorder %s40, 1
      %p320 = scmp.ne.s32.totalorder %s315, %s317
      %p321 = scmp.eq.s32.totalorder %s40, 0
      %p322 = por %p320, %p321
      %p323 = scmp.ne.s32.totalorder %s315, %s317
      %p324 = scmp.eq.s32.totalorder %s45, 1
      %p325 = por %p323, %p324
      %p326 = scmp.ne.s32.totalorder %s317, %s318
      %p327 = scmp.eq.s32.totalorder %s45, 0
      %p328 = por %p326, %p327
      %p329 = scmp.ne.s32.totalorder %s317, %s318
      %p330 = scmp.eq.s32.totalorder %s46, 1
      %p331 = por %p329, %p330
      %p333 = scmp.ne.s32.totalorder %s318, %s332
      %p334 = scmp.eq.s32.totalorder %s46, 0
      %p335 = por %p333, %p334
      %s337 = sadd.s32 %s336, 1
      %p340 = scmp.eq.s32.totalorder %s40, 1
      %p341 = scmp.ne.s32.totalorder %s336, %s338
      %p342 = scmp.eq.s32.totalorder %s40, 0
      %p343 = por %p341, %p342
      %p344 = scmp.ne.s32.totalorder %s336, %s338
      %p345 = scmp.eq.s32.totalorder %s45, 1
      %p346 = por %p344, %p345
      %p347 = scmp.ne.s32.totalorder %s338, %s339
      %p348 = scmp.eq.s32.totalorder %s45, 0
      %p349 = por %p347, %p348
      %p350 = scmp.ne.s32.totalorder %s338, %s339
      %p351 = scmp.eq.s32.totalorder %s46, 1
      %p352 = por %p350, %p351
      %p354 = scmp.ne.s32.totalorder %s339, %s353
      %p355 = scmp.eq.s32.totalorder %s46, 0
      %p356 = por %p354, %p355
      %s358 = sadd.s32 %s357, 1
      %p361 = scmp.eq.s32.totalorder %s40, 1
      %p362 = scmp.ne.s32.totalorder %s357, %s359
      %p363 = scmp.eq.s32.totalorder %s40, 0
      %p364 = por %p362, %p363
      %p365 = scmp.ne.s32.totalorder %s357, %s359
      %p366 = scmp.eq.s32.totalorder %s45, 1
      %p367 = por %p365, %p366
      %p368 = scmp.ne.s32.totalorder %s359, %s360
      %p369 = scmp.eq.s32.totalorder %s45, 0
      %p370 = por %p368, %p369
      %p371 = scmp.ne.s32.totalorder %s359, %s360
      %p372 = scmp.eq.s32.totalorder %s46, 1
      %p373 = por %p371, %p372
      %p375 = scmp.ne.s32.totalorder %s360, %s374
      %p376 = scmp.eq.s32.totalorder %s46, 0
      %p377 = por %p375, %p376
      %s379 = sadd.s32 %s378, 1
      %p382 = scmp.eq.s32.totalorder %s40, 1
      %p383 = scmp.ne.s32.totalorder %s378, %s380
      %p384 = scmp.eq.s32.totalorder %s40, 0
      %p385 = por %p383, %p384
      %p386 = scmp.ne.s32.totalorder %s378, %s380
      %p387 = scmp.eq.s32.totalorder %s45, 1
      %p388 = por %p386, %p387
      %p389 = scmp.ne.s32.totalorder %s380, %s381
      %p390 = scmp.eq.s32.totalorder %s45, 0
      %p391 = por %p389, %p390
      %p392 = scmp.ne.s32.totalorder %s380, %s381
      %p393 = scmp.eq.s32.totalorder %s46, 1
      %p394 = por %p392, %p393
      %p396 = scmp.ne.s32.totalorder %s381, %s395
      %p397 = scmp.eq.s32.totalorder %s46, 0
      %p398 = por %p396, %p397
      %s400 = sadd.s32 %s399, 1
      %p403 = scmp.eq.s32.totalorder %s40, 1
      %p404 = scmp.ne.s32.totalorder %s399, %s401
      %p405 = scmp.eq.s32.totalorder %s40, 0
      %p406 = por %p404, %p405
      %p407 = scmp.ne.s32.totalorder %s399, %s401
      %p408 = scmp.eq.s32.totalorder %s45, 1
      %p409 = por %p407, %p408
      %p410 = scmp.ne.s32.totalorder %s401, %s402
      %p411 = scmp.eq.s32.totalorder %s45, 0
      %p412 = por %p410, %p411
      %p413 = scmp.ne.s32.totalorder %s401, %s402
      %p414 = scmp.eq.s32.totalorder %s46, 1
      %p415 = por %p413, %p414
      %p417 = scmp.ne.s32.totalorder %s402, %s416
      %p418 = scmp.eq.s32.totalorder %s46, 0
      %p419 = por %p417, %p418
      %s421 = sadd.s32 %s420, 1
      %p424 = scmp.eq.s32.totalorder %s40, 1
      %p425 = scmp.ne.s32.totalorder %s420, %s422
      %p426 = scmp.eq.s32.totalorder %s40, 0
      %p427 = por %p425, %p426
      %p428 = scmp.ne.s32.totalorder %s420, %s422
      %p429 = scmp.eq.s32.totalorder %s45, 1
      %p430 = por %p428, %p429
      %p431 = scmp.ne.s32.totalorder %s422, %s423
      %p432 = scmp.eq.s32.totalorder %s45, 0
      %p433 = por %p431, %p432
      %p434 = scmp.ne.s32.totalorder %s422, %s423
      %p435 = scmp.eq.s32.totalorder %s46, 1
      %p436 = por %p434, %p435
      %p438 = scmp.ne.s32.totalorder %s423, %s437
      %p439 = scmp.eq.s32.totalorder %s46, 0
      %p440 = por %p438, %p439
      %s442 = sadd.s32 %s441, 1
      %p445 = scmp.eq.s32.totalorder %s40, 1
      %p446 = scmp.ne.s32.totalorder %s441, %s443
      %p447 = scmp.eq.s32.totalorder %s40, 0
      %p448 = por %p446, %p447
      %p449 = scmp.ne.s32.totalorder %s441, %s443
      %p450 = scmp.eq.s32.totalorder %s45, 1
      %p451 = por %p449, %p450
      %p452 = scmp.ne.s32.totalorder %s443, %s444
      %p453 = scmp.eq.s32.totalorder %s45, 0
      %p454 = por %p452, %p453
      %p455 = scmp.ne.s32.totalorder %s443, %s444
      %p456 = scmp.eq.s32.totalorder %s46, 1
      %p457 = por %p455, %p456
      %p459 = scmp.ne.s32.totalorder %s444, %s458
      %p460 = scmp.eq.s32.totalorder %s46, 0
      %p461 = por %p459, %p460
      %s463 = sadd.s32 %s462, 1
      %p466 = scmp.eq.s32.totalorder %s40, 1
      %p467 = scmp.ne.s32.totalorder %s462, %s464
      %p468 = scmp.eq.s32.totalorder %s40, 0
      %p469 = por %p467, %p468
      %p470 = scmp.ne.s32.totalorder %s462, %s464
      %p471 = scmp.eq.s32.totalorder %s45, 1
      %p472 = por %p470, %p471
      %p473 = scmp.ne.s32.totalorder %s464, %s465
      %p474 = scmp.eq.s32.totalorder %s45, 0
      %p475 = por %p473, %p474
      %p476 = scmp.ne.s32.totalorder %s464, %s465
      %p477 = scmp.eq.s32.totalorder %s46, 1
      %p478 = por %p476, %p477
      %p480 = scmp.ne.s32.totalorder %s465, %s479
      %p481 = scmp.eq.s32.totalorder %s46, 0
      %p482 = por %p480, %p481
      %s484 = sadd.s32 %s483, 1
      %p487 = scmp.eq.s32.totalorder %s40, 1
      %p488 = scmp.ne.s32.totalorder %s483, %s485
      %p489 = scmp.eq.s32.totalorder %s40, 0
      %p490 = por %p488, %p489
      %p491 = scmp.ne.s32.totalorder %s483, %s485
      %p492 = scmp.eq.s32.totalorder %s45, 1
      %p493 = por %p491, %p492
      %p494 = scmp.ne.s32.totalorder %s485, %s486
      %p495 = scmp.eq.s32.totalorder %s45, 0
      %p496 = por %p494, %p495
      %p497 = scmp.ne.s32.totalorder %s485, %s486
      %p498 = scmp.eq.s32.totalorder %s46, 1
      %p499 = por %p497, %p498
      %p501 = scmp.ne.s32.totalorder %s486, %s500
      %p502 = scmp.eq.s32.totalorder %s46, 0
      %p503 = por %p501, %p502
      %s505 = sadd.s32 %s504, 1
      %p508 = scmp.eq.s32.totalorder %s40, 1
      %p509 = scmp.ne.s32.totalorder %s504, %s506
      %p510 = scmp.eq.s32.totalorder %s40, 0
      %p511 = por %p509, %p510
      %p512 = scmp.ne.s32.totalorder %s504, %s506
      %p513 = scmp.eq.s32.totalorder %s45, 1
      %p514 = por %p512, %p513
      %p515 = scmp.ne.s32.totalorder %s506, %s507
      %p516 = scmp.eq.s32.totalorder %s45, 0
      %p517 = por %p515, %p516
      %p518 = scmp.ne.s32.totalorder %s506, %s507
      %p519 = scmp.eq.s32.totalorder %s46, 1
      %p520 = por %p518, %p519
      %p522 = scmp.ne.s32.totalorder %s507, %s521
      %p523 = scmp.eq.s32.totalorder %s46, 0
      %p524 = por %p522, %p523
      %s525 = ssub.s32 %s40, %s47
      %p526 = scmp.eq.s32.totalorder %s525, 0
      %s528 = sadd.s32 %s527, 1
      %s529 = scalar_select %p526, %s527, %s528
      %p532 = pneg %p526
      %p533 = scmp.eq.s32.totalorder %s40, 1
      %p534 = por %p532, %p533
      %p535 = scmp.ne.s32.totalorder %s527, %s530
      %p536 = scmp.eq.s32.totalorder %s40, 0
      %p537 = por %p535, %p536
      %p538 = scmp.ne.s32.totalorder %s527, %s530
      %p539 = scmp.eq.s32.totalorder %s45, 1
      %p540 = por %p538, %p539
      %p541 = scmp.ne.s32.totalorder %s530, %s531
      %p542 = scmp.eq.s32.totalorder %s45, 0
      %p543 = por %p541, %p542
      %p544 = scmp.ne.s32.totalorder %s530, %s531
      %p545 = scmp.eq.s32.totalorder %s46, 1
      %p546 = por %p544, %p545
      %p548 = scmp.ne.s32.totalorder %s531, %s547
      %p549 = scmp.eq.s32.totalorder %s46, 0
      %p550 = por %p548, %p549
      %p551 = scmp.le.s32.totalorder 1, %s40
      %p552 = scmp.lt.s32.totalorder %s40, 3
      %p553 = pnand %p551, %p552
      %p554 = pneg %p553
      // Predicated region
      $region9: #{tpu_custom_call.1} parent=5 // pred_check
        _
      $region10: #{tpu_custom_call.1} parent=5 // pred_check_branch
        %556 = sbr.rel (%p553) target = $region12
      $region11: #{tpu_custom_call.1} parent=5 // pred_region
        %s557 = ssub.s32 %s40, 1
        // Predicated region
        $region13: #{tpu_custom_call.1} parent=11 // pred_check
          %p558 = pneg %p139
        $region14: #{tpu_custom_call.1} parent=11 // pred_check_branch
          %560 = sbr.rel (%p558) target = $region16
        $region15: #{tpu_custom_call.1} parent=11 // pred_region
          %s562 = ssub.s32 16, 16
          %563 = vsyncadd [#allocation8], %s562
          %s565 = sshll.u32 [#allocation7], 4
          %s566 = int_to_ptr.vmem [resolvable:$true] %s565
          %568 = dma.hbm_to_vmem [thread:$0]  %s3, 16, %s566, [#allocation8]
        $region16: #{tpu_custom_call.1} parent=11 // pred_fallthru
          _
        // Predicated region
        $region17: #{tpu_custom_call.1} parent=11 // pred_check
          %p569 = pneg %p160
        $region18: #{tpu_custom_call.1} parent=11 // pred_check_branch
          %571 = sbr.rel (%p569) target = $region20
        $region19: #{tpu_custom_call.1} parent=11 // pred_region
          %s573 = ssub.s32 16, 16
          %574 = vsyncadd [#allocation8], %s573
          %s576 = sshll.u32 [#allocation9], 4
          %s577 = int_to_ptr.vmem [resolvable:$true] %s576
          %579 = dma.hbm_to_vmem [thread:$0]  %s4, 16, %s577, [#allocation8]
        $region20: #{tpu_custom_call.1} parent=11 // pred_fallthru
          _
        // Predicated region
        $region21: #{tpu_custom_call.1} parent=11 // pred_check
          %p580 = pneg %p181
        $region22: #{tpu_custom_call.1} parent=11 // pred_check_branch
          %582 = sbr.rel (%p580) target = $region24
        $region23: #{tpu_custom_call.1} parent=11 // pred_region
          %s584 = ssub.s32 1024, 1024
          %585 = vsyncadd [#allocation11], %s584
          %s586 = sshll.u32 [#allocation10], 4
          %s587 = int_to_ptr.vmem [resolvable:$true] %s586
          %592 = dma.hbm_to_vmem [thread:$0]  %s5, 1024, %s587, [#allocation11], 256, 256, 16
        $region24: #{tpu_custom_call.1} parent=11 // pred_fallthru
          _
        // Predicated region
        $region25: #{tpu_custom_call.1} parent=11 // pred_check
          %p593 = pneg %p202
        $region26: #{tpu_custom_call.1} parent=11 // pred_check_branch
          %595 = sbr.rel (%p593) target = $region28
        $region27: #{tpu_custom_call.1} parent=11 // pred_region
          %s597 = ssub.s32 1024, 1024
          %598 = vsyncadd [#allocation11], %s597
          %s599 = sshll.u32 [#allocation12], 4
          %s600 = int_to_ptr.vmem [resolvable:$true] %s599
          %605 = dma.hbm_to_vmem [thread:$0]  %s6, 1024, %s600, [#allocation11], 256, 256, 16
        $region28: #{tpu_custom_call.1} parent=11 // pred_fallthru
          _
        // Predicated region
        $region29: #{tpu_custom_call.1} parent=11 // pred_check
          %p606 = pneg %p223
        $region30: #{tpu_custom_call.1} parent=11 // pred_check_branch
          %608 = sbr.rel (%p606) target = $region32
        $region31: #{tpu_custom_call.1} parent=11 // pred_region
          _
        $region32: #{tpu_custom_call.1} parent=11 // pred_fallthru
          _
        // Predicated region
        $region33: #{tpu_custom_call.1} parent=11 // pred_check
          %p609 = pneg %p244
        $region34: #{tpu_custom_call.1} parent=11 // pred_check_branch
          %611 = sbr.rel (%p609) target = $region36
        $region35: #{tpu_custom_call.1} parent=11 // pred_region
          %s613 = ssub.s32 16384, 16384
          %614 = vsyncadd [#allocation14], %s613
          %s615 = sshll.u32 [#allocation13], 4
          %s616 = int_to_ptr.vmem [resolvable:$true] %s615
          %621 = dma.hbm_to_vmem [thread:$0]  %s8, 16384, %s616, [#allocation14], 256, 256, 16
        $region36: #{tpu_custom_call.1} parent=11 // pred_fallthru
          _
        // Predicated region
        $region37: #{tpu_custom_call.1} parent=11 // pred_check
          %p622 = pneg %p265
        $region38: #{tpu_custom_call.1} parent=11 // pred_check_branch
          %624 = sbr.rel (%p622) target = $region40
        $region39: #{tpu_custom_call.1} parent=11 // pred_region
          %s626 = ssub.s32 16384, 16384
          %627 = vsyncadd [#allocation14], %s626
          %s628 = sshll.u32 [#allocation15], 4
          %s629 = int_to_ptr.vmem [resolvable:$true] %s628
          %634 = dma.hbm_to_vmem [thread:$0]  %s9, 16384, %s629, [#allocation14], 256, 256, 16
        $region40: #{tpu_custom_call.1} parent=11 // pred_fallthru
          _
        // Predicated region
        $region41: #{tpu_custom_call.1} parent=11 // pred_check
          %p635 = pneg %p286
        $region42: #{tpu_custom_call.1} parent=11 // pred_check_branch
          %637 = sbr.rel (%p635) target = $region44
        $region43: #{tpu_custom_call.1} parent=11 // pred_region
          _
        $region44: #{tpu_custom_call.1} parent=11 // pred_fallthru
          _
        // Predicated region
        $region45: #{tpu_custom_call.1} parent=11 // pred_check
          %p638 = pneg %p307
        $region46: #{tpu_custom_call.1} parent=11 // pred_check_branch
          %640 = sbr.rel (%p638) target = $region48
        $region47: #{tpu_custom_call.1} parent=11 // pred_region
          %s642 = ssub.s32 8192, 8192
          %643 = vsyncadd [#allocation17], %s642
          %s644 = sshll.u32 [#allocation16], 4
          %s645 = int_to_ptr.vmem [resolvable:$true] %s644
          %650 = dma.hbm_to_vmem [thread:$0]  %s11, 8192, %s645, [#allocation17], 128, 128, 8
        $region48: #{tpu_custom_call.1} parent=11 // pred_fallthru
          _
        // Predicated region
        $region49: #{tpu_custom_call.1} parent=11 // pred_check
          %p651 = pneg %p328
        $region50: #{tpu_custom_call.1} parent=11 // pred_check_branch
          %653 = sbr.rel (%p651) target = $region52
        $region51: #{tpu_custom_call.1} parent=11 // pred_region
          %s655 = ssub.s32 8192, 8192
          %656 = vsyncadd [#allocation17], %s655
          %s657 = sshll.u32 [#allocation18], 4
          %s658 = int_to_ptr.vmem [resolvable:$true] %s657
          %663 = dma.hbm_to_vmem [thread:$0]  %s12, 8192, %s658, [#allocation17], 128, 128, 8
        $region52: #{tpu_custom_call.1} parent=11 // pred_fallthru
          _
        // Predicated region
        $region53: #{tpu_custom_call.1} parent=11 // pred_check
          %p664 = pneg %p349
        $region54: #{tpu_custom_call.1} parent=11 // pred_check_branch
          %666 = sbr.rel (%p664) target = $region56
        $region55: #{tpu_custom_call.1} parent=11 // pred_region
          _
        $region56: #{tpu_custom_call.1} parent=11 // pred_fallthru
          _
        // Predicated region
        $region57: #{tpu_custom_call.1} parent=11 // pred_check
          %p667 = pneg %p370
        $region58: #{tpu_custom_call.1} parent=11 // pred_check_branch
          %669 = sbr.rel (%p667) target = $region60
        $region59: #{tpu_custom_call.1} parent=11 // pred_region
          %s671 = ssub.s32 4096, 4096
          %672 = vsyncadd [#allocation20], %s671
          %s673 = sshll.u32 [#allocation19], 4
          %s674 = int_to_ptr.vmem [resolvable:$true] %s673
          %679 = dma.hbm_to_vmem [thread:$0]  %s14, 4096, %s674, [#allocation20], 128, 128, 8
        $region60: #{tpu_custom_call.1} parent=11 // pred_fallthru
          _
        // Predicated region
        $region61: #{tpu_custom_call.1} parent=11 // pred_check
          %p680 = pneg %p391
        $region62: #{tpu_custom_call.1} parent=11 // pred_check_branch
          %682 = sbr.rel (%p680) target = $region64
        $region63: #{tpu_custom_call.1} parent=11 // pred_region
          %s684 = ssub.s32 4096, 4096
          %685 = vsyncadd [#allocation20], %s684
          %s686 = sshll.u32 [#allocation21], 4
          %s687 = int_to_ptr.vmem [resolvable:$true] %s686
          %692 = dma.hbm_to_vmem [thread:$0]  %s15, 4096, %s687, [#allocation20], 128, 128, 8
        $region64: #{tpu_custom_call.1} parent=11 // pred_fallthru
          _
        // Predicated region
        $region65: #{tpu_custom_call.1} parent=11 // pred_check
          %p693 = pneg %p412
        $region66: #{tpu_custom_call.1} parent=11 // pred_check_branch
          %695 = sbr.rel (%p693) target = $region68
        $region67: #{tpu_custom_call.1} parent=11 // pred_region
          _
        $region68: #{tpu_custom_call.1} parent=11 // pred_fallthru
          _
        // Predicated region
        $region69: #{tpu_custom_call.1} parent=11 // pred_check
          %p696 = pneg %p433
        $region70: #{tpu_custom_call.1} parent=11 // pred_check_branch
          %698 = sbr.rel (%p696) target = $region72
        $region71: #{tpu_custom_call.1} parent=11 // pred_region
          %s700 = ssub.s32 4096, 4096
          %701 = vsyncadd [#allocation23], %s700
          %s702 = sshll.u32 [#allocation22], 4
          %s703 = int_to_ptr.vmem [resolvable:$true] %s702
          %708 = dma.hbm_to_vmem [thread:$0]  %s17, 4096, %s703, [#allocation23], 128, 128, 8
        $region72: #{tpu_custom_call.1} parent=11 // pred_fallthru
          _
        // Predicated region
        $region73: #{tpu_custom_call.1} parent=11 // pred_check
          %p709 = pneg %p454
        $region74: #{tpu_custom_call.1} parent=11 // pred_check_branch
          %711 = sbr.rel (%p709) target = $region76
        $region75: #{tpu_custom_call.1} parent=11 // pred_region
          _
        $region76: #{tpu_custom_call.1} parent=11 // pred_fallthru
          _
        // Predicated region
        $region77: #{tpu_custom_call.1} parent=11 // pred_check
          %p712 = pneg %p475
        $region78: #{tpu_custom_call.1} parent=11 // pred_check_branch
          %714 = sbr.rel (%p712) target = $region80
        $region79: #{tpu_custom_call.1} parent=11 // pred_region
          _
        $region80: #{tpu_custom_call.1} parent=11 // pred_fallthru
          _
        // Predicated region
        $region81: #{tpu_custom_call.1} parent=11 // pred_check
          %p715 = pneg %p496
        $region82: #{tpu_custom_call.1} parent=11 // pred_check_branch
          %717 = sbr.rel (%p715) target = $region84
        $region83: #{tpu_custom_call.1} parent=11 // pred_region
          %s719 = ssub.s32 2048, 2048
          %720 = vsyncadd [#allocation23], %s719
          %s721 = sshll.u32 [#allocation24], 4
          %s722 = int_to_ptr.vmem [resolvable:$true] %s721
          %727 = dma.hbm_to_vmem [thread:$0]  %s20, 2048, %s722, [#allocation23], 64, 64, 4
        $region84: #{tpu_custom_call.1} parent=11 // pred_fallthru
          _
        // Predicated region
        $region85: #{tpu_custom_call.1} parent=11 // pred_check
          %p728 = pneg %p517
        $region86: #{tpu_custom_call.1} parent=11 // pred_check_branch
          %730 = sbr.rel (%p728) target = $region88
        $region87: #{tpu_custom_call.1} parent=11 // pred_region
          _
        $region88: #{tpu_custom_call.1} parent=11 // pred_fallthru
          _
      $region12: #{tpu_custom_call.1} parent=5 // pred_fallthru
        _
      %p731 = scmp.lt.s32.totalorder %s40, 2
      // Predicated region
      $region89: #{tpu_custom_call.1} parent=5 // pred_check
        %p732 = pneg %p731
      $region90: #{tpu_custom_call.1} parent=5 // pred_check_branch
        %734 = sbr.rel (%p732) target = $region92
      $region91: #{tpu_custom_call.1} parent=5 // pred_region
        // Predicated region
        $region93: #{tpu_custom_call.1} parent=91 // pred_check
          %p735 = pneg %p60
        $region94: #{tpu_custom_call.1} parent=91 // pred_check_branch
          %737 = sbr.rel (%p735) target = $region96
        $region95: #{tpu_custom_call.1} parent=91 // pred_region
          %s738 = sand.u32 %s50, 1
          %s739 = scalar_lea.sflag [#allocation3], %s738
          %s740 = sand.u32 %s50, 1
          %s741 = smul.addr %s740, 16
          %s742 = scalar_lea.vmem [#allocation2], %s741
          %s744 = ssub.s32 256, 256
          %745 = vsyncadd %s739, %s744
          %s746 = smul.addr %s40, 2
          %s747 = smul.addr %s746, 128
          %s748 = scalar_lea.hbm %s0, %s747
          %s749 = sshll.u32 %s742, 4
          %s750 = int_to_ptr.vmem [resolvable:$true] %s749
          %755 = dma.hbm_to_vmem [thread:$0]  %s748, 256, %s750, %s739, 128, 128, 8
        $region96: #{tpu_custom_call.1} parent=91 // pred_fallthru
          _
        // Predicated region
        $region97: #{tpu_custom_call.1} parent=91 // pred_check
          %p756 = pneg %p86
        $region98: #{tpu_custom_call.1} parent=91 // pred_check_branch
          %758 = sbr.rel (%p756) target = $region100
        $region99: #{tpu_custom_call.1} parent=91 // pred_region
          %s759 = sand.u32 %s40, 1
          %s760 = scalar_lea.sflag [#allocation5], %s759
          %s761 = sand.u32 %s76, 1
          %s762 = smul.addr %s761, 8
          %s763 = scalar_lea.vmem [#allocation4], %s762
          %s765 = ssub.s32 128, 128
          %766 = vsyncadd %s760, %s765
          %s767 = smul.addr %s40, 2
          %s768 = smul.addr %s767, 64
          %s769 = scalar_lea.hbm %s1, %s768
          %s770 = sshll.u32 %s763, 4
          %s771 = int_to_ptr.vmem [resolvable:$true] %s770
          %776 = dma.hbm_to_vmem [thread:$0]  %s769, 128, %s771, %s760, 64, 64, 4
        $region100: #{tpu_custom_call.1} parent=91 // pred_fallthru
          _
        // Predicated region
        $region101: #{tpu_custom_call.1} parent=91 // pred_check
          %p777 = pneg %p112
        $region102: #{tpu_custom_call.1} parent=91 // pred_check_branch
          %779 = sbr.rel (%p777) target = $region104
        $region103: #{tpu_custom_call.1} parent=91 // pred_region
          %s780 = sand.u32 %s40, 1
          %s781 = scalar_lea.sflag [#allocation5], %s780
          %s782 = sand.u32 %s102, 1
          %s783 = smul.addr %s782, 4
          %s784 = scalar_lea.vmem [#allocation6], %s783
          %s786 = ssub.s32 64, 64
          %787 = vsyncadd %s781, %s786
          %s788 = smul.addr %s40, 64
          %s789 = scalar_lea.hbm %s2, %s788
          %s791 = sshll.u32 %s784, 4
          %s792 = int_to_ptr.vmem [resolvable:$true] %s791
          %794 = dma.hbm_to_vmem [thread:$0]  %s789, 64, %s792, %s781
        $region104: #{tpu_custom_call.1} parent=91 // pred_fallthru
          _
      $region92: #{tpu_custom_call.1} parent=5 // pred_fallthru
        _
      %p795 = scmp.le.s32.totalorder 1, %s40
      %p796 = scmp.lt.s32.totalorder %s40, 3
      %p797 = pnand %p795, %p796
      %p798 = pneg %p797
      // Predicated region
      $region105: #{tpu_custom_call.1} parent=5 // pred_check
        _
      $region106: #{tpu_custom_call.1} parent=5 // pred_check_branch
        %800 = sbr.rel (%p797) target = $region108
      $region107: #{tpu_custom_call.1} parent=5 // pred_region
        %s801 = ssub.s32 %s40, 1
        %s802 = sand.u32 %s53, 1
        %s803 = scalar_lea.sflag [#allocation3], %s802
        %s804 = sand.u32 %s53, 1
        %s805 = smul.addr %s804, 16
        %s806 = scalar_lea.vmem [#allocation2], %s805
        // Predicated region
        $region109: #{tpu_custom_call.1} parent=107 // pred_check
          %p807 = pneg %p66
        $region110: #{tpu_custom_call.1} parent=107 // pred_check_branch
          %809 = sbr.rel (%p807) target = $region112
        $region111: #{tpu_custom_call.1} parent=107 // pred_region
          %810 = dma.done %s803, 256
        $region112: #{tpu_custom_call.1} parent=107 // pred_fallthru
          _
        %s811 = sand.u32 %s45, 1
        %s812 = scalar_lea.sflag [#allocation5], %s811
        %s813 = sand.u32 %s79, 1
        %s814 = smul.addr %s813, 8
        %s815 = scalar_lea.vmem [#allocation4], %s814
        // Predicated region
        $region113: #{tpu_custom_call.1} parent=107 // pred_check
          %p816 = pneg %p92
        $region114: #{tpu_custom_call.1} parent=107 // pred_check_branch
          %818 = sbr.rel (%p816) target = $region116
        $region115: #{tpu_custom_call.1} parent=107 // pred_region
          %819 = dma.done %s812, 128
        $region116: #{tpu_custom_call.1} parent=107 // pred_fallthru
          _
        %s820 = sand.u32 %s45, 1
        %s821 = scalar_lea.sflag [#allocation5], %s820
        %s822 = sand.u32 %s105, 1
        %s823 = smul.addr %s822, 4
        %s824 = scalar_lea.vmem [#allocation6], %s823
        // Predicated region
        $region117: #{tpu_custom_call.1} parent=107 // pred_check
          %p825 = pneg %p118
        $region118: #{tpu_custom_call.1} parent=107 // pred_check_branch
          %827 = sbr.rel (%p825) target = $region120
        $region119: #{tpu_custom_call.1} parent=107 // pred_region
          %828 = dma.done %s821, 64
        $region120: #{tpu_custom_call.1} parent=107 // pred_fallthru
          _
        // Predicated region
        $region121: #{tpu_custom_call.1} parent=107 // pred_check
          %p829 = pneg %p139
        $region122: #{tpu_custom_call.1} parent=107 // pred_check_branch
          %831 = sbr.rel (%p829) target = $region124
        $region123: #{tpu_custom_call.1} parent=107 // pred_region
          %832 = dma.done [#allocation8], 16
        $region124: #{tpu_custom_call.1} parent=107 // pred_fallthru
          _
        // Predicated region
        $region125: #{tpu_custom_call.1} parent=107 // pred_check
          %p833 = pneg %p160
        $region126: #{tpu_custom_call.1} parent=107 // pred_check_branch
          %835 = sbr.rel (%p833) target = $region128
        $region127: #{tpu_custom_call.1} parent=107 // pred_region
          %836 = dma.done [#allocation8], 16
        $region128: #{tpu_custom_call.1} parent=107 // pred_fallthru
          _
        // Predicated region
        $region129: #{tpu_custom_call.1} parent=107 // pred_check
          %p837 = pneg %p181
        $region130: #{tpu_custom_call.1} parent=107 // pred_check_branch
          %839 = sbr.rel (%p837) target = $region132
        $region131: #{tpu_custom_call.1} parent=107 // pred_region
          %840 = dma.done [#allocation11], 1024
        $region132: #{tpu_custom_call.1} parent=107 // pred_fallthru
          _
        // Predicated region
        $region133: #{tpu_custom_call.1} parent=107 // pred_check
          %p841 = pneg %p202
        $region134: #{tpu_custom_call.1} parent=107 // pred_check_branch
          %843 = sbr.rel (%p841) target = $region136
        $region135: #{tpu_custom_call.1} parent=107 // pred_region
          %844 = dma.done [#allocation11], 1024
        $region136: #{tpu_custom_call.1} parent=107 // pred_fallthru
          _
        // Predicated region
        $region137: #{tpu_custom_call.1} parent=107 // pred_check
          %p845 = pneg %p244
        $region138: #{tpu_custom_call.1} parent=107 // pred_check_branch
          %847 = sbr.rel (%p845) target = $region140
        $region139: #{tpu_custom_call.1} parent=107 // pred_region
          %848 = dma.done [#allocation14], 16384
        $region140: #{tpu_custom_call.1} parent=107 // pred_fallthru
          _
        // Predicated region
        $region141: #{tpu_custom_call.1} parent=107 // pred_check
          %p849 = pneg %p265
        $region142: #{tpu_custom_call.1} parent=107 // pred_check_branch
          %851 = sbr.rel (%p849) target = $region144
        $region143: #{tpu_custom_call.1} parent=107 // pred_region
          %852 = dma.done [#allocation14], 16384
        $region144: #{tpu_custom_call.1} parent=107 // pred_fallthru
          _
        // Predicated region
        $region145: #{tpu_custom_call.1} parent=107 // pred_check
          %p853 = pneg %p307
        $region146: #{tpu_custom_call.1} parent=107 // pred_check_branch
          %855 = sbr.rel (%p853) target = $region148
        $region147: #{tpu_custom_call.1} parent=107 // pred_region
          %856 = dma.done [#allocation17], 8192
        $region148: #{tpu_custom_call.1} parent=107 // pred_fallthru
          _
        // Predicated region
        $region149: #{tpu_custom_call.1} parent=107 // pred_check
          %p857 = pneg %p328
        $region150: #{tpu_custom_call.1} parent=107 // pred_check_branch
          %859 = sbr.rel (%p857) target = $region152
        $region151: #{tpu_custom_call.1} parent=107 // pred_region
          %860 = dma.done [#allocation17], 8192
        $region152: #{tpu_custom_call.1} parent=107 // pred_fallthru
          _
        // Predicated region
        $region153: #{tpu_custom_call.1} parent=107 // pred_check
          %p861 = pneg %p370
        $region154: #{tpu_custom_call.1} parent=107 // pred_check_branch
          %863 = sbr.rel (%p861) target = $region156
        $region155: #{tpu_custom_call.1} parent=107 // pred_region
          %864 = dma.done [#allocation20], 4096
        $region156: #{tpu_custom_call.1} parent=107 // pred_fallthru
          _
        // Predicated region
        $region157: #{tpu_custom_call.1} parent=107 // pred_check
          %p865 = pneg %p391
        $region158: #{tpu_custom_call.1} parent=107 // pred_check_branch
          %867 = sbr.rel (%p865) target = $region160
        $region159: #{tpu_custom_call.1} parent=107 // pred_region
          %868 = dma.done [#allocation20], 4096
        $region160: #{tpu_custom_call.1} parent=107 // pred_fallthru
          _
        // Predicated region
        $region161: #{tpu_custom_call.1} parent=107 // pred_check
          %p869 = pneg %p433
        $region162: #{tpu_custom_call.1} parent=107 // pred_check_branch
          %871 = sbr.rel (%p869) target = $region164
        $region163: #{tpu_custom_call.1} parent=107 // pred_region
          %872 = dma.done [#allocation23], 4096
        $region164: #{tpu_custom_call.1} parent=107 // pred_fallthru
          _
        // Predicated region
        $region165: #{tpu_custom_call.1} parent=107 // pred_check
          %p873 = pneg %p496
        $region166: #{tpu_custom_call.1} parent=107 // pred_check_branch
          %875 = sbr.rel (%p873) target = $region168
        $region167: #{tpu_custom_call.1} parent=107 // pred_region
          %876 = dma.done [#allocation23], 2048
        $region168: #{tpu_custom_call.1} parent=107 // pred_fallthru
          _
        %s877 = sand.u32 %s53, 1
        %s878 = scalar_lea.sflag [#allocation3], %s877
        %s879 = sand.u32 %s53, 1
        %s880 = smul.addr %s879, 16
        %s881 = scalar_lea.vmem [#allocation2], %s880
        %p882 = pneg %p66
        %p883 = pneg %p63
        %s884 = sand.u32 %s45, 1
        %s885 = scalar_lea.sflag [#allocation5], %s884
        %s886 = sand.u32 %s79, 1
        %s887 = smul.addr %s886, 8
        %s888 = scalar_lea.vmem [#allocation4], %s887
        %p889 = pneg %p92
        %p890 = pneg %p89
        %s891 = sand.u32 %s45, 1
        %s892 = scalar_lea.sflag [#allocation5], %s891
        %s893 = sand.u32 %s105, 1
        %s894 = smul.addr %s893, 4
        %s895 = scalar_lea.vmem [#allocation6], %s894
        %p896 = pneg %p118
        %p897 = pneg %p115
        %p898 = pneg %p139
        %p899 = pneg %p136
        %p900 = pneg %p160
        %p901 = pneg %p157
        %p902 = pneg %p181
        %p903 = pneg %p178
        %p904 = pneg %p202
        %p905 = pneg %p199
        %p906 = pneg %p223
        %p907 = pneg %p220
        %p908 = pneg %p244
        %p909 = pneg %p241
        %p910 = pneg %p265
        %p911 = pneg %p262
        %p912 = pneg %p286
        %p913 = pneg %p283
        %p914 = pneg %p307
        %p915 = pneg %p304
        %p916 = pneg %p328
        %p917 = pneg %p325
        %p918 = pneg %p349
        %p919 = pneg %p346
        %p920 = pneg %p370
        %p921 = pneg %p367
        %p922 = pneg %p391
        %p923 = pneg %p388
        %p924 = pneg %p412
        %p925 = pneg %p409
        %p926 = pneg %p433
        %p927 = pneg %p430
        %p928 = pneg %p454
        %p929 = pneg %p451
        %p930 = pneg %p475
        %p931 = pneg %p472
        %p932 = pneg %p496
        %p933 = pneg %p493
        %p934 = pneg %p517
        %p935 = pneg %p514
        %p936 = pneg %p543
        %p937 = pneg %p540
        %p938 = scmp.lt.s32.totalorder %s45, 1
        %s939 = scalar_select %p938, %s45, 1
        %s940 = smul.addr %s939, 8
        %s941 = scalar_lea.vmem %s22, %s940
        %p942 = scmp.lt.s32.totalorder %s45, 1
        %s943 = scalar_select %p942, %s45, 1
        %s944 = smul.addr %s943, 8
        %s945 = scalar_lea.vmem %s22, %s944
        %v947 = vld [vmem:[%s806] sm:$0xff]
        %v948 = vld [vmem:[%s806 + $0x8] sm:$0xff]
        %v949 = vld [vmem:[#allocation7] sm:$0x1]
        %v951 = vlaneseq
        %v952 = vshrl.u32 %v951, 7
        %v953 = vsub.s32 0, %v952
        %v954 = vrot.slane %v949, %v953
        %v956 = vsub.f32 %v947, %v954
        %v957 = vsub.f32 %v948, %v954
        %v958 = vld [vmem:[#allocation9] sm:$0x1]
        %v960 = vlaneseq
        %v961 = vshrl.u32 %v960, 7
        %v962 = vsub.s32 0, %v961
        %v963 = vrot.slane %v958, %v962
        %v965 = vmul.f32 %v956, %v963
        %v966 = vmul.f32 %v957, %v963
        %v967 = vpack.c.bf16 %v966, %v965
        %v968 = vld [vmem:[%s815] sm:$0xf]
        %v969 = vld [vmem:[%s815 + $0x4] sm:$0xf]
        %v972 = vunpack.c.l.b16 %v968
        %v973 = vunpack.c.l.b16 %v969
        %v974 = vpack.c.b16 %v973, %v972
        %vm975 = vcmask 130048
        %v977 = vsel %vm975, %v974, 0
        %979 = vmatprep.subr.bf16.mxu0 0
        %980 = vmatpush1.bf16.msra.mxu0 0
        %981 = vmatprep.subr.bf16.mxu0 0
        %982 = vmatpush1.bf16.msra.mxu0 0
        %983 = vmatprep.subr.bf16.mxu0 0
        %984 = vmatpush1.bf16.msra.mxu0 0
        %985 = vmatprep.subr.bf16.mxu0 0
        %986 = vmatpush1.bf16.msra.mxu0 0
        %987 = vmatprep.subr.bf16.mxu0 0
        %988 = vmatpush1.bf16.msra.mxu0 0
        %989 = vmatprep.subr.bf16.mxu0 0
        %990 = vmatpush1.bf16.msra.mxu0 0
        %991 = vmatprep.subr.bf16.mxu0 0
        %992 = vmatpush1.bf16.msra.mxu0 0
        %993 = vmatprep.subr.bf16.mxu0 0
        %994 = vmatpush1.bf16.msra.mxu0 %v967
        %995 = vmatprep.subr.bf16.mxu0 0
        %996 = vmatpush2.bf16.msra.mxu0 0
        %997 = vmatprep.subr.bf16.mxu0 0
        %998 = vmatpush2.bf16.msra.mxu0 0
        %999 = vmatprep.subr.bf16.mxu0 0
        %1000 = vmatpush2.bf16.msra.mxu0 0
        %1001 = vmatprep.subr.bf16.mxu0 0
        %1002 = vmatpush2.bf16.msra.mxu0 0
        %1003 = vmatprep.subr.bf16.mxu0 0
        %1004 = vmatpush2.bf16.msra.mxu0 0
        %1005 = vmatprep.subr.bf16.mxu0 0
        %1006 = vmatpush2.bf16.msra.mxu0 0
        %1007 = vmatprep.subr.bf16.mxu0 0
        %1008 = vmatpush2.bf16.msra.mxu0 0
        %1009 = vmatprep.subr.bf16.mxu0 0
        %1010 = vmatpush2.bf16.msra.mxu0 0
        %1011 = vmatprep.mubr.bf16.mxu0 0
        %1012 = vmatmul.mubr.bf16.gmra.mxu0 %v977
        %v1013 = vpop.f32.mrf.mxu0
        %v1014 = vadd.f32 0.0, %v1013
        %v1015 = vpop.f32.mrf.mxu0
        %v1016 = vpop.f32.mrf.mxu0
        %v1017 = vadd.f32 0.0, %v1016
        %v1018 = vpop.f32.mrf.mxu0
        %1019 = vdwg.mxu0
        %v1020 = vld [vmem:[#allocation10] sm:$0xff]
        %v1021 = vld [vmem:[#allocation10 + $0x8] sm:$0xff]
        %v1022 = vld [vmem:[#allocation10 + $0x10] sm:$0xff]
        %v1023 = vld [vmem:[#allocation10 + $0x18] sm:$0xff]
        %v1024 = vld [vmem:[#allocation10 + $0x20] sm:$0xff]
        %v1025 = vld [vmem:[#allocation10 + $0x28] sm:$0xff]
        %v1026 = vld [vmem:[#allocation10 + $0x30] sm:$0xff]
        %v1027 = vld [vmem:[#allocation10 + $0x38] sm:$0xff]
        %v1028 = vpack.c.bf16 %v1017, %v1014
        %v1029 = vld [vmem:[#allocation12] sm:$0xff]
        %v1030 = vld [vmem:[#allocation12 + $0x8] sm:$0xff]
        %v1031 = vld [vmem:[#allocation12 + $0x10] sm:$0xff]
        %v1032 = vld [vmem:[#allocation12 + $0x18] sm:$0xff]
        %v1033 = vld [vmem:[#allocation12 + $0x20] sm:$0xff]
        %v1034 = vld [vmem:[#allocation12 + $0x28] sm:$0xff]
        %v1035 = vld [vmem:[#allocation12 + $0x30] sm:$0xff]
        %v1036 = vld [vmem:[#allocation12 + $0x38] sm:$0xff]
        %v1045 = vunpack.c.l.b16 %v1029
        %v1046 = vunpack.c.h.b16 %v1029
        %v1047 = vunpack.c.l.b16 %v1030
        %v1048 = vunpack.c.h.b16 %v1030
        %v1049 = vunpack.c.l.b16 %v1031
        %v1050 = vunpack.c.h.b16 %v1031
        %v1051 = vunpack.c.l.b16 %v1032
        %v1052 = vunpack.c.h.b16 %v1032
        %v1053 = vunpack.c.l.b16 %v1033
        %v1054 = vunpack.c.h.b16 %v1033
        %v1055 = vunpack.c.l.b16 %v1034
        %v1056 = vunpack.c.h.b16 %v1034
        %v1057 = vunpack.c.l.b16 %v1035
        %v1058 = vunpack.c.h.b16 %v1035
        %v1059 = vunpack.c.l.b16 %v1036
        %v1060 = vunpack.c.h.b16 %v1036
        %v1061 = vpack.c.b16 %v1049, %v1045
        %v1062 = vpack.c.b16 %v1050, %v1046
        %v1063 = vpack.c.b16 %v1051, %v1047
        %v1064 = vpack.c.b16 %v1052, %v1048
        %v1065 = vpack.c.b16 %v1057, %v1053
        %v1066 = vpack.c.b16 %v1058, %v1054
        %v1067 = vpack.c.b16 %v1059, %v1055
        %v1068 = vpack.c.b16 %v1060, %v1056
        %vm1077 = vcmask 261120
        %v1079 = vsel %vm1077, %v1028, 0
        %1081 = vmatprep.subr.bf16.mxu0 0
        %1082 = vmatpush1.bf16.msra.mxu0 0
        %1083 = vmatprep.subr.bf16.mxu0 0
        %1084 = vmatpush1.bf16.msra.mxu0 0
        %1085 = vmatprep.subr.bf16.mxu0 0
        %1086 = vmatpush1.bf16.msra.mxu0 0
        %1087 = vmatprep.subr.bf16.mxu0 0
        %1088 = vmatpush1.bf16.msra.mxu0 0
        %1089 = vmatprep.subr.bf16.mxu0 0
        %1090 = vmatpush1.bf16.msra.mxu0 0
        %1091 = vmatprep.subr.bf16.mxu0 0
        %1092 = vmatpush1.bf16.msra.mxu0 0
        %1093 = vmatprep.subr.bf16.mxu0 %v1066
        %1094 = vmatpush1.bf16.msra.mxu0 %v1065
        %1095 = vmatprep.subr.bf16.mxu0 %v1062
        %1096 = vmatpush1.bf16.msra.mxu0 %v1061
        %1097 = vmatprep.subr.bf16.mxu0 0
        %1098 = vmatpush2.bf16.msra.mxu0 0
        %1099 = vmatprep.subr.bf16.mxu0 0
        %1100 = vmatpush2.bf16.msra.mxu0 0
        %1101 = vmatprep.subr.bf16.mxu0 0
        %1102 = vmatpush2.bf16.msra.mxu0 0
        %1103 = vmatprep.subr.bf16.mxu0 0
        %1104 = vmatpush2.bf16.msra.mxu0 0
        %1105 = vmatprep.subr.bf16.mxu0 0
        %1106 = vmatpush2.bf16.msra.mxu0 0
        %1107 = vmatprep.subr.bf16.mxu0 0
        %1108 = vmatpush2.bf16.msra.mxu0 0
        %1109 = vmatprep.subr.bf16.mxu0 0
        %1110 = vmatpush2.bf16.msra.mxu0 0
        %1111 = vmatprep.subr.bf16.mxu0 0
        %1112 = vmatpush2.bf16.msra.mxu0 0
        %1113 = vmatprep.mubr.bf16.mxu0 0
        %1114 = vmatmul.mubr.bf16.gmra.mxu0 %v1079
        %v1115 = vpop.f32.mrf.mxu0
        %v1116 = vadd.f32 0.0, %v1115
        %v1117 = vpop.f32.mrf.mxu0
        %v1118 = vadd.f32 0.0, %v1117
        %v1119 = vpop.f32.mrf.mxu0
        %v1120 = vadd.f32 0.0, %v1119
        %v1121 = vpop.f32.mrf.mxu0
        %v1122 = vadd.f32 0.0, %v1121
        %1123 = vdwg.mxu0
        %1124 = vmatprep.subr.bf16.mxu0 0
        %1125 = vmatpush1.bf16.msra.mxu0 0
        %1126 = vmatprep.subr.bf16.mxu0 0
        %1127 = vmatpush1.bf16.msra.mxu0 0
        %1128 = vmatprep.subr.bf16.mxu0 0
        %1129 = vmatpush1.bf16.msra.mxu0 0
        %1130 = vmatprep.subr.bf16.mxu0 0
        %1131 = vmatpush1.bf16.msra.mxu0 0
        %1132 = vmatprep.subr.bf16.mxu0 0
        %1133 = vmatpush1.bf16.msra.mxu0 0
        %1134 = vmatprep.subr.bf16.mxu0 0
        %1135 = vmatpush1.bf16.msra.mxu0 0
        %1136 = vmatprep.subr.bf16.mxu0 %v1068
        %1137 = vmatpush1.bf16.msra.mxu0 %v1067
        %1138 = vmatprep.subr.bf16.mxu0 %v1064
        %1139 = vmatpush1.bf16.msra.mxu0 %v1063
        %1140 = vmatprep.subr.bf16.mxu0 0
        %1141 = vmatpush2.bf16.msra.mxu0 0
        %1142 = vmatprep.subr.bf16.mxu0 0
        %1143 = vmatpush2.bf16.msra.mxu0 0
        %1144 = vmatprep.subr.bf16.mxu0 0
        %1145 = vmatpush2.bf16.msra.mxu0 0
        %1146 = vmatprep.subr.bf16.mxu0 0
        %1147 = vmatpush2.bf16.msra.mxu0 0
        %1148 = vmatprep.subr.bf16.mxu0 0
        %1149 = vmatpush2.bf16.msra.mxu0 0
        %1150 = vmatprep.subr.bf16.mxu0 0
        %1151 = vmatpush2.bf16.msra.mxu0 0
        %1152 = vmatprep.subr.bf16.mxu0 0
        %1153 = vmatpush2.bf16.msra.mxu0 0
        %1154 = vmatprep.subr.bf16.mxu0 0
        %1155 = vmatpush2.bf16.msra.mxu0 0
        %1156 = vmatprep.mubr.bf16.mxu0 0
        %1157 = vmatmul.mubr.bf16.gmra.mxu0 %v1079
        %v1158 = vpop.f32.mrf.mxu0
        %v1159 = vadd.f32 0.0, %v1158
        %v1160 = vpop.f32.mrf.mxu0
        %v1161 = vadd.f32 0.0, %v1160
        %v1162 = vpop.f32.mrf.mxu0
        %v1163 = vadd.f32 0.0, %v1162
        %v1164 = vpop.f32.mrf.mxu0
        %v1165 = vadd.f32 0.0, %v1164
        %1166 = vdwg.mxu0
        %v1175 = vunpack.c.l.b16 %v1020
        %v1176 = vunpack.c.h.b16 %v1020
        %v1177 = vunpack.c.l.b16 %v1021
        %v1178 = vunpack.c.h.b16 %v1021
        %v1179 = vunpack.c.l.b16 %v1022
        %v1180 = vunpack.c.h.b16 %v1022
        %v1181 = vunpack.c.l.b16 %v1023
        %v1182 = vunpack.c.h.b16 %v1023
        %v1183 = vunpack.c.l.b16 %v1024
        %v1184 = vunpack.c.h.b16 %v1024
        %v1185 = vunpack.c.l.b16 %v1025
        %v1186 = vunpack.c.h.b16 %v1025
        %v1187 = vunpack.c.l.b16 %v1026
        %v1188 = vunpack.c.h.b16 %v1026
        %v1189 = vunpack.c.l.b16 %v1027
        %v1190 = vunpack.c.h.b16 %v1027
        %v1191 = vpack.c.b16 %v1179, %v1175
        %v1192 = vpack.c.b16 %v1180, %v1176
        %v1193 = vpack.c.b16 %v1181, %v1177
        %v1194 = vpack.c.b16 %v1182, %v1178
        %v1195 = vpack.c.b16 %v1187, %v1183
        %v1196 = vpack.c.b16 %v1188, %v1184
        %v1197 = vpack.c.b16 %v1189, %v1185
        %v1198 = vpack.c.b16 %v1190, %v1186
        %v1208 = vsel %vm1077, %v967, 0
        %1210 = vmatprep.subr.bf16.mxu0 0
        %1211 = vmatpush1.bf16.msra.mxu0 0
        %1212 = vmatprep.subr.bf16.mxu0 0
        %1213 = vmatpush1.bf16.msra.mxu0 0
        %1214 = vmatprep.subr.bf16.mxu0 0
        %1215 = vmatpush1.bf16.msra.mxu0 0
        %1216 = vmatprep.subr.bf16.mxu0 0
        %1217 = vmatpush1.bf16.msra.mxu0 0
        %1218 = vmatprep.subr.bf16.mxu0 0
        %1219 = vmatpush1.bf16.msra.mxu0 0
        %1220 = vmatprep.subr.bf16.mxu0 0
        %1221 = vmatpush1.bf16.msra.mxu0 0
        %1222 = vmatprep.subr.bf16.mxu0 %v1196
        %1223 = vmatpush1.bf16.msra.mxu0 %v1195
        %1224 = vmatprep.subr.bf16.mxu0 %v1192
        %1225 = vmatpush1.bf16.msra.mxu0 %v1191
        %1226 = vmatprep.subr.bf16.mxu0 0
        %1227 = vmatpush2.bf16.msra.mxu0 0
        %1228 = vmatprep.subr.bf16.mxu0 0
        %1229 = vmatpush2.bf16.msra.mxu0 0
        %1230 = vmatprep.subr.bf16.mxu0 0
        %1231 = vmatpush2.bf16.msra.mxu0 0
        %1232 = vmatprep.subr.bf16.mxu0 0
        %1233 = vmatpush2.bf16.msra.mxu0 0
        %1234 = vmatprep.subr.bf16.mxu0 0
        %1235 = vmatpush2.bf16.msra.mxu0 0
        %1236 = vmatprep.subr.bf16.mxu0 0
        %1237 = vmatpush2.bf16.msra.mxu0 0
        %1238 = vmatprep.subr.bf16.mxu0 0
        %1239 = vmatpush2.bf16.msra.mxu0 0
        %1240 = vmatprep.subr.bf16.mxu0 0
        %1241 = vmatpush2.bf16.msra.mxu0 0
        %1242 = vmatprep.mubr.bf16.mxu0 0
        %1243 = vmatmul.mubr.bf16.gmra.mxu0 %v1208
        %v1244 = vpop.f32.mrf.mxu0
        %v1245 = vadd.f32 %v1116, %v1244
        %v1246 = vpop.f32.mrf.mxu0
        %v1247 = vadd.f32 %v1118, %v1246
        %v1248 = vpop.f32.mrf.mxu0
        %v1249 = vadd.f32 %v1120, %v1248
        %v1250 = vpop.f32.mrf.mxu0
        %v1251 = vadd.f32 %v1122, %v1250
        %1252 = vdwg.mxu0
        %1253 = vmatprep.subr.bf16.mxu0 0
        %1254 = vmatpush1.bf16.msra.mxu0 0
        %1255 = vmatprep.subr.bf16.mxu0 0
        %1256 = vmatpush1.bf16.msra.mxu0 0
        %1257 = vmatprep.subr.bf16.mxu0 0
        %1258 = vmatpush1.bf16.msra.mxu0 0
        %1259 = vmatprep.subr.bf16.mxu0 0
        %1260 = vmatpush1.bf16.msra.mxu0 0
        %1261 = vmatprep.subr.bf16.mxu0 0
        %1262 = vmatpush1.bf16.msra.mxu0 0
        %1263 = vmatprep.subr.bf16.mxu0 0
        %1264 = vmatpush1.bf16.msra.mxu0 0
        %1265 = vmatprep.subr.bf16.mxu0 %v1198
        %1266 = vmatpush1.bf16.msra.mxu0 %v1197
        %1267 = vmatprep.subr.bf16.mxu0 %v1194
        %1268 = vmatpush1.bf16.msra.mxu0 %v1193
        %1269 = vmatprep.subr.bf16.mxu0 0
        %1270 = vmatpush2.bf16.msra.mxu0 0
        %1271 = vmatprep.subr.bf16.mxu0 0
        %1272 = vmatpush2.bf16.msra.mxu0 0
        %1273 = vmatprep.subr.bf16.mxu0 0
        %1274 = vmatpush2.bf16.msra.mxu0 0
        %1275 = vmatprep.subr.bf16.mxu0 0
        %1276 = vmatpush2.bf16.msra.mxu0 0
        %1277 = vmatprep.subr.bf16.mxu0 0
        %1278 = vmatpush2.bf16.msra.mxu0 0
        %1279 = vmatprep.subr.bf16.mxu0 0
        %1280 = vmatpush2.bf16.msra.mxu0 0
        %1281 = vmatprep.subr.bf16.mxu0 0
        %1282 = vmatpush2.bf16.msra.mxu0 0
        %1283 = vmatprep.subr.bf16.mxu0 0
        %1284 = vmatpush2.bf16.msra.mxu0 0
        %1285 = vmatprep.mubr.bf16.mxu0 0
        %1286 = vmatmul.mubr.bf16.gmra.mxu0 %v1208
        %v1287 = vpop.f32.mrf.mxu0
        %v1288 = vadd.f32 %v1159, %v1287
        %v1289 = vpop.f32.mrf.mxu0
        %v1290 = vadd.f32 %v1161, %v1289
        %v1291 = vpop.f32.mrf.mxu0
        %v1292 = vadd.f32 %v1163, %v1291
        %v1293 = vpop.f32.mrf.mxu0
        %v1294 = vadd.f32 %v1165, %v1293
        %1295 = vdwg.mxu0
        %v1296 = vld [vmem:[%s7] sm:$0xf]
        %v1298 = vlaneseq
        %v1299 = vshrl.u32 %v1298, 7
        %v1300 = vsub.s32 0, %v1299
        %v1301 = vrot.slane %v1296, %v1300
        %v1302 = vlaneseq
        %v1303 = vshrl.u32 %v1302, 7
        %v1304 = vsub.s32 1, %v1303
        %v1305 = vrot.slane %v1296, %v1304
        %v1306 = vlaneseq
        %v1307 = vshrl.u32 %v1306, 7
        %v1308 = vsub.s32 2, %v1307
        %v1309 = vrot.slane %v1296, %v1308
        %v1310 = vlaneseq
        %v1311 = vshrl.u32 %v1310, 7
        %v1312 = vsub.s32 3, %v1311
        %v1313 = vrot.slane %v1296, %v1312
        %v1318 = vadd.f32 %v1245, %v1301
        %v1319 = vadd.f32 %v1247, %v1305
        %v1320 = vadd.f32 %v1288, %v1309
        %v1321 = vadd.f32 %v1290, %v1313
        %v1322 = vadd.f32 %v1249, %v1301
        %v1323 = vadd.f32 %v1251, %v1305
        %v1324 = vadd.f32 %v1292, %v1309
        %v1325 = vadd.f32 %v1294, %v1313
        %v1326 = vmax.f32 %v1318, 0.0
        %v1327 = vmax.f32 %v1319, 0.0
        %v1328 = vmax.f32 %v1320, 0.0
        %v1329 = vmax.f32 %v1321, 0.0
        %v1330 = vmax.f32 %v1322, 0.0
        %v1331 = vmax.f32 %v1323, 0.0
        %v1332 = vmax.f32 %v1324, 0.0
        %v1333 = vmax.f32 %v1325, 0.0
        %v1334 = vpack.c.bf16 %v1330, %v1326
        %v1335 = vpack.c.bf16 %v1331, %v1327
        %v1336 = vpack.c.bf16 %v1332, %v1328
        %v1337 = vpack.c.bf16 %v1333, %v1329
        %1338 = vmatprep.subr.bf16.mxu0 0
        %1339 = vmatpush1.bf16.msra.mxu0 0
        %1340 = vmatprep.subr.bf16.mxu0 0
        %1341 = vmatpush1.bf16.msra.mxu0 0
        %1342 = vmatprep.subr.bf16.mxu0 0
        %1343 = vmatpush1.bf16.msra.mxu0 0
        %1344 = vmatprep.subr.bf16.mxu0 0
        %1345 = vmatpush1.bf16.msra.mxu0 0
        %1346 = vmatprep.subr.bf16.mxu0 0
        %1347 = vmatpush1.bf16.msra.mxu0 0
        %1348 = vmatprep.subr.bf16.mxu0 0
        %1349 = vmatpush1.bf16.msra.mxu0 0
        %1350 = vmatprep.subr.bf16.mxu0 0
        %1351 = vmatpush1.bf16.msra.mxu0 0
        %1352 = vmatprep.subr.bf16.mxu0 %v1335
        %1353 = vmatpush1.bf16.msra.mxu0 %v1334
        %1354 = vmatprep.subr.bf16.mxu0 0
        %1355 = vmatpush2.bf16.msra.mxu0 0
        %1356 = vmatprep.subr.bf16.mxu0 0
        %1357 = vmatpush2.bf16.msra.mxu0 0
        %1358 = vmatprep.subr.bf16.mxu0 0
        %1359 = vmatpush2.bf16.msra.mxu0 0
        %1360 = vmatprep.subr.bf16.mxu0 0
        %1361 = vmatpush2.bf16.msra.mxu0 0
        %1362 = vmatprep.subr.bf16.mxu0 0
        %1363 = vmatpush2.bf16.msra.mxu0 0
        %1364 = vmatprep.subr.bf16.mxu0 0
        %1365 = vmatpush2.bf16.msra.mxu0 0
        %1366 = vmatprep.subr.bf16.mxu0 0
        %1367 = vmatpush2.bf16.msra.mxu0 0
        %1368 = vmatprep.subr.bf16.mxu0 0
        %1369 = vmatpush2.bf16.msra.mxu0 0
        %1370 = vmatprep.mubr.bf16.mxu0 0
        %1371 = vmatmul.mubr.bf16.gmra.mxu0 %v977
        %v1372 = vpop.f32.mrf.mxu0
        %v1373 = vadd.f32 0.0, %v1372
        %v1374 = vpop.f32.mrf.mxu0
        %v1375 = vadd.f32 0.0, %v1374
        %v1376 = vpop.f32.mrf.mxu0
        %v1377 = vadd.f32 0.0, %v1376
        %v1378 = vpop.f32.mrf.mxu0
        %v1379 = vadd.f32 0.0, %v1378
        %1380 = vdwg.mxu0
        %1381 = vmatprep.subr.bf16.mxu0 0
        %1382 = vmatpush1.bf16.msra.mxu0 0
        %1383 = vmatprep.subr.bf16.mxu0 0
        %1384 = vmatpush1.bf16.msra.mxu0 0
        %1385 = vmatprep.subr.bf16.mxu0 0
        %1386 = vmatpush1.bf16.msra.mxu0 0
        %1387 = vmatprep.subr.bf16.mxu0 0
        %1388 = vmatpush1.bf16.msra.mxu0 0
        %1389 = vmatprep.subr.bf16.mxu0 0
        %1390 = vmatpush1.bf16.msra.mxu0 0
        %1391 = vmatprep.subr.bf16.mxu0 0
        %1392 = vmatpush1.bf16.msra.mxu0 0
        %1393 = vmatprep.subr.bf16.mxu0 0
        %1394 = vmatpush1.bf16.msra.mxu0 0
        %1395 = vmatprep.subr.bf16.mxu0 %v1337
        %1396 = vmatpush1.bf16.msra.mxu0 %v1336
        %1397 = vmatprep.subr.bf16.mxu0 0
        %1398 = vmatpush2.bf16.msra.mxu0 0
        %1399 = vmatprep.subr.bf16.mxu0 0
        %1400 = vmatpush2.bf16.msra.mxu0 0
        %1401 = vmatprep.subr.bf16.mxu0 0
        %1402 = vmatpush2.bf16.msra.mxu0 0
        %1403 = vmatprep.subr.bf16.mxu0 0
        %1404 = vmatpush2.bf16.msra.mxu0 0
        %1405 = vmatprep.subr.bf16.mxu0 0
        %1406 = vmatpush2.bf16.msra.mxu0 0
        %1407 = vmatprep.subr.bf16.mxu0 0
        %1408 = vmatpush2.bf16.msra.mxu0 0
        %1409 = vmatprep.subr.bf16.mxu0 0
        %1410 = vmatpush2.bf16.msra.mxu0 0
        %1411 = vmatprep.subr.bf16.mxu0 0
        %1412 = vmatpush2.bf16.msra.mxu0 0
        %1413 = vmatprep.mubr.bf16.mxu0 0
        %1414 = vmatmul.mubr.bf16.gmra.mxu0 %v977
        %v1415 = vpop.f32.mrf.mxu0
        %v1416 = vadd.f32 0.0, %v1415
        %v1417 = vpop.f32.mrf.mxu0
        %v1418 = vadd.f32 0.0, %v1417
        %v1419 = vpop.f32.mrf.mxu0
        %v1420 = vadd.f32 0.0, %v1419
        %v1421 = vpop.f32.mrf.mxu0
        %v1422 = vadd.f32 0.0, %v1421
        %1423 = vdwg.mxu0
        %v1424 = vld [vmem:[#allocation13] sm:$0xff]
        %v1425 = vld [vmem:[#allocation13 + $0x8] sm:$0xff]
        %v1426 = vld [vmem:[#allocation13 + $0x10] sm:$0xff]
        %v1427 = vld [vmem:[#allocation13 + $0x18] sm:$0xff]
        %v1428 = vld [vmem:[#allocation13 + $0x20] sm:$0xff]
        %v1429 = vld [vmem:[#allocation13 + $0x28] sm:$0xff]
        %v1430 = vld [vmem:[#allocation13 + $0x30] sm:$0xff]
        %v1431 = vld [vmem:[#allocation13 + $0x38] sm:$0xff]
        %v1432 = vld [vmem:[#allocation13 + $0x40] sm:$0xff]
        %v1433 = vld [vmem:[#allocation13 + $0x48] sm:$0xff]
        %v1434 = vld [vmem:[#allocation13 + $0x50] sm:$0xff]
        %v1435 = vld [vmem:[#allocation13 + $0x58] sm:$0xff]
        %v1436 = vld [vmem:[#allocation13 + $0x60] sm:$0xff]
        %v1437 = vld [vmem:[#allocation13 + $0x68] sm:$0xff]
        %v1438 = vld [vmem:[#allocation13 + $0x70] sm:$0xff]
        %v1439 = vld [vmem:[#allocation13 + $0x78] sm:$0xff]
        %v1440 = vld [vmem:[#allocation13 + $0x80] sm:$0xff]
        %v1441 = vld [vmem:[#allocation13 + $0x88] sm:$0xff]
        %v1442 = vld [vmem:[#allocation13 + $0x90] sm:$0xff]
        %v1443 = vld [vmem:[#allocation13 + $0x98] sm:$0xff]
        %v1444 = vld [vmem:[#allocation13 + $0xa0] sm:$0xff]
        %v1445 = vld [vmem:[#allocation13 + $0xa8] sm:$0xff]
        %v1446 = vld [vmem:[#allocation13 + $0xb0] sm:$0xff]
        %v1447 = vld [vmem:[#allocation13 + $0xb8] sm:$0xff]
        %v1448 = vld [vmem:[#allocation13 + $0xc0] sm:$0xff]
        %v1449 = vld [vmem:[#allocation13 + $0xc8] sm:$0xff]
        %v1450 = vld [vmem:[#allocation13 + $0xd0] sm:$0xff]
        %v1451 = vld [vmem:[#allocation13 + $0xd8] sm:$0xff]
        %v1452 = vld [vmem:[#allocation13 + $0xe0] sm:$0xff]
        %v1453 = vld [vmem:[#allocation13 + $0xe8] sm:$0xff]
        %v1454 = vld [vmem:[#allocation13 + $0xf0] sm:$0xff]
        %v1455 = vld [vmem:[#allocation13 + $0xf8] sm:$0xff]
        %v1456 = vld [vmem:[#allocation13 + $0x100] sm:$0xff]
        %v1457 = vld [vmem:[#allocation13 + $0x108] sm:$0xff]
        %v1458 = vld [vmem:[#allocation13 + $0x110] sm:$0xff]
        %v1459 = vld [vmem:[#allocation13 + $0x118] sm:$0xff]
        %v1460 = vld [vmem:[#allocation13 + $0x120] sm:$0xff]
        %v1461 = vld [vmem:[#allocation13 + $0x128] sm:$0xff]
        %v1462 = vld [vmem:[#allocation13 + $0x130] sm:$0xff]
        %v1463 = vld [vmem:[#allocation13 + $0x138] sm:$0xff]
        %v1464 = vld [vmem:[#allocation13 + $0x140] sm:$0xff]
        %v1465 = vld [vmem:[#allocation13 + $0x148] sm:$0xff]
        %v1466 = vld [vmem:[#allocation13 + $0x150] sm:$0xff]
        %v1467 = vld [vmem:[#allocation13 + $0x158] sm:$0xff]
        %v1468 = vld [vmem:[#allocation13 + $0x160] sm:$0xff]
        %v1469 = vld [vmem:[#allocation13 + $0x168] sm:$0xff]
        %v1470 = vld [vmem:[#allocation13 + $0x170] sm:$0xff]
        %v1471 = vld [vmem:[#allocation13 + $0x178] sm:$0xff]
        %v1472 = vld [vmem:[#allocation13 + $0x180] sm:$0xff]
        %v1473 = vld [vmem:[#allocation13 + $0x188] sm:$0xff]
        %v1474 = vld [vmem:[#allocation13 + $0x190] sm:$0xff]
        %v1475 = vld [vmem:[#allocation13 + $0x198] sm:$0xff]
        %v1476 = vld [vmem:[#allocation13 + $0x1a0] sm:$0xff]
        %v1477 = vld [vmem:[#allocation13 + $0x1a8] sm:$0xff]
        %v1478 = vld [vmem:[#allocation13 + $0x1b0] sm:$0xff]
        %v1479 = vld [vmem:[#allocation13 + $0x1b8] sm:$0xff]
        %v1480 = vld [vmem:[#allocation13 + $0x1c0] sm:$0xff]
        %v1481 = vld [vmem:[#allocation13 + $0x1c8] sm:$0xff]
        %v1482 = vld [vmem:[#allocation13 + $0x1d0] sm:$0xff]
        %v1483 = vld [vmem:[#allocation13 + $0x1d8] sm:$0xff]
        %v1484 = vld [vmem:[#allocation13 + $0x1e0] sm:$0xff]
        %v1485 = vld [vmem:[#allocation13 + $0x1e8] sm:$0xff]
        %v1486 = vld [vmem:[#allocation13 + $0x1f0] sm:$0xff]
        %v1487 = vld [vmem:[#allocation13 + $0x1f8] sm:$0xff]
        %v1488 = vld [vmem:[#allocation13 + $0x200] sm:$0xff]
        %v1489 = vld [vmem:[#allocation13 + $0x208] sm:$0xff]
        %v1490 = vld [vmem:[#allocation13 + $0x210] sm:$0xff]
        %v1491 = vld [vmem:[#allocation13 + $0x218] sm:$0xff]
        %v1492 = vld [vmem:[#allocation13 + $0x220] sm:$0xff]
        %v1493 = vld [vmem:[#allocation13 + $0x228] sm:$0xff]
        %v1494 = vld [vmem:[#allocation13 + $0x230] sm:$0xff]
        %v1495 = vld [vmem:[#allocation13 + $0x238] sm:$0xff]
        %v1496 = vld [vmem:[#allocation13 + $0x240] sm:$0xff]
        %v1497 = vld [vmem:[#allocation13 + $0x248] sm:$0xff]
        %v1498 = vld [vmem:[#allocation13 + $0x250] sm:$0xff]
        %v1499 = vld [vmem:[#allocation13 + $0x258] sm:$0xff]
        %v1500 = vld [vmem:[#allocation13 + $0x260] sm:$0xff]
        %v1501 = vld [vmem:[#allocation13 + $0x268] sm:$0xff]
        %v1502 = vld [vmem:[#allocation13 + $0x270] sm:$0xff]
        %v1503 = vld [vmem:[#allocation13 + $0x278] sm:$0xff]
        %v1504 = vld [vmem:[#allocation13 + $0x280] sm:$0xff]
        %v1505 = vld [vmem:[#allocation13 + $0x288] sm:$0xff]
        %v1506 = vld [vmem:[#allocation13 + $0x290] sm:$0xff]
        %v1507 = vld [vmem:[#allocation13 + $0x298] sm:$0xff]
        %v1508 = vld [vmem:[#allocation13 + $0x2a0] sm:$0xff]
        %v1509 = vld [vmem:[#allocation13 + $0x2a8] sm:$0xff]
        %v1510 = vld [vmem:[#allocation13 + $0x2b0] sm:$0xff]
        %v1511 = vld [vmem:[#allocation13 + $0x2b8] sm:$0xff]
        %v1512 = vld [vmem:[#allocation13 + $0x2c0] sm:$0xff]
        %v1513 = vld [vmem:[#allocation13 + $0x2c8] sm:$0xff]
        %v1514 = vld [vmem:[#allocation13 + $0x2d0] sm:$0xff]
        %v1515 = vld [vmem:[#allocation13 + $0x2d8] sm:$0xff]
        %v1516 = vld [vmem:[#allocation13 + $0x2e0] sm:$0xff]
        %v1517 = vld [vmem:[#allocation13 + $0x2e8] sm:$0xff]
        %v1518 = vld [vmem:[#allocation13 + $0x2f0] sm:$0xff]
        %v1519 = vld [vmem:[#allocation13 + $0x2f8] sm:$0xff]
        %v1520 = vld [vmem:[#allocation13 + $0x300] sm:$0xff]
        %v1521 = vld [vmem:[#allocation13 + $0x308] sm:$0xff]
        %v1522 = vld [vmem:[#allocation13 + $0x310] sm:$0xff]
        %v1523 = vld [vmem:[#allocation13 + $0x318] sm:$0xff]
        %v1524 = vld [vmem:[#allocation13 + $0x320] sm:$0xff]
        %v1525 = vld [vmem:[#allocation13 + $0x328] sm:$0xff]
        %v1526 = vld [vmem:[#allocation13 + $0x330] sm:$0xff]
        %v1527 = vld [vmem:[#allocation13 + $0x338] sm:$0xff]
        %v1528 = vld [vmem:[#allocation13 + $0x340] sm:$0xff]
        %v1529 = vld [vmem:[#allocation13 + $0x348] sm:$0xff]
        %v1530 = vld [vmem:[#allocation13 + $0x350] sm:$0xff]
        %v1531 = vld [vmem:[#allocation13 + $0x358] sm:$0xff]
        %v1532 = vld [vmem:[#allocation13 + $0x360] sm:$0xff]
        %v1533 = vld [vmem:[#allocation13 + $0x368] sm:$0xff]
        %v1534 = vld [vmem:[#allocation13 + $0x370] sm:$0xff]
        %v1535 = vld [vmem:[#allocation13 + $0x378] sm:$0xff]
        %v1536 = vld [vmem:[#allocation13 + $0x380] sm:$0xff]
        %v1537 = vld [vmem:[#allocation13 + $0x388] sm:$0xff]
        %v1538 = vld [vmem:[#allocation13 + $0x390] sm:$0xff]
        %v1539 = vld [vmem:[#allocation13 + $0x398] sm:$0xff]
        %v1540 = vld [vmem:[#allocation13 + $0x3a0] sm:$0xff]
        %v1541 = vld [vmem:[#allocation13 + $0x3a8] sm:$0xff]
        %v1542 = vld [vmem:[#allocation13 + $0x3b0] sm:$0xff]
        %v1543 = vld [vmem:[#allocation13 + $0x3b8] sm:$0xff]
        %v1544 = vld [vmem:[#allocation13 + $0x3c0] sm:$0xff]
        %v1545 = vld [vmem:[#allocation13 + $0x3c8] sm:$0xff]
        %v1546 = vld [vmem:[#allocation13 + $0x3d0] sm:$0xff]
        %v1547 = vld [vmem:[#allocation13 + $0x3d8] sm:$0xff]
        %v1548 = vld [vmem:[#allocation13 + $0x3e0] sm:$0xff]
        %v1549 = vld [vmem:[#allocation13 + $0x3e8] sm:$0xff]
        %v1550 = vld [vmem:[#allocation13 + $0x3f0] sm:$0xff]
        %v1551 = vld [vmem:[#allocation13 + $0x3f8] sm:$0xff]
        %v1552 = vpack.c.bf16 %v1377, %v1373
        %v1553 = vpack.c.bf16 %v1379, %v1375
        %v1554 = vpack.c.bf16 %v1420, %v1416
        %v1555 = vpack.c.bf16 %v1422, %v1418
        %v1556 = vld [vmem:[#allocation15] sm:$0xff]
        %v1557 = vld [vmem:[#allocation15 + $0x8] sm:$0xff]
        %v1558 = vld [vmem:[#allocation15 + $0x10] sm:$0xff]
        %v1559 = vld [vmem:[#allocation15 + $0x18] sm:$0xff]
        %v1560 = vld [vmem:[#allocation15 + $0x20] sm:$0xff]
        %v1561 = vld [vmem:[#allocation15 + $0x28] sm:$0xff]
        %v1562 = vld [vmem:[#allocation15 + $0x30] sm:$0xff]
        %v1563 = vld [vmem:[#allocation15 + $0x38] sm:$0xff]
        %v1564 = vld [vmem:[#allocation15 + $0x40] sm:$0xff]
        %v1565 = vld [vmem:[#allocation15 + $0x48] sm:$0xff]
        %v1566 = vld [vmem:[#allocation15 + $0x50] sm:$0xff]
        %v1567 = vld [vmem:[#allocation15 + $0x58] sm:$0xff]
        %v1568 = vld [vmem:[#allocation15 + $0x60] sm:$0xff]
        %v1569 = vld [vmem:[#allocation15 + $0x68] sm:$0xff]
        %v1570 = vld [vmem:[#allocation15 + $0x70] sm:$0xff]
        %v1571 = vld [vmem:[#allocation15 + $0x78] sm:$0xff]
        %v1572 = vld [vmem:[#allocation15 + $0x80] sm:$0xff]
        %v1573 = vld [vmem:[#allocation15 + $0x88] sm:$0xff]
        %v1574 = vld [vmem:[#allocation15 + $0x90] sm:$0xff]
        %v1575 = vld [vmem:[#allocation15 + $0x98] sm:$0xff]
        %v1576 = vld [vmem:[#allocation15 + $0xa0] sm:$0xff]
        %v1577 = vld [vmem:[#allocation15 + $0xa8] sm:$0xff]
        %v1578 = vld [vmem:[#allocation15 + $0xb0] sm:$0xff]
        %v1579 = vld [vmem:[#allocation15 + $0xb8] sm:$0xff]
        %v1580 = vld [vmem:[#allocation15 + $0xc0] sm:$0xff]
        %v1581 = vld [vmem:[#allocation15 + $0xc8] sm:$0xff]
        %v1582 = vld [vmem:[#allocation15 + $0xd0] sm:$0xff]
        %v1583 = vld [vmem:[#allocation15 + $0xd8] sm:$0xff]
        %v1584 = vld [vmem:[#allocation15 + $0xe0] sm:$0xff]
        %v1585 = vld [vmem:[#allocation15 + $0xe8] sm:$0xff]
        %v1586 = vld [vmem:[#allocation15 + $0xf0] sm:$0xff]
        %v1587 = vld [vmem:[#allocation15 + $0xf8] sm:$0xff]
        %v1588 = vld [vmem:[#allocation15 + $0x100] sm:$0xff]
        %v1589 = vld [vmem:[#allocation15 + $0x108] sm:$0xff]
        %v1590 = vld [vmem:[#allocation15 + $0x110] sm:$0xff]
        %v1591 = vld [vmem:[#allocation15 + $0x118] sm:$0xff]
        %v1592 = vld [vmem:[#allocation15 + $0x120] sm:$0xff]
        %v1593 = vld [vmem:[#allocation15 + $0x128] sm:$0xff]
        %v1594 = vld [vmem:[#allocation15 + $0x130] sm:$0xff]
        %v1595 = vld [vmem:[#allocation15 + $0x138] sm:$0xff]
        %v1596 = vld [vmem:[#allocation15 + $0x140] sm:$0xff]
        %v1597 = vld [vmem:[#allocation15 + $0x148] sm:$0xff]
        %v1598 = vld [vmem:[#allocation15 + $0x150] sm:$0xff]
        %v1599 = vld [vmem:[#allocation15 + $0x158] sm:$0xff]
        %v1600 = vld [vmem:[#allocation15 + $0x160] sm:$0xff]
        %v1601 = vld [vmem:[#allocation15 + $0x168] sm:$0xff]
        %v1602 = vld [vmem:[#allocation15 + $0x170] sm:$0xff]
        %v1603 = vld [vmem:[#allocation15 + $0x178] sm:$0xff]
        %v1604 = vld [vmem:[#allocation15 + $0x180] sm:$0xff]
        %v1605 = vld [vmem:[#allocation15 + $0x188] sm:$0xff]
        %v1606 = vld [vmem:[#allocation15 + $0x190] sm:$0xff]
        %v1607 = vld [vmem:[#allocation15 + $0x198] sm:$0xff]
        %v1608 = vld [vmem:[#allocation15 + $0x1a0] sm:$0xff]
        %v1609 = vld [vmem:[#allocation15 + $0x1a8] sm:$0xff]
        %v1610 = vld [vmem:[#allocation15 + $0x1b0] sm:$0xff]
        %v1611 = vld [vmem:[#allocation15 + $0x1b8] sm:$0xff]
        %v1612 = vld [vmem:[#allocation15 + $0x1c0] sm:$0xff]
        %v1613 = vld [vmem:[#allocation15 + $0x1c8] sm:$0xff]
        %v1614 = vld [vmem:[#allocation15 + $0x1d0] sm:$0xff]
        %v1615 = vld [vmem:[#allocation15 + $0x1d8] sm:$0xff]
        %v1616 = vld [vmem:[#allocation15 + $0x1e0] sm:$0xff]
        %v1617 = vld [vmem:[#allocation15 + $0x1e8] sm:$0xff]
        %v1618 = vld [vmem:[#allocation15 + $0x1f0] sm:$0xff]
        %v1619 = vld [vmem:[#allocation15 + $0x1f8] sm:$0xff]
        %v1620 = vld [vmem:[#allocation15 + $0x200] sm:$0xff]
        %v1621 = vld [vmem:[#allocation15 + $0x208] sm:$0xff]
        %v1622 = vld [vmem:[#allocation15 + $0x210] sm:$0xff]
        %v1623 = vld [vmem:[#allocation15 + $0x218] sm:$0xff]
        %v1624 = vld [vmem:[#allocation15 + $0x220] sm:$0xff]
        %v1625 = vld [vmem:[#allocation15 + $0x228] sm:$0xff]
        %v1626 = vld [vmem:[#allocation15 + $0x230] sm:$0xff]
        %v1627 = vld [vmem:[#allocation15 + $0x238] sm:$0xff]
        %v1628 = vld [vmem:[#allocation15 + $0x240] sm:$0xff]
        %v1629 = vld [vmem:[#allocation15 + $0x248] sm:$0xff]
        %v1630 = vld [vmem:[#allocation15 + $0x250] sm:$0xff]
        %v1631 = vld [vmem:[#allocation15 + $0x258] sm:$0xff]
        %v1632 = vld [vmem:[#allocation15 + $0x260] sm:$0xff]
        %v1633 = vld [vmem:[#allocation15 + $0x268] sm:$0xff]
        %v1634 = vld [vmem:[#allocation15 + $0x270] sm:$0xff]
        %v1635 = vld [vmem:[#allocation15 + $0x278] sm:$0xff]
        %v1636 = vld [vmem:[#allocation15 + $0x280] sm:$0xff]
        %v1637 = vld [vmem:[#allocation15 + $0x288] sm:$0xff]
        %v1638 = vld [vmem:[#allocation15 + $0x290] sm:$0xff]
        %v1639 = vld [vmem:[#allocation15 + $0x298] sm:$0xff]
        %v1640 = vld [vmem:[#allocation15 + $0x2a0] sm:$0xff]
        %v1641 = vld [vmem:[#allocation15 + $0x2a8] sm:$0xff]
        %v1642 = vld [vmem:[#allocation15 + $0x2b0] sm:$0xff]
        %v1643 = vld [vmem:[#allocation15 + $0x2b8] sm:$0xff]
        %v1644 = vld [vmem:[#allocation15 + $0x2c0] sm:$0xff]
        %v1645 = vld [vmem:[#allocation15 + $0x2c8] sm:$0xff]
        %v1646 = vld [vmem:[#allocation15 + $0x2d0] sm:$0xff]
        %v1647 = vld [vmem:[#allocation15 + $0x2d8] sm:$0xff]
        %v1648 = vld [vmem:[#allocation15 + $0x2e0] sm:$0xff]
        %v1649 = vld [vmem:[#allocation15 + $0x2e8] sm:$0xff]
        %v1650 = vld [vmem:[#allocation15 + $0x2f0] sm:$0xff]
        %v1651 = vld [vmem:[#allocation15 + $0x2f8] sm:$0xff]
        %v1652 = vld [vmem:[#allocation15 + $0x300] sm:$0xff]
        %v1653 = vld [vmem:[#allocation15 + $0x308] sm:$0xff]
        %v1654 = vld [vmem:[#allocation15 + $0x310] sm:$0xff]
        %v1655 = vld [vmem:[#allocation15 + $0x318] sm:$0xff]
        %v1656 = vld [vmem:[#allocation15 + $0x320] sm:$0xff]
        %v1657 = vld [vmem:[#allocation15 + $0x328] sm:$0xff]
        %v1658 = vld [vmem:[#allocation15 + $0x330] sm:$0xff]
        %v1659 = vld [vmem:[#allocation15 + $0x338] sm:$0xff]
        %v1660 = vld [vmem:[#allocation15 + $0x340] sm:$0xff]
        %v1661 = vld [vmem:[#allocation15 + $0x348] sm:$0xff]
        %v1662 = vld [vmem:[#allocation15 + $0x350] sm:$0xff]
        %v1663 = vld [vmem:[#allocation15 + $0x358] sm:$0xff]
        %v1664 = vld [vmem:[#allocation15 + $0x360] sm:$0xff]
        %v1665 = vld [vmem:[#allocation15 + $0x368] sm:$0xff]
        %v1666 = vld [vmem:[#allocation15 + $0x370] sm:$0xff]
        %v1667 = vld [vmem:[#allocation15 + $0x378] sm:$0xff]
        %v1668 = vld [vmem:[#allocation15 + $0x380] sm:$0xff]
        %v1669 = vld [vmem:[#allocation15 + $0x388] sm:$0xff]
        %v1670 = vld [vmem:[#allocation15 + $0x390] sm:$0xff]
        %v1671 = vld [vmem:[#allocation15 + $0x398] sm:$0xff]
        %v1672 = vld [vmem:[#allocation15 + $0x3a0] sm:$0xff]
        %v1673 = vld [vmem:[#allocation15 + $0x3a8] sm:$0xff]
        %v1674 = vld [vmem:[#allocation15 + $0x3b0] sm:$0xff]
        %v1675 = vld [vmem:[#allocation15 + $0x3b8] sm:$0xff]
        %v1676 = vld [vmem:[#allocation15 + $0x3c0] sm:$0xff]
        %v1677 = vld [vmem:[#allocation15 + $0x3c8] sm:$0xff]
        %v1678 = vld [vmem:[#allocation15 + $0x3d0] sm:$0xff]
        %v1679 = vld [vmem:[#allocation15 + $0x3d8] sm:$0xff]
        %v1680 = vld [vmem:[#allocation15 + $0x3e0] sm:$0xff]
        %v1681 = vld [vmem:[#allocation15 + $0x3e8] sm:$0xff]
        %v1682 = vld [vmem:[#allocation15 + $0x3f0] sm:$0xff]
        %v1683 = vld [vmem:[#allocation15 + $0x3f8] sm:$0xff]
        %v1812 = vunpack.c.l.b16 %v1556
        %v1813 = vunpack.c.h.b16 %v1556
        %v1814 = vunpack.c.l.b16 %v1557
        %v1815 = vunpack.c.h.b16 %v1557
        %v1816 = vunpack.c.l.b16 %v1558
        %v1817 = vunpack.c.h.b16 %v1558
        %v1818 = vunpack.c.l.b16 %v1559
        %v1819 = vunpack.c.h.b16 %v1559
        %v1820 = vunpack.c.l.b16 %v1560
        %v1821 = vunpack.c.h.b16 %v1560
        %v1822 = vunpack.c.l.b16 %v1561
        %v1823 = vunpack.c.h.b16 %v1561
        %v1824 = vunpack.c.l.b16 %v1562
        %v1825 = vunpack.c.h.b16 %v1562
        %v1826 = vunpack.c.l.b16 %v1563
        %v1827 = vunpack.c.h.b16 %v1563
        %v1828 = vunpack.c.l.b16 %v1564
        %v1829 = vunpack.c.h.b16 %v1564
        %v1830 = vunpack.c.l.b16 %v1565
        %v1831 = vunpack.c.h.b16 %v1565
        %v1832 = vunpack.c.l.b16 %v1566
        %v1833 = vunpack.c.h.b16 %v1566
        %v1834 = vunpack.c.l.b16 %v1567
        %v1835 = vunpack.c.h.b16 %v1567
        %v1836 = vunpack.c.l.b16 %v1568
        %v1837 = vunpack.c.h.b16 %v1568
        %v1838 = vunpack.c.l.b16 %v1569
        %v1839 = vunpack.c.h.b16 %v1569
        %v1840 = vunpack.c.l.b16 %v1570
        %v1841 = vunpack.c.h.b16 %v1570
        %v1842 = vunpack.c.l.b16 %v1571
        %v1843 = vunpack.c.h.b16 %v1571
        %v1844 = vunpack.c.l.b16 %v1572
        %v1845 = vunpack.c.h.b16 %v1572
        %v1846 = vunpack.c.l.b16 %v1573
        %v1847 = vunpack.c.h.b16 %v1573
        %v1848 = vunpack.c.l.b16 %v1574
        %v1849 = vunpack.c.h.b16 %v1574
        %v1850 = vunpack.c.l.b16 %v1575
        %v1851 = vunpack.c.h.b16 %v1575
        %v1852 = vunpack.c.l.b16 %v1576
        %v1853 = vunpack.c.h.b16 %v1576
        %v1854 = vunpack.c.l.b16 %v1577
        %v1855 = vunpack.c.h.b16 %v1577
        %v1856 = vunpack.c.l.b16 %v1578
        %v1857 = vunpack.c.h.b16 %v1578
        %v1858 = vunpack.c.l.b16 %v1579
        %v1859 = vunpack.c.h.b16 %v1579
        %v1860 = vunpack.c.l.b16 %v1580
        %v1861 = vunpack.c.h.b16 %v1580
        %v1862 = vunpack.c.l.b16 %v1581
        %v1863 = vunpack.c.h.b16 %v1581
        %v1864 = vunpack.c.l.b16 %v1582
        %v1865 = vunpack.c.h.b16 %v1582
        %v1866 = vunpack.c.l.b16 %v1583
        %v1867 = vunpack.c.h.b16 %v1583
        %v1868 = vunpack.c.l.b16 %v1584
        %v1869 = vunpack.c.h.b16 %v1584
        %v1870 = vunpack.c.l.b16 %v1585
        %v1871 = vunpack.c.h.b16 %v1585
        %v1872 = vunpack.c.l.b16 %v1586
        %v1873 = vunpack.c.h.b16 %v1586
        %v1874 = vunpack.c.l.b16 %v1587
        %v1875 = vunpack.c.h.b16 %v1587
        %v1876 = vunpack.c.l.b16 %v1588
        %v1877 = vunpack.c.h.b16 %v1588
        %v1878 = vunpack.c.l.b16 %v1589
        %v1879 = vunpack.c.h.b16 %v1589
        %v1880 = vunpack.c.l.b16 %v1590
        %v1881 = vunpack.c.h.b16 %v1590
        %v1882 = vunpack.c.l.b16 %v1591
        %v1883 = vunpack.c.h.b16 %v1591
        %v1884 = vunpack.c.l.b16 %v1592
        %v1885 = vunpack.c.h.b16 %v1592
        %v1886 = vunpack.c.l.b16 %v1593
        %v1887 = vunpack.c.h.b16 %v1593
        %v1888 = vunpack.c.l.b16 %v1594
        %v1889 = vunpack.c.h.b16 %v1594
        %v1890 = vunpack.c.l.b16 %v1595
        %v1891 = vunpack.c.h.b16 %v1595
        %v1892 = vunpack.c.l.b16 %v1596
        %v1893 = vunpack.c.h.b16 %v1596
        %v1894 = vunpack.c.l.b16 %v1597
        %v1895 = vunpack.c.h.b16 %v1597
        %v1896 = vunpack.c.l.b16 %v1598
        %v1897 = vunpack.c.h.b16 %v1598
        %v1898 = vunpack.c.l.b16 %v1599
        %v1899 = vunpack.c.h.b16 %v1599
        %v1900 = vunpack.c.l.b16 %v1600
        %v1901 = vunpack.c.h.b16 %v1600
        %v1902 = vunpack.c.l.b16 %v1601
        %v1903 = vunpack.c.h.b16 %v1601
        %v1904 = vunpack.c.l.b16 %v1602
        %v1905 = vunpack.c.h.b16 %v1602
        %v1906 = vunpack.c.l.b16 %v1603
        %v1907 = vunpack.c.h.b16 %v1603
        %v1908 = vunpack.c.l.b16 %v1604
        %v1909 = vunpack.c.h.b16 %v1604
        %v1910 = vunpack.c.l.b16 %v1605
        %v1911 = vunpack.c.h.b16 %v1605
        %v1912 = vunpack.c.l.b16 %v1606
        %v1913 = vunpack.c.h.b16 %v1606
        %v1914 = vunpack.c.l.b16 %v1607
        %v1915 = vunpack.c.h.b16 %v1607
        %v1916 = vunpack.c.l.b16 %v1608
        %v1917 = vunpack.c.h.b16 %v1608
        %v1918 = vunpack.c.l.b16 %v1609
        %v1919 = vunpack.c.h.b16 %v1609
        %v1920 = vunpack.c.l.b16 %v1610
        %v1921 = vunpack.c.h.b16 %v1610
        %v1922 = vunpack.c.l.b16 %v1611
        %v1923 = vunpack.c.h.b16 %v1611
        %v1924 = vunpack.c.l.b16 %v1612
        %v1925 = vunpack.c.h.b16 %v1612
        %v1926 = vunpack.c.l.b16 %v1613
        %v1927 = vunpack.c.h.b16 %v1613
        %v1928 = vunpack.c.l.b16 %v1614
        %v1929 = vunpack.c.h.b16 %v1614
        %v1930 = vunpack.c.l.b16 %v1615
        %v1931 = vunpack.c.h.b16 %v1615
        %v1932 = vunpack.c.l.b16 %v1616
        %v1933 = vunpack.c.h.b16 %v1616
        %v1934 = vunpack.c.l.b16 %v1617
        %v1935 = vunpack.c.h.b16 %v1617
        %v1936 = vunpack.c.l.b16 %v1618
        %v1937 = vunpack.c.h.b16 %v1618
        %v1938 = vunpack.c.l.b16 %v1619
        %v1939 = vunpack.c.h.b16 %v1619
        %v1940 = vunpack.c.l.b16 %v1620
        %v1941 = vunpack.c.h.b16 %v1620
        %v1942 = vunpack.c.l.b16 %v1621
        %v1943 = vunpack.c.h.b16 %v1621
        %v1944 = vunpack.c.l.b16 %v1622
        %v1945 = vunpack.c.h.b16 %v1622
        %v1946 = vunpack.c.l.b16 %v1623
        %v1947 = vunpack.c.h.b16 %v1623
        %v1948 = vunpack.c.l.b16 %v1624
        %v1949 = vunpack.c.h.b16 %v1624
        %v1950 = vunpack.c.l.b16 %v1625
        %v1951 = vunpack.c.h.b16 %v1625
        %v1952 = vunpack.c.l.b16 %v1626
        %v1953 = vunpack.c.h.b16 %v1626
        %v1954 = vunpack.c.l.b16 %v1627
        %v1955 = vunpack.c.h.b16 %v1627
        %v1956 = vunpack.c.l.b16 %v1628
        %v1957 = vunpack.c.h.b16 %v1628
        %v1958 = vunpack.c.l.b16 %v1629
        %v1959 = vunpack.c.h.b16 %v1629
        %v1960 = vunpack.c.l.b16 %v1630
        %v1961 = vunpack.c.h.b16 %v1630
        %v1962 = vunpack.c.l.b16 %v1631
        %v1963 = vunpack.c.h.b16 %v1631
        %v1964 = vunpack.c.l.b16 %v1632
        %v1965 = vunpack.c.h.b16 %v1632
        %v1966 = vunpack.c.l.b16 %v1633
        %v1967 = vunpack.c.h.b16 %v1633
        %v1968 = vunpack.c.l.b16 %v1634
        %v1969 = vunpack.c.h.b16 %v1634
        %v1970 = vunpack.c.l.b16 %v1635
        %v1971 = vunpack.c.h.b16 %v1635
        %v1972 = vunpack.c.l.b16 %v1636
        %v1973 = vunpack.c.h.b16 %v1636
        %v1974 = vunpack.c.l.b16 %v1637
        %v1975 = vunpack.c.h.b16 %v1637
        %v1976 = vunpack.c.l.b16 %v1638
        %v1977 = vunpack.c.h.b16 %v1638
        %v1978 = vunpack.c.l.b16 %v1639
        %v1979 = vunpack.c.h.b16 %v1639
        %v1980 = vunpack.c.l.b16 %v1640
        %v1981 = vunpack.c.h.b16 %v1640
        %v1982 = vunpack.c.l.b16 %v1641
        %v1983 = vunpack.c.h.b16 %v1641
        %v1984 = vunpack.c.l.b16 %v1642
        %v1985 = vunpack.c.h.b16 %v1642
        %v1986 = vunpack.c.l.b16 %v1643
        %v1987 = vunpack.c.h.b16 %v1643
        %v1988 = vunpack.c.l.b16 %v1644
        %v1989 = vunpack.c.h.b16 %v1644
        %v1990 = vunpack.c.l.b16 %v1645
        %v1991 = vunpack.c.h.b16 %v1645
        %v1992 = vunpack.c.l.b16 %v1646
        %v1993 = vunpack.c.h.b16 %v1646
        %v1994 = vunpack.c.l.b16 %v1647
        %v1995 = vunpack.c.h.b16 %v1647
        %v1996 = vunpack.c.l.b16 %v1648
        %v1997 = vunpack.c.h.b16 %v1648
        %v1998 = vunpack.c.l.b16 %v1649
        %v1999 = vunpack.c.h.b16 %v1649
        %v2000 = vunpack.c.l.b16 %v1650
        %v2001 = vunpack.c.h.b16 %v1650
        %v2002 = vunpack.c.l.b16 %v1651
        %v2003 = vunpack.c.h.b16 %v1651
        %v2004 = vunpack.c.l.b16 %v1652
        %v2005 = vunpack.c.h.b16 %v1652
        %v2006 = vunpack.c.l.b16 %v1653
        %v2007 = vunpack.c.h.b16 %v1653
        %v2008 = vunpack.c.l.b16 %v1654
        %v2009 = vunpack.c.h.b16 %v1654
        %v2010 = vunpack.c.l.b16 %v1655
        %v2011 = vunpack.c.h.b16 %v1655
        %v2012 = vunpack.c.l.b16 %v1656
        %v2013 = vunpack.c.h.b16 %v1656
        %v2014 = vunpack.c.l.b16 %v1657
        %v2015 = vunpack.c.h.b16 %v1657
        %v2016 = vunpack.c.l.b16 %v1658
        %v2017 = vunpack.c.h.b16 %v1658
        %v2018 = vunpack.c.l.b16 %v1659
        %v2019 = vunpack.c.h.b16 %v1659
        %v2020 = vunpack.c.l.b16 %v1660
        %v2021 = vunpack.c.h.b16 %v1660
        %v2022 = vunpack.c.l.b16 %v1661
        %v2023 = vunpack.c.h.b16 %v1661
        %v2024 = vunpack.c.l.b16 %v1662
        %v2025 = vunpack.c.h.b16 %v1662
        %v2026 = vunpack.c.l.b16 %v1663
        %v2027 = vunpack.c.h.b16 %v1663
        %v2028 = vunpack.c.l.b16 %v1664
        %v2029 = vunpack.c.h.b16 %v1664
        %v2030 = vunpack.c.l.b16 %v1665
        %v2031 = vunpack.c.h.b16 %v1665
        %v2032 = vunpack.c.l.b16 %v1666
        %v2033 = vunpack.c.h.b16 %v1666
        %v2034 = vunpack.c.l.b16 %v1667
        %v2035 = vunpack.c.h.b16 %v1667
        %v2036 = vunpack.c.l.b16 %v1668
        %v2037 = vunpack.c.h.b16 %v1668
        %v2038 = vunpack.c.l.b16 %v1669
        %v2039 = vunpack.c.h.b16 %v1669
        %v2040 = vunpack.c.l.b16 %v1670
        %v2041 = vunpack.c.h.b16 %v1670
        %v2042 = vunpack.c.l.b16 %v1671
        %v2043 = vunpack.c.h.b16 %v1671
        %v2044 = vunpack.c.l.b16 %v1672
        %v2045 = vunpack.c.h.b16 %v1672
        %v2046 = vunpack.c.l.b16 %v1673
        %v2047 = vunpack.c.h.b16 %v1673
        %v2048 = vunpack.c.l.b16 %v1674
        %v2049 = vunpack.c.h.b16 %v1674
        %v2050 = vunpack.c.l.b16 %v1675
        %v2051 = vunpack.c.h.b16 %v1675
        %v2052 = vunpack.c.l.b16 %v1676
        %v2053 = vunpack.c.h.b16 %v1676
        %v2054 = vunpack.c.l.b16 %v1677
        %v2055 = vunpack.c.h.b16 %v1677
        %v2056 = vunpack.c.l.b16 %v1678
        %v2057 = vunpack.c.h.b16 %v1678
        %v2058 = vunpack.c.l.b16 %v1679
        %v2059 = vunpack.c.h.b16 %v1679
        %v2060 = vunpack.c.l.b16 %v1680
        %v2061 = vunpack.c.h.b16 %v1680
        %v2062 = vunpack.c.l.b16 %v1681
        %v2063 = vunpack.c.h.b16 %v1681
        %v2064 = vunpack.c.l.b16 %v1682
        %v2065 = vunpack.c.h.b16 %v1682
        %v2066 = vunpack.c.l.b16 %v1683
        %v2067 = vunpack.c.h.b16 %v1683
        %v2068 = vpack.c.b16 %v1816, %v1812
        %v2069 = vpack.c.b16 %v1817, %v1813
        %v2070 = vpack.c.b16 %v1818, %v1814
        %v2071 = vpack.c.b16 %v1819, %v1815
        %v2072 = vpack.c.b16 %v1824, %v1820
        %v2073 = vpack.c.b16 %v1825, %v1821
        %v2074 = vpack.c.b16 %v1826, %v1822
        %v2075 = vpack.c.b16 %v1827, %v1823
        %v2076 = vpack.c.b16 %v1832, %v1828
        %v2077 = vpack.c.b16 %v1833, %v1829
        %v2078 = vpack.c.b16 %v1834, %v1830
        %v2079 = vpack.c.b16 %v1835, %v1831
        %v2080 = vpack.c.b16 %v1840, %v1836
        %v2081 = vpack.c.b16 %v1841, %v1837
        %v2082 = vpack.c.b16 %v1842, %v1838
        %v2083 = vpack.c.b16 %v1843, %v1839
        %v2084 = vpack.c.b16 %v1848, %v1844
        %v2085 = vpack.c.b16 %v1849, %v1845
        %v2086 = vpack.c.b16 %v1850, %v1846
        %v2087 = vpack.c.b16 %v1851, %v1847
        %v2088 = vpack.c.b16 %v1856, %v1852
        %v2089 = vpack.c.b16 %v1857, %v1853
        %v2090 = vpack.c.b16 %v1858, %v1854
        %v2091 = vpack.c.b16 %v1859, %v1855
        %v2092 = vpack.c.b16 %v1864, %v1860
        %v2093 = vpack.c.b16 %v1865, %v1861
        %v2094 = vpack.c.b16 %v1866, %v1862
        %v2095 = vpack.c.b16 %v1867, %v1863
        %v2096 = vpack.c.b16 %v1872, %v1868
        %v2097 = vpack.c.b16 %v1873, %v1869
        %v2098 = vpack.c.b16 %v1874, %v1870
        %v2099 = vpack.c.b16 %v1875, %v1871
        %v2100 = vpack.c.b16 %v1880, %v1876
        %v2101 = vpack.c.b16 %v1881, %v1877
        %v2102 = vpack.c.b16 %v1882, %v1878
        %v2103 = vpack.c.b16 %v1883, %v1879
        %v2104 = vpack.c.b16 %v1888, %v1884
        %v2105 = vpack.c.b16 %v1889, %v1885
        %v2106 = vpack.c.b16 %v1890, %v1886
        %v2107 = vpack.c.b16 %v1891, %v1887
        %v2108 = vpack.c.b16 %v1896, %v1892
        %v2109 = vpack.c.b16 %v1897, %v1893
        %v2110 = vpack.c.b16 %v1898, %v1894
        %v2111 = vpack.c.b16 %v1899, %v1895
        %v2112 = vpack.c.b16 %v1904, %v1900
        %v2113 = vpack.c.b16 %v1905, %v1901
        %v2114 = vpack.c.b16 %v1906, %v1902
        %v2115 = vpack.c.b16 %v1907, %v1903
        %v2116 = vpack.c.b16 %v1912, %v1908
        %v2117 = vpack.c.b16 %v1913, %v1909
        %v2118 = vpack.c.b16 %v1914, %v1910
        %v2119 = vpack.c.b16 %v1915, %v1911
        %v2120 = vpack.c.b16 %v1920, %v1916
        %v2121 = vpack.c.b16 %v1921, %v1917
        %v2122 = vpack.c.b16 %v1922, %v1918
        %v2123 = vpack.c.b16 %v1923, %v1919
        %v2124 = vpack.c.b16 %v1928, %v1924
        %v2125 = vpack.c.b16 %v1929, %v1925
        %v2126 = vpack.c.b16 %v1930, %v1926
        %v2127 = vpack.c.b16 %v1931, %v1927
        %v2128 = vpack.c.b16 %v1936, %v1932
        %v2129 = vpack.c.b16 %v1937, %v1933
        %v2130 = vpack.c.b16 %v1938, %v1934
        %v2131 = vpack.c.b16 %v1939, %v1935
        %v2132 = vpack.c.b16 %v1944, %v1940
        %v2133 = vpack.c.b16 %v1945, %v1941
        %v2134 = vpack.c.b16 %v1946, %v1942
        %v2135 = vpack.c.b16 %v1947, %v1943
        %v2136 = vpack.c.b16 %v1952, %v1948
        %v2137 = vpack.c.b16 %v1953, %v1949
        %v2138 = vpack.c.b16 %v1954, %v1950
        %v2139 = vpack.c.b16 %v1955, %v1951
        %v2140 = vpack.c.b16 %v1960, %v1956
        %v2141 = vpack.c.b16 %v1961, %v1957
        %v2142 = vpack.c.b16 %v1962, %v1958
        %v2143 = vpack.c.b16 %v1963, %v1959
        %v2144 = vpack.c.b16 %v1968, %v1964
        %v2145 = vpack.c.b16 %v1969, %v1965
        %v2146 = vpack.c.b16 %v1970, %v1966
        %v2147 = vpack.c.b16 %v1971, %v1967
        %v2148 = vpack.c.b16 %v1976, %v1972
        %v2149 = vpack.c.b16 %v1977, %v1973
        %v2150 = vpack.c.b16 %v1978, %v1974
        %v2151 = vpack.c.b16 %v1979, %v1975
        %v2152 = vpack.c.b16 %v1984, %v1980
        %v2153 = vpack.c.b16 %v1985, %v1981
        %v2154 = vpack.c.b16 %v1986, %v1982
        %v2155 = vpack.c.b16 %v1987, %v1983
        %v2156 = vpack.c.b16 %v1992, %v1988
        %v2157 = vpack.c.b16 %v1993, %v1989
        %v2158 = vpack.c.b16 %v1994, %v1990
        %v2159 = vpack.c.b16 %v1995, %v1991
        %v2160 = vpack.c.b16 %v2000, %v1996
        %v2161 = vpack.c.b16 %v2001, %v1997
        %v2162 = vpack.c.b16 %v2002, %v1998
        %v2163 = vpack.c.b16 %v2003, %v1999
        %v2164 = vpack.c.b16 %v2008, %v2004
        %v2165 = vpack.c.b16 %v2009, %v2005
        %v2166 = vpack.c.b16 %v2010, %v2006
        %v2167 = vpack.c.b16 %v2011, %v2007
        %v2168 = vpack.c.b16 %v2016, %v2012
        %v2169 = vpack.c.b16 %v2017, %v2013
        %v2170 = vpack.c.b16 %v2018, %v2014
        %v2171 = vpack.c.b16 %v2019, %v2015
        %v2172 = vpack.c.b16 %v2024, %v2020
        %v2173 = vpack.c.b16 %v2025, %v2021
        %v2174 = vpack.c.b16 %v2026, %v2022
        %v2175 = vpack.c.b16 %v2027, %v2023
        %v2176 = vpack.c.b16 %v2032, %v2028
        %v2177 = vpack.c.b16 %v2033, %v2029
        %v2178 = vpack.c.b16 %v2034, %v2030
        %v2179 = vpack.c.b16 %v2035, %v2031
        %v2180 = vpack.c.b16 %v2040, %v2036
        %v2181 = vpack.c.b16 %v2041, %v2037
        %v2182 = vpack.c.b16 %v2042, %v2038
        %v2183 = vpack.c.b16 %v2043, %v2039
        %v2184 = vpack.c.b16 %v2048, %v2044
        %v2185 = vpack.c.b16 %v2049, %v2045
        %v2186 = vpack.c.b16 %v2050, %v2046
        %v2187 = vpack.c.b16 %v2051, %v2047
        %v2188 = vpack.c.b16 %v2056, %v2052
        %v2189 = vpack.c.b16 %v2057, %v2053
        %v2190 = vpack.c.b16 %v2058, %v2054
        %v2191 = vpack.c.b16 %v2059, %v2055
        %v2192 = vpack.c.b16 %v2064, %v2060
        %v2193 = vpack.c.b16 %v2065, %v2061
        %v2194 = vpack.c.b16 %v2066, %v2062
        %v2195 = vpack.c.b16 %v2067, %v2063
        %2324 = vmatprep.subr.bf16.mxu0 %v2097
        %2325 = vmatpush1.bf16.msra.mxu0 %v2096
        %2326 = vmatprep.subr.bf16.mxu0 %v2093
        %2327 = vmatpush1.bf16.msra.mxu0 %v2092
        %2328 = vmatprep.subr.bf16.mxu0 %v2089
        %2329 = vmatpush1.bf16.msra.mxu0 %v2088
        %2330 = vmatprep.subr.bf16.mxu0 %v2085
        %2331 = vmatpush1.bf16.msra.mxu0 %v2084
        %2332 = vmatprep.subr.bf16.mxu0 %v2081
        %2333 = vmatpush1.bf16.msra.mxu0 %v2080
        %2334 = vmatprep.subr.bf16.mxu0 %v2077
        %2335 = vmatpush1.bf16.msra.mxu0 %v2076
        %2336 = vmatprep.subr.bf16.mxu0 %v2073
        %2337 = vmatpush1.bf16.msra.mxu0 %v2072
        %2338 = vmatprep.subr.bf16.mxu0 %v2069
        %2339 = vmatpush1.bf16.msra.mxu0 %v2068
        %2340 = vmatprep.subr.bf16.mxu0 %v2129
        %2341 = vmatpush2.bf16.msra.mxu0 %v2128
        %2342 = vmatprep.subr.bf16.mxu0 %v2125
        %2343 = vmatpush2.bf16.msra.mxu0 %v2124
        %2344 = vmatprep.subr.bf16.mxu0 %v2121
        %2345 = vmatpush2.bf16.msra.mxu0 %v2120
        %2346 = vmatprep.subr.bf16.mxu0 %v2117
        %2347 = vmatpush2.bf16.msra.mxu0 %v2116
        %2348 = vmatprep.subr.bf16.mxu0 %v2113
        %2349 = vmatpush2.bf16.msra.mxu0 %v2112
        %2350 = vmatprep.subr.bf16.mxu0 %v2109
        %2351 = vmatpush2.bf16.msra.mxu0 %v2108
        %2352 = vmatprep.subr.bf16.mxu0 %v2105
        %2353 = vmatpush2.bf16.msra.mxu0 %v2104
        %2354 = vmatprep.subr.bf16.mxu0 %v2101
        %2355 = vmatpush2.bf16.msra.mxu0 %v2100
        %2356 = vmatprep.mubr.bf16.mxu0 %v1553
        %2357 = vmatmul.mubr.bf16.gmra.mxu0 %v1552
        %v2358 = vpop.f32.mrf.mxu0
        %v2359 = vadd.f32 0.0, %v2358
        %v2360 = vpop.f32.mrf.mxu0
        %v2361 = vadd.f32 0.0, %v2360
        %v2362 = vpop.f32.mrf.mxu0
        %v2363 = vadd.f32 0.0, %v2362
        %v2364 = vpop.f32.mrf.mxu0
        %v2365 = vadd.f32 0.0, %v2364
        %2366 = vdwg.mxu0
        %2367 = vmatprep.subr.bf16.mxu0 %v2161
        %2368 = vmatpush1.bf16.msra.mxu0 %v2160
        %2369 = vmatprep.subr.bf16.mxu0 %v2157
        %2370 = vmatpush1.bf16.msra.mxu0 %v2156
        %2371 = vmatprep.subr.bf16.mxu0 %v2153
        %2372 = vmatpush1.bf16.msra.mxu0 %v2152
        %2373 = vmatprep.subr.bf16.mxu0 %v2149
        %2374 = vmatpush1.bf16.msra.mxu0 %v2148
        %2375 = vmatprep.subr.bf16.mxu0 %v2145
        %2376 = vmatpush1.bf16.msra.mxu0 %v2144
        %2377 = vmatprep.subr.bf16.mxu0 %v2141
        %2378 = vmatpush1.bf16.msra.mxu0 %v2140
        %2379 = vmatprep.subr.bf16.mxu0 %v2137
        %2380 = vmatpush1.bf16.msra.mxu0 %v2136
        %2381 = vmatprep.subr.bf16.mxu0 %v2133
        %2382 = vmatpush1.bf16.msra.mxu0 %v2132
        %2383 = vmatprep.subr.bf16.mxu0 %v2193
        %2384 = vmatpush2.bf16.msra.mxu0 %v2192
        %2385 = vmatprep.subr.bf16.mxu0 %v2189
        %2386 = vmatpush2.bf16.msra.mxu0 %v2188
        %2387 = vmatprep.subr.bf16.mxu0 %v2185
        %2388 = vmatpush2.bf16.msra.mxu0 %v2184
        %2389 = vmatprep.subr.bf16.mxu0 %v2181
        %2390 = vmatpush2.bf16.msra.mxu0 %v2180
        %2391 = vmatprep.subr.bf16.mxu0 %v2177
        %2392 = vmatpush2.bf16.msra.mxu0 %v2176
        %2393 = vmatprep.subr.bf16.mxu0 %v2173
        %2394 = vmatpush2.bf16.msra.mxu0 %v2172
        %2395 = vmatprep.subr.bf16.mxu0 %v2169
        %2396 = vmatpush2.bf16.msra.mxu0 %v2168
        %2397 = vmatprep.subr.bf16.mxu0 %v2165
        %2398 = vmatpush2.bf16.msra.mxu0 %v2164
        %2399 = vmatprep.mubr.bf16.mxu0 %v1555
        %2400 = vmatmul.mubr.bf16.gmra.mxu0 %v1554
        %v2401 = vpop.f32.mrf.mxu0
        %v2402 = vadd.f32 %v2359, %v2401
        %v2403 = vpop.f32.mrf.mxu0
        %v2404 = vadd.f32 %v2361, %v2403
        %v2405 = vpop.f32.mrf.mxu0
        %v2406 = vadd.f32 %v2363, %v2405
        %v2407 = vpop.f32.mrf.mxu0
        %v2408 = vadd.f32 %v2365, %v2407
        %2409 = vdwg.mxu0
        %2410 = vmatprep.subr.bf16.mxu0 %v2099
        %2411 = vmatpush1.bf16.msra.mxu0 %v2098
        %2412 = vmatprep.subr.bf16.mxu0 %v2095
        %2413 = vmatpush1.bf16.msra.mxu0 %v2094
        %2414 = vmatprep.subr.bf16.mxu0 %v2091
        %2415 = vmatpush1.bf16.msra.mxu0 %v2090
        %2416 = vmatprep.subr.bf16.mxu0 %v2087
        %2417 = vmatpush1.bf16.msra.mxu0 %v2086
        %2418 = vmatprep.subr.bf16.mxu0 %v2083
        %2419 = vmatpush1.bf16.msra.mxu0 %v2082
        %2420 = vmatprep.subr.bf16.mxu0 %v2079
        %2421 = vmatpush1.bf16.msra.mxu0 %v2078
        %2422 = vmatprep.subr.bf16.mxu0 %v2075
        %2423 = vmatpush1.bf16.msra.mxu0 %v2074
        %2424 = vmatprep.subr.bf16.mxu0 %v2071
        %2425 = vmatpush1.bf16.msra.mxu0 %v2070
        %2426 = vmatprep.subr.bf16.mxu0 %v2131
        %2427 = vmatpush2.bf16.msra.mxu0 %v2130
        %2428 = vmatprep.subr.bf16.mxu0 %v2127
        %2429 = vmatpush2.bf16.msra.mxu0 %v2126
        %2430 = vmatprep.subr.bf16.mxu0 %v2123
        %2431 = vmatpush2.bf16.msra.mxu0 %v2122
        %2432 = vmatprep.subr.bf16.mxu0 %v2119
        %2433 = vmatpush2.bf16.msra.mxu0 %v2118
        %2434 = vmatprep.subr.bf16.mxu0 %v2115
        %2435 = vmatpush2.bf16.msra.mxu0 %v2114
        %2436 = vmatprep.subr.bf16.mxu0 %v2111
        %2437 = vmatpush2.bf16.msra.mxu0 %v2110
        %2438 = vmatprep.subr.bf16.mxu0 %v2107
        %2439 = vmatpush2.bf16.msra.mxu0 %v2106
        %2440 = vmatprep.subr.bf16.mxu0 %v2103
        %2441 = vmatpush2.bf16.msra.mxu0 %v2102
        %2442 = vmatprep.mubr.bf16.mxu0 %v1553
        %2443 = vmatmul.mubr.bf16.gmra.mxu0 %v1552
        %v2444 = vpop.f32.mrf.mxu0
        %v2445 = vadd.f32 0.0, %v2444
        %v2446 = vpop.f32.mrf.mxu0
        %v2447 = vadd.f32 0.0, %v2446
        %v2448 = vpop.f32.mrf.mxu0
        %v2449 = vadd.f32 0.0, %v2448
        %v2450 = vpop.f32.mrf.mxu0
        %v2451 = vadd.f32 0.0, %v2450
        %2452 = vdwg.mxu0
        %2453 = vmatprep.subr.bf16.mxu0 %v2163
        %2454 = vmatpush1.bf16.msra.mxu0 %v2162
        %2455 = vmatprep.subr.bf16.mxu0 %v2159
        %2456 = vmatpush1.bf16.msra.mxu0 %v2158
        %2457 = vmatprep.subr.bf16.mxu0 %v2155
        %2458 = vmatpush1.bf16.msra.mxu0 %v2154
        %2459 = vmatprep.subr.bf16.mxu0 %v2151
        %2460 = vmatpush1.bf16.msra.mxu0 %v2150
        %2461 = vmatprep.subr.bf16.mxu0 %v2147
        %2462 = vmatpush1.bf16.msra.mxu0 %v2146
        %2463 = vmatprep.subr.bf16.mxu0 %v2143
        %2464 = vmatpush1.bf16.msra.mxu0 %v2142
        %2465 = vmatprep.subr.bf16.mxu0 %v2139
        %2466 = vmatpush1.bf16.msra.mxu0 %v2138
        %2467 = vmatprep.subr.bf16.mxu0 %v2135
        %2468 = vmatpush1.bf16.msra.mxu0 %v2134
        %2469 = vmatprep.subr.bf16.mxu0 %v2195
        %2470 = vmatpush2.bf16.msra.mxu0 %v2194
        %2471 = vmatprep.subr.bf16.mxu0 %v2191
        %2472 = vmatpush2.bf16.msra.mxu0 %v2190
        %2473 = vmatprep.subr.bf16.mxu0 %v2187
        %2474 = vmatpush2.bf16.msra.mxu0 %v2186
        %2475 = vmatprep.subr.bf16.mxu0 %v2183
        %2476 = vmatpush2.bf16.msra.mxu0 %v2182
        %2477 = vmatprep.subr.bf16.mxu0 %v2179
        %2478 = vmatpush2.bf16.msra.mxu0 %v2178
        %2479 = vmatprep.subr.bf16.mxu0 %v2175
        %2480 = vmatpush2.bf16.msra.mxu0 %v2174
        %2481 = vmatprep.subr.bf16.mxu0 %v2171
        %2482 = vmatpush2.bf16.msra.mxu0 %v2170
        %2483 = vmatprep.subr.bf16.mxu0 %v2167
        %2484 = vmatpush2.bf16.msra.mxu0 %v2166
        %2485 = vmatprep.mubr.bf16.mxu0 %v1555
        %2486 = vmatmul.mubr.bf16.gmra.mxu0 %v1554
        %v2487 = vpop.f32.mrf.mxu0
        %v2488 = vadd.f32 %v2445, %v2487
        %v2489 = vpop.f32.mrf.mxu0
        %v2490 = vadd.f32 %v2447, %v2489
        %v2491 = vpop.f32.mrf.mxu0
        %v2492 = vadd.f32 %v2449, %v2491
        %v2493 = vpop.f32.mrf.mxu0
        %v2494 = vadd.f32 %v2451, %v2493
        %2495 = vdwg.mxu0
        %v2624 = vunpack.c.l.b16 %v1424
        %v2625 = vunpack.c.h.b16 %v1424
        %v2626 = vunpack.c.l.b16 %v1425
        %v2627 = vunpack.c.h.b16 %v1425
        %v2628 = vunpack.c.l.b16 %v1426
        %v2629 = vunpack.c.h.b16 %v1426
        %v2630 = vunpack.c.l.b16 %v1427
        %v2631 = vunpack.c.h.b16 %v1427
        %v2632 = vunpack.c.l.b16 %v1428
        %v2633 = vunpack.c.h.b16 %v1428
        %v2634 = vunpack.c.l.b16 %v1429
        %v2635 = vunpack.c.h.b16 %v1429
        %v2636 = vunpack.c.l.b16 %v1430
        %v2637 = vunpack.c.h.b16 %v1430
        %v2638 = vunpack.c.l.b16 %v1431
        %v2639 = vunpack.c.h.b16 %v1431
        %v2640 = vunpack.c.l.b16 %v1432
        %v2641 = vunpack.c.h.b16 %v1432
        %v2642 = vunpack.c.l.b16 %v1433
        %v2643 = vunpack.c.h.b16 %v1433
        %v2644 = vunpack.c.l.b16 %v1434
        %v2645 = vunpack.c.h.b16 %v1434
        %v2646 = vunpack.c.l.b16 %v1435
        %v2647 = vunpack.c.h.b16 %v1435
        %v2648 = vunpack.c.l.b16 %v1436
        %v2649 = vunpack.c.h.b16 %v1436
        %v2650 = vunpack.c.l.b16 %v1437
        %v2651 = vunpack.c.h.b16 %v1437
        %v2652 = vunpack.c.l.b16 %v1438
        %v2653 = vunpack.c.h.b16 %v1438
        %v2654 = vunpack.c.l.b16 %v1439
        %v2655 = vunpack.c.h.b16 %v1439
        %v2656 = vunpack.c.l.b16 %v1440
        %v2657 = vunpack.c.h.b16 %v1440
        %v2658 = vunpack.c.l.b16 %v1441
        %v2659 = vunpack.c.h.b16 %v1441
        %v2660 = vunpack.c.l.b16 %v1442
        %v2661 = vunpack.c.h.b16 %v1442
        %v2662 = vunpack.c.l.b16 %v1443
        %v2663 = vunpack.c.h.b16 %v1443
        %v2664 = vunpack.c.l.b16 %v1444
        %v2665 = vunpack.c.h.b16 %v1444
        %v2666 = vunpack.c.l.b16 %v1445
        %v2667 = vunpack.c.h.b16 %v1445
        %v2668 = vunpack.c.l.b16 %v1446
        %v2669 = vunpack.c.h.b16 %v1446
        %v2670 = vunpack.c.l.b16 %v1447
        %v2671 = vunpack.c.h.b16 %v1447
        %v2672 = vunpack.c.l.b16 %v1448
        %v2673 = vunpack.c.h.b16 %v1448
        %v2674 = vunpack.c.l.b16 %v1449
        %v2675 = vunpack.c.h.b16 %v1449
        %v2676 = vunpack.c.l.b16 %v1450
        %v2677 = vunpack.c.h.b16 %v1450
        %v2678 = vunpack.c.l.b16 %v1451
        %v2679 = vunpack.c.h.b16 %v1451
        %v2680 = vunpack.c.l.b16 %v1452
        %v2681 = vunpack.c.h.b16 %v1452
        %v2682 = vunpack.c.l.b16 %v1453
        %v2683 = vunpack.c.h.b16 %v1453
        %v2684 = vunpack.c.l.b16 %v1454
        %v2685 = vunpack.c.h.b16 %v1454
        %v2686 = vunpack.c.l.b16 %v1455
        %v2687 = vunpack.c.h.b16 %v1455
        %v2688 = vunpack.c.l.b16 %v1456
        %v2689 = vunpack.c.h.b16 %v1456
        %v2690 = vunpack.c.l.b16 %v1457
        %v2691 = vunpack.c.h.b16 %v1457
        %v2692 = vunpack.c.l.b16 %v1458
        %v2693 = vunpack.c.h.b16 %v1458
        %v2694 = vunpack.c.l.b16 %v1459
        %v2695 = vunpack.c.h.b16 %v1459
        %v2696 = vunpack.c.l.b16 %v1460
        %v2697 = vunpack.c.h.b16 %v1460
        %v2698 = vunpack.c.l.b16 %v1461
        %v2699 = vunpack.c.h.b16 %v1461
        %v2700 = vunpack.c.l.b16 %v1462
        %v2701 = vunpack.c.h.b16 %v1462
        %v2702 = vunpack.c.l.b16 %v1463
        %v2703 = vunpack.c.h.b16 %v1463
        %v2704 = vunpack.c.l.b16 %v1464
        %v2705 = vunpack.c.h.b16 %v1464
        %v2706 = vunpack.c.l.b16 %v1465
        %v2707 = vunpack.c.h.b16 %v1465
        %v2708 = vunpack.c.l.b16 %v1466
        %v2709 = vunpack.c.h.b16 %v1466
        %v2710 = vunpack.c.l.b16 %v1467
        %v2711 = vunpack.c.h.b16 %v1467
        %v2712 = vunpack.c.l.b16 %v1468
        %v2713 = vunpack.c.h.b16 %v1468
        %v2714 = vunpack.c.l.b16 %v1469
        %v2715 = vunpack.c.h.b16 %v1469
        %v2716 = vunpack.c.l.b16 %v1470
        %v2717 = vunpack.c.h.b16 %v1470
        %v2718 = vunpack.c.l.b16 %v1471
        %v2719 = vunpack.c.h.b16 %v1471
        %v2720 = vunpack.c.l.b16 %v1472
        %v2721 = vunpack.c.h.b16 %v1472
        %v2722 = vunpack.c.l.b16 %v1473
        %v2723 = vunpack.c.h.b16 %v1473
        %v2724 = vunpack.c.l.b16 %v1474
        %v2725 = vunpack.c.h.b16 %v1474
        %v2726 = vunpack.c.l.b16 %v1475
        %v2727 = vunpack.c.h.b16 %v1475
        %v2728 = vunpack.c.l.b16 %v1476
        %v2729 = vunpack.c.h.b16 %v1476
        %v2730 = vunpack.c.l.b16 %v1477
        %v2731 = vunpack.c.h.b16 %v1477
        %v2732 = vunpack.c.l.b16 %v1478
        %v2733 = vunpack.c.h.b16 %v1478
        %v2734 = vunpack.c.l.b16 %v1479
        %v2735 = vunpack.c.h.b16 %v1479
        %v2736 = vunpack.c.l.b16 %v1480
        %v2737 = vunpack.c.h.b16 %v1480
        %v2738 = vunpack.c.l.b16 %v1481
        %v2739 = vunpack.c.h.b16 %v1481
        %v2740 = vunpack.c.l.b16 %v1482
        %v2741 = vunpack.c.h.b16 %v1482
        %v2742 = vunpack.c.l.b16 %v1483
        %v2743 = vunpack.c.h.b16 %v1483
        %v2744 = vunpack.c.l.b16 %v1484
        %v2745 = vunpack.c.h.b16 %v1484
        %v2746 = vunpack.c.l.b16 %v1485
        %v2747 = vunpack.c.h.b16 %v1485
        %v2748 = vunpack.c.l.b16 %v1486
        %v2749 = vunpack.c.h.b16 %v1486
        %v2750 = vunpack.c.l.b16 %v1487
        %v2751 = vunpack.c.h.b16 %v1487
        %v2752 = vunpack.c.l.b16 %v1488
        %v2753 = vunpack.c.h.b16 %v1488
        %v2754 = vunpack.c.l.b16 %v1489
        %v2755 = vunpack.c.h.b16 %v1489
        %v2756 = vunpack.c.l.b16 %v1490
        %v2757 = vunpack.c.h.b16 %v1490
        %v2758 = vunpack.c.l.b16 %v1491
        %v2759 = vunpack.c.h.b16 %v1491
        %v2760 = vunpack.c.l.b16 %v1492
        %v2761 = vunpack.c.h.b16 %v1492
        %v2762 = vunpack.c.l.b16 %v1493
        %v2763 = vunpack.c.h.b16 %v1493
        %v2764 = vunpack.c.l.b16 %v1494
        %v2765 = vunpack.c.h.b16 %v1494
        %v2766 = vunpack.c.l.b16 %v1495
        %v2767 = vunpack.c.h.b16 %v1495
        %v2768 = vunpack.c.l.b16 %v1496
        %v2769 = vunpack.c.h.b16 %v1496
        %v2770 = vunpack.c.l.b16 %v1497
        %v2771 = vunpack.c.h.b16 %v1497
        %v2772 = vunpack.c.l.b16 %v1498
        %v2773 = vunpack.c.h.b16 %v1498
        %v2774 = vunpack.c.l.b16 %v1499
        %v2775 = vunpack.c.h.b16 %v1499
        %v2776 = vunpack.c.l.b16 %v1500
        %v2777 = vunpack.c.h.b16 %v1500
        %v2778 = vunpack.c.l.b16 %v1501
        %v2779 = vunpack.c.h.b16 %v1501
        %v2780 = vunpack.c.l.b16 %v1502
        %v2781 = vunpack.c.h.b16 %v1502
        %v2782 = vunpack.c.l.b16 %v1503
        %v2783 = vunpack.c.h.b16 %v1503
        %v2784 = vunpack.c.l.b16 %v1504
        %v2785 = vunpack.c.h.b16 %v1504
        %v2786 = vunpack.c.l.b16 %v1505
        %v2787 = vunpack.c.h.b16 %v1505
        %v2788 = vunpack.c.l.b16 %v1506
        %v2789 = vunpack.c.h.b16 %v1506
        %v2790 = vunpack.c.l.b16 %v1507
        %v2791 = vunpack.c.h.b16 %v1507
        %v2792 = vunpack.c.l.b16 %v1508
        %v2793 = vunpack.c.h.b16 %v1508
        %v2794 = vunpack.c.l.b16 %v1509
        %v2795 = vunpack.c.h.b16 %v1509
        %v2796 = vunpack.c.l.b16 %v1510
        %v2797 = vunpack.c.h.b16 %v1510
        %v2798 = vunpack.c.l.b16 %v1511
        %v2799 = vunpack.c.h.b16 %v1511
        %v2800 = vunpack.c.l.b16 %v1512
        %v2801 = vunpack.c.h.b16 %v1512
        %v2802 = vunpack.c.l.b16 %v1513
        %v2803 = vunpack.c.h.b16 %v1513
        %v2804 = vunpack.c.l.b16 %v1514
        %v2805 = vunpack.c.h.b16 %v1514
        %v2806 = vunpack.c.l.b16 %v1515
        %v2807 = vunpack.c.h.b16 %v1515
        %v2808 = vunpack.c.l.b16 %v1516
        %v2809 = vunpack.c.h.b16 %v1516
        %v2810 = vunpack.c.l.b16 %v1517
        %v2811 = vunpack.c.h.b16 %v1517
        %v2812 = vunpack.c.l.b16 %v1518
        %v2813 = vunpack.c.h.b16 %v1518
        %v2814 = vunpack.c.l.b16 %v1519
        %v2815 = vunpack.c.h.b16 %v1519
        %v2816 = vunpack.c.l.b16 %v1520
        %v2817 = vunpack.c.h.b16 %v1520
        %v2818 = vunpack.c.l.b16 %v1521
        %v2819 = vunpack.c.h.b16 %v1521
        %v2820 = vunpack.c.l.b16 %v1522
        %v2821 = vunpack.c.h.b16 %v1522
        %v2822 = vunpack.c.l.b16 %v1523
        %v2823 = vunpack.c.h.b16 %v1523
        %v2824 = vunpack.c.l.b16 %v1524
        %v2825 = vunpack.c.h.b16 %v1524
        %v2826 = vunpack.c.l.b16 %v1525
        %v2827 = vunpack.c.h.b16 %v1525
        %v2828 = vunpack.c.l.b16 %v1526
        %v2829 = vunpack.c.h.b16 %v1526
        %v2830 = vunpack.c.l.b16 %v1527
        %v2831 = vunpack.c.h.b16 %v1527
        %v2832 = vunpack.c.l.b16 %v1528
        %v2833 = vunpack.c.h.b16 %v1528
        %v2834 = vunpack.c.l.b16 %v1529
        %v2835 = vunpack.c.h.b16 %v1529
        %v2836 = vunpack.c.l.b16 %v1530
        %v2837 = vunpack.c.h.b16 %v1530
        %v2838 = vunpack.c.l.b16 %v1531
        %v2839 = vunpack.c.h.b16 %v1531
        %v2840 = vunpack.c.l.b16 %v1532
        %v2841 = vunpack.c.h.b16 %v1532
        %v2842 = vunpack.c.l.b16 %v1533
        %v2843 = vunpack.c.h.b16 %v1533
        %v2844 = vunpack.c.l.b16 %v1534
        %v2845 = vunpack.c.h.b16 %v1534
        %v2846 = vunpack.c.l.b16 %v1535
        %v2847 = vunpack.c.h.b16 %v1535
        %v2848 = vunpack.c.l.b16 %v1536
        %v2849 = vunpack.c.h.b16 %v1536
        %v2850 = vunpack.c.l.b16 %v1537
        %v2851 = vunpack.c.h.b16 %v1537
        %v2852 = vunpack.c.l.b16 %v1538
        %v2853 = vunpack.c.h.b16 %v1538
        %v2854 = vunpack.c.l.b16 %v1539
        %v2855 = vunpack.c.h.b16 %v1539
        %v2856 = vunpack.c.l.b16 %v1540
        %v2857 = vunpack.c.h.b16 %v1540
        %v2858 = vunpack.c.l.b16 %v1541
        %v2859 = vunpack.c.h.b16 %v1541
        %v2860 = vunpack.c.l.b16 %v1542
        %v2861 = vunpack.c.h.b16 %v1542
        %v2862 = vunpack.c.l.b16 %v1543
        %v2863 = vunpack.c.h.b16 %v1543
        %v2864 = vunpack.c.l.b16 %v1544
        %v2865 = vunpack.c.h.b16 %v1544
        %v2866 = vunpack.c.l.b16 %v1545
        %v2867 = vunpack.c.h.b16 %v1545
        %v2868 = vunpack.c.l.b16 %v1546
        %v2869 = vunpack.c.h.b16 %v1546
        %v2870 = vunpack.c.l.b16 %v1547
        %v2871 = vunpack.c.h.b16 %v1547
        %v2872 = vunpack.c.l.b16 %v1548
        %v2873 = vunpack.c.h.b16 %v1548
        %v2874 = vunpack.c.l.b16 %v1549
        %v2875 = vunpack.c.h.b16 %v1549
        %v2876 = vunpack.c.l.b16 %v1550
        %v2877 = vunpack.c.h.b16 %v1550
        %v2878 = vunpack.c.l.b16 %v1551
        %v2879 = vunpack.c.h.b16 %v1551
        %v2880 = vpack.c.b16 %v2628, %v2624
        %v2881 = vpack.c.b16 %v2629, %v2625
        %v2882 = vpack.c.b16 %v2630, %v2626
        %v2883 = vpack.c.b16 %v2631, %v2627
        %v2884 = vpack.c.b16 %v2636, %v2632
        %v2885 = vpack.c.b16 %v2637, %v2633
        %v2886 = vpack.c.b16 %v2638, %v2634
        %v2887 = vpack.c.b16 %v2639, %v2635
        %v2888 = vpack.c.b16 %v2644, %v2640
        %v2889 = vpack.c.b16 %v2645, %v2641
        %v2890 = vpack.c.b16 %v2646, %v2642
        %v2891 = vpack.c.b16 %v2647, %v2643
        %v2892 = vpack.c.b16 %v2652, %v2648
        %v2893 = vpack.c.b16 %v2653, %v2649
        %v2894 = vpack.c.b16 %v2654, %v2650
        %v2895 = vpack.c.b16 %v2655, %v2651
        %v2896 = vpack.c.b16 %v2660, %v2656
        %v2897 = vpack.c.b16 %v2661, %v2657
        %v2898 = vpack.c.b16 %v2662, %v2658
        %v2899 = vpack.c.b16 %v2663, %v2659
        %v2900 = vpack.c.b16 %v2668, %v2664
        %v2901 = vpack.c.b16 %v2669, %v2665
        %v2902 = vpack.c.b16 %v2670, %v2666
        %v2903 = vpack.c.b16 %v2671, %v2667
        %v2904 = vpack.c.b16 %v2676, %v2672
        %v2905 = vpack.c.b16 %v2677, %v2673
        %v2906 = vpack.c.b16 %v2678, %v2674
        %v2907 = vpack.c.b16 %v2679, %v2675
        %v2908 = vpack.c.b16 %v2684, %v2680
        %v2909 = vpack.c.b16 %v2685, %v2681
        %v2910 = vpack.c.b16 %v2686, %v2682
        %v2911 = vpack.c.b16 %v2687, %v2683
        %v2912 = vpack.c.b16 %v2692, %v2688
        %v2913 = vpack.c.b16 %v2693, %v2689
        %v2914 = vpack.c.b16 %v2694, %v2690
        %v2915 = vpack.c.b16 %v2695, %v2691
        %v2916 = vpack.c.b16 %v2700, %v2696
        %v2917 = vpack.c.b16 %v2701, %v2697
        %v2918 = vpack.c.b16 %v2702, %v2698
        %v2919 = vpack.c.b16 %v2703, %v2699
        %v2920 = vpack.c.b16 %v2708, %v2704
        %v2921 = vpack.c.b16 %v2709, %v2705
        %v2922 = vpack.c.b16 %v2710, %v2706
        %v2923 = vpack.c.b16 %v2711, %v2707
        %v2924 = vpack.c.b16 %v2716, %v2712
        %v2925 = vpack.c.b16 %v2717, %v2713
        %v2926 = vpack.c.b16 %v2718, %v2714
        %v2927 = vpack.c.b16 %v2719, %v2715
        %v2928 = vpack.c.b16 %v2724, %v2720
        %v2929 = vpack.c.b16 %v2725, %v2721
        %v2930 = vpack.c.b16 %v2726, %v2722
        %v2931 = vpack.c.b16 %v2727, %v2723
        %v2932 = vpack.c.b16 %v2732, %v2728
        %v2933 = vpack.c.b16 %v2733, %v2729
        %v2934 = vpack.c.b16 %v2734, %v2730
        %v2935 = vpack.c.b16 %v2735, %v2731
        %v2936 = vpack.c.b16 %v2740, %v2736
        %v2937 = vpack.c.b16 %v2741, %v2737
        %v2938 = vpack.c.b16 %v2742, %v2738
        %v2939 = vpack.c.b16 %v2743, %v2739
        %v2940 = vpack.c.b16 %v2748, %v2744
        %v2941 = vpack.c.b16 %v2749, %v2745
        %v2942 = vpack.c.b16 %v2750, %v2746
        %v2943 = vpack.c.b16 %v2751, %v2747
        %v2944 = vpack.c.b16 %v2756, %v2752
        %v2945 = vpack.c.b16 %v2757, %v2753
        %v2946 = vpack.c.b16 %v2758, %v2754
        %v2947 = vpack.c.b16 %v2759, %v2755
        %v2948 = vpack.c.b16 %v2764, %v2760
        %v2949 = vpack.c.b16 %v2765, %v2761
        %v2950 = vpack.c.b16 %v2766, %v2762
        %v2951 = vpack.c.b16 %v2767, %v2763
        %v2952 = vpack.c.b16 %v2772, %v2768
        %v2953 = vpack.c.b16 %v2773, %v2769
        %v2954 = vpack.c.b16 %v2774, %v2770
        %v2955 = vpack.c.b16 %v2775, %v2771
        %v2956 = vpack.c.b16 %v2780, %v2776
        %v2957 = vpack.c.b16 %v2781, %v2777
        %v2958 = vpack.c.b16 %v2782, %v2778
        %v2959 = vpack.c.b16 %v2783, %v2779
        %v2960 = vpack.c.b16 %v2788, %v2784
        %v2961 = vpack.c.b16 %v2789, %v2785
        %v2962 = vpack.c.b16 %v2790, %v2786
        %v2963 = vpack.c.b16 %v2791, %v2787
        %v2964 = vpack.c.b16 %v2796, %v2792
        %v2965 = vpack.c.b16 %v2797, %v2793
        %v2966 = vpack.c.b16 %v2798, %v2794
        %v2967 = vpack.c.b16 %v2799, %v2795
        %v2968 = vpack.c.b16 %v2804, %v2800
        %v2969 = vpack.c.b16 %v2805, %v2801
        %v2970 = vpack.c.b16 %v2806, %v2802
        %v2971 = vpack.c.b16 %v2807, %v2803
        %v2972 = vpack.c.b16 %v2812, %v2808
        %v2973 = vpack.c.b16 %v2813, %v2809
        %v2974 = vpack.c.b16 %v2814, %v2810
        %v2975 = vpack.c.b16 %v2815, %v2811
        %v2976 = vpack.c.b16 %v2820, %v2816
        %v2977 = vpack.c.b16 %v2821, %v2817
        %v2978 = vpack.c.b16 %v2822, %v2818
        %v2979 = vpack.c.b16 %v2823, %v2819
        %v2980 = vpack.c.b16 %v2828, %v2824
        %v2981 = vpack.c.b16 %v2829, %v2825
        %v2982 = vpack.c.b16 %v2830, %v2826
        %v2983 = vpack.c.b16 %v2831, %v2827
        %v2984 = vpack.c.b16 %v2836, %v2832
        %v2985 = vpack.c.b16 %v2837, %v2833
        %v2986 = vpack.c.b16 %v2838, %v2834
        %v2987 = vpack.c.b16 %v2839, %v2835
        %v2988 = vpack.c.b16 %v2844, %v2840
        %v2989 = vpack.c.b16 %v2845, %v2841
        %v2990 = vpack.c.b16 %v2846, %v2842
        %v2991 = vpack.c.b16 %v2847, %v2843
        %v2992 = vpack.c.b16 %v2852, %v2848
        %v2993 = vpack.c.b16 %v2853, %v2849
        %v2994 = vpack.c.b16 %v2854, %v2850
        %v2995 = vpack.c.b16 %v2855, %v2851
        %v2996 = vpack.c.b16 %v2860, %v2856
        %v2997 = vpack.c.b16 %v2861, %v2857
        %v2998 = vpack.c.b16 %v2862, %v2858
        %v2999 = vpack.c.b16 %v2863, %v2859
        %v3000 = vpack.c.b16 %v2868, %v2864
        %v3001 = vpack.c.b16 %v2869, %v2865
        %v3002 = vpack.c.b16 %v2870, %v2866
        %v3003 = vpack.c.b16 %v2871, %v2867
        %v3004 = vpack.c.b16 %v2876, %v2872
        %v3005 = vpack.c.b16 %v2877, %v2873
        %v3006 = vpack.c.b16 %v2878, %v2874
        %v3007 = vpack.c.b16 %v2879, %v2875
        %3136 = vmatprep.subr.bf16.mxu0 %v2909
        %3137 = vmatpush1.bf16.msra.mxu0 %v2908
        %3138 = vmatprep.subr.bf16.mxu0 %v2905
        %3139 = vmatpush1.bf16.msra.mxu0 %v2904
        %3140 = vmatprep.subr.bf16.mxu0 %v2901
        %3141 = vmatpush1.bf16.msra.mxu0 %v2900
        %3142 = vmatprep.subr.bf16.mxu0 %v2897
        %3143 = vmatpush1.bf16.msra.mxu0 %v2896
        %3144 = vmatprep.subr.bf16.mxu0 %v2893
        %3145 = vmatpush1.bf16.msra.mxu0 %v2892
        %3146 = vmatprep.subr.bf16.mxu0 %v2889
        %3147 = vmatpush1.bf16.msra.mxu0 %v2888
        %3148 = vmatprep.subr.bf16.mxu0 %v2885
        %3149 = vmatpush1.bf16.msra.mxu0 %v2884
        %3150 = vmatprep.subr.bf16.mxu0 %v2881
        %3151 = vmatpush1.bf16.msra.mxu0 %v2880
        %3152 = vmatprep.subr.bf16.mxu0 %v2941
        %3153 = vmatpush2.bf16.msra.mxu0 %v2940
        %3154 = vmatprep.subr.bf16.mxu0 %v2937
        %3155 = vmatpush2.bf16.msra.mxu0 %v2936
        %3156 = vmatprep.subr.bf16.mxu0 %v2933
        %3157 = vmatpush2.bf16.msra.mxu0 %v2932
        %3158 = vmatprep.subr.bf16.mxu0 %v2929
        %3159 = vmatpush2.bf16.msra.mxu0 %v2928
        %3160 = vmatprep.subr.bf16.mxu0 %v2925
        %3161 = vmatpush2.bf16.msra.mxu0 %v2924
        %3162 = vmatprep.subr.bf16.mxu0 %v2921
        %3163 = vmatpush2.bf16.msra.mxu0 %v2920
        %3164 = vmatprep.subr.bf16.mxu0 %v2917
        %3165 = vmatpush2.bf16.msra.mxu0 %v2916
        %3166 = vmatprep.subr.bf16.mxu0 %v2913
        %3167 = vmatpush2.bf16.msra.mxu0 %v2912
        %3168 = vmatprep.mubr.bf16.mxu0 %v1335
        %3169 = vmatmul.mubr.bf16.gmra.mxu0 %v1334
        %v3170 = vpop.f32.mrf.mxu0
        %v3171 = vadd.f32 %v2402, %v3170
        %v3172 = vpop.f32.mrf.mxu0
        %v3173 = vadd.f32 %v2404, %v3172
        %v3174 = vpop.f32.mrf.mxu0
        %v3175 = vadd.f32 %v2406, %v3174
        %v3176 = vpop.f32.mrf.mxu0
        %v3177 = vadd.f32 %v2408, %v3176
        %3178 = vdwg.mxu0
        %3179 = vmatprep.subr.bf16.mxu0 %v2973
        %3180 = vmatpush1.bf16.msra.mxu0 %v2972
        %3181 = vmatprep.subr.bf16.mxu0 %v2969
        %3182 = vmatpush1.bf16.msra.mxu0 %v2968
        %3183 = vmatprep.subr.bf16.mxu0 %v2965
        %3184 = vmatpush1.bf16.msra.mxu0 %v2964
        %3185 = vmatprep.subr.bf16.mxu0 %v2961
        %3186 = vmatpush1.bf16.msra.mxu0 %v2960
        %3187 = vmatprep.subr.bf16.mxu0 %v2957
        %3188 = vmatpush1.bf16.msra.mxu0 %v2956
        %3189 = vmatprep.subr.bf16.mxu0 %v2953
        %3190 = vmatpush1.bf16.msra.mxu0 %v2952
        %3191 = vmatprep.subr.bf16.mxu0 %v2949
        %3192 = vmatpush1.bf16.msra.mxu0 %v2948
        %3193 = vmatprep.subr.bf16.mxu0 %v2945
        %3194 = vmatpush1.bf16.msra.mxu0 %v2944
        %3195 = vmatprep.subr.bf16.mxu0 %v3005
        %3196 = vmatpush2.bf16.msra.mxu0 %v3004
        %3197 = vmatprep.subr.bf16.mxu0 %v3001
        %3198 = vmatpush2.bf16.msra.mxu0 %v3000
        %3199 = vmatprep.subr.bf16.mxu0 %v2997
        %3200 = vmatpush2.bf16.msra.mxu0 %v2996
        %3201 = vmatprep.subr.bf16.mxu0 %v2993
        %3202 = vmatpush2.bf16.msra.mxu0 %v2992
        %3203 = vmatprep.subr.bf16.mxu0 %v2989
        %3204 = vmatpush2.bf16.msra.mxu0 %v2988
        %3205 = vmatprep.subr.bf16.mxu0 %v2985
        %3206 = vmatpush2.bf16.msra.mxu0 %v2984
        %3207 = vmatprep.subr.bf16.mxu0 %v2981
        %3208 = vmatpush2.bf16.msra.mxu0 %v2980
        %3209 = vmatprep.subr.bf16.mxu0 %v2977
        %3210 = vmatpush2.bf16.msra.mxu0 %v2976
        %3211 = vmatprep.mubr.bf16.mxu0 %v1337
        %3212 = vmatmul.mubr.bf16.gmra.mxu0 %v1336
        %v3213 = vpop.f32.mrf.mxu0
        %v3214 = vadd.f32 %v3171, %v3213
        %v3215 = vpop.f32.mrf.mxu0
        %v3216 = vadd.f32 %v3173, %v3215
        %v3217 = vpop.f32.mrf.mxu0
        %v3218 = vadd.f32 %v3175, %v3217
        %v3219 = vpop.f32.mrf.mxu0
        %v3220 = vadd.f32 %v3177, %v3219
        %3221 = vdwg.mxu0
        %3222 = vmatprep.subr.bf16.mxu0 %v2911
        %3223 = vmatpush1.bf16.msra.mxu0 %v2910
        %3224 = vmatprep.subr.bf16.mxu0 %v2907
        %3225 = vmatpush1.bf16.msra.mxu0 %v2906
        %3226 = vmatprep.subr.bf16.mxu0 %v2903
        %3227 = vmatpush1.bf16.msra.mxu0 %v2902
        %3228 = vmatprep.subr.bf16.mxu0 %v2899
        %3229 = vmatpush1.bf16.msra.mxu0 %v2898
        %3230 = vmatprep.subr.bf16.mxu0 %v2895
        %3231 = vmatpush1.bf16.msra.mxu0 %v2894
        %3232 = vmatprep.subr.bf16.mxu0 %v2891
        %3233 = vmatpush1.bf16.msra.mxu0 %v2890
        %3234 = vmatprep.subr.bf16.mxu0 %v2887
        %3235 = vmatpush1.bf16.msra.mxu0 %v2886
        %3236 = vmatprep.subr.bf16.mxu0 %v2883
        %3237 = vmatpush1.bf16.msra.mxu0 %v2882
        %3238 = vmatprep.subr.bf16.mxu0 %v2943
        %3239 = vmatpush2.bf16.msra.mxu0 %v2942
        %3240 = vmatprep.subr.bf16.mxu0 %v2939
        %3241 = vmatpush2.bf16.msra.mxu0 %v2938
        %3242 = vmatprep.subr.bf16.mxu0 %v2935
        %3243 = vmatpush2.bf16.msra.mxu0 %v2934
        %3244 = vmatprep.subr.bf16.mxu0 %v2931
        %3245 = vmatpush2.bf16.msra.mxu0 %v2930
        %3246 = vmatprep.subr.bf16.mxu0 %v2927
        %3247 = vmatpush2.bf16.msra.mxu0 %v2926
        %3248 = vmatprep.subr.bf16.mxu0 %v2923
        %3249 = vmatpush2.bf16.msra.mxu0 %v2922
        %3250 = vmatprep.subr.bf16.mxu0 %v2919
        %3251 = vmatpush2.bf16.msra.mxu0 %v2918
        %3252 = vmatprep.subr.bf16.mxu0 %v2915
        %3253 = vmatpush2.bf16.msra.mxu0 %v2914
        %3254 = vmatprep.mubr.bf16.mxu0 %v1335
        %3255 = vmatmul.mubr.bf16.gmra.mxu0 %v1334
        %v3256 = vpop.f32.mrf.mxu0
        %v3257 = vadd.f32 %v2488, %v3256
        %v3258 = vpop.f32.mrf.mxu0
        %v3259 = vadd.f32 %v2490, %v3258
        %v3260 = vpop.f32.mrf.mxu0
        %v3261 = vadd.f32 %v2492, %v3260
        %v3262 = vpop.f32.mrf.mxu0
        %v3263 = vadd.f32 %v2494, %v3262
        %3264 = vdwg.mxu0
        %3265 = vmatprep.subr.bf16.mxu0 %v2975
        %3266 = vmatpush1.bf16.msra.mxu0 %v2974
        %3267 = vmatprep.subr.bf16.mxu0 %v2971
        %3268 = vmatpush1.bf16.msra.mxu0 %v2970
        %3269 = vmatprep.subr.bf16.mxu0 %v2967
        %3270 = vmatpush1.bf16.msra.mxu0 %v2966
        %3271 = vmatprep.subr.bf16.mxu0 %v2963
        %3272 = vmatpush1.bf16.msra.mxu0 %v2962
        %3273 = vmatprep.subr.bf16.mxu0 %v2959
        %3274 = vmatpush1.bf16.msra.mxu0 %v2958
        %3275 = vmatprep.subr.bf16.mxu0 %v2955
        %3276 = vmatpush1.bf16.msra.mxu0 %v2954
        %3277 = vmatprep.subr.bf16.mxu0 %v2951
        %3278 = vmatpush1.bf16.msra.mxu0 %v2950
        %3279 = vmatprep.subr.bf16.mxu0 %v2947
        %3280 = vmatpush1.bf16.msra.mxu0 %v2946
        %3281 = vmatprep.subr.bf16.mxu0 %v3007
        %3282 = vmatpush2.bf16.msra.mxu0 %v3006
        %3283 = vmatprep.subr.bf16.mxu0 %v3003
        %3284 = vmatpush2.bf16.msra.mxu0 %v3002
        %3285 = vmatprep.subr.bf16.mxu0 %v2999
        %3286 = vmatpush2.bf16.msra.mxu0 %v2998
        %3287 = vmatprep.subr.bf16.mxu0 %v2995
        %3288 = vmatpush2.bf16.msra.mxu0 %v2994
        %3289 = vmatprep.subr.bf16.mxu0 %v2991
        %3290 = vmatpush2.bf16.msra.mxu0 %v2990
        %3291 = vmatprep.subr.bf16.mxu0 %v2987
        %3292 = vmatpush2.bf16.msra.mxu0 %v2986
        %3293 = vmatprep.subr.bf16.mxu0 %v2983
        %3294 = vmatpush2.bf16.msra.mxu0 %v2982
        %3295 = vmatprep.subr.bf16.mxu0 %v2979
        %3296 = vmatpush2.bf16.msra.mxu0 %v2978
        %3297 = vmatprep.mubr.bf16.mxu0 %v1337
        %3298 = vmatmul.mubr.bf16.gmra.mxu0 %v1336
        %v3299 = vpop.f32.mrf.mxu0
        %v3300 = vadd.f32 %v3257, %v3299
        %v3301 = vpop.f32.mrf.mxu0
        %v3302 = vadd.f32 %v3259, %v3301
        %v3303 = vpop.f32.mrf.mxu0
        %v3304 = vadd.f32 %v3261, %v3303
        %v3305 = vpop.f32.mrf.mxu0
        %v3306 = vadd.f32 %v3263, %v3305
        %3307 = vdwg.mxu0
        %v3308 = vld [vmem:[%s10] sm:$0xf]
        %v3310 = vlaneseq
        %v3311 = vshrl.u32 %v3310, 7
        %v3312 = vsub.s32 0, %v3311
        %v3313 = vrot.slane %v3308, %v3312
        %v3314 = vlaneseq
        %v3315 = vshrl.u32 %v3314, 7
        %v3316 = vsub.s32 1, %v3315
        %v3317 = vrot.slane %v3308, %v3316
        %v3318 = vlaneseq
        %v3319 = vshrl.u32 %v3318, 7
        %v3320 = vsub.s32 2, %v3319
        %v3321 = vrot.slane %v3308, %v3320
        %v3322 = vlaneseq
        %v3323 = vshrl.u32 %v3322, 7
        %v3324 = vsub.s32 3, %v3323
        %v3325 = vrot.slane %v3308, %v3324
        %v3330 = vadd.f32 %v3214, %v3313
        %v3331 = vadd.f32 %v3216, %v3317
        %v3332 = vadd.f32 %v3300, %v3321
        %v3333 = vadd.f32 %v3302, %v3325
        %v3334 = vadd.f32 %v3218, %v3313
        %v3335 = vadd.f32 %v3220, %v3317
        %v3336 = vadd.f32 %v3304, %v3321
        %v3337 = vadd.f32 %v3306, %v3325
        %v3338 = vmax.f32 %v3330, 0.0
        %v3339 = vmax.f32 %v3331, 0.0
        %v3340 = vmax.f32 %v3332, 0.0
        %v3341 = vmax.f32 %v3333, 0.0
        %v3342 = vmax.f32 %v3334, 0.0
        %v3343 = vmax.f32 %v3335, 0.0
        %v3344 = vmax.f32 %v3336, 0.0
        %v3345 = vmax.f32 %v3337, 0.0
        %v3346 = vpack.c.bf16 %v3342, %v3338
        %v3347 = vpack.c.bf16 %v3343, %v3339
        %v3348 = vpack.c.bf16 %v3344, %v3340
        %v3349 = vpack.c.bf16 %v3345, %v3341
        %3350 = vmatprep.subr.bf16.mxu0 0
        %3351 = vmatpush1.bf16.msra.mxu0 0
        %3352 = vmatprep.subr.bf16.mxu0 0
        %3353 = vmatpush1.bf16.msra.mxu0 0
        %3354 = vmatprep.subr.bf16.mxu0 0
        %3355 = vmatpush1.bf16.msra.mxu0 0
        %3356 = vmatprep.subr.bf16.mxu0 0
        %3357 = vmatpush1.bf16.msra.mxu0 0
        %3358 = vmatprep.subr.bf16.mxu0 0
        %3359 = vmatpush1.bf16.msra.mxu0 0
        %3360 = vmatprep.subr.bf16.mxu0 0
        %3361 = vmatpush1.bf16.msra.mxu0 0
        %3362 = vmatprep.subr.bf16.mxu0 0
        %3363 = vmatpush1.bf16.msra.mxu0 0
        %3364 = vmatprep.subr.bf16.mxu0 %v3347
        %3365 = vmatpush1.bf16.msra.mxu0 %v3346
        %3366 = vmatprep.subr.bf16.mxu0 0
        %3367 = vmatpush2.bf16.msra.mxu0 0
        %3368 = vmatprep.subr.bf16.mxu0 0
        %3369 = vmatpush2.bf16.msra.mxu0 0
        %3370 = vmatprep.subr.bf16.mxu0 0
        %3371 = vmatpush2.bf16.msra.mxu0 0
        %3372 = vmatprep.subr.bf16.mxu0 0
        %3373 = vmatpush2.bf16.msra.mxu0 0
        %3374 = vmatprep.subr.bf16.mxu0 0
        %3375 = vmatpush2.bf16.msra.mxu0 0
        %3376 = vmatprep.subr.bf16.mxu0 0
        %3377 = vmatpush2.bf16.msra.mxu0 0
        %3378 = vmatprep.subr.bf16.mxu0 0
        %3379 = vmatpush2.bf16.msra.mxu0 0
        %3380 = vmatprep.subr.bf16.mxu0 0
        %3381 = vmatpush2.bf16.msra.mxu0 0
        %3382 = vmatprep.mubr.bf16.mxu0 0
        %3383 = vmatmul.mubr.bf16.gmra.mxu0 %v977
        %v3384 = vpop.f32.mrf.mxu0
        %v3385 = vadd.f32 0.0, %v3384
        %v3386 = vpop.f32.mrf.mxu0
        %v3387 = vadd.f32 0.0, %v3386
        %v3388 = vpop.f32.mrf.mxu0
        %v3389 = vadd.f32 0.0, %v3388
        %v3390 = vpop.f32.mrf.mxu0
        %v3391 = vadd.f32 0.0, %v3390
        %3392 = vdwg.mxu0
        %3393 = vmatprep.subr.bf16.mxu0 0
        %3394 = vmatpush1.bf16.msra.mxu0 0
        %3395 = vmatprep.subr.bf16.mxu0 0
        %3396 = vmatpush1.bf16.msra.mxu0 0
        %3397 = vmatprep.subr.bf16.mxu0 0
        %3398 = vmatpush1.bf16.msra.mxu0 0
        %3399 = vmatprep.subr.bf16.mxu0 0
        %3400 = vmatpush1.bf16.msra.mxu0 0
        %3401 = vmatprep.subr.bf16.mxu0 0
        %3402 = vmatpush1.bf16.msra.mxu0 0
        %3403 = vmatprep.subr.bf16.mxu0 0
        %3404 = vmatpush1.bf16.msra.mxu0 0
        %3405 = vmatprep.subr.bf16.mxu0 0
        %3406 = vmatpush1.bf16.msra.mxu0 0
        %3407 = vmatprep.subr.bf16.mxu0 %v3349
        %3408 = vmatpush1.bf16.msra.mxu0 %v3348
        %3409 = vmatprep.subr.bf16.mxu0 0
        %3410 = vmatpush2.bf16.msra.mxu0 0
        %3411 = vmatprep.subr.bf16.mxu0 0
        %3412 = vmatpush2.bf16.msra.mxu0 0
        %3413 = vmatprep.subr.bf16.mxu0 0
        %3414 = vmatpush2.bf16.msra.mxu0 0
        %3415 = vmatprep.subr.bf16.mxu0 0
        %3416 = vmatpush2.bf16.msra.mxu0 0
        %3417 = vmatprep.subr.bf16.mxu0 0
        %3418 = vmatpush2.bf16.msra.mxu0 0
        %3419 = vmatprep.subr.bf16.mxu0 0
        %3420 = vmatpush2.bf16.msra.mxu0 0
        %3421 = vmatprep.subr.bf16.mxu0 0
        %3422 = vmatpush2.bf16.msra.mxu0 0
        %3423 = vmatprep.subr.bf16.mxu0 0
        %3424 = vmatpush2.bf16.msra.mxu0 0
        %3425 = vmatprep.mubr.bf16.mxu0 0
        %3426 = vmatmul.mubr.bf16.gmra.mxu0 %v977
        %v3427 = vpop.f32.mrf.mxu0
        %v3428 = vadd.f32 0.0, %v3427
        %v3429 = vpop.f32.mrf.mxu0
        %v3430 = vadd.f32 0.0, %v3429
        %v3431 = vpop.f32.mrf.mxu0
        %v3432 = vadd.f32 0.0, %v3431
        %v3433 = vpop.f32.mrf.mxu0
        %v3434 = vadd.f32 0.0, %v3433
        %3435 = vdwg.mxu0
        %v3436 = vld [vmem:[#allocation16] sm:$0xff]
        %v3437 = vld [vmem:[#allocation16 + $0x8] sm:$0xff]
        %v3438 = vld [vmem:[#allocation16 + $0x10] sm:$0xff]
        %v3439 = vld [vmem:[#allocation16 + $0x18] sm:$0xff]
        %v3440 = vld [vmem:[#allocation16 + $0x20] sm:$0xff]
        %v3441 = vld [vmem:[#allocation16 + $0x28] sm:$0xff]
        %v3442 = vld [vmem:[#allocation16 + $0x30] sm:$0xff]
        %v3443 = vld [vmem:[#allocation16 + $0x38] sm:$0xff]
        %v3444 = vld [vmem:[#allocation16 + $0x40] sm:$0xff]
        %v3445 = vld [vmem:[#allocation16 + $0x48] sm:$0xff]
        %v3446 = vld [vmem:[#allocation16 + $0x50] sm:$0xff]
        %v3447 = vld [vmem:[#allocation16 + $0x58] sm:$0xff]
        %v3448 = vld [vmem:[#allocation16 + $0x60] sm:$0xff]
        %v3449 = vld [vmem:[#allocation16 + $0x68] sm:$0xff]
        %v3450 = vld [vmem:[#allocation16 + $0x70] sm:$0xff]
        %v3451 = vld [vmem:[#allocation16 + $0x78] sm:$0xff]
        %v3452 = vld [vmem:[#allocation16 + $0x80] sm:$0xff]
        %v3453 = vld [vmem:[#allocation16 + $0x88] sm:$0xff]
        %v3454 = vld [vmem:[#allocation16 + $0x90] sm:$0xff]
        %v3455 = vld [vmem:[#allocation16 + $0x98] sm:$0xff]
        %v3456 = vld [vmem:[#allocation16 + $0xa0] sm:$0xff]
        %v3457 = vld [vmem:[#allocation16 + $0xa8] sm:$0xff]
        %v3458 = vld [vmem:[#allocation16 + $0xb0] sm:$0xff]
        %v3459 = vld [vmem:[#allocation16 + $0xb8] sm:$0xff]
        %v3460 = vld [vmem:[#allocation16 + $0xc0] sm:$0xff]
        %v3461 = vld [vmem:[#allocation16 + $0xc8] sm:$0xff]
        %v3462 = vld [vmem:[#allocation16 + $0xd0] sm:$0xff]
        %v3463 = vld [vmem:[#allocation16 + $0xd8] sm:$0xff]
        %v3464 = vld [vmem:[#allocation16 + $0xe0] sm:$0xff]
        %v3465 = vld [vmem:[#allocation16 + $0xe8] sm:$0xff]
        %v3466 = vld [vmem:[#allocation16 + $0xf0] sm:$0xff]
        %v3467 = vld [vmem:[#allocation16 + $0xf8] sm:$0xff]
        %v3468 = vld [vmem:[#allocation16 + $0x100] sm:$0xff]
        %v3469 = vld [vmem:[#allocation16 + $0x108] sm:$0xff]
        %v3470 = vld [vmem:[#allocation16 + $0x110] sm:$0xff]
        %v3471 = vld [vmem:[#allocation16 + $0x118] sm:$0xff]
        %v3472 = vld [vmem:[#allocation16 + $0x120] sm:$0xff]
        %v3473 = vld [vmem:[#allocation16 + $0x128] sm:$0xff]
        %v3474 = vld [vmem:[#allocation16 + $0x130] sm:$0xff]
        %v3475 = vld [vmem:[#allocation16 + $0x138] sm:$0xff]
        %v3476 = vld [vmem:[#allocation16 + $0x140] sm:$0xff]
        %v3477 = vld [vmem:[#allocation16 + $0x148] sm:$0xff]
        %v3478 = vld [vmem:[#allocation16 + $0x150] sm:$0xff]
        %v3479 = vld [vmem:[#allocation16 + $0x158] sm:$0xff]
        %v3480 = vld [vmem:[#allocation16 + $0x160] sm:$0xff]
        %v3481 = vld [vmem:[#allocation16 + $0x168] sm:$0xff]
        %v3482 = vld [vmem:[#allocation16 + $0x170] sm:$0xff]
        %v3483 = vld [vmem:[#allocation16 + $0x178] sm:$0xff]
        %v3484 = vld [vmem:[#allocation16 + $0x180] sm:$0xff]
        %v3485 = vld [vmem:[#allocation16 + $0x188] sm:$0xff]
        %v3486 = vld [vmem:[#allocation16 + $0x190] sm:$0xff]
        %v3487 = vld [vmem:[#allocation16 + $0x198] sm:$0xff]
        %v3488 = vld [vmem:[#allocation16 + $0x1a0] sm:$0xff]
        %v3489 = vld [vmem:[#allocation16 + $0x1a8] sm:$0xff]
        %v3490 = vld [vmem:[#allocation16 + $0x1b0] sm:$0xff]
        %v3491 = vld [vmem:[#allocation16 + $0x1b8] sm:$0xff]
        %v3492 = vld [vmem:[#allocation16 + $0x1c0] sm:$0xff]
        %v3493 = vld [vmem:[#allocation16 + $0x1c8] sm:$0xff]
        %v3494 = vld [vmem:[#allocation16 + $0x1d0] sm:$0xff]
        %v3495 = vld [vmem:[#allocation16 + $0x1d8] sm:$0xff]
        %v3496 = vld [vmem:[#allocation16 + $0x1e0] sm:$0xff]
        %v3497 = vld [vmem:[#allocation16 + $0x1e8] sm:$0xff]
        %v3498 = vld [vmem:[#allocation16 + $0x1f0] sm:$0xff]
        %v3499 = vld [vmem:[#allocation16 + $0x1f8] sm:$0xff]
        %v3500 = vpack.c.bf16 %v3389, %v3385
        %v3501 = vpack.c.bf16 %v3391, %v3387
        %v3502 = vpack.c.bf16 %v3432, %v3428
        %v3503 = vpack.c.bf16 %v3434, %v3430
        %v3504 = vld [vmem:[#allocation18] sm:$0xff]
        %v3505 = vld [vmem:[#allocation18 + $0x8] sm:$0xff]
        %v3506 = vld [vmem:[#allocation18 + $0x10] sm:$0xff]
        %v3507 = vld [vmem:[#allocation18 + $0x18] sm:$0xff]
        %v3508 = vld [vmem:[#allocation18 + $0x20] sm:$0xff]
        %v3509 = vld [vmem:[#allocation18 + $0x28] sm:$0xff]
        %v3510 = vld [vmem:[#allocation18 + $0x30] sm:$0xff]
        %v3511 = vld [vmem:[#allocation18 + $0x38] sm:$0xff]
        %v3512 = vld [vmem:[#allocation18 + $0x40] sm:$0xff]
        %v3513 = vld [vmem:[#allocation18 + $0x48] sm:$0xff]
        %v3514 = vld [vmem:[#allocation18 + $0x50] sm:$0xff]
        %v3515 = vld [vmem:[#allocation18 + $0x58] sm:$0xff]
        %v3516 = vld [vmem:[#allocation18 + $0x60] sm:$0xff]
        %v3517 = vld [vmem:[#allocation18 + $0x68] sm:$0xff]
        %v3518 = vld [vmem:[#allocation18 + $0x70] sm:$0xff]
        %v3519 = vld [vmem:[#allocation18 + $0x78] sm:$0xff]
        %v3520 = vld [vmem:[#allocation18 + $0x80] sm:$0xff]
        %v3521 = vld [vmem:[#allocation18 + $0x88] sm:$0xff]
        %v3522 = vld [vmem:[#allocation18 + $0x90] sm:$0xff]
        %v3523 = vld [vmem:[#allocation18 + $0x98] sm:$0xff]
        %v3524 = vld [vmem:[#allocation18 + $0xa0] sm:$0xff]
        %v3525 = vld [vmem:[#allocation18 + $0xa8] sm:$0xff]
        %v3526 = vld [vmem:[#allocation18 + $0xb0] sm:$0xff]
        %v3527 = vld [vmem:[#allocation18 + $0xb8] sm:$0xff]
        %v3528 = vld [vmem:[#allocation18 + $0xc0] sm:$0xff]
        %v3529 = vld [vmem:[#allocation18 + $0xc8] sm:$0xff]
        %v3530 = vld [vmem:[#allocation18 + $0xd0] sm:$0xff]
        %v3531 = vld [vmem:[#allocation18 + $0xd8] sm:$0xff]
        %v3532 = vld [vmem:[#allocation18 + $0xe0] sm:$0xff]
        %v3533 = vld [vmem:[#allocation18 + $0xe8] sm:$0xff]
        %v3534 = vld [vmem:[#allocation18 + $0xf0] sm:$0xff]
        %v3535 = vld [vmem:[#allocation18 + $0xf8] sm:$0xff]
        %v3536 = vld [vmem:[#allocation18 + $0x100] sm:$0xff]
        %v3537 = vld [vmem:[#allocation18 + $0x108] sm:$0xff]
        %v3538 = vld [vmem:[#allocation18 + $0x110] sm:$0xff]
        %v3539 = vld [vmem:[#allocation18 + $0x118] sm:$0xff]
        %v3540 = vld [vmem:[#allocation18 + $0x120] sm:$0xff]
        %v3541 = vld [vmem:[#allocation18 + $0x128] sm:$0xff]
        %v3542 = vld [vmem:[#allocation18 + $0x130] sm:$0xff]
        %v3543 = vld [vmem:[#allocation18 + $0x138] sm:$0xff]
        %v3544 = vld [vmem:[#allocation18 + $0x140] sm:$0xff]
        %v3545 = vld [vmem:[#allocation18 + $0x148] sm:$0xff]
        %v3546 = vld [vmem:[#allocation18 + $0x150] sm:$0xff]
        %v3547 = vld [vmem:[#allocation18 + $0x158] sm:$0xff]
        %v3548 = vld [vmem:[#allocation18 + $0x160] sm:$0xff]
        %v3549 = vld [vmem:[#allocation18 + $0x168] sm:$0xff]
        %v3550 = vld [vmem:[#allocation18 + $0x170] sm:$0xff]
        %v3551 = vld [vmem:[#allocation18 + $0x178] sm:$0xff]
        %v3552 = vld [vmem:[#allocation18 + $0x180] sm:$0xff]
        %v3553 = vld [vmem:[#allocation18 + $0x188] sm:$0xff]
        %v3554 = vld [vmem:[#allocation18 + $0x190] sm:$0xff]
        %v3555 = vld [vmem:[#allocation18 + $0x198] sm:$0xff]
        %v3556 = vld [vmem:[#allocation18 + $0x1a0] sm:$0xff]
        %v3557 = vld [vmem:[#allocation18 + $0x1a8] sm:$0xff]
        %v3558 = vld [vmem:[#allocation18 + $0x1b0] sm:$0xff]
        %v3559 = vld [vmem:[#allocation18 + $0x1b8] sm:$0xff]
        %v3560 = vld [vmem:[#allocation18 + $0x1c0] sm:$0xff]
        %v3561 = vld [vmem:[#allocation18 + $0x1c8] sm:$0xff]
        %v3562 = vld [vmem:[#allocation18 + $0x1d0] sm:$0xff]
        %v3563 = vld [vmem:[#allocation18 + $0x1d8] sm:$0xff]
        %v3564 = vld [vmem:[#allocation18 + $0x1e0] sm:$0xff]
        %v3565 = vld [vmem:[#allocation18 + $0x1e8] sm:$0xff]
        %v3566 = vld [vmem:[#allocation18 + $0x1f0] sm:$0xff]
        %v3567 = vld [vmem:[#allocation18 + $0x1f8] sm:$0xff]
        %v3632 = vunpack.c.l.b16 %v3504
        %v3633 = vunpack.c.h.b16 %v3504
        %v3634 = vunpack.c.l.b16 %v3505
        %v3635 = vunpack.c.h.b16 %v3505
        %v3636 = vunpack.c.l.b16 %v3506
        %v3637 = vunpack.c.h.b16 %v3506
        %v3638 = vunpack.c.l.b16 %v3507
        %v3639 = vunpack.c.h.b16 %v3507
        %v3640 = vunpack.c.l.b16 %v3508
        %v3641 = vunpack.c.h.b16 %v3508
        %v3642 = vunpack.c.l.b16 %v3509
        %v3643 = vunpack.c.h.b16 %v3509
        %v3644 = vunpack.c.l.b16 %v3510
        %v3645 = vunpack.c.h.b16 %v3510
        %v3646 = vunpack.c.l.b16 %v3511
        %v3647 = vunpack.c.h.b16 %v3511
        %v3648 = vunpack.c.l.b16 %v3512
        %v3649 = vunpack.c.h.b16 %v3512
        %v3650 = vunpack.c.l.b16 %v3513
        %v3651 = vunpack.c.h.b16 %v3513
        %v3652 = vunpack.c.l.b16 %v3514
        %v3653 = vunpack.c.h.b16 %v3514
        %v3654 = vunpack.c.l.b16 %v3515
        %v3655 = vunpack.c.h.b16 %v3515
        %v3656 = vunpack.c.l.b16 %v3516
        %v3657 = vunpack.c.h.b16 %v3516
        %v3658 = vunpack.c.l.b16 %v3517
        %v3659 = vunpack.c.h.b16 %v3517
        %v3660 = vunpack.c.l.b16 %v3518
        %v3661 = vunpack.c.h.b16 %v3518
        %v3662 = vunpack.c.l.b16 %v3519
        %v3663 = vunpack.c.h.b16 %v3519
        %v3664 = vunpack.c.l.b16 %v3520
        %v3665 = vunpack.c.h.b16 %v3520
        %v3666 = vunpack.c.l.b16 %v3521
        %v3667 = vunpack.c.h.b16 %v3521
        %v3668 = vunpack.c.l.b16 %v3522
        %v3669 = vunpack.c.h.b16 %v3522
        %v3670 = vunpack.c.l.b16 %v3523
        %v3671 = vunpack.c.h.b16 %v3523
        %v3672 = vunpack.c.l.b16 %v3524
        %v3673 = vunpack.c.h.b16 %v3524
        %v3674 = vunpack.c.l.b16 %v3525
        %v3675 = vunpack.c.h.b16 %v3525
        %v3676 = vunpack.c.l.b16 %v3526
        %v3677 = vunpack.c.h.b16 %v3526
        %v3678 = vunpack.c.l.b16 %v3527
        %v3679 = vunpack.c.h.b16 %v3527
        %v3680 = vunpack.c.l.b16 %v3528
        %v3681 = vunpack.c.h.b16 %v3528
        %v3682 = vunpack.c.l.b16 %v3529
        %v3683 = vunpack.c.h.b16 %v3529
        %v3684 = vunpack.c.l.b16 %v3530
        %v3685 = vunpack.c.h.b16 %v3530
        %v3686 = vunpack.c.l.b16 %v3531
        %v3687 = vunpack.c.h.b16 %v3531
        %v3688 = vunpack.c.l.b16 %v3532
        %v3689 = vunpack.c.h.b16 %v3532
        %v3690 = vunpack.c.l.b16 %v3533
        %v3691 = vunpack.c.h.b16 %v3533
        %v3692 = vunpack.c.l.b16 %v3534
        %v3693 = vunpack.c.h.b16 %v3534
        %v3694 = vunpack.c.l.b16 %v3535
        %v3695 = vunpack.c.h.b16 %v3535
        %v3696 = vunpack.c.l.b16 %v3536
        %v3697 = vunpack.c.h.b16 %v3536
        %v3698 = vunpack.c.l.b16 %v3537
        %v3699 = vunpack.c.h.b16 %v3537
        %v3700 = vunpack.c.l.b16 %v3538
        %v3701 = vunpack.c.h.b16 %v3538
        %v3702 = vunpack.c.l.b16 %v3539
        %v3703 = vunpack.c.h.b16 %v3539
        %v3704 = vunpack.c.l.b16 %v3540
        %v3705 = vunpack.c.h.b16 %v3540
        %v3706 = vunpack.c.l.b16 %v3541
        %v3707 = vunpack.c.h.b16 %v3541
        %v3708 = vunpack.c.l.b16 %v3542
        %v3709 = vunpack.c.h.b16 %v3542
        %v3710 = vunpack.c.l.b16 %v3543
        %v3711 = vunpack.c.h.b16 %v3543
        %v3712 = vunpack.c.l.b16 %v3544
        %v3713 = vunpack.c.h.b16 %v3544
        %v3714 = vunpack.c.l.b16 %v3545
        %v3715 = vunpack.c.h.b16 %v3545
        %v3716 = vunpack.c.l.b16 %v3546
        %v3717 = vunpack.c.h.b16 %v3546
        %v3718 = vunpack.c.l.b16 %v3547
        %v3719 = vunpack.c.h.b16 %v3547
        %v3720 = vunpack.c.l.b16 %v3548
        %v3721 = vunpack.c.h.b16 %v3548
        %v3722 = vunpack.c.l.b16 %v3549
        %v3723 = vunpack.c.h.b16 %v3549
        %v3724 = vunpack.c.l.b16 %v3550
        %v3725 = vunpack.c.h.b16 %v3550
        %v3726 = vunpack.c.l.b16 %v3551
        %v3727 = vunpack.c.h.b16 %v3551
        %v3728 = vunpack.c.l.b16 %v3552
        %v3729 = vunpack.c.h.b16 %v3552
        %v3730 = vunpack.c.l.b16 %v3553
        %v3731 = vunpack.c.h.b16 %v3553
        %v3732 = vunpack.c.l.b16 %v3554
        %v3733 = vunpack.c.h.b16 %v3554
        %v3734 = vunpack.c.l.b16 %v3555
        %v3735 = vunpack.c.h.b16 %v3555
        %v3736 = vunpack.c.l.b16 %v3556
        %v3737 = vunpack.c.h.b16 %v3556
        %v3738 = vunpack.c.l.b16 %v3557
        %v3739 = vunpack.c.h.b16 %v3557
        %v3740 = vunpack.c.l.b16 %v3558
        %v3741 = vunpack.c.h.b16 %v3558
        %v3742 = vunpack.c.l.b16 %v3559
        %v3743 = vunpack.c.h.b16 %v3559
        %v3744 = vunpack.c.l.b16 %v3560
        %v3745 = vunpack.c.h.b16 %v3560
        %v3746 = vunpack.c.l.b16 %v3561
        %v3747 = vunpack.c.h.b16 %v3561
        %v3748 = vunpack.c.l.b16 %v3562
        %v3749 = vunpack.c.h.b16 %v3562
        %v3750 = vunpack.c.l.b16 %v3563
        %v3751 = vunpack.c.h.b16 %v3563
        %v3752 = vunpack.c.l.b16 %v3564
        %v3753 = vunpack.c.h.b16 %v3564
        %v3754 = vunpack.c.l.b16 %v3565
        %v3755 = vunpack.c.h.b16 %v3565
        %v3756 = vunpack.c.l.b16 %v3566
        %v3757 = vunpack.c.h.b16 %v3566
        %v3758 = vunpack.c.l.b16 %v3567
        %v3759 = vunpack.c.h.b16 %v3567
        %v3760 = vpack.c.b16 %v3634, %v3632
        %v3761 = vpack.c.b16 %v3635, %v3633
        %v3762 = vpack.c.b16 %v3638, %v3636
        %v3763 = vpack.c.b16 %v3639, %v3637
        %v3764 = vpack.c.b16 %v3642, %v3640
        %v3765 = vpack.c.b16 %v3643, %v3641
        %v3766 = vpack.c.b16 %v3646, %v3644
        %v3767 = vpack.c.b16 %v3647, %v3645
        %v3768 = vpack.c.b16 %v3650, %v3648
        %v3769 = vpack.c.b16 %v3651, %v3649
        %v3770 = vpack.c.b16 %v3654, %v3652
        %v3771 = vpack.c.b16 %v3655, %v3653
        %v3772 = vpack.c.b16 %v3658, %v3656
        %v3773 = vpack.c.b16 %v3659, %v3657
        %v3774 = vpack.c.b16 %v3662, %v3660
        %v3775 = vpack.c.b16 %v3663, %v3661
        %v3776 = vpack.c.b16 %v3666, %v3664
        %v3777 = vpack.c.b16 %v3667, %v3665
        %v3778 = vpack.c.b16 %v3670, %v3668
        %v3779 = vpack.c.b16 %v3671, %v3669
        %v3780 = vpack.c.b16 %v3674, %v3672
        %v3781 = vpack.c.b16 %v3675, %v3673
        %v3782 = vpack.c.b16 %v3678, %v3676
        %v3783 = vpack.c.b16 %v3679, %v3677
        %v3784 = vpack.c.b16 %v3682, %v3680
        %v3785 = vpack.c.b16 %v3683, %v3681
        %v3786 = vpack.c.b16 %v3686, %v3684
        %v3787 = vpack.c.b16 %v3687, %v3685
        %v3788 = vpack.c.b16 %v3690, %v3688
        %v3789 = vpack.c.b16 %v3691, %v3689
        %v3790 = vpack.c.b16 %v3694, %v3692
        %v3791 = vpack.c.b16 %v3695, %v3693
        %v3792 = vpack.c.b16 %v3698, %v3696
        %v3793 = vpack.c.b16 %v3699, %v3697
        %v3794 = vpack.c.b16 %v3702, %v3700
        %v3795 = vpack.c.b16 %v3703, %v3701
        %v3796 = vpack.c.b16 %v3706, %v3704
        %v3797 = vpack.c.b16 %v3707, %v3705
        %v3798 = vpack.c.b16 %v3710, %v3708
        %v3799 = vpack.c.b16 %v3711, %v3709
        %v3800 = vpack.c.b16 %v3714, %v3712
        %v3801 = vpack.c.b16 %v3715, %v3713
        %v3802 = vpack.c.b16 %v3718, %v3716
        %v3803 = vpack.c.b16 %v3719, %v3717
        %v3804 = vpack.c.b16 %v3722, %v3720
        %v3805 = vpack.c.b16 %v3723, %v3721
        %v3806 = vpack.c.b16 %v3726, %v3724
        %v3807 = vpack.c.b16 %v3727, %v3725
        %v3808 = vpack.c.b16 %v3730, %v3728
        %v3809 = vpack.c.b16 %v3731, %v3729
        %v3810 = vpack.c.b16 %v3734, %v3732
        %v3811 = vpack.c.b16 %v3735, %v3733
        %v3812 = vpack.c.b16 %v3738, %v3736
        %v3813 = vpack.c.b16 %v3739, %v3737
        %v3814 = vpack.c.b16 %v3742, %v3740
        %v3815 = vpack.c.b16 %v3743, %v3741
        %v3816 = vpack.c.b16 %v3746, %v3744
        %v3817 = vpack.c.b16 %v3747, %v3745
        %v3818 = vpack.c.b16 %v3750, %v3748
        %v3819 = vpack.c.b16 %v3751, %v3749
        %v3820 = vpack.c.b16 %v3754, %v3752
        %v3821 = vpack.c.b16 %v3755, %v3753
        %v3822 = vpack.c.b16 %v3758, %v3756
        %v3823 = vpack.c.b16 %v3759, %v3757
        %3888 = vmatprep.subr.bf16.mxu0 %v3775
        %3889 = vmatpush1.bf16.msra.mxu0 %v3774
        %3890 = vmatprep.subr.bf16.mxu0 %v3773
        %3891 = vmatpush1.bf16.msra.mxu0 %v3772
        %3892 = vmatprep.subr.bf16.mxu0 %v3771
        %3893 = vmatpush1.bf16.msra.mxu0 %v3770
        %3894 = vmatprep.subr.bf16.mxu0 %v3769
        %3895 = vmatpush1.bf16.msra.mxu0 %v3768
        %3896 = vmatprep.subr.bf16.mxu0 %v3767
        %3897 = vmatpush1.bf16.msra.mxu0 %v3766
        %3898 = vmatprep.subr.bf16.mxu0 %v3765
        %3899 = vmatpush1.bf16.msra.mxu0 %v3764
        %3900 = vmatprep.subr.bf16.mxu0 %v3763
        %3901 = vmatpush1.bf16.msra.mxu0 %v3762
        %3902 = vmatprep.subr.bf16.mxu0 %v3761
        %3903 = vmatpush1.bf16.msra.mxu0 %v3760
        %3904 = vmatprep.subr.bf16.mxu0 %v3791
        %3905 = vmatpush2.bf16.msra.mxu0 %v3790
        %3906 = vmatprep.subr.bf16.mxu0 %v3789
        %3907 = vmatpush2.bf16.msra.mxu0 %v3788
        %3908 = vmatprep.subr.bf16.mxu0 %v3787
        %3909 = vmatpush2.bf16.msra.mxu0 %v3786
        %3910 = vmatprep.subr.bf16.mxu0 %v3785
        %3911 = vmatpush2.bf16.msra.mxu0 %v3784
        %3912 = vmatprep.subr.bf16.mxu0 %v3783
        %3913 = vmatpush2.bf16.msra.mxu0 %v3782
        %3914 = vmatprep.subr.bf16.mxu0 %v3781
        %3915 = vmatpush2.bf16.msra.mxu0 %v3780
        %3916 = vmatprep.subr.bf16.mxu0 %v3779
        %3917 = vmatpush2.bf16.msra.mxu0 %v3778
        %3918 = vmatprep.subr.bf16.mxu0 %v3777
        %3919 = vmatpush2.bf16.msra.mxu0 %v3776
        %3920 = vmatprep.mubr.bf16.mxu0 %v3501
        %3921 = vmatmul.mubr.bf16.gmra.mxu0 %v3500
        %v3922 = vpop.f32.mrf.mxu0
        %v3923 = vadd.f32 0.0, %v3922
        %v3924 = vpop.f32.mrf.mxu0
        %v3925 = vadd.f32 0.0, %v3924
        %v3926 = vpop.f32.mrf.mxu0
        %v3927 = vadd.f32 0.0, %v3926
        %v3928 = vpop.f32.mrf.mxu0
        %v3929 = vadd.f32 0.0, %v3928
        %3930 = vdwg.mxu0
        %3931 = vmatprep.subr.bf16.mxu0 %v3807
        %3932 = vmatpush1.bf16.msra.mxu0 %v3806
        %3933 = vmatprep.subr.bf16.mxu0 %v3805
        %3934 = vmatpush1.bf16.msra.mxu0 %v3804
        %3935 = vmatprep.subr.bf16.mxu0 %v3803
        %3936 = vmatpush1.bf16.msra.mxu0 %v3802
        %3937 = vmatprep.subr.bf16.mxu0 %v3801
        %3938 = vmatpush1.bf16.msra.mxu0 %v3800
        %3939 = vmatprep.subr.bf16.mxu0 %v3799
        %3940 = vmatpush1.bf16.msra.mxu0 %v3798
        %3941 = vmatprep.subr.bf16.mxu0 %v3797
        %3942 = vmatpush1.bf16.msra.mxu0 %v3796
        %3943 = vmatprep.subr.bf16.mxu0 %v3795
        %3944 = vmatpush1.bf16.msra.mxu0 %v3794
        %3945 = vmatprep.subr.bf16.mxu0 %v3793
        %3946 = vmatpush1.bf16.msra.mxu0 %v3792
        %3947 = vmatprep.subr.bf16.mxu0 %v3823
        %3948 = vmatpush2.bf16.msra.mxu0 %v3822
        %3949 = vmatprep.subr.bf16.mxu0 %v3821
        %3950 = vmatpush2.bf16.msra.mxu0 %v3820
        %3951 = vmatprep.subr.bf16.mxu0 %v3819
        %3952 = vmatpush2.bf16.msra.mxu0 %v3818
        %3953 = vmatprep.subr.bf16.mxu0 %v3817
        %3954 = vmatpush2.bf16.msra.mxu0 %v3816
        %3955 = vmatprep.subr.bf16.mxu0 %v3815
        %3956 = vmatpush2.bf16.msra.mxu0 %v3814
        %3957 = vmatprep.subr.bf16.mxu0 %v3813
        %3958 = vmatpush2.bf16.msra.mxu0 %v3812
        %3959 = vmatprep.subr.bf16.mxu0 %v3811
        %3960 = vmatpush2.bf16.msra.mxu0 %v3810
        %3961 = vmatprep.subr.bf16.mxu0 %v3809
        %3962 = vmatpush2.bf16.msra.mxu0 %v3808
        %3963 = vmatprep.mubr.bf16.mxu0 %v3503
        %3964 = vmatmul.mubr.bf16.gmra.mxu0 %v3502
        %v3965 = vpop.f32.mrf.mxu0
        %v3966 = vadd.f32 %v3923, %v3965
        %v3967 = vpop.f32.mrf.mxu0
        %v3968 = vadd.f32 %v3925, %v3967
        %v3969 = vpop.f32.mrf.mxu0
        %v3970 = vadd.f32 %v3927, %v3969
        %v3971 = vpop.f32.mrf.mxu0
        %v3972 = vadd.f32 %v3929, %v3971
        %3973 = vdwg.mxu0
        %v4038 = vunpack.c.l.b16 %v3436
        %v4039 = vunpack.c.h.b16 %v3436
        %v4040 = vunpack.c.l.b16 %v3437
        %v4041 = vunpack.c.h.b16 %v3437
        %v4042 = vunpack.c.l.b16 %v3438
        %v4043 = vunpack.c.h.b16 %v3438
        %v4044 = vunpack.c.l.b16 %v3439
        %v4045 = vunpack.c.h.b16 %v3439
        %v4046 = vunpack.c.l.b16 %v3440
        %v4047 = vunpack.c.h.b16 %v3440
        %v4048 = vunpack.c.l.b16 %v3441
        %v4049 = vunpack.c.h.b16 %v3441
        %v4050 = vunpack.c.l.b16 %v3442
        %v4051 = vunpack.c.h.b16 %v3442
        %v4052 = vunpack.c.l.b16 %v3443
        %v4053 = vunpack.c.h.b16 %v3443
        %v4054 = vunpack.c.l.b16 %v3444
        %v4055 = vunpack.c.h.b16 %v3444
        %v4056 = vunpack.c.l.b16 %v3445
        %v4057 = vunpack.c.h.b16 %v3445
        %v4058 = vunpack.c.l.b16 %v3446
        %v4059 = vunpack.c.h.b16 %v3446
        %v4060 = vunpack.c.l.b16 %v3447
        %v4061 = vunpack.c.h.b16 %v3447
        %v4062 = vunpack.c.l.b16 %v3448
        %v4063 = vunpack.c.h.b16 %v3448
        %v4064 = vunpack.c.l.b16 %v3449
        %v4065 = vunpack.c.h.b16 %v3449
        %v4066 = vunpack.c.l.b16 %v3450
        %v4067 = vunpack.c.h.b16 %v3450
        %v4068 = vunpack.c.l.b16 %v3451
        %v4069 = vunpack.c.h.b16 %v3451
        %v4070 = vunpack.c.l.b16 %v3452
        %v4071 = vunpack.c.h.b16 %v3452
        %v4072 = vunpack.c.l.b16 %v3453
        %v4073 = vunpack.c.h.b16 %v3453
        %v4074 = vunpack.c.l.b16 %v3454
        %v4075 = vunpack.c.h.b16 %v3454
        %v4076 = vunpack.c.l.b16 %v3455
        %v4077 = vunpack.c.h.b16 %v3455
        %v4078 = vunpack.c.l.b16 %v3456
        %v4079 = vunpack.c.h.b16 %v3456
        %v4080 = vunpack.c.l.b16 %v3457
        %v4081 = vunpack.c.h.b16 %v3457
        %v4082 = vunpack.c.l.b16 %v3458
        %v4083 = vunpack.c.h.b16 %v3458
        %v4084 = vunpack.c.l.b16 %v3459
        %v4085 = vunpack.c.h.b16 %v3459
        %v4086 = vunpack.c.l.b16 %v3460
        %v4087 = vunpack.c.h.b16 %v3460
        %v4088 = vunpack.c.l.b16 %v3461
        %v4089 = vunpack.c.h.b16 %v3461
        %v4090 = vunpack.c.l.b16 %v3462
        %v4091 = vunpack.c.h.b16 %v3462
        %v4092 = vunpack.c.l.b16 %v3463
        %v4093 = vunpack.c.h.b16 %v3463
        %v4094 = vunpack.c.l.b16 %v3464
        %v4095 = vunpack.c.h.b16 %v3464
        %v4096 = vunpack.c.l.b16 %v3465
        %v4097 = vunpack.c.h.b16 %v3465
        %v4098 = vunpack.c.l.b16 %v3466
        %v4099 = vunpack.c.h.b16 %v3466
        %v4100 = vunpack.c.l.b16 %v3467
        %v4101 = vunpack.c.h.b16 %v3467
        %v4102 = vunpack.c.l.b16 %v3468
        %v4103 = vunpack.c.h.b16 %v3468
        %v4104 = vunpack.c.l.b16 %v3469
        %v4105 = vunpack.c.h.b16 %v3469
        %v4106 = vunpack.c.l.b16 %v3470
        %v4107 = vunpack.c.h.b16 %v3470
        %v4108 = vunpack.c.l.b16 %v3471
        %v4109 = vunpack.c.h.b16 %v3471
        %v4110 = vunpack.c.l.b16 %v3472
        %v4111 = vunpack.c.h.b16 %v3472
        %v4112 = vunpack.c.l.b16 %v3473
        %v4113 = vunpack.c.h.b16 %v3473
        %v4114 = vunpack.c.l.b16 %v3474
        %v4115 = vunpack.c.h.b16 %v3474
        %v4116 = vunpack.c.l.b16 %v3475
        %v4117 = vunpack.c.h.b16 %v3475
        %v4118 = vunpack.c.l.b16 %v3476
        %v4119 = vunpack.c.h.b16 %v3476
        %v4120 = vunpack.c.l.b16 %v3477
        %v4121 = vunpack.c.h.b16 %v3477
        %v4122 = vunpack.c.l.b16 %v3478
        %v4123 = vunpack.c.h.b16 %v3478
        %v4124 = vunpack.c.l.b16 %v3479
        %v4125 = vunpack.c.h.b16 %v3479
        %v4126 = vunpack.c.l.b16 %v3480
        %v4127 = vunpack.c.h.b16 %v3480
        %v4128 = vunpack.c.l.b16 %v3481
        %v4129 = vunpack.c.h.b16 %v3481
        %v4130 = vunpack.c.l.b16 %v3482
        %v4131 = vunpack.c.h.b16 %v3482
        %v4132 = vunpack.c.l.b16 %v3483
        %v4133 = vunpack.c.h.b16 %v3483
        %v4134 = vunpack.c.l.b16 %v3484
        %v4135 = vunpack.c.h.b16 %v3484
        %v4136 = vunpack.c.l.b16 %v3485
        %v4137 = vunpack.c.h.b16 %v3485
        %v4138 = vunpack.c.l.b16 %v3486
        %v4139 = vunpack.c.h.b16 %v3486
        %v4140 = vunpack.c.l.b16 %v3487
        %v4141 = vunpack.c.h.b16 %v3487
        %v4142 = vunpack.c.l.b16 %v3488
        %v4143 = vunpack.c.h.b16 %v3488
        %v4144 = vunpack.c.l.b16 %v3489
        %v4145 = vunpack.c.h.b16 %v3489
        %v4146 = vunpack.c.l.b16 %v3490
        %v4147 = vunpack.c.h.b16 %v3490
        %v4148 = vunpack.c.l.b16 %v3491
        %v4149 = vunpack.c.h.b16 %v3491
        %v4150 = vunpack.c.l.b16 %v3492
        %v4151 = vunpack.c.h.b16 %v3492
        %v4152 = vunpack.c.l.b16 %v3493
        %v4153 = vunpack.c.h.b16 %v3493
        %v4154 = vunpack.c.l.b16 %v3494
        %v4155 = vunpack.c.h.b16 %v3494
        %v4156 = vunpack.c.l.b16 %v3495
        %v4157 = vunpack.c.h.b16 %v3495
        %v4158 = vunpack.c.l.b16 %v3496
        %v4159 = vunpack.c.h.b16 %v3496
        %v4160 = vunpack.c.l.b16 %v3497
        %v4161 = vunpack.c.h.b16 %v3497
        %v4162 = vunpack.c.l.b16 %v3498
        %v4163 = vunpack.c.h.b16 %v3498
        %v4164 = vunpack.c.l.b16 %v3499
        %v4165 = vunpack.c.h.b16 %v3499
        %v4166 = vpack.c.b16 %v4040, %v4038
        %v4167 = vpack.c.b16 %v4041, %v4039
        %v4168 = vpack.c.b16 %v4044, %v4042
        %v4169 = vpack.c.b16 %v4045, %v4043
        %v4170 = vpack.c.b16 %v4048, %v4046
        %v4171 = vpack.c.b16 %v4049, %v4047
        %v4172 = vpack.c.b16 %v4052, %v4050
        %v4173 = vpack.c.b16 %v4053, %v4051
        %v4174 = vpack.c.b16 %v4056, %v4054
        %v4175 = vpack.c.b16 %v4057, %v4055
        %v4176 = vpack.c.b16 %v4060, %v4058
        %v4177 = vpack.c.b16 %v4061, %v4059
        %v4178 = vpack.c.b16 %v4064, %v4062
        %v4179 = vpack.c.b16 %v4065, %v4063
        %v4180 = vpack.c.b16 %v4068, %v4066
        %v4181 = vpack.c.b16 %v4069, %v4067
        %v4182 = vpack.c.b16 %v4072, %v4070
        %v4183 = vpack.c.b16 %v4073, %v4071
        %v4184 = vpack.c.b16 %v4076, %v4074
        %v4185 = vpack.c.b16 %v4077, %v4075
        %v4186 = vpack.c.b16 %v4080, %v4078
        %v4187 = vpack.c.b16 %v4081, %v4079
        %v4188 = vpack.c.b16 %v4084, %v4082
        %v4189 = vpack.c.b16 %v4085, %v4083
        %v4190 = vpack.c.b16 %v4088, %v4086
        %v4191 = vpack.c.b16 %v4089, %v4087
        %v4192 = vpack.c.b16 %v4092, %v4090
        %v4193 = vpack.c.b16 %v4093, %v4091
        %v4194 = vpack.c.b16 %v4096, %v4094
        %v4195 = vpack.c.b16 %v4097, %v4095
        %v4196 = vpack.c.b16 %v4100, %v4098
        %v4197 = vpack.c.b16 %v4101, %v4099
        %v4198 = vpack.c.b16 %v4104, %v4102
        %v4199 = vpack.c.b16 %v4105, %v4103
        %v4200 = vpack.c.b16 %v4108, %v4106
        %v4201 = vpack.c.b16 %v4109, %v4107
        %v4202 = vpack.c.b16 %v4112, %v4110
        %v4203 = vpack.c.b16 %v4113, %v4111
        %v4204 = vpack.c.b16 %v4116, %v4114
        %v4205 = vpack.c.b16 %v4117, %v4115
        %v4206 = vpack.c.b16 %v4120, %v4118
        %v4207 = vpack.c.b16 %v4121, %v4119
        %v4208 = vpack.c.b16 %v4124, %v4122
        %v4209 = vpack.c.b16 %v4125, %v4123
        %v4210 = vpack.c.b16 %v4128, %v4126
        %v4211 = vpack.c.b16 %v4129, %v4127
        %v4212 = vpack.c.b16 %v4132, %v4130
        %v4213 = vpack.c.b16 %v4133, %v4131
        %v4214 = vpack.c.b16 %v4136, %v4134
        %v4215 = vpack.c.b16 %v4137, %v4135
        %v4216 = vpack.c.b16 %v4140, %v4138
        %v4217 = vpack.c.b16 %v4141, %v4139
        %v4218 = vpack.c.b16 %v4144, %v4142
        %v4219 = vpack.c.b16 %v4145, %v4143
        %v4220 = vpack.c.b16 %v4148, %v4146
        %v4221 = vpack.c.b16 %v4149, %v4147
        %v4222 = vpack.c.b16 %v4152, %v4150
        %v4223 = vpack.c.b16 %v4153, %v4151
        %v4224 = vpack.c.b16 %v4156, %v4154
        %v4225 = vpack.c.b16 %v4157, %v4155
        %v4226 = vpack.c.b16 %v4160, %v4158
        %v4227 = vpack.c.b16 %v4161, %v4159
        %v4228 = vpack.c.b16 %v4164, %v4162
        %v4229 = vpack.c.b16 %v4165, %v4163
        %4294 = vmatprep.subr.bf16.mxu0 %v4181
        %4295 = vmatpush1.bf16.msra.mxu0 %v4180
        %4296 = vmatprep.subr.bf16.mxu0 %v4179
        %4297 = vmatpush1.bf16.msra.mxu0 %v4178
        %4298 = vmatprep.subr.bf16.mxu0 %v4177
        %4299 = vmatpush1.bf16.msra.mxu0 %v4176
        %4300 = vmatprep.subr.bf16.mxu0 %v4175
        %4301 = vmatpush1.bf16.msra.mxu0 %v4174
        %4302 = vmatprep.subr.bf16.mxu0 %v4173
        %4303 = vmatpush1.bf16.msra.mxu0 %v4172
        %4304 = vmatprep.subr.bf16.mxu0 %v4171
        %4305 = vmatpush1.bf16.msra.mxu0 %v4170
        %4306 = vmatprep.subr.bf16.mxu0 %v4169
        %4307 = vmatpush1.bf16.msra.mxu0 %v4168
        %4308 = vmatprep.subr.bf16.mxu0 %v4167
        %4309 = vmatpush1.bf16.msra.mxu0 %v4166
        %4310 = vmatprep.subr.bf16.mxu0 %v4197
        %4311 = vmatpush2.bf16.msra.mxu0 %v4196
        %4312 = vmatprep.subr.bf16.mxu0 %v4195
        %4313 = vmatpush2.bf16.msra.mxu0 %v4194
        %4314 = vmatprep.subr.bf16.mxu0 %v4193
        %4315 = vmatpush2.bf16.msra.mxu0 %v4192
        %4316 = vmatprep.subr.bf16.mxu0 %v4191
        %4317 = vmatpush2.bf16.msra.mxu0 %v4190
        %4318 = vmatprep.subr.bf16.mxu0 %v4189
        %4319 = vmatpush2.bf16.msra.mxu0 %v4188
        %4320 = vmatprep.subr.bf16.mxu0 %v4187
        %4321 = vmatpush2.bf16.msra.mxu0 %v4186
        %4322 = vmatprep.subr.bf16.mxu0 %v4185
        %4323 = vmatpush2.bf16.msra.mxu0 %v4184
        %4324 = vmatprep.subr.bf16.mxu0 %v4183
        %4325 = vmatpush2.bf16.msra.mxu0 %v4182
        %4326 = vmatprep.mubr.bf16.mxu0 %v3347
        %4327 = vmatmul.mubr.bf16.gmra.mxu0 %v3346
        %v4328 = vpop.f32.mrf.mxu0
        %v4329 = vadd.f32 %v3966, %v4328
        %v4330 = vpop.f32.mrf.mxu0
        %v4331 = vadd.f32 %v3968, %v4330
        %v4332 = vpop.f32.mrf.mxu0
        %v4333 = vadd.f32 %v3970, %v4332
        %v4334 = vpop.f32.mrf.mxu0
        %v4335 = vadd.f32 %v3972, %v4334
        %4336 = vdwg.mxu0
        %4337 = vmatprep.subr.bf16.mxu0 %v4213
        %4338 = vmatpush1.bf16.msra.mxu0 %v4212
        %4339 = vmatprep.subr.bf16.mxu0 %v4211
        %4340 = vmatpush1.bf16.msra.mxu0 %v4210
        %4341 = vmatprep.subr.bf16.mxu0 %v4209
        %4342 = vmatpush1.bf16.msra.mxu0 %v4208
        %4343 = vmatprep.subr.bf16.mxu0 %v4207
        %4344 = vmatpush1.bf16.msra.mxu0 %v4206
        %4345 = vmatprep.subr.bf16.mxu0 %v4205
        %4346 = vmatpush1.bf16.msra.mxu0 %v4204
        %4347 = vmatprep.subr.bf16.mxu0 %v4203
        %4348 = vmatpush1.bf16.msra.mxu0 %v4202
        %4349 = vmatprep.subr.bf16.mxu0 %v4201
        %4350 = vmatpush1.bf16.msra.mxu0 %v4200
        %4351 = vmatprep.subr.bf16.mxu0 %v4199
        %4352 = vmatpush1.bf16.msra.mxu0 %v4198
        %4353 = vmatprep.subr.bf16.mxu0 %v4229
        %4354 = vmatpush2.bf16.msra.mxu0 %v4228
        %4355 = vmatprep.subr.bf16.mxu0 %v4227
        %4356 = vmatpush2.bf16.msra.mxu0 %v4226
        %4357 = vmatprep.subr.bf16.mxu0 %v4225
        %4358 = vmatpush2.bf16.msra.mxu0 %v4224
        %4359 = vmatprep.subr.bf16.mxu0 %v4223
        %4360 = vmatpush2.bf16.msra.mxu0 %v4222
        %4361 = vmatprep.subr.bf16.mxu0 %v4221
        %4362 = vmatpush2.bf16.msra.mxu0 %v4220
        %4363 = vmatprep.subr.bf16.mxu0 %v4219
        %4364 = vmatpush2.bf16.msra.mxu0 %v4218
        %4365 = vmatprep.subr.bf16.mxu0 %v4217
        %4366 = vmatpush2.bf16.msra.mxu0 %v4216
        %4367 = vmatprep.subr.bf16.mxu0 %v4215
        %4368 = vmatpush2.bf16.msra.mxu0 %v4214
        %4369 = vmatprep.mubr.bf16.mxu0 %v3349
        %4370 = vmatmul.mubr.bf16.gmra.mxu0 %v3348
        %v4371 = vpop.f32.mrf.mxu0
        %v4372 = vadd.f32 %v4329, %v4371
        %v4373 = vpop.f32.mrf.mxu0
        %v4374 = vadd.f32 %v4331, %v4373
        %v4375 = vpop.f32.mrf.mxu0
        %v4376 = vadd.f32 %v4333, %v4375
        %v4377 = vpop.f32.mrf.mxu0
        %v4378 = vadd.f32 %v4335, %v4377
        %4379 = vdwg.mxu0
        %v4380 = vld [vmem:[%s13] sm:$0x3]
        %v4382 = vlaneseq
        %v4383 = vshrl.u32 %v4382, 7
        %v4384 = vsub.s32 0, %v4383
        %v4385 = vrot.slane %v4380, %v4384
        %v4386 = vlaneseq
        %v4387 = vshrl.u32 %v4386, 7
        %v4388 = vsub.s32 1, %v4387
        %v4389 = vrot.slane %v4380, %v4388
        %v4392 = vadd.f32 %v4372, %v4385
        %v4393 = vadd.f32 %v4374, %v4389
        %v4394 = vadd.f32 %v4376, %v4385
        %v4395 = vadd.f32 %v4378, %v4389
        %v4396 = vmax.f32 %v4392, 0.0
        %v4397 = vmax.f32 %v4393, 0.0
        %v4398 = vmax.f32 %v4394, 0.0
        %v4399 = vmax.f32 %v4395, 0.0
        %v4400 = vpack.c.bf16 %v4398, %v4396
        %v4401 = vpack.c.bf16 %v4399, %v4397
        %4402 = vmatprep.subr.bf16.mxu0 0
        %4403 = vmatpush1.bf16.msra.mxu0 0
        %4404 = vmatprep.subr.bf16.mxu0 0
        %4405 = vmatpush1.bf16.msra.mxu0 0
        %4406 = vmatprep.subr.bf16.mxu0 0
        %4407 = vmatpush1.bf16.msra.mxu0 0
        %4408 = vmatprep.subr.bf16.mxu0 0
        %4409 = vmatpush1.bf16.msra.mxu0 0
        %4410 = vmatprep.subr.bf16.mxu0 0
        %4411 = vmatpush1.bf16.msra.mxu0 0
        %4412 = vmatprep.subr.bf16.mxu0 0
        %4413 = vmatpush1.bf16.msra.mxu0 0
        %4414 = vmatprep.subr.bf16.mxu0 0
        %4415 = vmatpush1.bf16.msra.mxu0 0
        %4416 = vmatprep.subr.bf16.mxu0 %v4401
        %4417 = vmatpush1.bf16.msra.mxu0 %v4400
        %4418 = vmatprep.subr.bf16.mxu0 0
        %4419 = vmatpush2.bf16.msra.mxu0 0
        %4420 = vmatprep.subr.bf16.mxu0 0
        %4421 = vmatpush2.bf16.msra.mxu0 0
        %4422 = vmatprep.subr.bf16.mxu0 0
        %4423 = vmatpush2.bf16.msra.mxu0 0
        %4424 = vmatprep.subr.bf16.mxu0 0
        %4425 = vmatpush2.bf16.msra.mxu0 0
        %4426 = vmatprep.subr.bf16.mxu0 0
        %4427 = vmatpush2.bf16.msra.mxu0 0
        %4428 = vmatprep.subr.bf16.mxu0 0
        %4429 = vmatpush2.bf16.msra.mxu0 0
        %4430 = vmatprep.subr.bf16.mxu0 0
        %4431 = vmatpush2.bf16.msra.mxu0 0
        %4432 = vmatprep.subr.bf16.mxu0 0
        %4433 = vmatpush2.bf16.msra.mxu0 0
        %4434 = vmatprep.mubr.bf16.mxu0 0
        %4435 = vmatmul.mubr.bf16.gmra.mxu0 %v977
        %v4436 = vpop.f32.mrf.mxu0
        %v4437 = vadd.f32 0.0, %v4436
        %v4438 = vpop.f32.mrf.mxu0
        %v4439 = vadd.f32 0.0, %v4438
        %v4440 = vpop.f32.mrf.mxu0
        %v4441 = vadd.f32 0.0, %v4440
        %v4442 = vpop.f32.mrf.mxu0
        %v4443 = vadd.f32 0.0, %v4442
        %4444 = vdwg.mxu0
        %v4445 = vld [vmem:[#allocation19] sm:$0xff]
        %v4446 = vld [vmem:[#allocation19 + $0x8] sm:$0xff]
        %v4447 = vld [vmem:[#allocation19 + $0x10] sm:$0xff]
        %v4448 = vld [vmem:[#allocation19 + $0x18] sm:$0xff]
        %v4449 = vld [vmem:[#allocation19 + $0x20] sm:$0xff]
        %v4450 = vld [vmem:[#allocation19 + $0x28] sm:$0xff]
        %v4451 = vld [vmem:[#allocation19 + $0x30] sm:$0xff]
        %v4452 = vld [vmem:[#allocation19 + $0x38] sm:$0xff]
        %v4453 = vld [vmem:[#allocation19 + $0x40] sm:$0xff]
        %v4454 = vld [vmem:[#allocation19 + $0x48] sm:$0xff]
        %v4455 = vld [vmem:[#allocation19 + $0x50] sm:$0xff]
        %v4456 = vld [vmem:[#allocation19 + $0x58] sm:$0xff]
        %v4457 = vld [vmem:[#allocation19 + $0x60] sm:$0xff]
        %v4458 = vld [vmem:[#allocation19 + $0x68] sm:$0xff]
        %v4459 = vld [vmem:[#allocation19 + $0x70] sm:$0xff]
        %v4460 = vld [vmem:[#allocation19 + $0x78] sm:$0xff]
        %v4461 = vld [vmem:[#allocation19 + $0x80] sm:$0xff]
        %v4462 = vld [vmem:[#allocation19 + $0x88] sm:$0xff]
        %v4463 = vld [vmem:[#allocation19 + $0x90] sm:$0xff]
        %v4464 = vld [vmem:[#allocation19 + $0x98] sm:$0xff]
        %v4465 = vld [vmem:[#allocation19 + $0xa0] sm:$0xff]
        %v4466 = vld [vmem:[#allocation19 + $0xa8] sm:$0xff]
        %v4467 = vld [vmem:[#allocation19 + $0xb0] sm:$0xff]
        %v4468 = vld [vmem:[#allocation19 + $0xb8] sm:$0xff]
        %v4469 = vld [vmem:[#allocation19 + $0xc0] sm:$0xff]
        %v4470 = vld [vmem:[#allocation19 + $0xc8] sm:$0xff]
        %v4471 = vld [vmem:[#allocation19 + $0xd0] sm:$0xff]
        %v4472 = vld [vmem:[#allocation19 + $0xd8] sm:$0xff]
        %v4473 = vld [vmem:[#allocation19 + $0xe0] sm:$0xff]
        %v4474 = vld [vmem:[#allocation19 + $0xe8] sm:$0xff]
        %v4475 = vld [vmem:[#allocation19 + $0xf0] sm:$0xff]
        %v4476 = vld [vmem:[#allocation19 + $0xf8] sm:$0xff]
        %v4477 = vpack.c.bf16 %v4441, %v4437
        %v4478 = vpack.c.bf16 %v4443, %v4439
        %v4479 = vld [vmem:[#allocation21] sm:$0xff]
        %v4480 = vld [vmem:[#allocation21 + $0x8] sm:$0xff]
        %v4481 = vld [vmem:[#allocation21 + $0x10] sm:$0xff]
        %v4482 = vld [vmem:[#allocation21 + $0x18] sm:$0xff]
        %v4483 = vld [vmem:[#allocation21 + $0x20] sm:$0xff]
        %v4484 = vld [vmem:[#allocation21 + $0x28] sm:$0xff]
        %v4485 = vld [vmem:[#allocation21 + $0x30] sm:$0xff]
        %v4486 = vld [vmem:[#allocation21 + $0x38] sm:$0xff]
        %v4487 = vld [vmem:[#allocation21 + $0x40] sm:$0xff]
        %v4488 = vld [vmem:[#allocation21 + $0x48] sm:$0xff]
        %v4489 = vld [vmem:[#allocation21 + $0x50] sm:$0xff]
        %v4490 = vld [vmem:[#allocation21 + $0x58] sm:$0xff]
        %v4491 = vld [vmem:[#allocation21 + $0x60] sm:$0xff]
        %v4492 = vld [vmem:[#allocation21 + $0x68] sm:$0xff]
        %v4493 = vld [vmem:[#allocation21 + $0x70] sm:$0xff]
        %v4494 = vld [vmem:[#allocation21 + $0x78] sm:$0xff]
        %v4495 = vld [vmem:[#allocation21 + $0x80] sm:$0xff]
        %v4496 = vld [vmem:[#allocation21 + $0x88] sm:$0xff]
        %v4497 = vld [vmem:[#allocation21 + $0x90] sm:$0xff]
        %v4498 = vld [vmem:[#allocation21 + $0x98] sm:$0xff]
        %v4499 = vld [vmem:[#allocation21 + $0xa0] sm:$0xff]
        %v4500 = vld [vmem:[#allocation21 + $0xa8] sm:$0xff]
        %v4501 = vld [vmem:[#allocation21 + $0xb0] sm:$0xff]
        %v4502 = vld [vmem:[#allocation21 + $0xb8] sm:$0xff]
        %v4503 = vld [vmem:[#allocation21 + $0xc0] sm:$0xff]
        %v4504 = vld [vmem:[#allocation21 + $0xc8] sm:$0xff]
        %v4505 = vld [vmem:[#allocation21 + $0xd0] sm:$0xff]
        %v4506 = vld [vmem:[#allocation21 + $0xd8] sm:$0xff]
        %v4507 = vld [vmem:[#allocation21 + $0xe0] sm:$0xff]
        %v4508 = vld [vmem:[#allocation21 + $0xe8] sm:$0xff]
        %v4509 = vld [vmem:[#allocation21 + $0xf0] sm:$0xff]
        %v4510 = vld [vmem:[#allocation21 + $0xf8] sm:$0xff]
        %v4543 = vunpack.c.l.b16 %v4479
        %v4544 = vunpack.c.h.b16 %v4479
        %v4545 = vunpack.c.l.b16 %v4480
        %v4546 = vunpack.c.h.b16 %v4480
        %v4547 = vunpack.c.l.b16 %v4481
        %v4548 = vunpack.c.h.b16 %v4481
        %v4549 = vunpack.c.l.b16 %v4482
        %v4550 = vunpack.c.h.b16 %v4482
        %v4551 = vunpack.c.l.b16 %v4483
        %v4552 = vunpack.c.h.b16 %v4483
        %v4553 = vunpack.c.l.b16 %v4484
        %v4554 = vunpack.c.h.b16 %v4484
        %v4555 = vunpack.c.l.b16 %v4485
        %v4556 = vunpack.c.h.b16 %v4485
        %v4557 = vunpack.c.l.b16 %v4486
        %v4558 = vunpack.c.h.b16 %v4486
        %v4559 = vunpack.c.l.b16 %v4487
        %v4560 = vunpack.c.h.b16 %v4487
        %v4561 = vunpack.c.l.b16 %v4488
        %v4562 = vunpack.c.h.b16 %v4488
        %v4563 = vunpack.c.l.b16 %v4489
        %v4564 = vunpack.c.h.b16 %v4489
        %v4565 = vunpack.c.l.b16 %v4490
        %v4566 = vunpack.c.h.b16 %v4490
        %v4567 = vunpack.c.l.b16 %v4491
        %v4568 = vunpack.c.h.b16 %v4491
        %v4569 = vunpack.c.l.b16 %v4492
        %v4570 = vunpack.c.h.b16 %v4492
        %v4571 = vunpack.c.l.b16 %v4493
        %v4572 = vunpack.c.h.b16 %v4493
        %v4573 = vunpack.c.l.b16 %v4494
        %v4574 = vunpack.c.h.b16 %v4494
        %v4575 = vunpack.c.l.b16 %v4495
        %v4576 = vunpack.c.h.b16 %v4495
        %v4577 = vunpack.c.l.b16 %v4496
        %v4578 = vunpack.c.h.b16 %v4496
        %v4579 = vunpack.c.l.b16 %v4497
        %v4580 = vunpack.c.h.b16 %v4497
        %v4581 = vunpack.c.l.b16 %v4498
        %v4582 = vunpack.c.h.b16 %v4498
        %v4583 = vunpack.c.l.b16 %v4499
        %v4584 = vunpack.c.h.b16 %v4499
        %v4585 = vunpack.c.l.b16 %v4500
        %v4586 = vunpack.c.h.b16 %v4500
        %v4587 = vunpack.c.l.b16 %v4501
        %v4588 = vunpack.c.h.b16 %v4501
        %v4589 = vunpack.c.l.b16 %v4502
        %v4590 = vunpack.c.h.b16 %v4502
        %v4591 = vunpack.c.l.b16 %v4503
        %v4592 = vunpack.c.h.b16 %v4503
        %v4593 = vunpack.c.l.b16 %v4504
        %v4594 = vunpack.c.h.b16 %v4504
        %v4595 = vunpack.c.l.b16 %v4505
        %v4596 = vunpack.c.h.b16 %v4505
        %v4597 = vunpack.c.l.b16 %v4506
        %v4598 = vunpack.c.h.b16 %v4506
        %v4599 = vunpack.c.l.b16 %v4507
        %v4600 = vunpack.c.h.b16 %v4507
        %v4601 = vunpack.c.l.b16 %v4508
        %v4602 = vunpack.c.h.b16 %v4508
        %v4603 = vunpack.c.l.b16 %v4509
        %v4604 = vunpack.c.h.b16 %v4509
        %v4605 = vunpack.c.l.b16 %v4510
        %v4606 = vunpack.c.h.b16 %v4510
        %v4607 = vpack.c.b16 %v4545, %v4543
        %v4608 = vpack.c.b16 %v4546, %v4544
        %v4609 = vpack.c.b16 %v4549, %v4547
        %v4610 = vpack.c.b16 %v4550, %v4548
        %v4611 = vpack.c.b16 %v4553, %v4551
        %v4612 = vpack.c.b16 %v4554, %v4552
        %v4613 = vpack.c.b16 %v4557, %v4555
        %v4614 = vpack.c.b16 %v4558, %v4556
        %v4615 = vpack.c.b16 %v4561, %v4559
        %v4616 = vpack.c.b16 %v4562, %v4560
        %v4617 = vpack.c.b16 %v4565, %v4563
        %v4618 = vpack.c.b16 %v4566, %v4564
        %v4619 = vpack.c.b16 %v4569, %v4567
        %v4620 = vpack.c.b16 %v4570, %v4568
        %v4621 = vpack.c.b16 %v4573, %v4571
        %v4622 = vpack.c.b16 %v4574, %v4572
        %v4623 = vpack.c.b16 %v4577, %v4575
        %v4624 = vpack.c.b16 %v4578, %v4576
        %v4625 = vpack.c.b16 %v4581, %v4579
        %v4626 = vpack.c.b16 %v4582, %v4580
        %v4627 = vpack.c.b16 %v4585, %v4583
        %v4628 = vpack.c.b16 %v4586, %v4584
        %v4629 = vpack.c.b16 %v4589, %v4587
        %v4630 = vpack.c.b16 %v4590, %v4588
        %v4631 = vpack.c.b16 %v4593, %v4591
        %v4632 = vpack.c.b16 %v4594, %v4592
        %v4633 = vpack.c.b16 %v4597, %v4595
        %v4634 = vpack.c.b16 %v4598, %v4596
        %v4635 = vpack.c.b16 %v4601, %v4599
        %v4636 = vpack.c.b16 %v4602, %v4600
        %v4637 = vpack.c.b16 %v4605, %v4603
        %v4638 = vpack.c.b16 %v4606, %v4604
        %4671 = vmatprep.subr.bf16.mxu0 %v4622
        %4672 = vmatpush1.bf16.msra.mxu0 %v4621
        %4673 = vmatprep.subr.bf16.mxu0 %v4620
        %4674 = vmatpush1.bf16.msra.mxu0 %v4619
        %4675 = vmatprep.subr.bf16.mxu0 %v4618
        %4676 = vmatpush1.bf16.msra.mxu0 %v4617
        %4677 = vmatprep.subr.bf16.mxu0 %v4616
        %4678 = vmatpush1.bf16.msra.mxu0 %v4615
        %4679 = vmatprep.subr.bf16.mxu0 %v4614
        %4680 = vmatpush1.bf16.msra.mxu0 %v4613
        %4681 = vmatprep.subr.bf16.mxu0 %v4612
        %4682 = vmatpush1.bf16.msra.mxu0 %v4611
        %4683 = vmatprep.subr.bf16.mxu0 %v4610
        %4684 = vmatpush1.bf16.msra.mxu0 %v4609
        %4685 = vmatprep.subr.bf16.mxu0 %v4608
        %4686 = vmatpush1.bf16.msra.mxu0 %v4607
        %4687 = vmatprep.subr.bf16.mxu0 %v4638
        %4688 = vmatpush2.bf16.msra.mxu0 %v4637
        %4689 = vmatprep.subr.bf16.mxu0 %v4636
        %4690 = vmatpush2.bf16.msra.mxu0 %v4635
        %4691 = vmatprep.subr.bf16.mxu0 %v4634
        %4692 = vmatpush2.bf16.msra.mxu0 %v4633
        %4693 = vmatprep.subr.bf16.mxu0 %v4632
        %4694 = vmatpush2.bf16.msra.mxu0 %v4631
        %4695 = vmatprep.subr.bf16.mxu0 %v4630
        %4696 = vmatpush2.bf16.msra.mxu0 %v4629
        %4697 = vmatprep.subr.bf16.mxu0 %v4628
        %4698 = vmatpush2.bf16.msra.mxu0 %v4627
        %4699 = vmatprep.subr.bf16.mxu0 %v4626
        %4700 = vmatpush2.bf16.msra.mxu0 %v4625
        %4701 = vmatprep.subr.bf16.mxu0 %v4624
        %4702 = vmatpush2.bf16.msra.mxu0 %v4623
        %4703 = vmatprep.mubr.bf16.mxu0 %v4478
        %4704 = vmatmul.mubr.bf16.gmra.mxu0 %v4477
        %v4705 = vpop.f32.mrf.mxu0
        %v4706 = vadd.f32 0.0, %v4705
        %v4707 = vpop.f32.mrf.mxu0
        %v4708 = vadd.f32 0.0, %v4707
        %v4709 = vpop.f32.mrf.mxu0
        %v4710 = vadd.f32 0.0, %v4709
        %v4711 = vpop.f32.mrf.mxu0
        %v4712 = vadd.f32 0.0, %v4711
        %4713 = vdwg.mxu0
        %v4746 = vunpack.c.l.b16 %v4445
        %v4747 = vunpack.c.h.b16 %v4445
        %v4748 = vunpack.c.l.b16 %v4446
        %v4749 = vunpack.c.h.b16 %v4446
        %v4750 = vunpack.c.l.b16 %v4447
        %v4751 = vunpack.c.h.b16 %v4447
        %v4752 = vunpack.c.l.b16 %v4448
        %v4753 = vunpack.c.h.b16 %v4448
        %v4754 = vunpack.c.l.b16 %v4449
        %v4755 = vunpack.c.h.b16 %v4449
        %v4756 = vunpack.c.l.b16 %v4450
        %v4757 = vunpack.c.h.b16 %v4450
        %v4758 = vunpack.c.l.b16 %v4451
        %v4759 = vunpack.c.h.b16 %v4451
        %v4760 = vunpack.c.l.b16 %v4452
        %v4761 = vunpack.c.h.b16 %v4452
        %v4762 = vunpack.c.l.b16 %v4453
        %v4763 = vunpack.c.h.b16 %v4453
        %v4764 = vunpack.c.l.b16 %v4454
        %v4765 = vunpack.c.h.b16 %v4454
        %v4766 = vunpack.c.l.b16 %v4455
        %v4767 = vunpack.c.h.b16 %v4455
        %v4768 = vunpack.c.l.b16 %v4456
        %v4769 = vunpack.c.h.b16 %v4456
        %v4770 = vunpack.c.l.b16 %v4457
        %v4771 = vunpack.c.h.b16 %v4457
        %v4772 = vunpack.c.l.b16 %v4458
        %v4773 = vunpack.c.h.b16 %v4458
        %v4774 = vunpack.c.l.b16 %v4459
        %v4775 = vunpack.c.h.b16 %v4459
        %v4776 = vunpack.c.l.b16 %v4460
        %v4777 = vunpack.c.h.b16 %v4460
        %v4778 = vunpack.c.l.b16 %v4461
        %v4779 = vunpack.c.h.b16 %v4461
        %v4780 = vunpack.c.l.b16 %v4462
        %v4781 = vunpack.c.h.b16 %v4462
        %v4782 = vunpack.c.l.b16 %v4463
        %v4783 = vunpack.c.h.b16 %v4463
        %v4784 = vunpack.c.l.b16 %v4464
        %v4785 = vunpack.c.h.b16 %v4464
        %v4786 = vunpack.c.l.b16 %v4465
        %v4787 = vunpack.c.h.b16 %v4465
        %v4788 = vunpack.c.l.b16 %v4466
        %v4789 = vunpack.c.h.b16 %v4466
        %v4790 = vunpack.c.l.b16 %v4467
        %v4791 = vunpack.c.h.b16 %v4467
        %v4792 = vunpack.c.l.b16 %v4468
        %v4793 = vunpack.c.h.b16 %v4468
        %v4794 = vunpack.c.l.b16 %v4469
        %v4795 = vunpack.c.h.b16 %v4469
        %v4796 = vunpack.c.l.b16 %v4470
        %v4797 = vunpack.c.h.b16 %v4470
        %v4798 = vunpack.c.l.b16 %v4471
        %v4799 = vunpack.c.h.b16 %v4471
        %v4800 = vunpack.c.l.b16 %v4472
        %v4801 = vunpack.c.h.b16 %v4472
        %v4802 = vunpack.c.l.b16 %v4473
        %v4803 = vunpack.c.h.b16 %v4473
        %v4804 = vunpack.c.l.b16 %v4474
        %v4805 = vunpack.c.h.b16 %v4474
        %v4806 = vunpack.c.l.b16 %v4475
        %v4807 = vunpack.c.h.b16 %v4475
        %v4808 = vunpack.c.l.b16 %v4476
        %v4809 = vunpack.c.h.b16 %v4476
        %v4810 = vpack.c.b16 %v4748, %v4746
        %v4811 = vpack.c.b16 %v4749, %v4747
        %v4812 = vpack.c.b16 %v4752, %v4750
        %v4813 = vpack.c.b16 %v4753, %v4751
        %v4814 = vpack.c.b16 %v4756, %v4754
        %v4815 = vpack.c.b16 %v4757, %v4755
        %v4816 = vpack.c.b16 %v4760, %v4758
        %v4817 = vpack.c.b16 %v4761, %v4759
        %v4818 = vpack.c.b16 %v4764, %v4762
        %v4819 = vpack.c.b16 %v4765, %v4763
        %v4820 = vpack.c.b16 %v4768, %v4766
        %v4821 = vpack.c.b16 %v4769, %v4767
        %v4822 = vpack.c.b16 %v4772, %v4770
        %v4823 = vpack.c.b16 %v4773, %v4771
        %v4824 = vpack.c.b16 %v4776, %v4774
        %v4825 = vpack.c.b16 %v4777, %v4775
        %v4826 = vpack.c.b16 %v4780, %v4778
        %v4827 = vpack.c.b16 %v4781, %v4779
        %v4828 = vpack.c.b16 %v4784, %v4782
        %v4829 = vpack.c.b16 %v4785, %v4783
        %v4830 = vpack.c.b16 %v4788, %v4786
        %v4831 = vpack.c.b16 %v4789, %v4787
        %v4832 = vpack.c.b16 %v4792, %v4790
        %v4833 = vpack.c.b16 %v4793, %v4791
        %v4834 = vpack.c.b16 %v4796, %v4794
        %v4835 = vpack.c.b16 %v4797, %v4795
        %v4836 = vpack.c.b16 %v4800, %v4798
        %v4837 = vpack.c.b16 %v4801, %v4799
        %v4838 = vpack.c.b16 %v4804, %v4802
        %v4839 = vpack.c.b16 %v4805, %v4803
        %v4840 = vpack.c.b16 %v4808, %v4806
        %v4841 = vpack.c.b16 %v4809, %v4807
        %4874 = vmatprep.subr.bf16.mxu0 %v4825
        %4875 = vmatpush1.bf16.msra.mxu0 %v4824
        %4876 = vmatprep.subr.bf16.mxu0 %v4823
        %4877 = vmatpush1.bf16.msra.mxu0 %v4822
        %4878 = vmatprep.subr.bf16.mxu0 %v4821
        %4879 = vmatpush1.bf16.msra.mxu0 %v4820
        %4880 = vmatprep.subr.bf16.mxu0 %v4819
        %4881 = vmatpush1.bf16.msra.mxu0 %v4818
        %4882 = vmatprep.subr.bf16.mxu0 %v4817
        %4883 = vmatpush1.bf16.msra.mxu0 %v4816
        %4884 = vmatprep.subr.bf16.mxu0 %v4815
        %4885 = vmatpush1.bf16.msra.mxu0 %v4814
        %4886 = vmatprep.subr.bf16.mxu0 %v4813
        %4887 = vmatpush1.bf16.msra.mxu0 %v4812
        %4888 = vmatprep.subr.bf16.mxu0 %v4811
        %4889 = vmatpush1.bf16.msra.mxu0 %v4810
        %4890 = vmatprep.subr.bf16.mxu0 %v4841
        %4891 = vmatpush2.bf16.msra.mxu0 %v4840
        %4892 = vmatprep.subr.bf16.mxu0 %v4839
        %4893 = vmatpush2.bf16.msra.mxu0 %v4838
        %4894 = vmatprep.subr.bf16.mxu0 %v4837
        %4895 = vmatpush2.bf16.msra.mxu0 %v4836
        %4896 = vmatprep.subr.bf16.mxu0 %v4835
        %4897 = vmatpush2.bf16.msra.mxu0 %v4834
        %4898 = vmatprep.subr.bf16.mxu0 %v4833
        %4899 = vmatpush2.bf16.msra.mxu0 %v4832
        %4900 = vmatprep.subr.bf16.mxu0 %v4831
        %4901 = vmatpush2.bf16.msra.mxu0 %v4830
        %4902 = vmatprep.subr.bf16.mxu0 %v4829
        %4903 = vmatpush2.bf16.msra.mxu0 %v4828
        %4904 = vmatprep.subr.bf16.mxu0 %v4827
        %4905 = vmatpush2.bf16.msra.mxu0 %v4826
        %4906 = vmatprep.mubr.bf16.mxu0 %v4401
        %4907 = vmatmul.mubr.bf16.gmra.mxu0 %v4400
        %v4908 = vpop.f32.mrf.mxu0
        %v4909 = vadd.f32 %v4706, %v4908
        %v4910 = vpop.f32.mrf.mxu0
        %v4911 = vadd.f32 %v4708, %v4910
        %v4912 = vpop.f32.mrf.mxu0
        %v4913 = vadd.f32 %v4710, %v4912
        %v4914 = vpop.f32.mrf.mxu0
        %v4915 = vadd.f32 %v4712, %v4914
        %4916 = vdwg.mxu0
        %v4917 = vld [vmem:[%s16] sm:$0x3]
        %v4919 = vlaneseq
        %v4920 = vshrl.u32 %v4919, 7
        %v4921 = vsub.s32 0, %v4920
        %v4922 = vrot.slane %v4917, %v4921
        %v4923 = vlaneseq
        %v4924 = vshrl.u32 %v4923, 7
        %v4925 = vsub.s32 1, %v4924
        %v4926 = vrot.slane %v4917, %v4925
        %v4929 = vadd.f32 %v4909, %v4922
        %v4930 = vadd.f32 %v4911, %v4926
        %v4931 = vadd.f32 %v4913, %v4922
        %v4932 = vadd.f32 %v4915, %v4926
        %v4933 = vmax.f32 %v4929, 0.0
        %v4934 = vmax.f32 %v4930, 0.0
        %v4935 = vmax.f32 %v4931, 0.0
        %v4936 = vmax.f32 %v4932, 0.0
        %v4937 = vpack.c.bf16 %v4935, %v4933
        %v4938 = vpack.c.bf16 %v4936, %v4934
        %v4939 = vld [vmem:[%s824] sm:$0xf]
        %v4941 = vsel %vm975, %v4939, 0
        %4943 = vmatprep.subr.bf16.mxu0 0
        %4944 = vmatpush1.bf16.msra.mxu0 0
        %4945 = vmatprep.subr.bf16.mxu0 0
        %4946 = vmatpush1.bf16.msra.mxu0 0
        %4947 = vmatprep.subr.bf16.mxu0 0
        %4948 = vmatpush1.bf16.msra.mxu0 0
        %4949 = vmatprep.subr.bf16.mxu0 0
        %4950 = vmatpush1.bf16.msra.mxu0 0
        %4951 = vmatprep.subr.bf16.mxu0 0
        %4952 = vmatpush1.bf16.msra.mxu0 0
        %4953 = vmatprep.subr.bf16.mxu0 0
        %4954 = vmatpush1.bf16.msra.mxu0 0
        %4955 = vmatprep.subr.bf16.mxu0 0
        %4956 = vmatpush1.bf16.msra.mxu0 0
        %4957 = vmatprep.subr.bf16.mxu0 %v4938
        %4958 = vmatpush1.bf16.msra.mxu0 %v4937
        %4959 = vmatprep.subr.bf16.mxu0 0
        %4960 = vmatpush2.bf16.msra.mxu0 0
        %4961 = vmatprep.subr.bf16.mxu0 0
        %4962 = vmatpush2.bf16.msra.mxu0 0
        %4963 = vmatprep.subr.bf16.mxu0 0
        %4964 = vmatpush2.bf16.msra.mxu0 0
        %4965 = vmatprep.subr.bf16.mxu0 0
        %4966 = vmatpush2.bf16.msra.mxu0 0
        %4967 = vmatprep.subr.bf16.mxu0 0
        %4968 = vmatpush2.bf16.msra.mxu0 0
        %4969 = vmatprep.subr.bf16.mxu0 0
        %4970 = vmatpush2.bf16.msra.mxu0 0
        %4971 = vmatprep.subr.bf16.mxu0 0
        %4972 = vmatpush2.bf16.msra.mxu0 0
        %4973 = vmatprep.subr.bf16.mxu0 0
        %4974 = vmatpush2.bf16.msra.mxu0 0
        %4975 = vmatprep.mubr.bf16.mxu0 0
        %4976 = vmatmul.mubr.bf16.gmra.mxu0 %v4941
        %v4977 = vpop.f32.mrf.mxu0
        %v4978 = vadd.f32 0.0, %v4977
        %v4979 = vpop.f32.mrf.mxu0
        %v4980 = vadd.f32 0.0, %v4979
        %v4981 = vpop.f32.mrf.mxu0
        %v4982 = vpop.f32.mrf.mxu0
        %4983 = vdwg.mxu0
        %v4984 = vpack.c.bf16 %v4978, %v4978
        %v4985 = vpack.c.bf16 %v4980, %v4980
        %v4986 = vld [vmem:[#allocation22] sm:$0xff]
        %v4987 = vld [vmem:[#allocation22 + $0x8] sm:$0xff]
        %v4988 = vld [vmem:[#allocation22 + $0x10] sm:$0xff]
        %v4989 = vld [vmem:[#allocation22 + $0x18] sm:$0xff]
        %v4990 = vld [vmem:[#allocation22 + $0x20] sm:$0xff]
        %v4991 = vld [vmem:[#allocation22 + $0x28] sm:$0xff]
        %v4992 = vld [vmem:[#allocation22 + $0x30] sm:$0xff]
        %v4993 = vld [vmem:[#allocation22 + $0x38] sm:$0xff]
        %v4994 = vld [vmem:[#allocation22 + $0x40] sm:$0xff]
        %v4995 = vld [vmem:[#allocation22 + $0x48] sm:$0xff]
        %v4996 = vld [vmem:[#allocation22 + $0x50] sm:$0xff]
        %v4997 = vld [vmem:[#allocation22 + $0x58] sm:$0xff]
        %v4998 = vld [vmem:[#allocation22 + $0x60] sm:$0xff]
        %v4999 = vld [vmem:[#allocation22 + $0x68] sm:$0xff]
        %v5000 = vld [vmem:[#allocation22 + $0x70] sm:$0xff]
        %v5001 = vld [vmem:[#allocation22 + $0x78] sm:$0xff]
        %v5002 = vld [vmem:[#allocation22 + $0x80] sm:$0xff]
        %v5003 = vld [vmem:[#allocation22 + $0x88] sm:$0xff]
        %v5004 = vld [vmem:[#allocation22 + $0x90] sm:$0xff]
        %v5005 = vld [vmem:[#allocation22 + $0x98] sm:$0xff]
        %v5006 = vld [vmem:[#allocation22 + $0xa0] sm:$0xff]
        %v5007 = vld [vmem:[#allocation22 + $0xa8] sm:$0xff]
        %v5008 = vld [vmem:[#allocation22 + $0xb0] sm:$0xff]
        %v5009 = vld [vmem:[#allocation22 + $0xb8] sm:$0xff]
        %v5010 = vld [vmem:[#allocation22 + $0xc0] sm:$0xff]
        %v5011 = vld [vmem:[#allocation22 + $0xc8] sm:$0xff]
        %v5012 = vld [vmem:[#allocation22 + $0xd0] sm:$0xff]
        %v5013 = vld [vmem:[#allocation22 + $0xd8] sm:$0xff]
        %v5014 = vld [vmem:[#allocation22 + $0xe0] sm:$0xff]
        %v5015 = vld [vmem:[#allocation22 + $0xe8] sm:$0xff]
        %v5016 = vld [vmem:[#allocation22 + $0xf0] sm:$0xff]
        %v5017 = vld [vmem:[#allocation22 + $0xf8] sm:$0xff]
        %v5018 = vld [vmem:[%s18] sm:$0x3]
        %v5020 = vlaneseq
        %v5021 = vshrl.u32 %v5020, 7
        %v5022 = vsub.s32 0, %v5021
        %v5023 = vrot.slane %v5018, %v5022
        %v5024 = vlaneseq
        %v5025 = vshrl.u32 %v5024, 7
        %v5026 = vsub.s32 1, %v5025
        %v5027 = vrot.slane %v5018, %v5026
        %v5062 = vunpack.c.l.b16 %v4986
        %v5063 = vunpack.c.h.b16 %v4986
        %v5064 = vunpack.c.l.b16 %v4987
        %v5065 = vunpack.c.h.b16 %v4987
        %v5066 = vunpack.c.l.b16 %v4988
        %v5067 = vunpack.c.h.b16 %v4988
        %v5068 = vunpack.c.l.b16 %v4989
        %v5069 = vunpack.c.h.b16 %v4989
        %v5070 = vunpack.c.l.b16 %v4990
        %v5071 = vunpack.c.h.b16 %v4990
        %v5072 = vunpack.c.l.b16 %v4991
        %v5073 = vunpack.c.h.b16 %v4991
        %v5074 = vunpack.c.l.b16 %v4992
        %v5075 = vunpack.c.h.b16 %v4992
        %v5076 = vunpack.c.l.b16 %v4993
        %v5077 = vunpack.c.h.b16 %v4993
        %v5078 = vunpack.c.l.b16 %v4994
        %v5079 = vunpack.c.h.b16 %v4994
        %v5080 = vunpack.c.l.b16 %v4995
        %v5081 = vunpack.c.h.b16 %v4995
        %v5082 = vunpack.c.l.b16 %v4996
        %v5083 = vunpack.c.h.b16 %v4996
        %v5084 = vunpack.c.l.b16 %v4997
        %v5085 = vunpack.c.h.b16 %v4997
        %v5086 = vunpack.c.l.b16 %v4998
        %v5087 = vunpack.c.h.b16 %v4998
        %v5088 = vunpack.c.l.b16 %v4999
        %v5089 = vunpack.c.h.b16 %v4999
        %v5090 = vunpack.c.l.b16 %v5000
        %v5091 = vunpack.c.h.b16 %v5000
        %v5092 = vunpack.c.l.b16 %v5001
        %v5093 = vunpack.c.h.b16 %v5001
        %v5094 = vunpack.c.l.b16 %v5002
        %v5095 = vunpack.c.h.b16 %v5002
        %v5096 = vunpack.c.l.b16 %v5003
        %v5097 = vunpack.c.h.b16 %v5003
        %v5098 = vunpack.c.l.b16 %v5004
        %v5099 = vunpack.c.h.b16 %v5004
        %v5100 = vunpack.c.l.b16 %v5005
        %v5101 = vunpack.c.h.b16 %v5005
        %v5102 = vunpack.c.l.b16 %v5006
        %v5103 = vunpack.c.h.b16 %v5006
        %v5104 = vunpack.c.l.b16 %v5007
        %v5105 = vunpack.c.h.b16 %v5007
        %v5106 = vunpack.c.l.b16 %v5008
        %v5107 = vunpack.c.h.b16 %v5008
        %v5108 = vunpack.c.l.b16 %v5009
        %v5109 = vunpack.c.h.b16 %v5009
        %v5110 = vunpack.c.l.b16 %v5010
        %v5111 = vunpack.c.h.b16 %v5010
        %v5112 = vunpack.c.l.b16 %v5011
        %v5113 = vunpack.c.h.b16 %v5011
        %v5114 = vunpack.c.l.b16 %v5012
        %v5115 = vunpack.c.h.b16 %v5012
        %v5116 = vunpack.c.l.b16 %v5013
        %v5117 = vunpack.c.h.b16 %v5013
        %v5118 = vunpack.c.l.b16 %v5014
        %v5119 = vunpack.c.h.b16 %v5014
        %v5120 = vunpack.c.l.b16 %v5015
        %v5121 = vunpack.c.h.b16 %v5015
        %v5122 = vunpack.c.l.b16 %v5016
        %v5123 = vunpack.c.h.b16 %v5016
        %v5124 = vunpack.c.l.b16 %v5017
        %v5125 = vunpack.c.h.b16 %v5017
        %v5126 = vpack.c.b16 %v5064, %v5062
        %v5127 = vpack.c.b16 %v5065, %v5063
        %v5128 = vpack.c.b16 %v5068, %v5066
        %v5129 = vpack.c.b16 %v5069, %v5067
        %v5130 = vpack.c.b16 %v5072, %v5070
        %v5131 = vpack.c.b16 %v5073, %v5071
        %v5132 = vpack.c.b16 %v5076, %v5074
        %v5133 = vpack.c.b16 %v5077, %v5075
        %v5134 = vpack.c.b16 %v5080, %v5078
        %v5135 = vpack.c.b16 %v5081, %v5079
        %v5136 = vpack.c.b16 %v5084, %v5082
        %v5137 = vpack.c.b16 %v5085, %v5083
        %v5138 = vpack.c.b16 %v5088, %v5086
        %v5139 = vpack.c.b16 %v5089, %v5087
        %v5140 = vpack.c.b16 %v5092, %v5090
        %v5141 = vpack.c.b16 %v5093, %v5091
        %v5142 = vpack.c.b16 %v5096, %v5094
        %v5143 = vpack.c.b16 %v5097, %v5095
        %v5144 = vpack.c.b16 %v5100, %v5098
        %v5145 = vpack.c.b16 %v5101, %v5099
        %v5146 = vpack.c.b16 %v5104, %v5102
        %v5147 = vpack.c.b16 %v5105, %v5103
        %v5148 = vpack.c.b16 %v5108, %v5106
        %v5149 = vpack.c.b16 %v5109, %v5107
        %v5150 = vpack.c.b16 %v5112, %v5110
        %v5151 = vpack.c.b16 %v5113, %v5111
        %v5152 = vpack.c.b16 %v5116, %v5114
        %v5153 = vpack.c.b16 %v5117, %v5115
        %v5154 = vpack.c.b16 %v5120, %v5118
        %v5155 = vpack.c.b16 %v5121, %v5119
        %v5156 = vpack.c.b16 %v5124, %v5122
        %v5157 = vpack.c.b16 %v5125, %v5123
        %5190 = vmatprep.subr.bf16.mxu0 %v5141
        %5191 = vmatpush1.bf16.msra.mxu0 %v5140
        %5192 = vmatprep.subr.bf16.mxu0 %v5139
        %5193 = vmatpush1.bf16.msra.mxu0 %v5138
        %5194 = vmatprep.subr.bf16.mxu0 %v5137
        %5195 = vmatpush1.bf16.msra.mxu0 %v5136
        %5196 = vmatprep.subr.bf16.mxu0 %v5135
        %5197 = vmatpush1.bf16.msra.mxu0 %v5134
        %5198 = vmatprep.subr.bf16.mxu0 %v5133
        %5199 = vmatpush1.bf16.msra.mxu0 %v5132
        %5200 = vmatprep.subr.bf16.mxu0 %v5131
        %5201 = vmatpush1.bf16.msra.mxu0 %v5130
        %5202 = vmatprep.subr.bf16.mxu0 %v5129
        %5203 = vmatpush1.bf16.msra.mxu0 %v5128
        %5204 = vmatprep.subr.bf16.mxu0 %v5127
        %5205 = vmatpush1.bf16.msra.mxu0 %v5126
        %5206 = vmatprep.subr.bf16.mxu0 %v5157
        %5207 = vmatpush2.bf16.msra.mxu0 %v5156
        %5208 = vmatprep.subr.bf16.mxu0 %v5155
        %5209 = vmatpush2.bf16.msra.mxu0 %v5154
        %5210 = vmatprep.subr.bf16.mxu0 %v5153
        %5211 = vmatpush2.bf16.msra.mxu0 %v5152
        %5212 = vmatprep.subr.bf16.mxu0 %v5151
        %5213 = vmatpush2.bf16.msra.mxu0 %v5150
        %5214 = vmatprep.subr.bf16.mxu0 %v5149
        %5215 = vmatpush2.bf16.msra.mxu0 %v5148
        %5216 = vmatprep.subr.bf16.mxu0 %v5147
        %5217 = vmatpush2.bf16.msra.mxu0 %v5146
        %5218 = vmatprep.subr.bf16.mxu0 %v5145
        %5219 = vmatpush2.bf16.msra.mxu0 %v5144
        %5220 = vmatprep.subr.bf16.mxu0 %v5143
        %5221 = vmatpush2.bf16.msra.mxu0 %v5142
        %5222 = vmatprep.mubr.bf16.mxu0 %v4985
        %5223 = vmatmul.mubr.bf16.gmra.mxu0 %v4984
        %v5224 = vpop.f32.mrf.mxu0
        %v5225 = vadd.f32 %v5023, %v5224
        %v5226 = vpop.f32.mrf.mxu0
        %v5227 = vadd.f32 %v5027, %v5226
        %v5228 = vpop.f32.mrf.mxu0
        %v5229 = vpop.f32.mrf.mxu0
        %5230 = vdwg.mxu0
        %vm5231 = vcmp.ge.f32.partialorder %v5225, 0.0
        %vm5232 = vcmp.ge.f32.partialorder %v5227, 0.0
        %v5233 = vld [vmem:[%s19] sm:$0x3]
        %v5235 = vlaneseq
        %v5236 = vshrl.u32 %v5235, 7
        %v5237 = vsub.s32 0, %v5236
        %v5238 = vrot.slane %v5233, %v5237
        %v5239 = vlaneseq
        %v5240 = vshrl.u32 %v5239, 7
        %v5241 = vsub.s32 1, %v5240
        %v5242 = vrot.slane %v5233, %v5241
        %v5245 = vmul.f32 %v5238, %v5225
        %v5246 = vmul.f32 %v5242, %v5227
        %v5247 = vsel %vm5231, %v5225, %v5245
        %v5248 = vsel %vm5232, %v5227, %v5246
        %v5249 = vpack.c.bf16 %v5247, %v5247
        %v5250 = vpack.c.bf16 %v5248, %v5248
        %v5251 = vld [vmem:[#allocation24] sm:$0xf]
        %v5252 = vld [vmem:[#allocation24 + $0x4] sm:$0xf]
        %v5253 = vld [vmem:[#allocation24 + $0x8] sm:$0xf]
        %v5254 = vld [vmem:[#allocation24 + $0xc] sm:$0xf]
        %v5255 = vld [vmem:[#allocation24 + $0x10] sm:$0xf]
        %v5256 = vld [vmem:[#allocation24 + $0x14] sm:$0xf]
        %v5257 = vld [vmem:[#allocation24 + $0x18] sm:$0xf]
        %v5258 = vld [vmem:[#allocation24 + $0x1c] sm:$0xf]
        %v5259 = vld [vmem:[#allocation24 + $0x20] sm:$0xf]
        %v5260 = vld [vmem:[#allocation24 + $0x24] sm:$0xf]
        %v5261 = vld [vmem:[#allocation24 + $0x28] sm:$0xf]
        %v5262 = vld [vmem:[#allocation24 + $0x2c] sm:$0xf]
        %v5263 = vld [vmem:[#allocation24 + $0x30] sm:$0xf]
        %v5264 = vld [vmem:[#allocation24 + $0x34] sm:$0xf]
        %v5265 = vld [vmem:[#allocation24 + $0x38] sm:$0xf]
        %v5266 = vld [vmem:[#allocation24 + $0x3c] sm:$0xf]
        %v5267 = vld [vmem:[#allocation24 + $0x40] sm:$0xf]
        %v5268 = vld [vmem:[#allocation24 + $0x44] sm:$0xf]
        %v5269 = vld [vmem:[#allocation24 + $0x48] sm:$0xf]
        %v5270 = vld [vmem:[#allocation24 + $0x4c] sm:$0xf]
        %v5271 = vld [vmem:[#allocation24 + $0x50] sm:$0xf]
        %v5272 = vld [vmem:[#allocation24 + $0x54] sm:$0xf]
        %v5273 = vld [vmem:[#allocation24 + $0x58] sm:$0xf]
        %v5274 = vld [vmem:[#allocation24 + $0x5c] sm:$0xf]
        %v5275 = vld [vmem:[#allocation24 + $0x60] sm:$0xf]
        %v5276 = vld [vmem:[#allocation24 + $0x64] sm:$0xf]
        %v5277 = vld [vmem:[#allocation24 + $0x68] sm:$0xf]
        %v5278 = vld [vmem:[#allocation24 + $0x6c] sm:$0xf]
        %v5279 = vld [vmem:[#allocation24 + $0x70] sm:$0xf]
        %v5280 = vld [vmem:[#allocation24 + $0x74] sm:$0xf]
        %v5281 = vld [vmem:[#allocation24 + $0x78] sm:$0xf]
        %v5282 = vld [vmem:[#allocation24 + $0x7c] sm:$0xf]
        %v5315 = vunpack.c.l.b16 %v5251
        %v5316 = vunpack.c.l.b16 %v5252
        %v5317 = vunpack.c.l.b16 %v5253
        %v5318 = vunpack.c.l.b16 %v5254
        %v5319 = vunpack.c.l.b16 %v5255
        %v5320 = vunpack.c.l.b16 %v5256
        %v5321 = vunpack.c.l.b16 %v5257
        %v5322 = vunpack.c.l.b16 %v5258
        %v5323 = vunpack.c.l.b16 %v5259
        %v5324 = vunpack.c.l.b16 %v5260
        %v5325 = vunpack.c.l.b16 %v5261
        %v5326 = vunpack.c.l.b16 %v5262
        %v5327 = vunpack.c.l.b16 %v5263
        %v5328 = vunpack.c.l.b16 %v5264
        %v5329 = vunpack.c.l.b16 %v5265
        %v5330 = vunpack.c.l.b16 %v5266
        %v5331 = vunpack.c.l.b16 %v5267
        %v5332 = vunpack.c.l.b16 %v5268
        %v5333 = vunpack.c.l.b16 %v5269
        %v5334 = vunpack.c.l.b16 %v5270
        %v5335 = vunpack.c.l.b16 %v5271
        %v5336 = vunpack.c.l.b16 %v5272
        %v5337 = vunpack.c.l.b16 %v5273
        %v5338 = vunpack.c.l.b16 %v5274
        %v5339 = vunpack.c.l.b16 %v5275
        %v5340 = vunpack.c.l.b16 %v5276
        %v5341 = vunpack.c.l.b16 %v5277
        %v5342 = vunpack.c.l.b16 %v5278
        %v5343 = vunpack.c.l.b16 %v5279
        %v5344 = vunpack.c.l.b16 %v5280
        %v5345 = vunpack.c.l.b16 %v5281
        %v5346 = vunpack.c.l.b16 %v5282
        %v5347 = vpack.c.b16 %v5316, %v5315
        %v5348 = vpack.c.b16 %v5318, %v5317
        %v5349 = vpack.c.b16 %v5320, %v5319
        %v5350 = vpack.c.b16 %v5322, %v5321
        %v5351 = vpack.c.b16 %v5324, %v5323
        %v5352 = vpack.c.b16 %v5326, %v5325
        %v5353 = vpack.c.b16 %v5328, %v5327
        %v5354 = vpack.c.b16 %v5330, %v5329
        %v5355 = vpack.c.b16 %v5332, %v5331
        %v5356 = vpack.c.b16 %v5334, %v5333
        %v5357 = vpack.c.b16 %v5336, %v5335
        %v5358 = vpack.c.b16 %v5338, %v5337
        %v5359 = vpack.c.b16 %v5340, %v5339
        %v5360 = vpack.c.b16 %v5342, %v5341
        %v5361 = vpack.c.b16 %v5344, %v5343
        %v5362 = vpack.c.b16 %v5346, %v5345
        %5379 = vmatprep.subr.bf16.mxu0 0
        %5380 = vmatpush1.bf16.msra.mxu0 %v5354
        %5381 = vmatprep.subr.bf16.mxu0 0
        %5382 = vmatpush1.bf16.msra.mxu0 %v5353
        %5383 = vmatprep.subr.bf16.mxu0 0
        %5384 = vmatpush1.bf16.msra.mxu0 %v5352
        %5385 = vmatprep.subr.bf16.mxu0 0
        %5386 = vmatpush1.bf16.msra.mxu0 %v5351
        %5387 = vmatprep.subr.bf16.mxu0 0
        %5388 = vmatpush1.bf16.msra.mxu0 %v5350
        %5389 = vmatprep.subr.bf16.mxu0 0
        %5390 = vmatpush1.bf16.msra.mxu0 %v5349
        %5391 = vmatprep.subr.bf16.mxu0 0
        %5392 = vmatpush1.bf16.msra.mxu0 %v5348
        %5393 = vmatprep.subr.bf16.mxu0 0
        %5394 = vmatpush1.bf16.msra.mxu0 %v5347
        %5395 = vmatprep.subr.bf16.mxu0 0
        %5396 = vmatpush2.bf16.msra.mxu0 %v5362
        %5397 = vmatprep.subr.bf16.mxu0 0
        %5398 = vmatpush2.bf16.msra.mxu0 %v5361
        %5399 = vmatprep.subr.bf16.mxu0 0
        %5400 = vmatpush2.bf16.msra.mxu0 %v5360
        %5401 = vmatprep.subr.bf16.mxu0 0
        %5402 = vmatpush2.bf16.msra.mxu0 %v5359
        %5403 = vmatprep.subr.bf16.mxu0 0
        %5404 = vmatpush2.bf16.msra.mxu0 %v5358
        %5405 = vmatprep.subr.bf16.mxu0 0
        %5406 = vmatpush2.bf16.msra.mxu0 %v5357
        %5407 = vmatprep.subr.bf16.mxu0 0
        %5408 = vmatpush2.bf16.msra.mxu0 %v5356
        %5409 = vmatprep.subr.bf16.mxu0 0
        %5410 = vmatpush2.bf16.msra.mxu0 %v5355
        %5411 = vmatprep.mubr.bf16.mxu0 %v5250
        %5412 = vmatmul.mubr.bf16.gmra.mxu0 %v5249
        %v5413 = vpop.f32.mrf.mxu0
        %v5414 = vadd.f32 0.0, %v5413
        %v5415 = vpop.f32.mrf.mxu0
        %v5416 = vpop.f32.mrf.mxu0
        %v5417 = vpop.f32.mrf.mxu0
        %5418 = vdwg.mxu0
        %v5419 = vld [vmem:[%s21] sm:$0x1]
        %v5421 = vlaneseq
        %v5422 = vshrl.u32 %v5421, 7
        %v5423 = vsub.s32 0, %v5422
        %v5424 = vrot.slane %v5419, %v5423
        %v5426 = vadd.f32 %v5414, %v5424
        %vm5427 = vcmask 15360
        %5428 = vst.msk [vmem:[%s945] sm:$0xff] %vm5427, %v5426
        %p5429 = scmp.lt.s32.totalorder %s45, 1
        %s5430 = scalar_select %p5429, %s45, 1
        %s5431 = smul.addr %s5430, 8
        %s5432 = scalar_lea.vmem %s22, %s5431
        // Predicated region
        $region169: #{tpu_custom_call.1} parent=107 // pred_check
          %p5433 = pneg %p540
        $region170: #{tpu_custom_call.1} parent=107 // pred_check_branch
          %5435 = sbr.rel (%p5433) target = $region172
        $region171: #{tpu_custom_call.1} parent=107 // pred_region
          _
        $region172: #{tpu_custom_call.1} parent=107 // pred_fallthru
          _
      $region108: #{tpu_custom_call.1} parent=5 // pred_fallthru
        _
      %p5436 = scmp.le.s32.totalorder 2, %s40
      // Predicated region
      $region173: #{tpu_custom_call.1} parent=5 // pred_check
        %p5437 = pneg %p5436
      $region174: #{tpu_custom_call.1} parent=5 // pred_check_branch
        %5439 = sbr.rel (%p5437) target = $region176
      $region175: #{tpu_custom_call.1} parent=5 // pred_region
        %s5440 = ssub.s32 %s40, 2
        // Predicated region
        $region177: #{tpu_custom_call.1} parent=175 // pred_check
          %p5441 = pneg %p546
        $region178: #{tpu_custom_call.1} parent=175 // pred_check_branch
          %5443 = sbr.rel (%p5441) target = $region180
        $region179: #{tpu_custom_call.1} parent=175 // pred_region
          %p5444 = scmp.lt.s32.totalorder %s46, 1
          %s5445 = scalar_select %p5444, %s46, 1
          %s5446 = smul.addr %s5445, 8
          %s5447 = scalar_lea.vmem %s22, %s5446
        $region180: #{tpu_custom_call.1} parent=175 // pred_fallthru
          _
      $region176: #{tpu_custom_call.1} parent=5 // pred_fallthru
        _
    $region6: #{tpu_custom_call.1} parent=1 // loop_footer
      %s44 = sadd.s32 1, %s40
    $region7: #{tpu_custom_call.1} parent=1 // loop_footer_branch
      %39 = sbr.rel target = $region3
    $region8: #{tpu_custom_call.1} parent=1 // loop_exit
      _
    %5448 = vsyncpa [#allocation3], 1
    %s5449 = scalar_lea.sflag [#allocation3], 1
    %5450 = vsyncpa %s5449, 1
    %5451 = vsyncpa [#allocation5], 1
    %s5452 = scalar_lea.sflag [#allocation5], 1
    %5453 = vsyncpa %s5452, 1
    %5454 = vsyncpa [#allocation8], 1
    %5455 = vsyncpa [#allocation11], 1
    %5456 = vsyncpa [#allocation14], 1
    %5457 = vsyncpa [#allocation17], 1
    %5458 = vsyncpa [#allocation20], 1
    %5459 = vsyncpa [#allocation23], 1

</llo_original>
